<compile_context>
chip_gen: v7x
topology: tpu7x:2x2x1
jax: 0.10.0
libtpu: 0.0.40
codegen_flags: <defaults>
</compile_context>

<pallas_src>
import functools

import numpy as np

import jax
import jax.numpy as jnp
from jax import lax
from jax.experimental import pallas as pl
from jax.experimental.pallas import tpu as pltpu


# ============================================================================
# Kernel 1: fused TFCNN + TFCAP feature extractor (conv+pool+FC as 2 matmuls)
# ============================================================================
def _feature_kernel(x_ref, wconv_ref, bconv_ref, wpfc_ref, bfc_ref, o_ref):
    # x_ref    : [NB, H*W]       f32   raw frames, lane-dense
    # wconv_ref: [H*W, Ct*H*W]   bf16  3x3 conv (zero-pad baked in) as a matrix
    # bconv_ref: [1, Ct*H*W]     f32
    # wpfc_ref : [Ct*H*W, Dout]  bf16  avg-pool + both branch FCs, folded
    # bfc_ref  : [1, Dout]       f32
    # o_ref    : [NB, Dout]      bf16  seg_feats slab (lane-dense HBM write)
    x = x_ref[...].astype(jnp.bfloat16)
    a = jnp.dot(x, wconv_ref[...], preferred_element_type=jnp.float32)
    a = jnp.maximum(a + bconv_ref[...], 0.0)                 # conv bias + ReLU
    s = jnp.dot(a.astype(jnp.bfloat16), wpfc_ref[...],
                preferred_element_type=jnp.float32)          # pool + branch FCs
    s = jnp.maximum(s + bfc_ref[...], 0.0)
    o_ref[...] = s.astype(o_ref.dtype)


def _pick_frame_block(n, target=256):
    """Largest frame block <= target dividing n (M>=256 for the MXU on
    v6e/v7x when n is large, while staying well under v7x's VMEM budget)."""
    if n <= target:
        return n
    for nb in range(target, 7, -8):
        if n % nb == 0:
            return nb
    return n  # fallback: single block


def tfcn_cap_features(x2d, wconv, bconv, wpfc, bfc):
    """x2d: [N, H*W] f32  ->  seg_feats [N, Dout] bf16 (lane-dense)."""
    N, HW = x2d.shape
    Dconv = wconv.shape[1]
    Dout = wpfc.shape[1]
    NB = _pick_frame_block(N)
    return pl.pallas_call(
        _feature_kernel,
        out_shape=jax.ShapeDtypeStruct((N, Dout), jnp.bfloat16),
        grid=(N // NB,),
        in_specs=[
            pl.BlockSpec((NB, HW), lambda i: (i, 0)),
            pl.BlockSpec((HW, Dconv), lambda i: (0, 0)),
            pl.BlockSpec((1, Dconv), lambda i: (0, 0)),
            pl.BlockSpec((Dconv, Dout), lambda i: (0, 0)),
            pl.BlockSpec((1, Dout), lambda i: (0, 0)),
        ],
        out_specs=pl.BlockSpec((NB, Dout), lambda i: (i, 0)),
        compiler_params=pltpu.CompilerParams(
            dimension_semantics=("parallel",)),     # megacore-shardable (v7x)
    )(x2d, wconv, bconv, wpfc, bfc)


# ============================================================================
# Kernel 2: bidirectional LSTM + classifier head (fully fused)
# ============================================================================
def _lstm_cell(gates, c_prev, hidden):
    """Gates packed (i, f, o, g); sigmoids as exp + approx reciprocal (EUP)."""
    sg = pl.reciprocal(1.0 + jnp.exp(-gates[:, :3 * hidden]), approx=True)
    gg = jnp.tanh(gates[:, 3 * hidden:])
    c_new = sg[:, hidden:2 * hidden] * c_prev + sg[:, :hidden] * gg
    h_new = sg[:, 2 * hidden:3 * hidden] * jnp.tanh(c_new)
    return h_new, c_new


def _lstm_head_kernel(xpad_ref, wih_ref, ball_ref, whhf_ref,
                      wc1_ref, bc1_ref, wc2_ref, bc2_ref, o_ref, xg_ref, *,
                      hidden):
    t_max, Bs, D = xpad_ref.shape
    H4 = 4 * hidden

    # 1) Input projections + hoisted (ih+hh) gate biases for all timesteps and
    #    both directions in ONE lane-dense MXU matmul.  Padded frames are zero
    #    so their projection is exactly the bias (== nn.LSTM on a zero-padded,
    #    un-packed sequence).  Bs % 16 == 0, so the reshapes are layout no-ops.
    xg = jnp.dot(xpad_ref[...].reshape(t_max * Bs, D), wih_ref[...],
                 preferred_element_type=jnp.float32) + ball_ref[...]
    xg_ref[...] = xg.reshape(t_max, Bs, 2 * H4)

    whhf = whhf_ref[...]

    # 2) Forward recurrence: serial fori_loop, x_t read from the VMEM scratch.
    def fwd_body(t, carry):
        h, c = carry
        g = xg_ref[t][:, :H4] + jnp.dot(h.astype(jnp.bfloat16), whhf,
                                        preferred_element_type=jnp.float32)
        return _lstm_cell(g, c, hidden)

    h0 = jnp.zeros((Bs, hidden), jnp.float32)
    c0 = jnp.zeros((Bs, hidden), jnp.float32)
    h_fwd, _ = lax.fori_loop(0, t_max, fwd_body, (h0, c0))

    # 3) Backward direction: h_n[:, -1, :] only consumes the backward state
    #    after processing x_{t_max-1} from a zero state, so the recurrent
    #    contribution (0 @ W_hh_b) is exactly zero and is omitted.
    h_bwd, _ = _lstm_cell(xg_ref[t_max - 1][:, H4:], c0, hidden)

    rnn_out = jnp.concatenate([h_fwd, h_bwd], axis=1)               # [Bs, 2H]

    # 4) Classifier: Linear -> (Dropout = identity at inference) -> ReLU -> Linear.
    hid_a = jnp.dot(rnn_out.astype(jnp.bfloat16), wc1_ref[...],
                    preferred_element_type=jnp.float32) + bc1_ref[...]
    hid_a = jnp.maximum(hid_a, 0.0)
    logits = jnp.dot(hid_a.astype(jnp.bfloat16), wc2_ref[...],
                     preferred_element_type=jnp.float32) + bc2_ref[...]
    o_ref[...] = logits.astype(o_ref.dtype)


def lstm_head(xpad, lstm_p, head_p, *, hidden, n_classes):
    """xpad: [t_max, Pb, D] bf16 (batch already padded to a multiple of 16)."""
    t_max, Pb, D = xpad.shape
    shards = 2 if Pb % 32 == 0 else 1       # v7x: one batch shard per TensorCore
    Bs = Pb // shards
    H4 = 4 * hidden

    args = (xpad, lstm_p["wih"], lstm_p["b_all"], lstm_p["whh_f"],
            head_p["w1"], head_p["b1"], head_p["w2"], head_p["b2"])

    def full(a):
        return pl.BlockSpec(a.shape, lambda i, _nd=a.ndim: (0,) * _nd)

    return pl.pallas_call(
        functools.partial(_lstm_head_kernel, hidden=hidden),
        out_shape=jax.ShapeDtypeStruct((Pb, n_classes), jnp.float32),
        grid=(shards,),
        in_specs=[pl.BlockSpec((t_max, Bs, D), lambda i: (0, i, 0))] +
                 [full(a) for a in args[1:]],
        out_specs=pl.BlockSpec((Bs, n_classes), lambda i: (i, 0)),
        scratch_shapes=[pltpu.VMEM((t_max, Bs, 2 * H4), jnp.float32)],
        compiler_params=pltpu.CompilerParams(
            dimension_semantics=("parallel",)),
    )(*args)


# ============================================================================
# pad_sequence(torch.split(seg_feats, lengths), batch_first=True)
# as ONE vectorized masked XLA gather (time-major, batch padded to %16).
# ============================================================================
def pad_segments(seg_feats, lengths, t_max, batch_pad):
    B = lengths.shape[0]
    lens = jnp.zeros((batch_pad,), jnp.int32).at[:B].set(lengths.astype(jnp.int32))
    offs = jnp.cumsum(lens) - lens                       # start row per sequence
    t_ids = jnp.arange(t_max, dtype=jnp.int32)
    src = offs[None, :] + t_ids[:, None]                 # [t_max, Pb]
    valid = t_ids[:, None] < lens[None, :]
    src = jnp.where(valid, src, 0)
    g = jnp.take(seg_feats, src.reshape(-1), axis=0)
    g = g.reshape(t_max, batch_pad, seg_feats.shape[-1])
    return jnp.where(valid[..., None], g, jnp.zeros((), seg_feats.dtype))


# ============================================================================
# Model definition / one-time parameter baking
# ============================================================================
HP = dict(
    image_size=16,
    tfcnn=dict(conv_channels=8, out_size=64),
    tfcap=dict(conv_channels=8, out_size=64),
    lstm=dict(hidden_size=64),                 # bidirectional, batch_first
    classify=dict(hidden_size=64, dropout=0.1),
    classes_name=["neutral", "happy", "sad", "angry"],
)


def init_params(key, hp):
    """Random parameters in the native torch layouts."""
    ks = iter(jax.random.split(key, 32))
    w = lambda shape, s=0.1: (s * jax.random.normal(next(ks), shape)).astype(jnp.float32)
    H = hp["lstm"]["hidden_size"]
    D = hp["tfcnn"]["out_size"] + hp["tfcap"]["out_size"]
    hid = hp["classify"]["hidden_size"]
    ncls = len(hp["classes_name"])
    p = {}
    for name in ("tfcnn", "tfcap"):
        cc, outs = hp[name]["conv_channels"], hp[name]["out_size"]
        p[name] = dict(conv_w=w((cc, 1, 3, 3)), conv_b=w((cc,)),
                       fc_w=w((outs, cc)), fc_b=w((outs,)))
    p["lstm"] = {}
    for d in ("f", "b"):
        p["lstm"][d] = dict(w_ih=w((4 * H, D)), w_hh=w((4 * H, H)),
                            b_ih=w((4 * H,)), b_hh=w((4 * H,)))
    p["classify"] = dict(w1=w((hid, 2 * H)), b1=w((hid,)),
                         w2=w((ncls, hid)), b2=w((ncls,)))
    return p


def _conv_as_matrix(conv_w, H, W):
    """Conv2d(1->C, 3x3, padding=1) as a dense [H*W, C*H*W] matrix so that
    x[N, H*W] @ M is the conv output with lane index c*H*W + i*W + j
    (zero padding is baked in as structural zeros)."""
    conv_w = np.asarray(conv_w)
    C = conv_w.shape[0]
    M = np.zeros((H * W, C * H * W), np.float32)
    for c in range(C):
        for dh in range(3):
            for dw in range(3):
                i = np.arange(max(0, 1 - dh), min(H, H + 1 - dh))
                j = np.arange(max(0, 1 - dw), min(W, W + 1 - dw))
                ii, jj = np.meshgrid(i, j, indexing="ij")
                src = (ii + dh - 1) * W + (jj + dw - 1)
                dst = c * H * W + ii * W + jj
                M[src.ravel(), dst.ravel()] += conv_w[c, 0, dh, dw]
    return M


def _reorder_gates(m, H):
    """torch LSTM gate order (i, f, g, o) -> packed (i, f, o, g) along axis 0."""
    m = np.asarray(m)
    return np.concatenate([m[0:H], m[H:2 * H], m[3 * H:4 * H], m[2 * H:3 * H]],
                          axis=0)


def prepare_params(p, hp):
    """One-time layout baking (no per-call transpose/reshape/pad glue):
      * both branches' conv (incl. zero padding) folded into one dense
        [H*W, Ct*H*W] matrix; avg-pool + both branch FCs folded into one
        [Ct*H*W, Dout] matrix -> kernel 1 is two lane-dense MXU matmuls,
      * LSTM gates reordered (i,f,o,g) so the three sigmoid gates are one
        contiguous lane slab; ih+hh biases pre-summed (hoisted out of the loop),
      * every MXU operand pre-cast to bf16, biases kept f32."""
    f32, bf16 = jnp.float32, jnp.bfloat16
    S = hp["image_size"]
    HW = S * S
    Ca, Cb = hp["tfcnn"]["conv_channels"], hp["tfcap"]["conv_channels"]
    oa, ob = hp["tfcnn"]["out_size"], hp["tfcap"]["out_size"]
    Ct, Dout = Ca + Cb, oa + ob

    # --- feature extractor -------------------------------------------------
    wconv = np.concatenate([_conv_as_matrix(p["tfcnn"]["conv_w"], S, S),
                            _conv_as_matrix(p["tfcap"]["conv_w"], S, S)], axis=1)
    bconv = np.concatenate([np.repeat(np.asarray(p["tfcnn"]["conv_b"]), HW),
                            np.repeat(np.asarray(p["tfcap"]["conv_b"]), HW)])
    wfc_bd = np.zeros((Ct, Dout), np.float32)           # block-diag branch FCs
    wfc_bd[:Ca, :oa] = np.asarray(p["tfcnn"]["fc_w"]).T
    wfc_bd[Ca:, oa:] = np.asarray(p["tfcap"]["fc_w"]).T
    wpfc = np.repeat(wfc_bd, HW, axis=0) / float(HW)    # avg-pool folded in
    bfc = np.concatenate([np.asarray(p["tfcnn"]["fc_b"]),
                          np.asarray(p["tfcap"]["fc_b"])])
    feature = dict(
        wconv=jnp.asarray(wconv, bf16),
        bconv=jnp.asarray(bconv, f32).reshape(1, Ct * HW),
        wpfc=jnp.asarray(wpfc, bf16),
        bfc=jnp.asarray(bfc, f32).reshape(1, Dout),
    )

    # --- bidirectional LSTM -------------------------------------------------
    H = hp["lstm"]["hidden_size"]
    lf, lb = p["lstm"]["f"], p["lstm"]["b"]
    wih = np.concatenate([_reorder_gates(lf["w_ih"], H).T,
                          _reorder_gates(lb["w_ih"], H).T], axis=1)   # [D, 8H]
    b_all = np.concatenate([
        _reorder_gates(np.asarray(lf["b_ih"]) + np.asarray(lf["b_hh"]), H),
        _reorder_gates(np.asarray(lb["b_ih"]) + np.asarray(lb["b_hh"]), H)])
    lstm = dict(
        wih=jnp.asarray(wih, bf16),
        b_all=jnp.asarray(b_all, f32).reshape(1, 8 * H),
        whh_f=jnp.asarray(_reorder_gates(lf["w_hh"], H).T, bf16),     # [H, 4H]
        # NOTE: under the h_n[:, -1, :] readout the backward direction only
        # ever sees a zero recurrent state, so w_hh_b cannot affect the output.
    )

    # --- classifier head ------------------------------------------------------
    c = p["classify"]
    classify = dict(
        w1=jnp.asarray(np.asarray(c["w1"]).T, bf16),
        b1=jnp.asarray(c["b1"], f32).reshape(1, -1),
        w2=jnp.asarray(np.asarray(c["w2"]).T, bf16),
        b2=jnp.asarray(c["b2"], f32).reshape(1, -1),
    )
    return dict(feature=feature, lstm=lstm, classify=classify)


# ============================================================================
# Forward pass (mirrors TFCNCAP_LSTM.forward, inference)
# ============================================================================
def tfcncap_lstm_forward(params, spectrograms, lengths, *, hp, t_max):
    """spectrograms: [N, 1, H, W] f32 (N = total frames over all utterances)
       lengths     : [B] int32 (dynamic values; only B and t_max are static)
       t_max       : static, must equal max(lengths)."""
    log = {}
    N = spectrograms.shape[0]
    hw = hp["image_size"] * hp["image_size"]
    x2d = spectrograms.reshape(N, hw)            # free reshape; lane-dense DMA
    fp = params["feature"]
    seg_feats = tfcn_cap_features(x2d, fp["wconv"], fp["bconv"],
                                  fp["wpfc"], fp["bfc"])          # [N,128] bf16

    B = lengths.shape[0]
    batch_pad = ((B + 15) // 16) * 16
    xpad = pad_segments(seg_feats, lengths, t_max, batch_pad)     # [t,Pb,128]
    logits = lstm_head(xpad, params["lstm"], params["classify"],
                       hidden=hp["lstm"]["hidden_size"],
                       n_classes=len(hp["classes_name"]))         # [Pb, ncls]
    return logits[:B], log


if __name__ == "__main__":
    key = jax.random.PRNGKey(0)
    k_param, k_data = jax.random.split(key)

    params = prepare_params(init_params(k_param, HP), HP)

    # Two utterances of 6 and 10 spectrogram frames -> 16 [1, 16, 16] images.
    lengths = jnp.array([6, 10], dtype=jnp.int32)
    t_max = 10                                    # static max utterance length
    n_total = 16
    spectrograms = jax.random.normal(
        k_data, (n_total, 1, HP["image_size"], HP["image_size"]), jnp.float32)

    fwd = jax.jit(functools.partial(tfcncap_lstm_forward, hp=HP, t_max=t_max))
    out, log = fwd(params, spectrograms, lengths)
    out = jax.block_until_ready(out)

    assert out.shape == (2, len(HP["classes_name"]))
    assert bool(jnp.all(jnp.isfinite(out)))
    print("KERNEL_OK")
</pallas_src>

<mosaic_0001>
module attributes {stable_mosaic.version = 11 : i64} {
  func.func @_feature_kernel(%arg0: i32, %arg1: memref<16x256xf32, #tpu.memory_space<vmem>>, %arg2: memref<256x4096xbf16, #tpu.memory_space<vmem>>, %arg3: memref<1x4096xf32, #tpu.memory_space<vmem>>, %arg4: memref<4096x128xbf16, #tpu.memory_space<vmem>>, %arg5: memref<1x128xf32, #tpu.memory_space<vmem>>, %arg6: memref<16x128xbf16, #tpu.memory_space<vmem>>) attributes {dimension_semantics = [#tpu.dimension_semantics<parallel>], iteration_bounds = array<i64: 1>, scalar_prefetch = 0 : i64, scratch_operands = 0 : i64, tpu.core_type = #tpu.core_type<tc>, window_params = [{transform_indices = @transform_0, window_bounds = array<i64: 16, 256>}, {pipeline_mode = #tpu.pipeline_mode<synchronous>, transform_indices = @transform_1, window_bounds = array<i64: 256, 4096>}, {pipeline_mode = #tpu.pipeline_mode<synchronous>, transform_indices = @transform_2, window_bounds = array<i64: 1, 4096>}, {pipeline_mode = #tpu.pipeline_mode<synchronous>, transform_indices = @transform_3, window_bounds = array<i64: 4096, 128>}, {pipeline_mode = #tpu.pipeline_mode<synchronous>, transform_indices = @transform_4, window_bounds = array<i64: 1, 128>}, {transform_indices = @transform_5, window_bounds = array<i64: 16, 128>}]} {
    %c0 = arith.constant 0 : index
    %c0_0 = arith.constant 0 : index
    %0 = vector.load %arg1[%c0, %c0_0] : memref<16x256xf32, #tpu.memory_space<vmem>>, vector<16x256xf32>
    %1 = arith.truncf %0 : vector<16x256xf32> to vector<16x256xbf16>
    %c0_1 = arith.constant 0 : index
    %c0_2 = arith.constant 0 : index
    %2 = vector.load %arg2[%c0_1, %c0_2] : memref<256x4096xbf16, #tpu.memory_space<vmem>>, vector<256x4096xbf16>
    %cst = arith.constant dense<0.000000e+00> : vector<16x4096xf32>
    %3 = tpu.matmul %1, %2, %cst {dimension_numbers = #tpu.dot_dimension_numbers<[1], [0], [0], [1], [0, 0, 1, 1], [], []>} : vector<16x256xbf16>, vector<256x4096xbf16>, vector<16x4096xf32> -> vector<16x4096xf32>
    %c0_3 = arith.constant 0 : index
    %c0_4 = arith.constant 0 : index
    %4 = vector.load %arg3[%c0_3, %c0_4] : memref<1x4096xf32, #tpu.memory_space<vmem>>, vector<1x4096xf32>
    %5 = vector.broadcast %4 : vector<1x4096xf32> to vector<16x4096xf32>
    %6 = arith.addf %3, %5 : vector<16x4096xf32>
    %cst_5 = arith.constant 0.000000e+00 : f32
    %7 = vector.broadcast %cst_5 : f32 to vector<16x4096xf32>
    %8 = arith.maximumf %6, %7 : vector<16x4096xf32>
    %9 = arith.truncf %8 : vector<16x4096xf32> to vector<16x4096xbf16>
    %c0_6 = arith.constant 0 : index
    %c0_7 = arith.constant 0 : index
    %10 = vector.load %arg4[%c0_6, %c0_7] : memref<4096x128xbf16, #tpu.memory_space<vmem>>, vector<4096x128xbf16>
    %cst_8 = arith.constant dense<0.000000e+00> : vector<16x128xf32>
    %11 = tpu.matmul %9, %10, %cst_8 {dimension_numbers = #tpu.dot_dimension_numbers<[1], [0], [0], [1], [0, 0, 1, 1], [], []>} : vector<16x4096xbf16>, vector<4096x128xbf16>, vector<16x128xf32> -> vector<16x128xf32>
    %c0_9 = arith.constant 0 : index
    %c0_10 = arith.constant 0 : index
    %12 = vector.load %arg5[%c0_9, %c0_10] : memref<1x128xf32, #tpu.memory_space<vmem>>, vector<1x128xf32>
    %13 = vector.broadcast %12 : vector<1x128xf32> to vector<16x128xf32>
    %14 = arith.addf %11, %13 : vector<16x128xf32>
    %cst_11 = arith.constant 0.000000e+00 : f32
    %15 = vector.broadcast %cst_11 : f32 to vector<16x128xf32>
    %16 = arith.maximumf %14, %15 : vector<16x128xf32>
    %17 = arith.truncf %16 : vector<16x128xf32> to vector<16x128xbf16>
    %c0_12 = arith.constant 0 : index
    %c0_13 = arith.constant 0 : index
    %18 = vector.load %arg6[%c0_12, %c0_13] : memref<16x128xbf16, #tpu.memory_space<vmem>>, vector<16x128xbf16>
    tpu.vector_store %arg6[%c0_12, %c0_13], %17 {strides = array<i32>} : memref<16x128xbf16, #tpu.memory_space<vmem>>, vector<16x128xbf16>,
    return
  }
  func.func @transform_0(%arg0: i32) -> (i32, i32) {
    %c0_i32 = arith.constant 0 : i32
    %c0_i32_0 = arith.constant 0 : i32
    return %arg0, %c0_i32 : i32, i32
  }
  func.func @transform_1(%arg0: i32) -> (i32, i32) {
    %c0_i32 = arith.constant 0 : i32
    %c0_i32_0 = arith.constant 0 : i32
    %c0_i32_1 = arith.constant 0 : i32
    return %c0_i32, %c0_i32_0 : i32, i32
  }
  func.func @transform_2(%arg0: i32) -> (i32, i32) {
    %c0_i32 = arith.constant 0 : i32
    %c0_i32_0 = arith.constant 0 : i32
    %c0_i32_1 = arith.constant 0 : i32
    return %c0_i32, %c0_i32_0 : i32, i32
  }
  func.func @transform_3(%arg0: i32) -> (i32, i32) {
    %c0_i32 = arith.constant 0 : i32
    %c0_i32_0 = arith.constant 0 : i32
    %c0_i32_1 = arith.constant 0 : i32
    return %c0_i32, %c0_i32_0 : i32, i32
  }
  func.func @transform_4(%arg0: i32) -> (i32, i32) {
    %c0_i32 = arith.constant 0 : i32
    %c0_i32_0 = arith.constant 0 : i32
    %c0_i32_1 = arith.constant 0 : i32
    return %c0_i32, %c0_i32_0 : i32, i32
  }
  func.func @transform_5(%arg0: i32) -> (i32, i32) {
    %c0_i32 = arith.constant 0 : i32
    %c0_i32_0 = arith.constant 0 : i32
    return %arg0, %c0_i32 : i32, i32
  }
}

module attributes {stable_mosaic.version = 11 : i64} {
  func.func @_lstm_head_kernel(%arg0: i32, %arg1: memref<10x16x128xbf16, #tpu.memory_space<vmem>>, %arg2: memref<128x512xbf16, #tpu.memory_space<vmem>>, %arg3: memref<1x512xf32, #tpu.memory_space<vmem>>, %arg4: memref<64x256xbf16, #tpu.memory_space<vmem>>, %arg5: memref<128x64xbf16, #tpu.memory_space<vmem>>, %arg6: memref<1x64xf32, #tpu.memory_space<vmem>>, %arg7: memref<64x4xbf16, #tpu.memory_space<vmem>>, %arg8: memref<1x4xf32, #tpu.memory_space<vmem>>, %arg9: memref<16x4xf32, #tpu.memory_space<vmem>>, %arg10: memref<10x16x512xf32, #tpu.memory_space<vmem>>) attributes {dimension_semantics = [#tpu.dimension_semantics<parallel>], iteration_bounds = array<i64: 1>, scalar_prefetch = 0 : i64, scratch_operands = 1 : i64, tpu.core_type = #tpu.core_type<tc>, window_params = [{transform_indices = @transform_0, window_bounds = array<i64: 10, 16, 128>}, {pipeline_mode = #tpu.pipeline_mode<synchronous>, transform_indices = @transform_1, window_bounds = array<i64: 128, 512>}, {pipeline_mode = #tpu.pipeline_mode<synchronous>, transform_indices = @transform_2, window_bounds = array<i64: 1, 512>}, {pipeline_mode = #tpu.pipeline_mode<synchronous>, transform_indices = @transform_3, window_bounds = array<i64: 64, 256>}, {pipeline_mode = #tpu.pipeline_mode<synchronous>, transform_indices = @transform_4, window_bounds = array<i64: 128, 64>}, {pipeline_mode = #tpu.pipeline_mode<synchronous>, transform_indices = @transform_5, window_bounds = array<i64: 1, 64>}, {pipeline_mode = #tpu.pipeline_mode<synchronous>, transform_indices = @transform_6, window_bounds = array<i64: 64, 4>}, {pipeline_mode = #tpu.pipeline_mode<synchronous>, transform_indices = @transform_7, window_bounds = array<i64: 1, 4>}, {transform_indices = @transform_8, window_bounds = array<i64: 16, 4>}]} {
    %c0 = arith.constant 0 : index
    %c0_0 = arith.constant 0 : index
    %c0_1 = arith.constant 0 : index
    %0 = vector.load %arg1[%c0, %c0_0, %c0_1] : memref<10x16x128xbf16, #tpu.memory_space<vmem>>, vector<10x16x128xbf16>
    %1 = vector.shape_cast %0 : vector<10x16x128xbf16> to vector<160x128xbf16>
    %c0_2 = arith.constant 0 : index
    %c0_3 = arith.constant 0 : index
    %2 = vector.load %arg2[%c0_2, %c0_3] : memref<128x512xbf16, #tpu.memory_space<vmem>>, vector<128x512xbf16>
    %cst = arith.constant dense<0.000000e+00> : vector<160x512xf32>
    %3 = tpu.matmul %1, %2, %cst {dimension_numbers = #tpu.dot_dimension_numbers<[1], [0], [0], [1], [0, 0, 1, 1], [], []>} : vector<160x128xbf16>, vector<128x512xbf16>, vector<160x512xf32> -> vector<160x512xf32>
    %c0_4 = arith.constant 0 : index
    %c0_5 = arith.constant 0 : index
    %4 = vector.load %arg3[%c0_4, %c0_5] : memref<1x512xf32, #tpu.memory_space<vmem>>, vector<1x512xf32>
    %5 = vector.broadcast %4 : vector<1x512xf32> to vector<160x512xf32>
    %6 = arith.addf %3, %5 : vector<160x512xf32>
    %7 = vector.shape_cast %6 : vector<160x512xf32> to vector<10x16x512xf32>
    %c0_6 = arith.constant 0 : index
    %c0_7 = arith.constant 0 : index
    %c0_8 = arith.constant 0 : index
    %8 = vector.load %arg10[%c0_6, %c0_7, %c0_8] : memref<10x16x512xf32, #tpu.memory_space<vmem>>, vector<10x16x512xf32>
    tpu.vector_store %arg10[%c0_6, %c0_7, %c0_8], %7 {strides = array<i32>} : memref<10x16x512xf32, #tpu.memory_space<vmem>>, vector<10x16x512xf32>,
    %c0_9 = arith.constant 0 : index
    %c0_10 = arith.constant 0 : index
    %9 = vector.load %arg4[%c0_9, %c0_10] : memref<64x256xbf16, #tpu.memory_space<vmem>>, vector<64x256xbf16>
    %cst_11 = arith.constant 0.000000e+00 : f32
    %10 = vector.broadcast %cst_11 : f32 to vector<16x64xf32>
    %cst_12 = arith.constant 0.000000e+00 : f32
    %11 = vector.broadcast %cst_12 : f32 to vector<16x64xf32>
    %c0_i32 = arith.constant 0 : i32
    %c10_i32 = arith.constant 10 : i32
    %12 = arith.addi %c0_i32, %c10_i32 : i32
    %c1_i32 = arith.constant 1 : i32
    %13:2 = scf.for %arg11 = %c0_i32 to %12 step %c1_i32 iter_args(%arg12 = %10, %arg13 = %11) -> (vector<16x64xf32>, vector<16x64xf32>)  : i32 {
      %50 = arith.index_cast %arg11 : i32 to index
      %c0_31 = arith.constant 0 : index
      %c0_32 = arith.constant 0 : index
      %51 = vector.load %arg10[%50, %c0_31, %c0_32] : memref<10x16x512xf32, #tpu.memory_space<vmem>>, vector<1x16x512xf32>
      %52 = vector.shape_cast %51 : vector<1x16x512xf32> to vector<16x512xf32>
      %53 = vector.extract_strided_slice %52 {offsets = [0, 0], sizes = [16, 256], strides = [1, 1]} : vector<16x512xf32> to vector<16x256xf32>
      %54 = arith.truncf %arg12 : vector<16x64xf32> to vector<16x64xbf16>
      %cst_33 = arith.constant dense<0.000000e+00> : vector<16x256xf32>
      %55 = tpu.matmul %54, %9, %cst_33 {dimension_numbers = #tpu.dot_dimension_numbers<[1], [0], [0], [1], [0, 0, 1, 1], [], []>} : vector<16x64xbf16>, vector<64x256xbf16>, vector<16x256xf32> -> vector<16x256xf32>
      %56 = arith.addf %53, %55 : vector<16x256xf32>
      %57 = vector.extract_strided_slice %56 {offsets = [0, 0], sizes = [16, 192], strides = [1, 1]} : vector<16x256xf32> to vector<16x192xf32>
      %cst_34 = arith.constant 0.000000e+00 : f32
      %58 = vector.broadcast %cst_34 : f32 to vector<16x192xf32>
      %59 = arith.subf %58, %57 : vector<16x192xf32>
      %60 = math.exp %59 : vector<16x192xf32>
      %cst_35 = arith.constant 1.000000e+00 : f32
      %61 = vector.broadcast %cst_35 : f32 to vector<16x192xf32>
      %62 = arith.addf %61, %60 : vector<16x192xf32>
      %63 = tpu.reciprocal %62 {approx = true} : vector<16x192xf32> -> vector<16x192xf32>
      %64 = vector.extract_strided_slice %56 {offsets = [0, 192], sizes = [16, 64], strides = [1, 1]} : vector<16x256xf32> to vector<16x64xf32>
      %65 = math.tanh %64 : vector<16x64xf32>
      %66 = vector.extract_strided_slice %63 {offsets = [0, 64], sizes = [16, 64], strides = [1, 1]} : vector<16x192xf32> to vector<16x64xf32>
      %67 = arith.mulf %66, %arg13 : vector<16x64xf32>
      %68 = vector.extract_strided_slice %63 {offsets = [0, 0], sizes = [16, 64], strides = [1, 1]} : vector<16x192xf32> to vector<16x64xf32>
      %69 = arith.mulf %68, %65 : vector<16x64xf32>
      %70 = arith.addf %67, %69 : vector<16x64xf32>
      %71 = vector.extract_strided_slice %63 {offsets = [0, 128], sizes = [16, 64], strides = [1, 1]} : vector<16x192xf32> to vector<16x64xf32>
      %72 = math.tanh %70 : vector<16x64xf32>
      %73 = arith.mulf %71, %72 : vector<16x64xf32>
      scf.yield %73, %70 : vector<16x64xf32>, vector<16x64xf32>
    }
    %c10_i32_13 = arith.constant 10 : i32
    %c9 = arith.constant 9 : index
    %c0_14 = arith.constant 0 : index
    %c0_15 = arith.constant 0 : index
    %14 = vector.load %arg10[%c9, %c0_14, %c0_15] : memref<10x16x512xf32, #tpu.memory_space<vmem>>, vector<1x16x512xf32>
    %15 = vector.shape_cast %14 : vector<1x16x512xf32> to vector<16x512xf32>
    %16 = vector.extract_strided_slice %15 {offsets = [0, 256], sizes = [16, 256], strides = [1, 1]} : vector<16x512xf32> to vector<16x256xf32>
    %17 = vector.extract_strided_slice %16 {offsets = [0, 0], sizes = [16, 192], strides = [1, 1]} : vector<16x256xf32> to vector<16x192xf32>
    %cst_16 = arith.constant 0.000000e+00 : f32
    %18 = vector.broadcast %cst_16 : f32 to vector<16x192xf32>
    %19 = arith.subf %18, %17 : vector<16x192xf32>
    %20 = math.exp %19 : vector<16x192xf32>
    %cst_17 = arith.constant 1.000000e+00 : f32
    %21 = vector.broadcast %cst_17 : f32 to vector<16x192xf32>
    %22 = arith.addf %21, %20 : vector<16x192xf32>
    %23 = tpu.reciprocal %22 {approx = true} : vector<16x192xf32> -> vector<16x192xf32>
    %24 = vector.extract_strided_slice %16 {offsets = [0, 192], sizes = [16, 64], strides = [1, 1]} : vector<16x256xf32> to vector<16x64xf32>
    %25 = math.tanh %24 : vector<16x64xf32>
    %26 = vector.extract_strided_slice %23 {offsets = [0, 64], sizes = [16, 64], strides = [1, 1]} : vector<16x192xf32> to vector<16x64xf32>
    %27 = arith.mulf %26, %11 : vector<16x64xf32>
    %28 = vector.extract_strided_slice %23 {offsets = [0, 0], sizes = [16, 64], strides = [1, 1]} : vector<16x192xf32> to vector<16x64xf32>
    %29 = arith.mulf %28, %25 : vector<16x64xf32>
    %30 = arith.addf %27, %29 : vector<16x64xf32>
    %31 = vector.extract_strided_slice %23 {offsets = [0, 128], sizes = [16, 64], strides = [1, 1]} : vector<16x192xf32> to vector<16x64xf32>
    %32 = math.tanh %30 : vector<16x64xf32>
    %33 = arith.mulf %31, %32 : vector<16x64xf32>
    %34 = tpu.concatenate %13#0, %33 in 1 : vector<16x64xf32>, vector<16x64xf32> -> vector<16x128xf32>
    %35 = arith.truncf %34 : vector<16x128xf32> to vector<16x128xbf16>
    %c0_18 = arith.constant 0 : index
    %c0_19 = arith.constant 0 : index
    %36 = vector.load %arg5[%c0_18, %c0_19] : memref<128x64xbf16, #tpu.memory_space<vmem>>, vector<128x64xbf16>
    %cst_20 = arith.constant dense<0.000000e+00> : vector<16x64xf32>
    %37 = tpu.matmul %35, %36, %cst_20 {dimension_numbers = #tpu.dot_dimension_numbers<[1], [0], [0], [1], [0, 0, 1, 1], [], []>} : vector<16x128xbf16>, vector<128x64xbf16>, vector<16x64xf32> -> vector<16x64xf32>
    %c0_21 = arith.constant 0 : index
    %c0_22 = arith.constant 0 : index
    %38 = vector.load %arg6[%c0_21, %c0_22] : memref<1x64xf32, #tpu.memory_space<vmem>>, vector<1x64xf32>
    %39 = vector.broadcast %38 : vector<1x64xf32> to vector<16x64xf32>
    %40 = arith.addf %37, %39 : vector<16x64xf32>
    %cst_23 = arith.constant 0.000000e+00 : f32
    %41 = vector.broadcast %cst_23 : f32 to vector<16x64xf32>
    %42 = arith.maximumf %40, %41 : vector<16x64xf32>
    %43 = arith.truncf %42 : vector<16x64xf32> to vector<16x64xbf16>
    %c0_24 = arith.constant 0 : index
    %c0_25 = arith.constant 0 : index
    %44 = vector.load %arg7[%c0_24, %c0_25] : memref<64x4xbf16, #tpu.memory_space<vmem>>, vector<64x4xbf16>
    %cst_26 = arith.constant dense<0.000000e+00> : vector<16x4xf32>
    %45 = tpu.matmul %43, %44, %cst_26 {dimension_numbers = #tpu.dot_dimension_numbers<[1], [0], [0], [1], [0, 0, 1, 1], [], []>} : vector<16x64xbf16>, vector<64x4xbf16>, vector<16x4xf32> -> vector<16x4xf32>
    %c0_27 = arith.constant 0 : index
    %c0_28 = arith.constant 0 : index
    %46 = vector.load %arg8[%c0_27, %c0_28] : memref<1x4xf32, #tpu.memory_space<vmem>>, vector<1x4xf32>
    %47 = vector.broadcast %46 : vector<1x4xf32> to vector<16x4xf32>
    %48 = arith.addf %45, %47 : vector<16x4xf32>
    %c0_29 = arith.constant 0 : index
    %c0_30 = arith.constant 0 : index
    %49 = vector.load %arg9[%c0_29, %c0_30] : memref<16x4xf32, #tpu.memory_space<vmem>>, vector<16x4xf32>
    tpu.vector_store %arg9[%c0_29, %c0_30], %48 {strides = array<i32>} : memref<16x4xf32, #tpu.memory_space<vmem>>, vector<16x4xf32>,
    return
  }
  func.func @transform_0(%arg0: i32) -> (i32, i32, i32) {
    %c0_i32 = arith.constant 0 : i32
    %c0_i32_0 = arith.constant 0 : i32
    %c0_i32_1 = arith.constant 0 : i32
    return %c0_i32, %arg0, %c0_i32_0 : i32, i32, i32
  }
  func.func @transform_1(%arg0: i32) -> (i32, i32) {
    %c0_i32 = arith.constant 0 : i32
    %c0_i32_0 = arith.constant 0 : i32
    %c0_i32_1 = arith.constant 0 : i32
    return %c0_i32, %c0_i32_0 : i32, i32
  }
  func.func @transform_2(%arg0: i32) -> (i32, i32) {
    %c0_i32 = arith.constant 0 : i32
    %c0_i32_0 = arith.constant 0 : i32
    %c0_i32_1 = arith.constant 0 : i32
    return %c0_i32, %c0_i32_0 : i32, i32
  }
  func.func @transform_3(%arg0: i32) -> (i32, i32) {
    %c0_i32 = arith.constant 0 : i32
    %c0_i32_0 = arith.constant 0 : i32
    %c0_i32_1 = arith.constant 0 : i32
    return %c0_i32, %c0_i32_0 : i32, i32
  }
  func.func @transform_4(%arg0: i32) -> (i32, i32) {
    %c0_i32 = arith.constant 0 : i32
    %c0_i32_0 = arith.constant 0 : i32
    %c0_i32_1 = arith.constant 0 : i32
    return %c0_i32, %c0_i32_0 : i32, i32
  }
  func.func @transform_5(%arg0: i32) -> (i32, i32) {
    %c0_i32 = arith.constant 0 : i32
    %c0_i32_0 = arith.constant 0 : i32
    %c0_i32_1 = arith.constant 0 : i32
    return %c0_i32, %c0_i32_0 : i32, i32
  }
  func.func @transform_6(%arg0: i32) -> (i32, i32) {
    %c0_i32 = arith.constant 0 : i32
    %c0_i32_0 = arith.constant 0 : i32
    %c0_i32_1 = arith.constant 0 : i32
    return %c0_i32, %c0_i32_0 : i32, i32
  }
  func.func @transform_7(%arg0: i32) -> (i32, i32) {
    %c0_i32 = arith.constant 0 : i32
    %c0_i32_0 = arith.constant 0 : i32
    %c0_i32_1 = arith.constant 0 : i32
    return %c0_i32, %c0_i32_0 : i32, i32
  }
  func.func @transform_8(%arg0: i32) -> (i32, i32) {
    %c0_i32 = arith.constant 0 : i32
    %c0_i32_0 = arith.constant 0 : i32
    return %arg0, %c0_i32 : i32, i32
  }
}

</mosaic_0001>

<llo_original>
// kernel: tfcncap_lstm_forward.3
$region0: #{tfcncap_lstm_forward.3}
  #allocation0 [shape = 'u32[]', space=smem, size = 0x4, offset = 0x4, fixed_abs, tag = 'smem constant byte address 0x4 - core index']
  #allocation1 [shape = 'u32[144,128]{1,0:T(1,128)}', space=vmem, size = 0x12000, scoped, tag = 'internal scratch']
  #allocation2 [shape = 'f32[10,16,512]{2,1,0:T(8,128)}', space=vmem, size = 0x50000, scoped, tag = 'scratch operand']
  %s0 = inlined_call_operand.vmem [shape: bf16[10,16,128], index: 0, kind: input, shape index: {}]
  %s1 = inlined_call_operand.vmem [shape: bf16[128,512], index: 1, kind: input, shape index: {}]
  %s2 = inlined_call_operand.vmem [shape: f32[1,512], index: 2, kind: input, shape index: {}]
  %s3 = inlined_call_operand.vmem [shape: bf16[64,256], index: 3, kind: input, shape index: {}]
  %s4 = inlined_call_operand.vmem [shape: bf16[128,64], index: 4, kind: input, shape index: {}]
  %s5 = inlined_call_operand.vmem [shape: f32[1,64], index: 5, kind: input, shape index: {}]
  %s6 = inlined_call_operand.vmem [shape: bf16[64,4], index: 6, kind: input, shape index: {}]
  %s7 = inlined_call_operand.vmem [shape: f32[1,4], index: 7, kind: input, shape index: {}]
  %s8 = inlined_call_operand.vmem [shape: f32[16,4], index: 8, kind: output, shape index: {}]
  %s9 = sld [smem:[#allocation0]]
  $region49: #{tfcncap_lstm_forward.3} parent=0
    _
  %s11 = ssub.s32 1, %s9
  %s12 = scalar_select 0, %s11, %s9
  // Predicated region
  $region2: #{tfcncap_lstm_forward.3} parent=0 // pred_check
    _
  $region3: #{tfcncap_lstm_forward.3} parent=0 // pred_check_branch
    %14 = sbr.rel (0) target = $region5
  $region4: #{tfcncap_lstm_forward.3} parent=0 // pred_region
    _
  $region5: #{tfcncap_lstm_forward.3} parent=0 // pred_fallthru
    _
  // Predicated region
  $region6: #{tfcncap_lstm_forward.3} parent=0 // pred_check
    _
  $region7: #{tfcncap_lstm_forward.3} parent=0 // pred_check_branch
    %16 = sbr.rel (0) target = $region9
  $region8: #{tfcncap_lstm_forward.3} parent=0 // pred_region
    _
  $region9: #{tfcncap_lstm_forward.3} parent=0 // pred_fallthru
    _
  // Predicated region
  $region10: #{tfcncap_lstm_forward.3} parent=0 // pred_check
    _
  $region11: #{tfcncap_lstm_forward.3} parent=0 // pred_check_branch
    %18 = sbr.rel (0) target = $region13
  $region12: #{tfcncap_lstm_forward.3} parent=0 // pred_region
    _
  $region13: #{tfcncap_lstm_forward.3} parent=0 // pred_fallthru
    _
  // Predicated region
  $region14: #{tfcncap_lstm_forward.3} parent=0 // pred_check
    _
  $region15: #{tfcncap_lstm_forward.3} parent=0 // pred_check_branch
    %20 = sbr.rel (0) target = $region17
  $region16: #{tfcncap_lstm_forward.3} parent=0 // pred_region
    _
  $region17: #{tfcncap_lstm_forward.3} parent=0 // pred_fallthru
    _
  // Predicated region
  $region18: #{tfcncap_lstm_forward.3} parent=0 // pred_check
    _
  $region19: #{tfcncap_lstm_forward.3} parent=0 // pred_check_branch
    %22 = sbr.rel (0) target = $region21
  $region20: #{tfcncap_lstm_forward.3} parent=0 // pred_region
    _
  $region21: #{tfcncap_lstm_forward.3} parent=0 // pred_fallthru
    _
  // Predicated region
  $region22: #{tfcncap_lstm_forward.3} parent=0 // pred_check
    _
  $region23: #{tfcncap_lstm_forward.3} parent=0 // pred_check_branch
    %24 = sbr.rel (0) target = $region25
  $region24: #{tfcncap_lstm_forward.3} parent=0 // pred_region
    _
  $region25: #{tfcncap_lstm_forward.3} parent=0 // pred_fallthru
    _
  // Predicated region
  $region26: #{tfcncap_lstm_forward.3} parent=0 // pred_check
    _
  $region27: #{tfcncap_lstm_forward.3} parent=0 // pred_check_branch
    %26 = sbr.rel (0) target = $region29
  $region28: #{tfcncap_lstm_forward.3} parent=0 // pred_region
    _
  $region29: #{tfcncap_lstm_forward.3} parent=0 // pred_fallthru
    _
  // Predicated region
  $region30: #{tfcncap_lstm_forward.3} parent=0 // pred_check
    _
  $region31: #{tfcncap_lstm_forward.3} parent=0 // pred_check_branch
    %28 = sbr.rel (0) target = $region33
  $region32: #{tfcncap_lstm_forward.3} parent=0 // pred_region
    _
  $region33: #{tfcncap_lstm_forward.3} parent=0 // pred_fallthru
    _
  %v30 = vld [vmem:[%s0] sm:$0xf]
  %v31 = vld [vmem:[%s0 + $0x4] sm:$0xf]
  %v32 = vld [vmem:[%s0 + $0x8] sm:$0xf]
  %v33 = vld [vmem:[%s0 + $0xc] sm:$0xf]
  %v34 = vld [vmem:[%s0 + $0x10] sm:$0xf]
  %v35 = vld [vmem:[%s0 + $0x14] sm:$0xf]
  %v36 = vld [vmem:[%s0 + $0x18] sm:$0xf]
  %v37 = vld [vmem:[%s0 + $0x1c] sm:$0xf]
  %v38 = vld [vmem:[%s0 + $0x20] sm:$0xf]
  %v39 = vld [vmem:[%s0 + $0x24] sm:$0xf]
  %v40 = vld [vmem:[%s0 + $0x28] sm:$0xf]
  %v41 = vld [vmem:[%s0 + $0x2c] sm:$0xf]
  %v42 = vld [vmem:[%s0 + $0x30] sm:$0xf]
  %v43 = vld [vmem:[%s0 + $0x34] sm:$0xf]
  %v44 = vld [vmem:[%s0 + $0x38] sm:$0xf]
  %v45 = vld [vmem:[%s0 + $0x3c] sm:$0xf]
  %v46 = vld [vmem:[%s0 + $0x40] sm:$0xf]
  %v47 = vld [vmem:[%s0 + $0x44] sm:$0xf]
  %v48 = vld [vmem:[%s0 + $0x48] sm:$0xf]
  %v49 = vld [vmem:[%s0 + $0x4c] sm:$0xf]
  %v50 = vld [vmem:[%s1] sm:$0xff]
  %v51 = vld [vmem:[%s1 + $0x8] sm:$0xff]
  %v52 = vld [vmem:[%s1 + $0x10] sm:$0xff]
  %v53 = vld [vmem:[%s1 + $0x18] sm:$0xff]
  %v54 = vld [vmem:[%s1 + $0x20] sm:$0xff]
  %v55 = vld [vmem:[%s1 + $0x28] sm:$0xff]
  %v56 = vld [vmem:[%s1 + $0x30] sm:$0xff]
  %v57 = vld [vmem:[%s1 + $0x38] sm:$0xff]
  %v58 = vld [vmem:[%s1 + $0x40] sm:$0xff]
  %v59 = vld [vmem:[%s1 + $0x48] sm:$0xff]
  %v60 = vld [vmem:[%s1 + $0x50] sm:$0xff]
  %v61 = vld [vmem:[%s1 + $0x58] sm:$0xff]
  %v62 = vld [vmem:[%s1 + $0x60] sm:$0xff]
  %v63 = vld [vmem:[%s1 + $0x68] sm:$0xff]
  %v64 = vld [vmem:[%s1 + $0x70] sm:$0xff]
  %v65 = vld [vmem:[%s1 + $0x78] sm:$0xff]
  %v66 = vld [vmem:[%s1 + $0x80] sm:$0xff]
  %v67 = vld [vmem:[%s1 + $0x88] sm:$0xff]
  %v68 = vld [vmem:[%s1 + $0x90] sm:$0xff]
  %v69 = vld [vmem:[%s1 + $0x98] sm:$0xff]
  %v70 = vld [vmem:[%s1 + $0xa0] sm:$0xff]
  %v71 = vld [vmem:[%s1 + $0xa8] sm:$0xff]
  %v72 = vld [vmem:[%s1 + $0xb0] sm:$0xff]
  %v73 = vld [vmem:[%s1 + $0xb8] sm:$0xff]
  %v74 = vld [vmem:[%s1 + $0xc0] sm:$0xff]
  %v75 = vld [vmem:[%s1 + $0xc8] sm:$0xff]
  %v76 = vld [vmem:[%s1 + $0xd0] sm:$0xff]
  %v77 = vld [vmem:[%s1 + $0xd8] sm:$0xff]
  %v78 = vld [vmem:[%s1 + $0xe0] sm:$0xff]
  %v79 = vld [vmem:[%s1 + $0xe8] sm:$0xff]
  %v80 = vld [vmem:[%s1 + $0xf0] sm:$0xff]
  %v81 = vld [vmem:[%s1 + $0xf8] sm:$0xff]
  %v82 = vld [vmem:[%s2] sm:$0xf]
  %v84 = vlaneseq
  %v85 = vshrl.u32 %v84, 7
  %v86 = vsub.s32 0, %v85
  %v87 = vrot.slane %v82, %v86
  %v88 = vlaneseq
  %v89 = vshrl.u32 %v88, 7
  %v90 = vsub.s32 1, %v89
  %v91 = vrot.slane %v82, %v90
  %v92 = vlaneseq
  %v93 = vshrl.u32 %v92, 7
  %v94 = vsub.s32 2, %v93
  %v95 = vrot.slane %v82, %v94
  %v96 = vlaneseq
  %v97 = vshrl.u32 %v96, 7
  %v98 = vsub.s32 3, %v97
  %v99 = vrot.slane %v82, %v98
  %v124 = vunpack.c.l.b16 %v30
  %v125 = vunpack.c.l.b16 %v31
  %v126 = vunpack.c.l.b16 %v32
  %v127 = vunpack.c.l.b16 %v33
  %v128 = vunpack.c.l.b16 %v34
  %v129 = vunpack.c.l.b16 %v35
  %v130 = vunpack.c.l.b16 %v36
  %v131 = vunpack.c.l.b16 %v37
  %v132 = vunpack.c.l.b16 %v38
  %v133 = vunpack.c.l.b16 %v39
  %v134 = vunpack.c.l.b16 %v40
  %v135 = vunpack.c.l.b16 %v41
  %v136 = vunpack.c.l.b16 %v42
  %v137 = vunpack.c.l.b16 %v43
  %v138 = vunpack.c.l.b16 %v44
  %v139 = vunpack.c.l.b16 %v45
  %v140 = vunpack.c.l.b16 %v46
  %v141 = vunpack.c.l.b16 %v47
  %v142 = vunpack.c.l.b16 %v48
  %v143 = vunpack.c.l.b16 %v49
  %v144 = vpack.c.b16 %v125, %v124
  %v145 = vpack.c.b16 %v127, %v126
  %v146 = vpack.c.b16 %v129, %v128
  %v147 = vpack.c.b16 %v131, %v130
  %v148 = vpack.c.b16 %v133, %v132
  %v149 = vpack.c.b16 %v135, %v134
  %v150 = vpack.c.b16 %v137, %v136
  %v151 = vpack.c.b16 %v139, %v138
  %v152 = vpack.c.b16 %v141, %v140
  %v153 = vpack.c.b16 %v143, %v142
  %v196 = vunpack.c.l.b16 %v50
  %v197 = vunpack.c.h.b16 %v50
  %v198 = vunpack.c.l.b16 %v51
  %v199 = vunpack.c.h.b16 %v51
  %v200 = vunpack.c.l.b16 %v52
  %v201 = vunpack.c.h.b16 %v52
  %v202 = vunpack.c.l.b16 %v53
  %v203 = vunpack.c.h.b16 %v53
  %v204 = vunpack.c.l.b16 %v54
  %v205 = vunpack.c.h.b16 %v54
  %v206 = vunpack.c.l.b16 %v55
  %v207 = vunpack.c.h.b16 %v55
  %v208 = vunpack.c.l.b16 %v56
  %v209 = vunpack.c.h.b16 %v56
  %v210 = vunpack.c.l.b16 %v57
  %v211 = vunpack.c.h.b16 %v57
  %v212 = vunpack.c.l.b16 %v58
  %v213 = vunpack.c.h.b16 %v58
  %v214 = vunpack.c.l.b16 %v59
  %v215 = vunpack.c.h.b16 %v59
  %v216 = vunpack.c.l.b16 %v60
  %v217 = vunpack.c.h.b16 %v60
  %v218 = vunpack.c.l.b16 %v61
  %v219 = vunpack.c.h.b16 %v61
  %v220 = vunpack.c.l.b16 %v62
  %v221 = vunpack.c.h.b16 %v62
  %v222 = vunpack.c.l.b16 %v63
  %v223 = vunpack.c.h.b16 %v63
  %v224 = vunpack.c.l.b16 %v64
  %v225 = vunpack.c.h.b16 %v64
  %v226 = vunpack.c.l.b16 %v65
  %v227 = vunpack.c.h.b16 %v65
  %v228 = vunpack.c.l.b16 %v66
  %v229 = vunpack.c.h.b16 %v66
  %v230 = vunpack.c.l.b16 %v67
  %v231 = vunpack.c.h.b16 %v67
  %v232 = vunpack.c.l.b16 %v68
  %v233 = vunpack.c.h.b16 %v68
  %v234 = vunpack.c.l.b16 %v69
  %v235 = vunpack.c.h.b16 %v69
  %v236 = vunpack.c.l.b16 %v70
  %v237 = vunpack.c.h.b16 %v70
  %v238 = vunpack.c.l.b16 %v71
  %v239 = vunpack.c.h.b16 %v71
  %v240 = vunpack.c.l.b16 %v72
  %v241 = vunpack.c.h.b16 %v72
  %v242 = vunpack.c.l.b16 %v73
  %v243 = vunpack.c.h.b16 %v73
  %v244 = vunpack.c.l.b16 %v74
  %v245 = vunpack.c.h.b16 %v74
  %v246 = vunpack.c.l.b16 %v75
  %v247 = vunpack.c.h.b16 %v75
  %v248 = vunpack.c.l.b16 %v76
  %v249 = vunpack.c.h.b16 %v76
  %v250 = vunpack.c.l.b16 %v77
  %v251 = vunpack.c.h.b16 %v77
  %v252 = vunpack.c.l.b16 %v78
  %v253 = vunpack.c.h.b16 %v78
  %v254 = vunpack.c.l.b16 %v79
  %v255 = vunpack.c.h.b16 %v79
  %v256 = vunpack.c.l.b16 %v80
  %v257 = vunpack.c.h.b16 %v80
  %v258 = vunpack.c.l.b16 %v81
  %v259 = vunpack.c.h.b16 %v81
  %v260 = vpack.c.b16 %v200, %v196
  %v261 = vpack.c.b16 %v201, %v197
  %v262 = vpack.c.b16 %v202, %v198
  %v263 = vpack.c.b16 %v203, %v199
  %v264 = vpack.c.b16 %v208, %v204
  %v265 = vpack.c.b16 %v209, %v205
  %v266 = vpack.c.b16 %v210, %v206
  %v267 = vpack.c.b16 %v211, %v207
  %v268 = vpack.c.b16 %v216, %v212
  %v269 = vpack.c.b16 %v217, %v213
  %v270 = vpack.c.b16 %v218, %v214
  %v271 = vpack.c.b16 %v219, %v215
  %v272 = vpack.c.b16 %v224, %v220
  %v273 = vpack.c.b16 %v225, %v221
  %v274 = vpack.c.b16 %v226, %v222
  %v275 = vpack.c.b16 %v227, %v223
  %v276 = vpack.c.b16 %v232, %v228
  %v277 = vpack.c.b16 %v233, %v229
  %v278 = vpack.c.b16 %v234, %v230
  %v279 = vpack.c.b16 %v235, %v231
  %v280 = vpack.c.b16 %v240, %v236
  %v281 = vpack.c.b16 %v241, %v237
  %v282 = vpack.c.b16 %v242, %v238
  %v283 = vpack.c.b16 %v243, %v239
  %v284 = vpack.c.b16 %v248, %v244
  %v285 = vpack.c.b16 %v249, %v245
  %v286 = vpack.c.b16 %v250, %v246
  %v287 = vpack.c.b16 %v251, %v247
  %v288 = vpack.c.b16 %v256, %v252
  %v289 = vpack.c.b16 %v257, %v253
  %v290 = vpack.c.b16 %v258, %v254
  %v291 = vpack.c.b16 %v259, %v255
  %324 = vmatprep.subr.bf16.mxu0 %v261
  %325 = vmatpush1.bf16.msra.mxu0 %v260
  %326 = vmatprep.subr.bf16.mxu0 %v265
  %327 = vmatpush1.bf16.msra.mxu0 %v264
  %328 = vmatprep.subr.bf16.mxu0 %v269
  %329 = vmatpush1.bf16.msra.mxu0 %v268
  %330 = vmatprep.subr.bf16.mxu0 %v273
  %331 = vmatpush1.bf16.msra.mxu0 %v272
  %332 = vmatprep.subr.bf16.mxu0 %v277
  %333 = vmatpush1.bf16.msra.mxu0 %v276
  %334 = vmatprep.subr.bf16.mxu0 %v281
  %335 = vmatpush1.bf16.msra.mxu0 %v280
  %336 = vmatprep.subr.bf16.mxu0 %v285
  %337 = vmatpush1.bf16.msra.mxu0 %v284
  %338 = vmatprep.subr.bf16.mxu0 %v289
  %339 = vmatpush1.bf16.msra.mxu0 %v288
  %340 = vmatprep.subr.bf16.mxu0 0
  %341 = vmatpush1.bf16.msra.mxu0 0
  %342 = vmatprep.subr.bf16.mxu0 0
  %343 = vmatpush1.bf16.msra.mxu0 0
  %344 = vmatprep.subr.bf16.mxu0 0
  %345 = vmatpush1.bf16.msra.mxu0 0
  %346 = vmatprep.subr.bf16.mxu0 0
  %347 = vmatpush1.bf16.msra.mxu0 0
  %348 = vmatprep.subr.bf16.mxu0 0
  %349 = vmatpush1.bf16.msra.mxu0 0
  %350 = vmatprep.subr.bf16.mxu0 0
  %351 = vmatpush1.bf16.msra.mxu0 0
  %352 = vmatprep.subr.bf16.mxu0 0
  %353 = vmatpush1.bf16.msra.mxu0 0
  %354 = vmatprep.subr.bf16.mxu0 0
  %355 = vmatpush1.bf16.msra.mxu0 0
  %356 = vmatprep.mubr.bf16.mxu0 0
  %357 = vmatmul.mubr.bf16.gmra.mrb[0].mxu0 %v144
  %v358 = vpop.f32.mrb[0].mxu0
  %v359 = vadd.f32 %v87, %v358
  %v360 = vpop.f32.mrb[0].mxu0
  %v361 = vadd.f32 %v91, %v360
  %v362 = vpop.f32.mrb[0].mxu0
  %v363 = vadd.f32 %v87, %v362
  %v364 = vpop.f32.mrb[0].mxu0
  %v365 = vadd.f32 %v91, %v364
  %366 = vmatprep.mubr.bf16.mxu0 0
  %367 = vmatmul.mubr.bf16.gmra.mrb[0].mxu0 %v145
  %v368 = vpop.f32.mrb[0].mxu0
  %v369 = vadd.f32 %v87, %v368
  %v370 = vpop.f32.mrb[0].mxu0
  %v371 = vadd.f32 %v91, %v370
  %v372 = vpop.f32.mrb[0].mxu0
  %v373 = vadd.f32 %v87, %v372
  %v374 = vpop.f32.mrb[0].mxu0
  %v375 = vadd.f32 %v91, %v374
  %376 = vmatprep.mubr.bf16.mxu0 0
  %377 = vmatmul.mubr.bf16.gmra.mrb[0].mxu0 %v146
  %v378 = vpop.f32.mrb[0].mxu0
  %v379 = vadd.f32 %v87, %v378
  %v380 = vpop.f32.mrb[0].mxu0
  %v381 = vadd.f32 %v91, %v380
  %v382 = vpop.f32.mrb[0].mxu0
  %v383 = vadd.f32 %v87, %v382
  %v384 = vpop.f32.mrb[0].mxu0
  %v385 = vadd.f32 %v91, %v384
  %386 = vmatprep.mubr.bf16.mxu0 0
  %387 = vmatmul.mubr.bf16.gmra.mrb[0].mxu0 %v147
  %v388 = vpop.f32.mrb[0].mxu0
  %v389 = vadd.f32 %v87, %v388
  %v390 = vpop.f32.mrb[0].mxu0
  %v391 = vadd.f32 %v91, %v390
  %v392 = vpop.f32.mrb[0].mxu0
  %v393 = vadd.f32 %v87, %v392
  %v394 = vpop.f32.mrb[0].mxu0
  %v395 = vadd.f32 %v91, %v394
  %396 = vmatprep.mubr.bf16.mxu0 0
  %397 = vmatmul.mubr.bf16.gmra.mrb[0].mxu0 %v148
  %v398 = vpop.f32.mrb[0].mxu0
  %v399 = vadd.f32 %v87, %v398
  %v400 = vpop.f32.mrb[0].mxu0
  %v401 = vadd.f32 %v91, %v400
  %v402 = vpop.f32.mrb[0].mxu0
  %v403 = vadd.f32 %v87, %v402
  %v404 = vpop.f32.mrb[0].mxu0
  %v405 = vadd.f32 %v91, %v404
  %406 = vmatprep.mubr.bf16.mxu0 0
  %407 = vmatmul.mubr.bf16.gmra.mrb[0].mxu0 %v149
  %v408 = vpop.f32.mrb[0].mxu0
  %v409 = vadd.f32 %v87, %v408
  %v410 = vpop.f32.mrb[0].mxu0
  %v411 = vadd.f32 %v91, %v410
  %v412 = vpop.f32.mrb[0].mxu0
  %v413 = vadd.f32 %v87, %v412
  %v414 = vpop.f32.mrb[0].mxu0
  %v415 = vadd.f32 %v91, %v414
  %416 = vmatprep.mubr.bf16.mxu0 0
  %417 = vmatmul.mubr.bf16.gmra.mrb[0].mxu0 %v150
  %v418 = vpop.f32.mrb[0].mxu0
  %v419 = vadd.f32 %v87, %v418
  %v420 = vpop.f32.mrb[0].mxu0
  %v421 = vadd.f32 %v91, %v420
  %v422 = vpop.f32.mrb[0].mxu0
  %v423 = vadd.f32 %v87, %v422
  %v424 = vpop.f32.mrb[0].mxu0
  %v425 = vadd.f32 %v91, %v424
  %426 = vmatprep.mubr.bf16.mxu0 0
  %427 = vmatmul.mubr.bf16.gmra.mrb[0].mxu0 %v151
  %v428 = vpop.f32.mrb[0].mxu0
  %v429 = vadd.f32 %v87, %v428
  %v430 = vpop.f32.mrb[0].mxu0
  %v431 = vadd.f32 %v91, %v430
  %v432 = vpop.f32.mrb[0].mxu0
  %v433 = vadd.f32 %v87, %v432
  %v434 = vpop.f32.mrb[0].mxu0
  %v435 = vadd.f32 %v91, %v434
  %436 = vmatprep.mubr.bf16.mxu0 0
  %437 = vmatmul.mubr.bf16.gmra.mrb[0].mxu0 %v152
  %v438 = vpop.f32.mrb[0].mxu0
  %v439 = vadd.f32 %v87, %v438
  %v440 = vpop.f32.mrb[0].mxu0
  %v441 = vadd.f32 %v91, %v440
  %v442 = vpop.f32.mrb[0].mxu0
  %v443 = vadd.f32 %v87, %v442
  %v444 = vpop.f32.mrb[0].mxu0
  %v445 = vadd.f32 %v91, %v444
  %446 = vmatprep.mubr.bf16.mxu0 0
  %447 = vmatmul.mubr.bf16.gmra.mrb[0].mxu0 %v153
  %v448 = vpop.f32.mrb[0].mxu0
  %v449 = vadd.f32 %v87, %v448
  %v450 = vpop.f32.mrb[0].mxu0
  %v451 = vadd.f32 %v91, %v450
  %v452 = vpop.f32.mrb[0].mxu0
  %v453 = vadd.f32 %v87, %v452
  %v454 = vpop.f32.mrb[0].mxu0
  %v455 = vadd.f32 %v91, %v454
  %456 = vdwg.mxu0
  %457 = vmatprep.subr.bf16.mxu0 %v263
  %458 = vmatpush1.bf16.msra.mxu0 %v262
  %459 = vmatprep.subr.bf16.mxu0 %v267
  %460 = vmatpush1.bf16.msra.mxu0 %v266
  %461 = vmatprep.subr.bf16.mxu0 %v271
  %462 = vmatpush1.bf16.msra.mxu0 %v270
  %463 = vmatprep.subr.bf16.mxu0 %v275
  %464 = vmatpush1.bf16.msra.mxu0 %v274
  %465 = vmatprep.subr.bf16.mxu0 %v279
  %466 = vmatpush1.bf16.msra.mxu0 %v278
  %467 = vmatprep.subr.bf16.mxu0 %v283
  %468 = vmatpush1.bf16.msra.mxu0 %v282
  %469 = vmatprep.subr.bf16.mxu0 %v287
  %470 = vmatpush1.bf16.msra.mxu0 %v286
  %471 = vmatprep.subr.bf16.mxu0 %v291
  %472 = vmatpush1.bf16.msra.mxu0 %v290
  %473 = vmatprep.subr.bf16.mxu0 0
  %474 = vmatpush1.bf16.msra.mxu0 0
  %475 = vmatprep.subr.bf16.mxu0 0
  %476 = vmatpush1.bf16.msra.mxu0 0
  %477 = vmatprep.subr.bf16.mxu0 0
  %478 = vmatpush1.bf16.msra.mxu0 0
  %479 = vmatprep.subr.bf16.mxu0 0
  %480 = vmatpush1.bf16.msra.mxu0 0
  %481 = vmatprep.subr.bf16.mxu0 0
  %482 = vmatpush1.bf16.msra.mxu0 0
  %483 = vmatprep.subr.bf16.mxu0 0
  %484 = vmatpush1.bf16.msra.mxu0 0
  %485 = vmatprep.subr.bf16.mxu0 0
  %486 = vmatpush1.bf16.msra.mxu0 0
  %487 = vmatprep.subr.bf16.mxu0 0
  %488 = vmatpush1.bf16.msra.mxu0 0
  %489 = vmatprep.mubr.bf16.mxu0 0
  %490 = vmatmul.mubr.bf16.gmra.mrb[0].mxu0 %v144
  %v491 = vpop.f32.mrb[0].mxu0
  %v492 = vadd.f32 %v95, %v491
  %v493 = vpop.f32.mrb[0].mxu0
  %v494 = vadd.f32 %v99, %v493
  %v495 = vpop.f32.mrb[0].mxu0
  %v496 = vadd.f32 %v95, %v495
  %v497 = vpop.f32.mrb[0].mxu0
  %v498 = vadd.f32 %v99, %v497
  %499 = vmatprep.mubr.bf16.mxu0 0
  %500 = vmatmul.mubr.bf16.gmra.mrb[0].mxu0 %v145
  %v501 = vpop.f32.mrb[0].mxu0
  %v502 = vadd.f32 %v95, %v501
  %v503 = vpop.f32.mrb[0].mxu0
  %v504 = vadd.f32 %v99, %v503
  %v505 = vpop.f32.mrb[0].mxu0
  %v506 = vadd.f32 %v95, %v505
  %v507 = vpop.f32.mrb[0].mxu0
  %v508 = vadd.f32 %v99, %v507
  %509 = vmatprep.mubr.bf16.mxu0 0
  %510 = vmatmul.mubr.bf16.gmra.mrb[0].mxu0 %v146
  %v511 = vpop.f32.mrb[0].mxu0
  %v512 = vadd.f32 %v95, %v511
  %v513 = vpop.f32.mrb[0].mxu0
  %v514 = vadd.f32 %v99, %v513
  %v515 = vpop.f32.mrb[0].mxu0
  %v516 = vadd.f32 %v95, %v515
  %v517 = vpop.f32.mrb[0].mxu0
  %v518 = vadd.f32 %v99, %v517
  %519 = vmatprep.mubr.bf16.mxu0 0
  %520 = vmatmul.mubr.bf16.gmra.mrb[0].mxu0 %v147
  %v521 = vpop.f32.mrb[0].mxu0
  %v522 = vadd.f32 %v95, %v521
  %v523 = vpop.f32.mrb[0].mxu0
  %v524 = vadd.f32 %v99, %v523
  %v525 = vpop.f32.mrb[0].mxu0
  %v526 = vadd.f32 %v95, %v525
  %v527 = vpop.f32.mrb[0].mxu0
  %v528 = vadd.f32 %v99, %v527
  %529 = vmatprep.mubr.bf16.mxu0 0
  %530 = vmatmul.mubr.bf16.gmra.mrb[0].mxu0 %v148
  %v531 = vpop.f32.mrb[0].mxu0
  %v532 = vadd.f32 %v95, %v531
  %v533 = vpop.f32.mrb[0].mxu0
  %v534 = vadd.f32 %v99, %v533
  %v535 = vpop.f32.mrb[0].mxu0
  %v536 = vadd.f32 %v95, %v535
  %v537 = vpop.f32.mrb[0].mxu0
  %v538 = vadd.f32 %v99, %v537
  %539 = vmatprep.mubr.bf16.mxu0 0
  %540 = vmatmul.mubr.bf16.gmra.mrb[0].mxu0 %v149
  %v541 = vpop.f32.mrb[0].mxu0
  %v542 = vadd.f32 %v95, %v541
  %v543 = vpop.f32.mrb[0].mxu0
  %v544 = vadd.f32 %v99, %v543
  %v545 = vpop.f32.mrb[0].mxu0
  %v546 = vadd.f32 %v95, %v545
  %v547 = vpop.f32.mrb[0].mxu0
  %v548 = vadd.f32 %v99, %v547
  %549 = vmatprep.mubr.bf16.mxu0 0
  %550 = vmatmul.mubr.bf16.gmra.mrb[0].mxu0 %v150
  %v551 = vpop.f32.mrb[0].mxu0
  %v552 = vadd.f32 %v95, %v551
  %v553 = vpop.f32.mrb[0].mxu0
  %v554 = vadd.f32 %v99, %v553
  %v555 = vpop.f32.mrb[0].mxu0
  %v556 = vadd.f32 %v95, %v555
  %v557 = vpop.f32.mrb[0].mxu0
  %v558 = vadd.f32 %v99, %v557
  %559 = vmatprep.mubr.bf16.mxu0 0
  %560 = vmatmul.mubr.bf16.gmra.mrb[0].mxu0 %v151
  %v561 = vpop.f32.mrb[0].mxu0
  %v562 = vadd.f32 %v95, %v561
  %v563 = vpop.f32.mrb[0].mxu0
  %v564 = vadd.f32 %v99, %v563
  %v565 = vpop.f32.mrb[0].mxu0
  %v566 = vadd.f32 %v95, %v565
  %v567 = vpop.f32.mrb[0].mxu0
  %v568 = vadd.f32 %v99, %v567
  %569 = vmatprep.mubr.bf16.mxu0 0
  %570 = vmatmul.mubr.bf16.gmra.mrb[0].mxu0 %v152
  %v571 = vpop.f32.mrb[0].mxu0
  %v572 = vadd.f32 %v95, %v571
  %v573 = vpop.f32.mrb[0].mxu0
  %v574 = vadd.f32 %v99, %v573
  %v575 = vpop.f32.mrb[0].mxu0
  %v576 = vadd.f32 %v95, %v575
  %v577 = vpop.f32.mrb[0].mxu0
  %v578 = vadd.f32 %v99, %v577
  %579 = vmatprep.mubr.bf16.mxu0 0
  %580 = vmatmul.mubr.bf16.gmra.mrb[0].mxu0 %v153
  %v581 = vpop.f32.mrb[0].mxu0
  %v582 = vadd.f32 %v95, %v581
  %v583 = vpop.f32.mrb[0].mxu0
  %v584 = vadd.f32 %v99, %v583
  %v585 = vpop.f32.mrb[0].mxu0
  %v586 = vadd.f32 %v95, %v585
  %v587 = vpop.f32.mrb[0].mxu0
  %v588 = vadd.f32 %v99, %v587
  %589 = vdwg.mxu0
  %590 = vst [vmem:[#allocation2] sm:$0xff] %v359
  %591 = vst [vmem:[#allocation2 + $0x8] sm:$0xff] %v361
  %592 = vst [vmem:[#allocation2 + $0x10] sm:$0xff] %v492
  %593 = vst [vmem:[#allocation2 + $0x18] sm:$0xff] %v494
  %594 = vst [vmem:[#allocation2 + $0x20] sm:$0xff] %v363
  %595 = vst [vmem:[#allocation2 + $0x28] sm:$0xff] %v365
  %596 = vst [vmem:[#allocation2 + $0x30] sm:$0xff] %v496
  %597 = vst [vmem:[#allocation2 + $0x38] sm:$0xff] %v498
  %598 = vst [vmem:[#allocation2 + $0x40] sm:$0xff] %v369
  %599 = vst [vmem:[#allocation2 + $0x48] sm:$0xff] %v371
  %600 = vst [vmem:[#allocation2 + $0x50] sm:$0xff] %v502
  %601 = vst [vmem:[#allocation2 + $0x58] sm:$0xff] %v504
  %602 = vst [vmem:[#allocation2 + $0x60] sm:$0xff] %v373
  %603 = vst [vmem:[#allocation2 + $0x68] sm:$0xff] %v375
  %604 = vst [vmem:[#allocation2 + $0x70] sm:$0xff] %v506
  %605 = vst [vmem:[#allocation2 + $0x78] sm:$0xff] %v508
  %606 = vst [vmem:[#allocation2 + $0x80] sm:$0xff] %v379
  %607 = vst [vmem:[#allocation2 + $0x88] sm:$0xff] %v381
  %608 = vst [vmem:[#allocation2 + $0x90] sm:$0xff] %v512
  %609 = vst [vmem:[#allocation2 + $0x98] sm:$0xff] %v514
  %610 = vst [vmem:[#allocation2 + $0xa0] sm:$0xff] %v383
  %611 = vst [vmem:[#allocation2 + $0xa8] sm:$0xff] %v385
  %612 = vst [vmem:[#allocation2 + $0xb0] sm:$0xff] %v516
  %613 = vst [vmem:[#allocation2 + $0xb8] sm:$0xff] %v518
  %614 = vst [vmem:[#allocation2 + $0xc0] sm:$0xff] %v389
  %615 = vst [vmem:[#allocation2 + $0xc8] sm:$0xff] %v391
  %616 = vst [vmem:[#allocation2 + $0xd0] sm:$0xff] %v522
  %617 = vst [vmem:[#allocation2 + $0xd8] sm:$0xff] %v524
  %618 = vst [vmem:[#allocation2 + $0xe0] sm:$0xff] %v393
  %619 = vst [vmem:[#allocation2 + $0xe8] sm:$0xff] %v395
  %620 = vst [vmem:[#allocation2 + $0xf0] sm:$0xff] %v526
  %621 = vst [vmem:[#allocation2 + $0xf8] sm:$0xff] %v528
  %622 = vst [vmem:[#allocation2 + $0x100] sm:$0xff] %v399
  %623 = vst [vmem:[#allocation2 + $0x108] sm:$0xff] %v401
  %624 = vst [vmem:[#allocation2 + $0x110] sm:$0xff] %v532
  %625 = vst [vmem:[#allocation2 + $0x118] sm:$0xff] %v534
  %626 = vst [vmem:[#allocation2 + $0x120] sm:$0xff] %v403
  %627 = vst [vmem:[#allocation2 + $0x128] sm:$0xff] %v405
  %628 = vst [vmem:[#allocation2 + $0x130] sm:$0xff] %v536
  %629 = vst [vmem:[#allocation2 + $0x138] sm:$0xff] %v538
  %630 = vst [vmem:[#allocation2 + $0x140] sm:$0xff] %v409
  %631 = vst [vmem:[#allocation2 + $0x148] sm:$0xff] %v411
  %632 = vst [vmem:[#allocation2 + $0x150] sm:$0xff] %v542
  %633 = vst [vmem:[#allocation2 + $0x158] sm:$0xff] %v544
  %634 = vst [vmem:[#allocation2 + $0x160] sm:$0xff] %v413
  %635 = vst [vmem:[#allocation2 + $0x168] sm:$0xff] %v415
  %636 = vst [vmem:[#allocation2 + $0x170] sm:$0xff] %v546
  %637 = vst [vmem:[#allocation2 + $0x178] sm:$0xff] %v548
  %638 = vst [vmem:[#allocation2 + $0x180] sm:$0xff] %v419
  %639 = vst [vmem:[#allocation2 + $0x188] sm:$0xff] %v421
  %640 = vst [vmem:[#allocation2 + $0x190] sm:$0xff] %v552
  %641 = vst [vmem:[#allocation2 + $0x198] sm:$0xff] %v554
  %642 = vst [vmem:[#allocation2 + $0x1a0] sm:$0xff] %v423
  %643 = vst [vmem:[#allocation2 + $0x1a8] sm:$0xff] %v425
  %644 = vst [vmem:[#allocation2 + $0x1b0] sm:$0xff] %v556
  %645 = vst [vmem:[#allocation2 + $0x1b8] sm:$0xff] %v558
  %646 = vst [vmem:[#allocation2 + $0x1c0] sm:$0xff] %v429
  %647 = vst [vmem:[#allocation2 + $0x1c8] sm:$0xff] %v431
  %648 = vst [vmem:[#allocation2 + $0x1d0] sm:$0xff] %v562
  %649 = vst [vmem:[#allocation2 + $0x1d8] sm:$0xff] %v564
  %650 = vst [vmem:[#allocation2 + $0x1e0] sm:$0xff] %v433
  %651 = vst [vmem:[#allocation2 + $0x1e8] sm:$0xff] %v435
  %652 = vst [vmem:[#allocation2 + $0x1f0] sm:$0xff] %v566
  %653 = vst [vmem:[#allocation2 + $0x1f8] sm:$0xff] %v568
  %654 = vst [vmem:[#allocation2 + $0x200] sm:$0xff] %v439
  %655 = vst [vmem:[#allocation2 + $0x208] sm:$0xff] %v441
  %656 = vst [vmem:[#allocation2 + $0x210] sm:$0xff] %v572
  %657 = vst [vmem:[#allocation2 + $0x218] sm:$0xff] %v574
  %658 = vst [vmem:[#allocation2 + $0x220] sm:$0xff] %v443
  %659 = vst [vmem:[#allocation2 + $0x228] sm:$0xff] %v445
  %660 = vst [vmem:[#allocation2 + $0x230] sm:$0xff] %v576
  %661 = vst [vmem:[#allocation2 + $0x238] sm:$0xff] %v578
  %662 = vst [vmem:[#allocation2 + $0x240] sm:$0xff] %v449
  %663 = vst [vmem:[#allocation2 + $0x248] sm:$0xff] %v451
  %664 = vst [vmem:[#allocation2 + $0x250] sm:$0xff] %v582
  %665 = vst [vmem:[#allocation2 + $0x258] sm:$0xff] %v584
  %666 = vst [vmem:[#allocation2 + $0x260] sm:$0xff] %v453
  %667 = vst [vmem:[#allocation2 + $0x268] sm:$0xff] %v455
  %668 = vst [vmem:[#allocation2 + $0x270] sm:$0xff] %v586
  %669 = vst [vmem:[#allocation2 + $0x278] sm:$0xff] %v588
  %v670 = vld [vmem:[%s3] sm:$0xff]
  %v671 = vld [vmem:[%s3 + $0x8] sm:$0xff]
  %v672 = vld [vmem:[%s3 + $0x10] sm:$0xff]
  %v673 = vld [vmem:[%s3 + $0x18] sm:$0xff]
  %v674 = vld [vmem:[%s3 + $0x20] sm:$0xff]
  %v675 = vld [vmem:[%s3 + $0x28] sm:$0xff]
  %v676 = vld [vmem:[%s3 + $0x30] sm:$0xff]
  %v677 = vld [vmem:[%s3 + $0x38] sm:$0xff]
  loop: start=0, step=1, limit=10
  $region34: #{tfcncap_lstm_forward.3} parent=0 // loop_pre_header
    _
  $region35: #{tfcncap_lstm_forward.3} parent=0 // loop_header
    %s679 = sphi 0, %s683
    %p680 = scmp.ge.s32.totalorder %s679, 10
    %v684 = vphi 0.0, %v841
    %v685 = vphi 0.0, %v842
    %v686 = vphi 0.0, %v829
    %v687 = vphi 0.0, %v830
  $region36: #{tfcncap_lstm_forward.3} parent=0 // loop_header_branch
    %682 = sbr.rel (%p680) target = $region40
  $region37: #{tfcncap_lstm_forward.3} parent=0 // loop_body
    %s688 = smul.u32 %s679, 8
    %s689 = smul.addr %s688, 8
    %s690 = scalar_lea.vmem [#allocation2], %s689
    %v691 = vld [vmem:[%s690] sm:$0xff]
    %v692 = vld [vmem:[%s690 + $0x8] sm:$0xff]
    %v693 = vld [vmem:[%s690 + $0x20] sm:$0xff]
    %v694 = vld [vmem:[%s690 + $0x28] sm:$0xff]
    %v695 = vpack.c.bf16 %v685, %v684
    %v704 = vunpack.c.l.b16 %v670
    %v705 = vunpack.c.h.b16 %v670
    %v706 = vunpack.c.l.b16 %v671
    %v707 = vunpack.c.h.b16 %v671
    %v708 = vunpack.c.l.b16 %v672
    %v709 = vunpack.c.h.b16 %v672
    %v710 = vunpack.c.l.b16 %v673
    %v711 = vunpack.c.h.b16 %v673
    %v712 = vunpack.c.l.b16 %v674
    %v713 = vunpack.c.h.b16 %v674
    %v714 = vunpack.c.l.b16 %v675
    %v715 = vunpack.c.h.b16 %v675
    %v716 = vunpack.c.l.b16 %v676
    %v717 = vunpack.c.h.b16 %v676
    %v718 = vunpack.c.l.b16 %v677
    %v719 = vunpack.c.h.b16 %v677
    %v720 = vpack.c.b16 %v706, %v704
    %v721 = vpack.c.b16 %v707, %v705
    %v722 = vpack.c.b16 %v710, %v708
    %v723 = vpack.c.b16 %v711, %v709
    %v724 = vpack.c.b16 %v714, %v712
    %v725 = vpack.c.b16 %v715, %v713
    %v726 = vpack.c.b16 %v718, %v716
    %v727 = vpack.c.b16 %v719, %v717
    %vm736 = vcmask 523264
    %v738 = vsel %vm736, %v695, 0
    %740 = vmatprep.subr.bf16.mxu0 %v721
    %741 = vmatpush1.bf16.msra.mxu0 %v720
    %742 = vmatprep.subr.bf16.mxu0 %v723
    %743 = vmatpush1.bf16.msra.mxu0 %v722
    %744 = vmatprep.subr.bf16.mxu0 %v725
    %745 = vmatpush1.bf16.msra.mxu0 %v724
    %746 = vmatprep.subr.bf16.mxu0 %v727
    %747 = vmatpush1.bf16.msra.mxu0 %v726
    %748 = vmatprep.subr.bf16.mxu0 0
    %749 = vmatpush1.bf16.msra.mxu0 0
    %750 = vmatprep.subr.bf16.mxu0 0
    %751 = vmatpush1.bf16.msra.mxu0 0
    %752 = vmatprep.subr.bf16.mxu0 0
    %753 = vmatpush1.bf16.msra.mxu0 0
    %754 = vmatprep.subr.bf16.mxu0 0
    %755 = vmatpush1.bf16.msra.mxu0 0
    %756 = vmatprep.subr.bf16.mxu0 0
    %757 = vmatpush1.bf16.msra.mxu0 0
    %758 = vmatprep.subr.bf16.mxu0 0
    %759 = vmatpush1.bf16.msra.mxu0 0
    %760 = vmatprep.subr.bf16.mxu0 0
    %761 = vmatpush1.bf16.msra.mxu0 0
    %762 = vmatprep.subr.bf16.mxu0 0
    %763 = vmatpush1.bf16.msra.mxu0 0
    %764 = vmatprep.subr.bf16.mxu0 0
    %765 = vmatpush1.bf16.msra.mxu0 0
    %766 = vmatprep.subr.bf16.mxu0 0
    %767 = vmatpush1.bf16.msra.mxu0 0
    %768 = vmatprep.subr.bf16.mxu0 0
    %769 = vmatpush1.bf16.msra.mxu0 0
    %770 = vmatprep.subr.bf16.mxu0 0
    %771 = vmatpush1.bf16.msra.mxu0 0
    %772 = vmatprep.mubr.bf16.mxu0 0
    %773 = vmatmul.mubr.bf16.gmra.mrb[0].mxu0 %v738
    %v774 = vpop.f32.mrb[0].mxu0
    %v775 = vadd.f32 0.0, %v774
    %v776 = vpop.f32.mrb[0].mxu0
    %v777 = vadd.f32 0.0, %v776
    %v778 = vpop.f32.mrb[0].mxu0
    %v779 = vadd.f32 0.0, %v778
    %v780 = vpop.f32.mrb[0].mxu0
    %v781 = vadd.f32 0.0, %v780
    %782 = vdwg.mxu0
    %v783 = vadd.f32 %v691, %v775
    %v784 = vadd.f32 %v692, %v777
    %v785 = vadd.f32 %v693, %v779
    %v786 = vadd.f32 %v694, %v781
    %v787 = vsub.f32 0.0, %v783
    %v788 = vsub.f32 0.0, %v784
    %v789 = vsub.f32 0.0, %v785
    %v790 = vsub.f32 0.0, %v786
    %v791 = vmul.f32 %v787, 1.442695
    %v792 = vpow.pop %v791
    %v793 = vmul.f32 %v788, 1.442695
    %v794 = vpow.pop %v793
    %v795 = vmul.f32 %v789, 1.442695
    %v796 = vpow.pop %v795
    %v797 = vmul.f32 %v790, 1.442695
    %v798 = vpow.pop %v797
    %v799 = vadd.f32 %v792, 1.0
    %v800 = vadd.f32 %v794, 1.0
    %v801 = vadd.f32 %v796, 1.0
    %v802 = vadd.f32 %v798, 1.0
    %v803 = vrcp.pop %v799
    %v804 = vrcp.pop %v800
    %v805 = vrcp.pop %v801
    %v806 = vrcp.pop %v802
    %v807 = vtanh.pop %v784
    %v808 = vtanh.pop %v786
    %v809 = vmul.f32 %v803, %v686
    %v810 = vmul.f32 %v805, %v687
    %813 = vrot.lane.b32.xlu0 %v807, 64
    %v814 = vpop.permute.xlu0 %813
    %815 = vrot.lane.b32.xlu0 %v808, 64
    %v816 = vpop.permute.xlu0 %815
    %v819 = vmul.f32 %v803, %v814
    %v820 = vmul.f32 %v805, %v816
    %823 = vrot.lane.b32.xlu0 %v819, 64
    %v824 = vpop.permute.xlu0 %823
    %825 = vrot.lane.b32.xlu0 %v820, 64
    %v826 = vpop.permute.xlu0 %825
    %v829 = vadd.f32 %v809, %v824
    %v830 = vadd.f32 %v810, %v826
    %v831 = vtanh.pop %v829
    %v832 = vtanh.pop %v830
    %835 = vrot.lane.b32.xlu0 %v831, 64
    %v836 = vpop.permute.xlu0 %835
    %837 = vrot.lane.b32.xlu0 %v832, 64
    %v838 = vpop.permute.xlu0 %837
    %v841 = vmul.f32 %v804, %v836
    %v842 = vmul.f32 %v806, %v838
  $region38: #{tfcncap_lstm_forward.3} parent=0 // loop_footer
    %s683 = sadd.s32 1, %s679
  $region39: #{tfcncap_lstm_forward.3} parent=0 // loop_footer_branch
    %678 = sbr.rel target = $region35
  $region40: #{tfcncap_lstm_forward.3} parent=0 // loop_exit
    _
  %s843 = scalar_lea.vmem [#allocation2], 576
  %v844 = vld [vmem:[%s843 + $0x10] sm:$0xff]
  %v845 = vld [vmem:[%s843 + $0x18] sm:$0xff]
  %v846 = vld [vmem:[%s843 + $0x30] sm:$0xff]
  %v847 = vld [vmem:[%s843 + $0x38] sm:$0xff]
  %v848 = vsub.f32 0.0, %v844
  %v849 = vsub.f32 0.0, %v845
  %v850 = vsub.f32 0.0, %v846
  %v851 = vsub.f32 0.0, %v847
  %v852 = vmul.f32 %v848, 1.442695
  %v853 = vpow.pop %v852
  %v854 = vmul.f32 %v849, 1.442695
  %v855 = vpow.pop %v854
  %v856 = vmul.f32 %v850, 1.442695
  %v857 = vpow.pop %v856
  %v858 = vmul.f32 %v851, 1.442695
  %v859 = vpow.pop %v858
  %v860 = vadd.f32 %v853, 1.0
  %v861 = vadd.f32 %v855, 1.0
  %v862 = vadd.f32 %v857, 1.0
  %v863 = vadd.f32 %v859, 1.0
  %v864 = vrcp.pop %v860
  %v865 = vrcp.pop %v861
  %v866 = vrcp.pop %v862
  %v867 = vrcp.pop %v863
  %v868 = vtanh.pop %v845
  %v869 = vtanh.pop %v847
  %v870 = vmul.f32 %v864, 0.0
  %v871 = vmul.f32 %v866, 0.0
  %874 = vrot.lane.b32.xlu0 %v868, 64
  %v875 = vpop.permute.xlu0 %874
  %876 = vrot.lane.b32.xlu0 %v869, 64
  %v877 = vpop.permute.xlu0 %876
  %v880 = vmul.f32 %v864, %v875
  %v881 = vmul.f32 %v866, %v877
  %884 = vrot.lane.b32.xlu0 %v880, 64
  %v885 = vpop.permute.xlu0 %884
  %886 = vrot.lane.b32.xlu0 %v881, 64
  %v887 = vpop.permute.xlu0 %886
  %v890 = vadd.f32 %v870, %v885
  %v891 = vadd.f32 %v871, %v887
  %v892 = vtanh.pop %v890
  %v893 = vtanh.pop %v891
  %896 = vrot.lane.b32.xlu0 %v892, 64
  %v897 = vpop.permute.xlu0 %896
  %898 = vrot.lane.b32.xlu0 %v893, 64
  %v899 = vpop.permute.xlu0 %898
  %v902 = vmul.f32 %v865, %v897
  %v903 = vmul.f32 %v867, %v899
  %906 = vrot.lane.b32.xlu0 %v902, 64
  %v907 = vpop.permute.xlu0 %906
  %908 = vrot.lane.b32.xlu0 %v903, 64
  %v909 = vpop.permute.xlu0 %908
  %vm912 = vcmask 523264
  %v913 = vsel %vm912, %v684, %v907
  %v914 = vsel %vm912, %v685, %v909
  %v915 = vpack.c.bf16 %v914, %v913
  %v916 = vld [vmem:[%s4] sm:$0xf]
  %v917 = vld [vmem:[%s4 + $0x4] sm:$0xf]
  %v918 = vld [vmem:[%s4 + $0x8] sm:$0xf]
  %v919 = vld [vmem:[%s4 + $0xc] sm:$0xf]
  %v920 = vld [vmem:[%s4 + $0x10] sm:$0xf]
  %v921 = vld [vmem:[%s4 + $0x14] sm:$0xf]
  %v922 = vld [vmem:[%s4 + $0x18] sm:$0xf]
  %v923 = vld [vmem:[%s4 + $0x1c] sm:$0xf]
  %v924 = vld [vmem:[%s4 + $0x20] sm:$0xf]
  %v925 = vld [vmem:[%s4 + $0x24] sm:$0xf]
  %v926 = vld [vmem:[%s4 + $0x28] sm:$0xf]
  %v927 = vld [vmem:[%s4 + $0x2c] sm:$0xf]
  %v928 = vld [vmem:[%s4 + $0x30] sm:$0xf]
  %v929 = vld [vmem:[%s4 + $0x34] sm:$0xf]
  %v930 = vld [vmem:[%s4 + $0x38] sm:$0xf]
  %v931 = vld [vmem:[%s4 + $0x3c] sm:$0xf]
  %v932 = vld [vmem:[%s5] sm:$0x1]
  %v934 = vlaneseq
  %v935 = vshrl.u32 %v934, 7
  %v936 = vsub.s32 0, %v935
  %v937 = vrot.slane %v932, %v936
  %v955 = vunpack.c.l.b16 %v916
  %v956 = vunpack.c.l.b16 %v917
  %v957 = vunpack.c.l.b16 %v918
  %v958 = vunpack.c.l.b16 %v919
  %v959 = vunpack.c.l.b16 %v920
  %v960 = vunpack.c.l.b16 %v921
  %v961 = vunpack.c.l.b16 %v922
  %v962 = vunpack.c.l.b16 %v923
  %v963 = vunpack.c.l.b16 %v924
  %v964 = vunpack.c.l.b16 %v925
  %v965 = vunpack.c.l.b16 %v926
  %v966 = vunpack.c.l.b16 %v927
  %v967 = vunpack.c.l.b16 %v928
  %v968 = vunpack.c.l.b16 %v929
  %v969 = vunpack.c.l.b16 %v930
  %v970 = vunpack.c.l.b16 %v931
  %v971 = vpack.c.b16 %v956, %v955
  %v972 = vpack.c.b16 %v958, %v957
  %v973 = vpack.c.b16 %v960, %v959
  %v974 = vpack.c.b16 %v962, %v961
  %v975 = vpack.c.b16 %v964, %v963
  %v976 = vpack.c.b16 %v966, %v965
  %v977 = vpack.c.b16 %v968, %v967
  %v978 = vpack.c.b16 %v970, %v969
  %987 = vmatprep.subr.bf16.mxu0 0
  %988 = vmatpush1.bf16.msra.mxu0 %v971
  %989 = vmatprep.subr.bf16.mxu0 0
  %990 = vmatpush1.bf16.msra.mxu0 %v972
  %991 = vmatprep.subr.bf16.mxu0 0
  %992 = vmatpush1.bf16.msra.mxu0 %v973
  %993 = vmatprep.subr.bf16.mxu0 0
  %994 = vmatpush1.bf16.msra.mxu0 %v974
  %995 = vmatprep.subr.bf16.mxu0 0
  %996 = vmatpush1.bf16.msra.mxu0 %v975
  %997 = vmatprep.subr.bf16.mxu0 0
  %998 = vmatpush1.bf16.msra.mxu0 %v976
  %999 = vmatprep.subr.bf16.mxu0 0
  %1000 = vmatpush1.bf16.msra.mxu0 %v977
  %1001 = vmatprep.subr.bf16.mxu0 0
  %1002 = vmatpush1.bf16.msra.mxu0 %v978
  %1003 = vmatprep.subr.bf16.mxu0 0
  %1004 = vmatpush1.bf16.msra.mxu0 0
  %1005 = vmatprep.subr.bf16.mxu0 0
  %1006 = vmatpush1.bf16.msra.mxu0 0
  %1007 = vmatprep.subr.bf16.mxu0 0
  %1008 = vmatpush1.bf16.msra.mxu0 0
  %1009 = vmatprep.subr.bf16.mxu0 0
  %1010 = vmatpush1.bf16.msra.mxu0 0
  %1011 = vmatprep.subr.bf16.mxu0 0
  %1012 = vmatpush1.bf16.msra.mxu0 0
  %1013 = vmatprep.subr.bf16.mxu0 0
  %1014 = vmatpush1.bf16.msra.mxu0 0
  %1015 = vmatprep.subr.bf16.mxu0 0
  %1016 = vmatpush1.bf16.msra.mxu0 0
  %1017 = vmatprep.subr.bf16.mxu0 0
  %1018 = vmatpush1.bf16.msra.mxu0 0
  %1019 = vmatprep.mubr.bf16.mxu0 0
  %1020 = vmatmul.mubr.bf16.gmra.mrb[0].mxu0 %v915
  %v1021 = vpop.f32.mrb[0].mxu0
  %v1022 = vadd.f32 %v937, %v1021
  %v1023 = vpop.f32.mrb[0].mxu0
  %v1024 = vpop.f32.mrb[0].mxu0
  %v1025 = vadd.f32 %v937, %v1024
  %v1026 = vpop.f32.mrb[0].mxu0
  %1027 = vdwg.mxu0
  %v1028 = vmax.f32 %v1022, 0.0
  %v1029 = vmax.f32 %v1025, 0.0
  %v1030 = vpack.c.bf16 %v1029, %v1028
  %v1031 = vld [vmem:[%s6] sm:$0xf]
  %v1032 = vld [vmem:[%s6 + $0x4] sm:$0xf]
  %v1033 = vld [vmem:[%s6 + $0x8] sm:$0xf]
  %v1034 = vld [vmem:[%s6 + $0xc] sm:$0xf]
  %v1035 = vld [vmem:[%s6 + $0x10] sm:$0xf]
  %v1036 = vld [vmem:[%s6 + $0x14] sm:$0xf]
  %v1037 = vld [vmem:[%s6 + $0x18] sm:$0xf]
  %v1038 = vld [vmem:[%s6 + $0x1c] sm:$0xf]
  %v1039 = vld [vmem:[%s7] sm:$0x1]
  %v1041 = vlaneseq
  %v1042 = vshrl.u32 %v1041, 7
  %v1043 = vsub.s32 0, %v1042
  %v1044 = vrot.slane %v1039, %v1043
  %v1054 = vunpack.c.l.b16 %v1031
  %v1055 = vunpack.c.l.b16 %v1032
  %v1056 = vunpack.c.l.b16 %v1033
  %v1057 = vunpack.c.l.b16 %v1034
  %v1058 = vunpack.c.l.b16 %v1035
  %v1059 = vunpack.c.l.b16 %v1036
  %v1060 = vunpack.c.l.b16 %v1037
  %v1061 = vunpack.c.l.b16 %v1038
  %v1062 = vpack.c.b16 %v1055, %v1054
  %v1063 = vpack.c.b16 %v1057, %v1056
  %v1064 = vpack.c.b16 %v1059, %v1058
  %v1065 = vpack.c.b16 %v1061, %v1060
  %v1071 = vsel %vm912, %v1030, 0
  %1073 = vmatprep.subr.bf16.mxu0 0
  %1074 = vmatpush1.bf16.msra.mxu0 %v1062
  %1075 = vmatprep.subr.bf16.mxu0 0
  %1076 = vmatpush1.bf16.msra.mxu0 %v1063
  %1077 = vmatprep.subr.bf16.mxu0 0
  %1078 = vmatpush1.bf16.msra.mxu0 %v1064
  %1079 = vmatprep.subr.bf16.mxu0 0
  %1080 = vmatpush1.bf16.msra.mxu0 %v1065
  %1081 = vmatprep.subr.bf16.mxu0 0
  %1082 = vmatpush1.bf16.msra.mxu0 0
  %1083 = vmatprep.subr.bf16.mxu0 0
  %1084 = vmatpush1.bf16.msra.mxu0 0
  %1085 = vmatprep.subr.bf16.mxu0 0
  %1086 = vmatpush1.bf16.msra.mxu0 0
  %1087 = vmatprep.subr.bf16.mxu0 0
  %1088 = vmatpush1.bf16.msra.mxu0 0
  %1089 = vmatprep.subr.bf16.mxu0 0
  %1090 = vmatpush1.bf16.msra.mxu0 0
  %1091 = vmatprep.subr.bf16.mxu0 0
  %1092 = vmatpush1.bf16.msra.mxu0 0
  %1093 = vmatprep.subr.bf16.mxu0 0
  %1094 = vmatpush1.bf16.msra.mxu0 0
  %1095 = vmatprep.subr.bf16.mxu0 0
  %1096 = vmatpush1.bf16.msra.mxu0 0
  %1097 = vmatprep.subr.bf16.mxu0 0
  %1098 = vmatpush1.bf16.msra.mxu0 0
  %1099 = vmatprep.subr.bf16.mxu0 0
  %1100 = vmatpush1.bf16.msra.mxu0 0
  %1101 = vmatprep.subr.bf16.mxu0 0
  %1102 = vmatpush1.bf16.msra.mxu0 0
  %1103 = vmatprep.subr.bf16.mxu0 0
  %1104 = vmatpush1.bf16.msra.mxu0 0
  %1105 = vmatprep.mubr.bf16.mxu0 0
  %1106 = vmatmul.mubr.bf16.gmra.mrb[0].mxu0 %v1071
  %v1107 = vpop.f32.mrb[0].mxu0
  %v1108 = vadd.f32 %v1044, %v1107
  %v1109 = vpop.f32.mrb[0].mxu0
  %v1110 = vpop.f32.mrb[0].mxu0
  %v1111 = vadd.f32 %v1044, %v1110
  %v1112 = vpop.f32.mrb[0].mxu0
  %1113 = vdwg.mxu0
  %vm1114 = vcmask 31744
  %1115 = vst.msk [vmem:[%s8] sm:$0xff] %vm1114, %v1108
  %1116 = vst.msk [vmem:[%s8 + $0x8] sm:$0xff] %vm1114, %v1111
  // Predicated region
  $region41: #{tfcncap_lstm_forward.3} parent=0 // pred_check
    _
  $region42: #{tfcncap_lstm_forward.3} parent=0 // pred_check_branch
    %1118 = sbr.rel (0) target = $region44
  $region43: #{tfcncap_lstm_forward.3} parent=0 // pred_region
    _
  $region44: #{tfcncap_lstm_forward.3} parent=0 // pred_fallthru
    _
  // Predicated region
  $region45: #{tfcncap_lstm_forward.3} parent=0 // pred_check
    _
  $region46: #{tfcncap_lstm_forward.3} parent=0 // pred_check_branch
    %1120 = sbr.rel (0) target = $region48
  $region47: #{tfcncap_lstm_forward.3} parent=0 // pred_region
    _
  $region48: #{tfcncap_lstm_forward.3} parent=0 // pred_fallthru
    _

// kernel: tfcncap_lstm_forward.2
$region0: #{tfcncap_lstm_forward.2}
  #allocation0 [shape = 'u32[]', space=smem, size = 0x4, offset = 0x4, fixed_abs, tag = 'smem constant byte address 0x4 - core index']
  #allocation1 [shape = 'u32[144,128]{1,0:T(1,128)}', space=vmem, size = 0x12000, scoped, tag = 'internal scratch']
  %s0 = inlined_call_operand.vmem [shape: f32[16,256], index: 0, kind: input, shape index: {}]
  %s1 = inlined_call_operand.hbm [shape: bf16[256,4096], index: 1, kind: input, shape index: {}]
  %s2 = inlined_call_operand.hbm [shape: f32[1,4096], index: 2, kind: input, shape index: {}]
  %s3 = inlined_call_operand.hbm [shape: bf16[4096,128], index: 3, kind: input, shape index: {}]
  %s4 = inlined_call_operand.hbm [shape: f32[1,128], index: 4, kind: input, shape index: {}]
  %s5 = inlined_call_operand.vmem [shape: bf16[16,128], index: 5, kind: output, shape index: {}]
  %s6 = sld [smem:[#allocation0]]
  $region46: #{tfcncap_lstm_forward.2} parent=0
    _
  %s8 = ssub.s32 1, %s6
  %s9 = scalar_select 0, %s8, %s6
  $region1: #{tfcncap_lstm_forward.2} parent=0
    #allocation2 [shape = 'u8[2097152]{0}', space=vmem, size = 0x200000, scoped, tag = 'input window, operand 1, single buffered']
    #allocation3 [shape = 's32[1]{0}', space=sflag, size = 0x4, scoped, tag = 'scoped memory for tfcncap_lstm_forward.2']
    #allocation4 [shape = 'u8[16384]{0}', space=vmem, size = 0x4000, scoped, tag = 'input window, operand 2, single buffered']
    #allocation5 [shape = 's32[1]{0}', space=sflag, size = 0x4, scoped, tag = 'scoped memory for tfcncap_lstm_forward.2']
    #allocation6 [shape = 'u8[1048576]{0}', space=vmem, size = 0x100000, scoped, tag = 'input window, operand 3, single buffered']
    #allocation7 [shape = 'u8[512]{0}', space=vmem, size = 0x400, scoped, tag = 'input window, operand 4, single buffered']
    #allocation8 [shape = 's32[1]{0}', space=sflag, size = 0x4, scoped, tag = 'scoped memory for tfcncap_lstm_forward.2']
    %10 = vsyncpa [#allocation3], 0
    %11 = vsyncpa [#allocation5], 0
    %12 = vsyncpa [#allocation8], 0
    // Predicated region
    $region2: #{tfcncap_lstm_forward.2} parent=1 // pred_check
      _
    $region3: #{tfcncap_lstm_forward.2} parent=1 // pred_check_branch
      %14 = sbr.rel (0) target = $region5
    $region4: #{tfcncap_lstm_forward.2} parent=1 // pred_region
      _
    $region5: #{tfcncap_lstm_forward.2} parent=1 // pred_fallthru
      _
    // Predicated region
    $region6: #{tfcncap_lstm_forward.2} parent=1 // pred_check
      _
    $region7: #{tfcncap_lstm_forward.2} parent=1 // pred_check_branch
      %16 = sbr.rel (0) target = $region9
    $region8: #{tfcncap_lstm_forward.2} parent=1 // pred_region
      %s18 = ssub.s32 65536, 65536
      %19 = vsyncadd [#allocation3], %s18
      %s20 = sshll.u32 [#allocation2], 4
      %s21 = int_to_ptr.vmem [resolvable:$true] %s20
      %26 = dma.hbm_to_vmem [thread:$0]  %s1, 65536, %s21, [#allocation3], 2048, 2048, 128
    $region9: #{tfcncap_lstm_forward.2} parent=1 // pred_fallthru
      _
    // Predicated region
    $region10: #{tfcncap_lstm_forward.2} parent=1 // pred_check
      _
    $region11: #{tfcncap_lstm_forward.2} parent=1 // pred_check_branch
      %28 = sbr.rel (0) target = $region13
    $region12: #{tfcncap_lstm_forward.2} parent=1 // pred_region
      %s30 = ssub.s32 512, 512
      %31 = vsyncadd [#allocation5], %s30
      %s33 = sshll.u32 [#allocation4], 4
      %s34 = int_to_ptr.vmem [resolvable:$true] %s33
      %36 = dma.hbm_to_vmem [thread:$0]  %s2, 512, %s34, [#allocation5]
    $region13: #{tfcncap_lstm_forward.2} parent=1 // pred_fallthru
      _
    // Predicated region
    $region14: #{tfcncap_lstm_forward.2} parent=1 // pred_check
      _
    $region15: #{tfcncap_lstm_forward.2} parent=1 // pred_check_branch
      %38 = sbr.rel (0) target = $region17
    $region16: #{tfcncap_lstm_forward.2} parent=1 // pred_region
      %s40 = ssub.s32 32768, 32768
      %41 = vsyncadd [#allocation5], %s40
      %s42 = sshll.u32 [#allocation6], 4
      %s43 = int_to_ptr.vmem [resolvable:$true] %s42
      %48 = dma.hbm_to_vmem [thread:$0]  %s3, 32768, %s43, [#allocation5], 64, 64, 4
    $region17: #{tfcncap_lstm_forward.2} parent=1 // pred_fallthru
      _
    // Predicated region
    $region18: #{tfcncap_lstm_forward.2} parent=1 // pred_check
      _
    $region19: #{tfcncap_lstm_forward.2} parent=1 // pred_check_branch
      %50 = sbr.rel (0) target = $region21
    $region20: #{tfcncap_lstm_forward.2} parent=1 // pred_region
      %s52 = ssub.s32 16, 16
      %53 = vsyncadd [#allocation8], %s52
      %s55 = sshll.u32 [#allocation7], 4
      %s56 = int_to_ptr.vmem [resolvable:$true] %s55
      %58 = dma.hbm_to_vmem [thread:$0]  %s4, 16, %s56, [#allocation8]
    $region21: #{tfcncap_lstm_forward.2} parent=1 // pred_fallthru
      _
    // Predicated region
    $region22: #{tfcncap_lstm_forward.2} parent=1 // pred_check
      _
    $region23: #{tfcncap_lstm_forward.2} parent=1 // pred_check_branch
      %60 = sbr.rel (0) target = $region25
    $region24: #{tfcncap_lstm_forward.2} parent=1 // pred_region
      %61 = dma.done [#allocation3], 65536
    $region25: #{tfcncap_lstm_forward.2} parent=1 // pred_fallthru
      _
    // Predicated region
    $region26: #{tfcncap_lstm_forward.2} parent=1 // pred_check
      _
    $region27: #{tfcncap_lstm_forward.2} parent=1 // pred_check_branch
      %63 = sbr.rel (0) target = $region29
    $region28: #{tfcncap_lstm_forward.2} parent=1 // pred_region
      %64 = dma.done [#allocation5], 512
    $region29: #{tfcncap_lstm_forward.2} parent=1 // pred_fallthru
      _
    // Predicated region
    $region30: #{tfcncap_lstm_forward.2} parent=1 // pred_check
      _
    $region31: #{tfcncap_lstm_forward.2} parent=1 // pred_check_branch
      %66 = sbr.rel (0) target = $region33
    $region32: #{tfcncap_lstm_forward.2} parent=1 // pred_region
      %67 = dma.done [#allocation5], 32768
    $region33: #{tfcncap_lstm_forward.2} parent=1 // pred_fallthru
      _
    // Predicated region
    $region34: #{tfcncap_lstm_forward.2} parent=1 // pred_check
      _
    $region35: #{tfcncap_lstm_forward.2} parent=1 // pred_check_branch
      %69 = sbr.rel (0) target = $region37
    $region36: #{tfcncap_lstm_forward.2} parent=1 // pred_region
      %70 = dma.done [#allocation8], 16
    $region37: #{tfcncap_lstm_forward.2} parent=1 // pred_fallthru
      _
    %v72 = vld [vmem:[%s0] sm:$0xff]
    %v73 = vld [vmem:[%s0 + $0x8] sm:$0xff]
    %v74 = vld [vmem:[%s0 + $0x10] sm:$0xff]
    %v75 = vld [vmem:[%s0 + $0x18] sm:$0xff]
    %v76 = vpack.c.bf16 %v74, %v72
    %v77 = vpack.c.bf16 %v75, %v73
    %v78 = vld [vmem:[#allocation2] sm:$0xff]
    %v79 = vld [vmem:[#allocation2 + $0x8] sm:$0xff]
    %v80 = vld [vmem:[#allocation2 + $0x10] sm:$0xff]
    %v81 = vld [vmem:[#allocation2 + $0x18] sm:$0xff]
    %v82 = vld [vmem:[#allocation2 + $0x20] sm:$0xff]
    %v83 = vld [vmem:[#allocation2 + $0x28] sm:$0xff]
    %v84 = vld [vmem:[#allocation2 + $0x30] sm:$0xff]
    %v85 = vld [vmem:[#allocation2 + $0x38] sm:$0xff]
    %v86 = vld [vmem:[#allocation2 + $0x40] sm:$0xff]
    %v87 = vld [vmem:[#allocation2 + $0x48] sm:$0xff]
    %v88 = vld [vmem:[#allocation2 + $0x50] sm:$0xff]
    %v89 = vld [vmem:[#allocation2 + $0x58] sm:$0xff]
    %v90 = vld [vmem:[#allocation2 + $0x60] sm:$0xff]
    %v91 = vld [vmem:[#allocation2 + $0x68] sm:$0xff]
    %v92 = vld [vmem:[#allocation2 + $0x70] sm:$0xff]
    %v93 = vld [vmem:[#allocation2 + $0x78] sm:$0xff]
    %v94 = vld [vmem:[#allocation2 + $0x80] sm:$0xff]
    %v95 = vld [vmem:[#allocation2 + $0x88] sm:$0xff]
    %v96 = vld [vmem:[#allocation2 + $0x90] sm:$0xff]
    %v97 = vld [vmem:[#allocation2 + $0x98] sm:$0xff]
    %v98 = vld [vmem:[#allocation2 + $0xa0] sm:$0xff]
    %v99 = vld [vmem:[#allocation2 + $0xa8] sm:$0xff]
    %v100 = vld [vmem:[#allocation2 + $0xb0] sm:$0xff]
    %v101 = vld [vmem:[#allocation2 + $0xb8] sm:$0xff]
    %v102 = vld [vmem:[#allocation2 + $0xc0] sm:$0xff]
    %v103 = vld [vmem:[#allocation2 + $0xc8] sm:$0xff]
    %v104 = vld [vmem:[#allocation2 + $0xd0] sm:$0xff]
    %v105 = vld [vmem:[#allocation2 + $0xd8] sm:$0xff]
    %v106 = vld [vmem:[#allocation2 + $0xe0] sm:$0xff]
    %v107 = vld [vmem:[#allocation2 + $0xe8] sm:$0xff]
    %v108 = vld [vmem:[#allocation2 + $0xf0] sm:$0xff]
    %v109 = vld [vmem:[#allocation2 + $0xf8] sm:$0xff]
    %v110 = vld [vmem:[#allocation2 + $0x100] sm:$0xff]
    %v111 = vld [vmem:[#allocation2 + $0x108] sm:$0xff]
    %v112 = vld [vmem:[#allocation2 + $0x110] sm:$0xff]
    %v113 = vld [vmem:[#allocation2 + $0x118] sm:$0xff]
    %v114 = vld [vmem:[#allocation2 + $0x120] sm:$0xff]
    %v115 = vld [vmem:[#allocation2 + $0x128] sm:$0xff]
    %v116 = vld [vmem:[#allocation2 + $0x130] sm:$0xff]
    %v117 = vld [vmem:[#allocation2 + $0x138] sm:$0xff]
    %v118 = vld [vmem:[#allocation2 + $0x140] sm:$0xff]
    %v119 = vld [vmem:[#allocation2 + $0x148] sm:$0xff]
    %v120 = vld [vmem:[#allocation2 + $0x150] sm:$0xff]
    %v121 = vld [vmem:[#allocation2 + $0x158] sm:$0xff]
    %v122 = vld [vmem:[#allocation2 + $0x160] sm:$0xff]
    %v123 = vld [vmem:[#allocation2 + $0x168] sm:$0xff]
    %v124 = vld [vmem:[#allocation2 + $0x170] sm:$0xff]
    %v125 = vld [vmem:[#allocation2 + $0x178] sm:$0xff]
    %v126 = vld [vmem:[#allocation2 + $0x180] sm:$0xff]
    %v127 = vld [vmem:[#allocation2 + $0x188] sm:$0xff]
    %v128 = vld [vmem:[#allocation2 + $0x190] sm:$0xff]
    %v129 = vld [vmem:[#allocation2 + $0x198] sm:$0xff]
    %v130 = vld [vmem:[#allocation2 + $0x1a0] sm:$0xff]
    %v131 = vld [vmem:[#allocation2 + $0x1a8] sm:$0xff]
    %v132 = vld [vmem:[#allocation2 + $0x1b0] sm:$0xff]
    %v133 = vld [vmem:[#allocation2 + $0x1b8] sm:$0xff]
    %v134 = vld [vmem:[#allocation2 + $0x1c0] sm:$0xff]
    %v135 = vld [vmem:[#allocation2 + $0x1c8] sm:$0xff]
    %v136 = vld [vmem:[#allocation2 + $0x1d0] sm:$0xff]
    %v137 = vld [vmem:[#allocation2 + $0x1d8] sm:$0xff]
    %v138 = vld [vmem:[#allocation2 + $0x1e0] sm:$0xff]
    %v139 = vld [vmem:[#allocation2 + $0x1e8] sm:$0xff]
    %v140 = vld [vmem:[#allocation2 + $0x1f0] sm:$0xff]
    %v141 = vld [vmem:[#allocation2 + $0x1f8] sm:$0xff]
    %v142 = vld [vmem:[#allocation2 + $0x200] sm:$0xff]
    %v143 = vld [vmem:[#allocation2 + $0x208] sm:$0xff]
    %v144 = vld [vmem:[#allocation2 + $0x210] sm:$0xff]
    %v145 = vld [vmem:[#allocation2 + $0x218] sm:$0xff]
    %v146 = vld [vmem:[#allocation2 + $0x220] sm:$0xff]
    %v147 = vld [vmem:[#allocation2 + $0x228] sm:$0xff]
    %v148 = vld [vmem:[#allocation2 + $0x230] sm:$0xff]
    %v149 = vld [vmem:[#allocation2 + $0x238] sm:$0xff]
    %v150 = vld [vmem:[#allocation2 + $0x240] sm:$0xff]
    %v151 = vld [vmem:[#allocation2 + $0x248] sm:$0xff]
    %v152 = vld [vmem:[#allocation2 + $0x250] sm:$0xff]
    %v153 = vld [vmem:[#allocation2 + $0x258] sm:$0xff]
    %v154 = vld [vmem:[#allocation2 + $0x260] sm:$0xff]
    %v155 = vld [vmem:[#allocation2 + $0x268] sm:$0xff]
    %v156 = vld [vmem:[#allocation2 + $0x270] sm:$0xff]
    %v157 = vld [vmem:[#allocation2 + $0x278] sm:$0xff]
    %v158 = vld [vmem:[#allocation2 + $0x280] sm:$0xff]
    %v159 = vld [vmem:[#allocation2 + $0x288] sm:$0xff]
    %v160 = vld [vmem:[#allocation2 + $0x290] sm:$0xff]
    %v161 = vld [vmem:[#allocation2 + $0x298] sm:$0xff]
    %v162 = vld [vmem:[#allocation2 + $0x2a0] sm:$0xff]
    %v163 = vld [vmem:[#allocation2 + $0x2a8] sm:$0xff]
    %v164 = vld [vmem:[#allocation2 + $0x2b0] sm:$0xff]
    %v165 = vld [vmem:[#allocation2 + $0x2b8] sm:$0xff]
    %v166 = vld [vmem:[#allocation2 + $0x2c0] sm:$0xff]
    %v167 = vld [vmem:[#allocation2 + $0x2c8] sm:$0xff]
    %v168 = vld [vmem:[#allocation2 + $0x2d0] sm:$0xff]
    %v169 = vld [vmem:[#allocation2 + $0x2d8] sm:$0xff]
    %v170 = vld [vmem:[#allocation2 + $0x2e0] sm:$0xff]
    %v171 = vld [vmem:[#allocation2 + $0x2e8] sm:$0xff]
    %v172 = vld [vmem:[#allocation2 + $0x2f0] sm:$0xff]
    %v173 = vld [vmem:[#allocation2 + $0x2f8] sm:$0xff]
    %v174 = vld [vmem:[#allocation2 + $0x300] sm:$0xff]
    %v175 = vld [vmem:[#allocation2 + $0x308] sm:$0xff]
    %v176 = vld [vmem:[#allocation2 + $0x310] sm:$0xff]
    %v177 = vld [vmem:[#allocation2 + $0x318] sm:$0xff]
    %v178 = vld [vmem:[#allocation2 + $0x320] sm:$0xff]
    %v179 = vld [vmem:[#allocation2 + $0x328] sm:$0xff]
    %v180 = vld [vmem:[#allocation2 + $0x330] sm:$0xff]
    %v181 = vld [vmem:[#allocation2 + $0x338] sm:$0xff]
    %v182 = vld [vmem:[#allocation2 + $0x340] sm:$0xff]
    %v183 = vld [vmem:[#allocation2 + $0x348] sm:$0xff]
    %v184 = vld [vmem:[#allocation2 + $0x350] sm:$0xff]
    %v185 = vld [vmem:[#allocation2 + $0x358] sm:$0xff]
    %v186 = vld [vmem:[#allocation2 + $0x360] sm:$0xff]
    %v187 = vld [vmem:[#allocation2 + $0x368] sm:$0xff]
    %v188 = vld [vmem:[#allocation2 + $0x370] sm:$0xff]
    %v189 = vld [vmem:[#allocation2 + $0x378] sm:$0xff]
    %v190 = vld [vmem:[#allocation2 + $0x380] sm:$0xff]
    %v191 = vld [vmem:[#allocation2 + $0x388] sm:$0xff]
    %v192 = vld [vmem:[#allocation2 + $0x390] sm:$0xff]
    %v193 = vld [vmem:[#allocation2 + $0x398] sm:$0xff]
    %v194 = vld [vmem:[#allocation2 + $0x3a0] sm:$0xff]
    %v195 = vld [vmem:[#allocation2 + $0x3a8] sm:$0xff]
    %v196 = vld [vmem:[#allocation2 + $0x3b0] sm:$0xff]
    %v197 = vld [vmem:[#allocation2 + $0x3b8] sm:$0xff]
    %v198 = vld [vmem:[#allocation2 + $0x3c0] sm:$0xff]
    %v199 = vld [vmem:[#allocation2 + $0x3c8] sm:$0xff]
    %v200 = vld [vmem:[#allocation2 + $0x3d0] sm:$0xff]
    %v201 = vld [vmem:[#allocation2 + $0x3d8] sm:$0xff]
    %v202 = vld [vmem:[#allocation2 + $0x3e0] sm:$0xff]
    %v203 = vld [vmem:[#allocation2 + $0x3e8] sm:$0xff]
    %v204 = vld [vmem:[#allocation2 + $0x3f0] sm:$0xff]
    %v205 = vld [vmem:[#allocation2 + $0x3f8] sm:$0xff]
    %v206 = vld [vmem:[#allocation2 + $0x400] sm:$0xff]
    %v207 = vld [vmem:[#allocation2 + $0x408] sm:$0xff]
    %v208 = vld [vmem:[#allocation2 + $0x410] sm:$0xff]
    %v209 = vld [vmem:[#allocation2 + $0x418] sm:$0xff]
    %v210 = vld [vmem:[#allocation2 + $0x420] sm:$0xff]
    %v211 = vld [vmem:[#allocation2 + $0x428] sm:$0xff]
    %v212 = vld [vmem:[#allocation2 + $0x430] sm:$0xff]
    %v213 = vld [vmem:[#allocation2 + $0x438] sm:$0xff]
    %v214 = vld [vmem:[#allocation2 + $0x440] sm:$0xff]
    %v215 = vld [vmem:[#allocation2 + $0x448] sm:$0xff]
    %v216 = vld [vmem:[#allocation2 + $0x450] sm:$0xff]
    %v217 = vld [vmem:[#allocation2 + $0x458] sm:$0xff]
    %v218 = vld [vmem:[#allocation2 + $0x460] sm:$0xff]
    %v219 = vld [vmem:[#allocation2 + $0x468] sm:$0xff]
    %v220 = vld [vmem:[#allocation2 + $0x470] sm:$0xff]
    %v221 = vld [vmem:[#allocation2 + $0x478] sm:$0xff]
    %v222 = vld [vmem:[#allocation2 + $0x480] sm:$0xff]
    %v223 = vld [vmem:[#allocation2 + $0x488] sm:$0xff]
    %v224 = vld [vmem:[#allocation2 + $0x490] sm:$0xff]
    %v225 = vld [vmem:[#allocation2 + $0x498] sm:$0xff]
    %v226 = vld [vmem:[#allocation2 + $0x4a0] sm:$0xff]
    %v227 = vld [vmem:[#allocation2 + $0x4a8] sm:$0xff]
    %v228 = vld [vmem:[#allocation2 + $0x4b0] sm:$0xff]
    %v229 = vld [vmem:[#allocation2 + $0x4b8] sm:$0xff]
    %v230 = vld [vmem:[#allocation2 + $0x4c0] sm:$0xff]
    %v231 = vld [vmem:[#allocation2 + $0x4c8] sm:$0xff]
    %v232 = vld [vmem:[#allocation2 + $0x4d0] sm:$0xff]
    %v233 = vld [vmem:[#allocation2 + $0x4d8] sm:$0xff]
    %v234 = vld [vmem:[#allocation2 + $0x4e0] sm:$0xff]
    %v235 = vld [vmem:[#allocation2 + $0x4e8] sm:$0xff]
    %v236 = vld [vmem:[#allocation2 + $0x4f0] sm:$0xff]
    %v237 = vld [vmem:[#allocation2 + $0x4f8] sm:$0xff]
    %v238 = vld [vmem:[#allocation2 + $0x500] sm:$0xff]
    %v239 = vld [vmem:[#allocation2 + $0x508] sm:$0xff]
    %v240 = vld [vmem:[#allocation2 + $0x510] sm:$0xff]
    %v241 = vld [vmem:[#allocation2 + $0x518] sm:$0xff]
    %v242 = vld [vmem:[#allocation2 + $0x520] sm:$0xff]
    %v243 = vld [vmem:[#allocation2 + $0x528] sm:$0xff]
    %v244 = vld [vmem:[#allocation2 + $0x530] sm:$0xff]
    %v245 = vld [vmem:[#allocation2 + $0x538] sm:$0xff]
    %v246 = vld [vmem:[#allocation2 + $0x540] sm:$0xff]
    %v247 = vld [vmem:[#allocation2 + $0x548] sm:$0xff]
    %v248 = vld [vmem:[#allocation2 + $0x550] sm:$0xff]
    %v249 = vld [vmem:[#allocation2 + $0x558] sm:$0xff]
    %v250 = vld [vmem:[#allocation2 + $0x560] sm:$0xff]
    %v251 = vld [vmem:[#allocation2 + $0x568] sm:$0xff]
    %v252 = vld [vmem:[#allocation2 + $0x570] sm:$0xff]
    %v253 = vld [vmem:[#allocation2 + $0x578] sm:$0xff]
    %v254 = vld [vmem:[#allocation2 + $0x580] sm:$0xff]
    %v255 = vld [vmem:[#allocation2 + $0x588] sm:$0xff]
    %v256 = vld [vmem:[#allocation2 + $0x590] sm:$0xff]
    %v257 = vld [vmem:[#allocation2 + $0x598] sm:$0xff]
    %v258 = vld [vmem:[#allocation2 + $0x5a0] sm:$0xff]
    %v259 = vld [vmem:[#allocation2 + $0x5a8] sm:$0xff]
    %v260 = vld [vmem:[#allocation2 + $0x5b0] sm:$0xff]
    %v261 = vld [vmem:[#allocation2 + $0x5b8] sm:$0xff]
    %v262 = vld [vmem:[#allocation2 + $0x5c0] sm:$0xff]
    %v263 = vld [vmem:[#allocation2 + $0x5c8] sm:$0xff]
    %v264 = vld [vmem:[#allocation2 + $0x5d0] sm:$0xff]
    %v265 = vld [vmem:[#allocation2 + $0x5d8] sm:$0xff]
    %v266 = vld [vmem:[#allocation2 + $0x5e0] sm:$0xff]
    %v267 = vld [vmem:[#allocation2 + $0x5e8] sm:$0xff]
    %v268 = vld [vmem:[#allocation2 + $0x5f0] sm:$0xff]
    %v269 = vld [vmem:[#allocation2 + $0x5f8] sm:$0xff]
    %v270 = vld [vmem:[#allocation2 + $0x600] sm:$0xff]
    %v271 = vld [vmem:[#allocation2 + $0x608] sm:$0xff]
    %v272 = vld [vmem:[#allocation2 + $0x610] sm:$0xff]
    %v273 = vld [vmem:[#allocation2 + $0x618] sm:$0xff]
    %v274 = vld [vmem:[#allocation2 + $0x620] sm:$0xff]
    %v275 = vld [vmem:[#allocation2 + $0x628] sm:$0xff]
    %v276 = vld [vmem:[#allocation2 + $0x630] sm:$0xff]
    %v277 = vld [vmem:[#allocation2 + $0x638] sm:$0xff]
    %v278 = vld [vmem:[#allocation2 + $0x640] sm:$0xff]
    %v279 = vld [vmem:[#allocation2 + $0x648] sm:$0xff]
    %v280 = vld [vmem:[#allocation2 + $0x650] sm:$0xff]
    %v281 = vld [vmem:[#allocation2 + $0x658] sm:$0xff]
    %v282 = vld [vmem:[#allocation2 + $0x660] sm:$0xff]
    %v283 = vld [vmem:[#allocation2 + $0x668] sm:$0xff]
    %v284 = vld [vmem:[#allocation2 + $0x670] sm:$0xff]
    %v285 = vld [vmem:[#allocation2 + $0x678] sm:$0xff]
    %v286 = vld [vmem:[#allocation2 + $0x680] sm:$0xff]
    %v287 = vld [vmem:[#allocation2 + $0x688] sm:$0xff]
    %v288 = vld [vmem:[#allocation2 + $0x690] sm:$0xff]
    %v289 = vld [vmem:[#allocation2 + $0x698] sm:$0xff]
    %v290 = vld [vmem:[#allocation2 + $0x6a0] sm:$0xff]
    %v291 = vld [vmem:[#allocation2 + $0x6a8] sm:$0xff]
    %v292 = vld [vmem:[#allocation2 + $0x6b0] sm:$0xff]
    %v293 = vld [vmem:[#allocation2 + $0x6b8] sm:$0xff]
    %v294 = vld [vmem:[#allocation2 + $0x6c0] sm:$0xff]
    %v295 = vld [vmem:[#allocation2 + $0x6c8] sm:$0xff]
    %v296 = vld [vmem:[#allocation2 + $0x6d0] sm:$0xff]
    %v297 = vld [vmem:[#allocation2 + $0x6d8] sm:$0xff]
    %v298 = vld [vmem:[#allocation2 + $0x6e0] sm:$0xff]
    %v299 = vld [vmem:[#allocation2 + $0x6e8] sm:$0xff]
    %v300 = vld [vmem:[#allocation2 + $0x6f0] sm:$0xff]
    %v301 = vld [vmem:[#allocation2 + $0x6f8] sm:$0xff]
    %v302 = vld [vmem:[#allocation2 + $0x700] sm:$0xff]
    %v303 = vld [vmem:[#allocation2 + $0x708] sm:$0xff]
    %v304 = vld [vmem:[#allocation2 + $0x710] sm:$0xff]
    %v305 = vld [vmem:[#allocation2 + $0x718] sm:$0xff]
    %v306 = vld [vmem:[#allocation2 + $0x720] sm:$0xff]
    %v307 = vld [vmem:[#allocation2 + $0x728] sm:$0xff]
    %v308 = vld [vmem:[#allocation2 + $0x730] sm:$0xff]
    %v309 = vld [vmem:[#allocation2 + $0x738] sm:$0xff]
    %v310 = vld [vmem:[#allocation2 + $0x740] sm:$0xff]
    %v311 = vld [vmem:[#allocation2 + $0x748] sm:$0xff]
    %v312 = vld [vmem:[#allocation2 + $0x750] sm:$0xff]
    %v313 = vld [vmem:[#allocation2 + $0x758] sm:$0xff]
    %v314 = vld [vmem:[#allocation2 + $0x760] sm:$0xff]
    %v315 = vld [vmem:[#allocation2 + $0x768] sm:$0xff]
    %v316 = vld [vmem:[#allocation2 + $0x770] sm:$0xff]
    %v317 = vld [vmem:[#allocation2 + $0x778] sm:$0xff]
    %v318 = vld [vmem:[#allocation2 + $0x780] sm:$0xff]
    %v319 = vld [vmem:[#allocation2 + $0x788] sm:$0xff]
    %v320 = vld [vmem:[#allocation2 + $0x790] sm:$0xff]
    %v321 = vld [vmem:[#allocation2 + $0x798] sm:$0xff]
    %v322 = vld [vmem:[#allocation2 + $0x7a0] sm:$0xff]
    %v323 = vld [vmem:[#allocation2 + $0x7a8] sm:$0xff]
    %v324 = vld [vmem:[#allocation2 + $0x7b0] sm:$0xff]
    %v325 = vld [vmem:[#allocation2 + $0x7b8] sm:$0xff]
    %v326 = vld [vmem:[#allocation2 + $0x7c0] sm:$0xff]
    %v327 = vld [vmem:[#allocation2 + $0x7c8] sm:$0xff]
    %v328 = vld [vmem:[#allocation2 + $0x7d0] sm:$0xff]
    %v329 = vld [vmem:[#allocation2 + $0x7d8] sm:$0xff]
    %v330 = vld [vmem:[#allocation2 + $0x7e0] sm:$0xff]
    %v331 = vld [vmem:[#allocation2 + $0x7e8] sm:$0xff]
    %v332 = vld [vmem:[#allocation2 + $0x7f0] sm:$0xff]
    %v333 = vld [vmem:[#allocation2 + $0x7f8] sm:$0xff]
    %v334 = vld [vmem:[#allocation2 + $0x800] sm:$0xff]
    %v335 = vld [vmem:[#allocation2 + $0x808] sm:$0xff]
    %v336 = vld [vmem:[#allocation2 + $0x810] sm:$0xff]
    %v337 = vld [vmem:[#allocation2 + $0x818] sm:$0xff]
    %v338 = vld [vmem:[#allocation2 + $0x820] sm:$0xff]
    %v339 = vld [vmem:[#allocation2 + $0x828] sm:$0xff]
    %v340 = vld [vmem:[#allocation2 + $0x830] sm:$0xff]
    %v341 = vld [vmem:[#allocation2 + $0x838] sm:$0xff]
    %v342 = vld [vmem:[#allocation2 + $0x840] sm:$0xff]
    %v343 = vld [vmem:[#allocation2 + $0x848] sm:$0xff]
    %v344 = vld [vmem:[#allocation2 + $0x850] sm:$0xff]
    %v345 = vld [vmem:[#allocation2 + $0x858] sm:$0xff]
    %v346 = vld [vmem:[#allocation2 + $0x860] sm:$0xff]
    %v347 = vld [vmem:[#allocation2 + $0x868] sm:$0xff]
    %v348 = vld [vmem:[#allocation2 + $0x870] sm:$0xff]
    %v349 = vld [vmem:[#allocation2 + $0x878] sm:$0xff]
    %v350 = vld [vmem:[#allocation2 + $0x880] sm:$0xff]
    %v351 = vld [vmem:[#allocation2 + $0x888] sm:$0xff]
    %v352 = vld [vmem:[#allocation2 + $0x890] sm:$0xff]
    %v353 = vld [vmem:[#allocation2 + $0x898] sm:$0xff]
    %v354 = vld [vmem:[#allocation2 + $0x8a0] sm:$0xff]
    %v355 = vld [vmem:[#allocation2 + $0x8a8] sm:$0xff]
    %v356 = vld [vmem:[#allocation2 + $0x8b0] sm:$0xff]
    %v357 = vld [vmem:[#allocation2 + $0x8b8] sm:$0xff]
    %v358 = vld [vmem:[#allocation2 + $0x8c0] sm:$0xff]
    %v359 = vld [vmem:[#allocation2 + $0x8c8] sm:$0xff]
    %v360 = vld [vmem:[#allocation2 + $0x8d0] sm:$0xff]
    %v361 = vld [vmem:[#allocation2 + $0x8d8] sm:$0xff]
    %v362 = vld [vmem:[#allocation2 + $0x8e0] sm:$0xff]
    %v363 = vld [vmem:[#allocation2 + $0x8e8] sm:$0xff]
    %v364 = vld [vmem:[#allocation2 + $0x8f0] sm:$0xff]
    %v365 = vld [vmem:[#allocation2 + $0x8f8] sm:$0xff]
    %v366 = vld [vmem:[#allocation2 + $0x900] sm:$0xff]
    %v367 = vld [vmem:[#allocation2 + $0x908] sm:$0xff]
    %v368 = vld [vmem:[#allocation2 + $0x910] sm:$0xff]
    %v369 = vld [vmem:[#allocation2 + $0x918] sm:$0xff]
    %v370 = vld [vmem:[#allocation2 + $0x920] sm:$0xff]
    %v371 = vld [vmem:[#allocation2 + $0x928] sm:$0xff]
    %v372 = vld [vmem:[#allocation2 + $0x930] sm:$0xff]
    %v373 = vld [vmem:[#allocation2 + $0x938] sm:$0xff]
    %v374 = vld [vmem:[#allocation2 + $0x940] sm:$0xff]
    %v375 = vld [vmem:[#allocation2 + $0x948] sm:$0xff]
    %v376 = vld [vmem:[#allocation2 + $0x950] sm:$0xff]
    %v377 = vld [vmem:[#allocation2 + $0x958] sm:$0xff]
    %v378 = vld [vmem:[#allocation2 + $0x960] sm:$0xff]
    %v379 = vld [vmem:[#allocation2 + $0x968] sm:$0xff]
    %v380 = vld [vmem:[#allocation2 + $0x970] sm:$0xff]
    %v381 = vld [vmem:[#allocation2 + $0x978] sm:$0xff]
    %v382 = vld [vmem:[#allocation2 + $0x980] sm:$0xff]
    %v383 = vld [vmem:[#allocation2 + $0x988] sm:$0xff]
    %v384 = vld [vmem:[#allocation2 + $0x990] sm:$0xff]
    %v385 = vld [vmem:[#allocation2 + $0x998] sm:$0xff]
    %v386 = vld [vmem:[#allocation2 + $0x9a0] sm:$0xff]
    %v387 = vld [vmem:[#allocation2 + $0x9a8] sm:$0xff]
    %v388 = vld [vmem:[#allocation2 + $0x9b0] sm:$0xff]
    %v389 = vld [vmem:[#allocation2 + $0x9b8] sm:$0xff]
    %v390 = vld [vmem:[#allocation2 + $0x9c0] sm:$0xff]
    %v391 = vld [vmem:[#allocation2 + $0x9c8] sm:$0xff]
    %v392 = vld [vmem:[#allocation2 + $0x9d0] sm:$0xff]
    %v393 = vld [vmem:[#allocation2 + $0x9d8] sm:$0xff]
    %v394 = vld [vmem:[#allocation2 + $0x9e0] sm:$0xff]
    %v395 = vld [vmem:[#allocation2 + $0x9e8] sm:$0xff]
    %v396 = vld [vmem:[#allocation2 + $0x9f0] sm:$0xff]
    %v397 = vld [vmem:[#allocation2 + $0x9f8] sm:$0xff]
    %v398 = vld [vmem:[#allocation2 + $0xa00] sm:$0xff]
    %v399 = vld [vmem:[#allocation2 + $0xa08] sm:$0xff]
    %v400 = vld [vmem:[#allocation2 + $0xa10] sm:$0xff]
    %v401 = vld [vmem:[#allocation2 + $0xa18] sm:$0xff]
    %v402 = vld [vmem:[#allocation2 + $0xa20] sm:$0xff]
    %v403 = vld [vmem:[#allocation2 + $0xa28] sm:$0xff]
    %v404 = vld [vmem:[#allocation2 + $0xa30] sm:$0xff]
    %v405 = vld [vmem:[#allocation2 + $0xa38] sm:$0xff]
    %v406 = vld [vmem:[#allocation2 + $0xa40] sm:$0xff]
    %v407 = vld [vmem:[#allocation2 + $0xa48] sm:$0xff]
    %v408 = vld [vmem:[#allocation2 + $0xa50] sm:$0xff]
    %v409 = vld [vmem:[#allocation2 + $0xa58] sm:$0xff]
    %v410 = vld [vmem:[#allocation2 + $0xa60] sm:$0xff]
    %v411 = vld [vmem:[#allocation2 + $0xa68] sm:$0xff]
    %v412 = vld [vmem:[#allocation2 + $0xa70] sm:$0xff]
    %v413 = vld [vmem:[#allocation2 + $0xa78] sm:$0xff]
    %v414 = vld [vmem:[#allocation2 + $0xa80] sm:$0xff]
    %v415 = vld [vmem:[#allocation2 + $0xa88] sm:$0xff]
    %v416 = vld [vmem:[#allocation2 + $0xa90] sm:$0xff]
    %v417 = vld [vmem:[#allocation2 + $0xa98] sm:$0xff]
    %v418 = vld [vmem:[#allocation2 + $0xaa0] sm:$0xff]
    %v419 = vld [vmem:[#allocation2 + $0xaa8] sm:$0xff]
    %v420 = vld [vmem:[#allocation2 + $0xab0] sm:$0xff]
    %v421 = vld [vmem:[#allocation2 + $0xab8] sm:$0xff]
    %v422 = vld [vmem:[#allocation2 + $0xac0] sm:$0xff]
    %v423 = vld [vmem:[#allocation2 + $0xac8] sm:$0xff]
    %v424 = vld [vmem:[#allocation2 + $0xad0] sm:$0xff]
    %v425 = vld [vmem:[#allocation2 + $0xad8] sm:$0xff]
    %v426 = vld [vmem:[#allocation2 + $0xae0] sm:$0xff]
    %v427 = vld [vmem:[#allocation2 + $0xae8] sm:$0xff]
    %v428 = vld [vmem:[#allocation2 + $0xaf0] sm:$0xff]
    %v429 = vld [vmem:[#allocation2 + $0xaf8] sm:$0xff]
    %v430 = vld [vmem:[#allocation2 + $0xb00] sm:$0xff]
    %v431 = vld [vmem:[#allocation2 + $0xb08] sm:$0xff]
    %v432 = vld [vmem:[#allocation2 + $0xb10] sm:$0xff]
    %v433 = vld [vmem:[#allocation2 + $0xb18] sm:$0xff]
    %v434 = vld [vmem:[#allocation2 + $0xb20] sm:$0xff]
    %v435 = vld [vmem:[#allocation2 + $0xb28] sm:$0xff]
    %v436 = vld [vmem:[#allocation2 + $0xb30] sm:$0xff]
    %v437 = vld [vmem:[#allocation2 + $0xb38] sm:$0xff]
    %v438 = vld [vmem:[#allocation2 + $0xb40] sm:$0xff]
    %v439 = vld [vmem:[#allocation2 + $0xb48] sm:$0xff]
    %v440 = vld [vmem:[#allocation2 + $0xb50] sm:$0xff]
    %v441 = vld [vmem:[#allocation2 + $0xb58] sm:$0xff]
    %v442 = vld [vmem:[#allocation2 + $0xb60] sm:$0xff]
    %v443 = vld [vmem:[#allocation2 + $0xb68] sm:$0xff]
    %v444 = vld [vmem:[#allocation2 + $0xb70] sm:$0xff]
    %v445 = vld [vmem:[#allocation2 + $0xb78] sm:$0xff]
    %v446 = vld [vmem:[#allocation2 + $0xb80] sm:$0xff]
    %v447 = vld [vmem:[#allocation2 + $0xb88] sm:$0xff]
    %v448 = vld [vmem:[#allocation2 + $0xb90] sm:$0xff]
    %v449 = vld [vmem:[#allocation2 + $0xb98] sm:$0xff]
    %v450 = vld [vmem:[#allocation2 + $0xba0] sm:$0xff]
    %v451 = vld [vmem:[#allocation2 + $0xba8] sm:$0xff]
    %v452 = vld [vmem:[#allocation2 + $0xbb0] sm:$0xff]
    %v453 = vld [vmem:[#allocation2 + $0xbb8] sm:$0xff]
    %v454 = vld [vmem:[#allocation2 + $0xbc0] sm:$0xff]
    %v455 = vld [vmem:[#allocation2 + $0xbc8] sm:$0xff]
    %v456 = vld [vmem:[#allocation2 + $0xbd0] sm:$0xff]
    %v457 = vld [vmem:[#allocation2 + $0xbd8] sm:$0xff]
    %v458 = vld [vmem:[#allocation2 + $0xbe0] sm:$0xff]
    %v459 = vld [vmem:[#allocation2 + $0xbe8] sm:$0xff]
    %v460 = vld [vmem:[#allocation2 + $0xbf0] sm:$0xff]
    %v461 = vld [vmem:[#allocation2 + $0xbf8] sm:$0xff]
    %v462 = vld [vmem:[#allocation2 + $0xc00] sm:$0xff]
    %v463 = vld [vmem:[#allocation2 + $0xc08] sm:$0xff]
    %v464 = vld [vmem:[#allocation2 + $0xc10] sm:$0xff]
    %v465 = vld [vmem:[#allocation2 + $0xc18] sm:$0xff]
    %v466 = vld [vmem:[#allocation2 + $0xc20] sm:$0xff]
    %v467 = vld [vmem:[#allocation2 + $0xc28] sm:$0xff]
    %v468 = vld [vmem:[#allocation2 + $0xc30] sm:$0xff]
    %v469 = vld [vmem:[#allocation2 + $0xc38] sm:$0xff]
    %v470 = vld [vmem:[#allocation2 + $0xc40] sm:$0xff]
    %v471 = vld [vmem:[#allocation2 + $0xc48] sm:$0xff]
    %v472 = vld [vmem:[#allocation2 + $0xc50] sm:$0xff]
    %v473 = vld [vmem:[#allocation2 + $0xc58] sm:$0xff]
    %v474 = vld [vmem:[#allocation2 + $0xc60] sm:$0xff]
    %v475 = vld [vmem:[#allocation2 + $0xc68] sm:$0xff]
    %v476 = vld [vmem:[#allocation2 + $0xc70] sm:$0xff]
    %v477 = vld [vmem:[#allocation2 + $0xc78] sm:$0xff]
    %v478 = vld [vmem:[#allocation2 + $0xc80] sm:$0xff]
    %v479 = vld [vmem:[#allocation2 + $0xc88] sm:$0xff]
    %v480 = vld [vmem:[#allocation2 + $0xc90] sm:$0xff]
    %v481 = vld [vmem:[#allocation2 + $0xc98] sm:$0xff]
    %v482 = vld [vmem:[#allocation2 + $0xca0] sm:$0xff]
    %v483 = vld [vmem:[#allocation2 + $0xca8] sm:$0xff]
    %v484 = vld [vmem:[#allocation2 + $0xcb0] sm:$0xff]
    %v485 = vld [vmem:[#allocation2 + $0xcb8] sm:$0xff]
    %v486 = vld [vmem:[#allocation2 + $0xcc0] sm:$0xff]
    %v487 = vld [vmem:[#allocation2 + $0xcc8] sm:$0xff]
    %v488 = vld [vmem:[#allocation2 + $0xcd0] sm:$0xff]
    %v489 = vld [vmem:[#allocation2 + $0xcd8] sm:$0xff]
    %v490 = vld [vmem:[#allocation2 + $0xce0] sm:$0xff]
    %v491 = vld [vmem:[#allocation2 + $0xce8] sm:$0xff]
    %v492 = vld [vmem:[#allocation2 + $0xcf0] sm:$0xff]
    %v493 = vld [vmem:[#allocation2 + $0xcf8] sm:$0xff]
    %v494 = vld [vmem:[#allocation2 + $0xd00] sm:$0xff]
    %v495 = vld [vmem:[#allocation2 + $0xd08] sm:$0xff]
    %v496 = vld [vmem:[#allocation2 + $0xd10] sm:$0xff]
    %v497 = vld [vmem:[#allocation2 + $0xd18] sm:$0xff]
    %v498 = vld [vmem:[#allocation2 + $0xd20] sm:$0xff]
    %v499 = vld [vmem:[#allocation2 + $0xd28] sm:$0xff]
    %v500 = vld [vmem:[#allocation2 + $0xd30] sm:$0xff]
    %v501 = vld [vmem:[#allocation2 + $0xd38] sm:$0xff]
    %v502 = vld [vmem:[#allocation2 + $0xd40] sm:$0xff]
    %v503 = vld [vmem:[#allocation2 + $0xd48] sm:$0xff]
    %v504 = vld [vmem:[#allocation2 + $0xd50] sm:$0xff]
    %v505 = vld [vmem:[#allocation2 + $0xd58] sm:$0xff]
    %v506 = vld [vmem:[#allocation2 + $0xd60] sm:$0xff]
    %v507 = vld [vmem:[#allocation2 + $0xd68] sm:$0xff]
    %v508 = vld [vmem:[#allocation2 + $0xd70] sm:$0xff]
    %v509 = vld [vmem:[#allocation2 + $0xd78] sm:$0xff]
    %v510 = vld [vmem:[#allocation2 + $0xd80] sm:$0xff]
    %v511 = vld [vmem:[#allocation2 + $0xd88] sm:$0xff]
    %v512 = vld [vmem:[#allocation2 + $0xd90] sm:$0xff]
    %v513 = vld [vmem:[#allocation2 + $0xd98] sm:$0xff]
    %v514 = vld [vmem:[#allocation2 + $0xda0] sm:$0xff]
    %v515 = vld [vmem:[#allocation2 + $0xda8] sm:$0xff]
    %v516 = vld [vmem:[#allocation2 + $0xdb0] sm:$0xff]
    %v517 = vld [vmem:[#allocation2 + $0xdb8] sm:$0xff]
    %v518 = vld [vmem:[#allocation2 + $0xdc0] sm:$0xff]
    %v519 = vld [vmem:[#allocation2 + $0xdc8] sm:$0xff]
    %v520 = vld [vmem:[#allocation2 + $0xdd0] sm:$0xff]
    %v521 = vld [vmem:[#allocation2 + $0xdd8] sm:$0xff]
    %v522 = vld [vmem:[#allocation2 + $0xde0] sm:$0xff]
    %v523 = vld [vmem:[#allocation2 + $0xde8] sm:$0xff]
    %v524 = vld [vmem:[#allocation2 + $0xdf0] sm:$0xff]
    %v525 = vld [vmem:[#allocation2 + $0xdf8] sm:$0xff]
    %v526 = vld [vmem:[#allocation2 + $0xe00] sm:$0xff]
    %v527 = vld [vmem:[#allocation2 + $0xe08] sm:$0xff]
    %v528 = vld [vmem:[#allocation2 + $0xe10] sm:$0xff]
    %v529 = vld [vmem:[#allocation2 + $0xe18] sm:$0xff]
    %v530 = vld [vmem:[#allocation2 + $0xe20] sm:$0xff]
    %v531 = vld [vmem:[#allocation2 + $0xe28] sm:$0xff]
    %v532 = vld [vmem:[#allocation2 + $0xe30] sm:$0xff]
    %v533 = vld [vmem:[#allocation2 + $0xe38] sm:$0xff]
    %v534 = vld [vmem:[#allocation2 + $0xe40] sm:$0xff]
    %v535 = vld [vmem:[#allocation2 + $0xe48] sm:$0xff]
    %v536 = vld [vmem:[#allocation2 + $0xe50] sm:$0xff]
    %v537 = vld [vmem:[#allocation2 + $0xe58] sm:$0xff]
    %v538 = vld [vmem:[#allocation2 + $0xe60] sm:$0xff]
    %v539 = vld [vmem:[#allocation2 + $0xe68] sm:$0xff]
    %v540 = vld [vmem:[#allocation2 + $0xe70] sm:$0xff]
    %v541 = vld [vmem:[#allocation2 + $0xe78] sm:$0xff]
    %v542 = vld [vmem:[#allocation2 + $0xe80] sm:$0xff]
    %v543 = vld [vmem:[#allocation2 + $0xe88] sm:$0xff]
    %v544 = vld [vmem:[#allocation2 + $0xe90] sm:$0xff]
    %v545 = vld [vmem:[#allocation2 + $0xe98] sm:$0xff]
    %v546 = vld [vmem:[#allocation2 + $0xea0] sm:$0xff]
    %v547 = vld [vmem:[#allocation2 + $0xea8] sm:$0xff]
    %v548 = vld [vmem:[#allocation2 + $0xeb0] sm:$0xff]
    %v549 = vld [vmem:[#allocation2 + $0xeb8] sm:$0xff]
    %v550 = vld [vmem:[#allocation2 + $0xec0] sm:$0xff]
    %v551 = vld [vmem:[#allocation2 + $0xec8] sm:$0xff]
    %v552 = vld [vmem:[#allocation2 + $0xed0] sm:$0xff]
    %v553 = vld [vmem:[#allocation2 + $0xed8] sm:$0xff]
    %v554 = vld [vmem:[#allocation2 + $0xee0] sm:$0xff]
    %v555 = vld [vmem:[#allocation2 + $0xee8] sm:$0xff]
    %v556 = vld [vmem:[#allocation2 + $0xef0] sm:$0xff]
    %v557 = vld [vmem:[#allocation2 + $0xef8] sm:$0xff]
    %v558 = vld [vmem:[#allocation2 + $0xf00] sm:$0xff]
    %v559 = vld [vmem:[#allocation2 + $0xf08] sm:$0xff]
    %v560 = vld [vmem:[#allocation2 + $0xf10] sm:$0xff]
    %v561 = vld [vmem:[#allocation2 + $0xf18] sm:$0xff]
    %v562 = vld [vmem:[#allocation2 + $0xf20] sm:$0xff]
    %v563 = vld [vmem:[#allocation2 + $0xf28] sm:$0xff]
    %v564 = vld [vmem:[#allocation2 + $0xf30] sm:$0xff]
    %v565 = vld [vmem:[#allocation2 + $0xf38] sm:$0xff]
    %v566 = vld [vmem:[#allocation2 + $0xf40] sm:$0xff]
    %v567 = vld [vmem:[#allocation2 + $0xf48] sm:$0xff]
    %v568 = vld [vmem:[#allocation2 + $0xf50] sm:$0xff]
    %v569 = vld [vmem:[#allocation2 + $0xf58] sm:$0xff]
    %v570 = vld [vmem:[#allocation2 + $0xf60] sm:$0xff]
    %v571 = vld [vmem:[#allocation2 + $0xf68] sm:$0xff]
    %v572 = vld [vmem:[#allocation2 + $0xf70] sm:$0xff]
    %v573 = vld [vmem:[#allocation2 + $0xf78] sm:$0xff]
    %v574 = vld [vmem:[#allocation2 + $0xf80] sm:$0xff]
    %v575 = vld [vmem:[#allocation2 + $0xf88] sm:$0xff]
    %v576 = vld [vmem:[#allocation2 + $0xf90] sm:$0xff]
    %v577 = vld [vmem:[#allocation2 + $0xf98] sm:$0xff]
    %v578 = vld [vmem:[#allocation2 + $0xfa0] sm:$0xff]
    %v579 = vld [vmem:[#allocation2 + $0xfa8] sm:$0xff]
    %v580 = vld [vmem:[#allocation2 + $0xfb0] sm:$0xff]
    %v581 = vld [vmem:[#allocation2 + $0xfb8] sm:$0xff]
    %v582 = vld [vmem:[#allocation2 + $0xfc0] sm:$0xff]
    %v583 = vld [vmem:[#allocation2 + $0xfc8] sm:$0xff]
    %v584 = vld [vmem:[#allocation2 + $0xfd0] sm:$0xff]
    %v585 = vld [vmem:[#allocation2 + $0xfd8] sm:$0xff]
    %v586 = vld [vmem:[#allocation2 + $0xfe0] sm:$0xff]
    %v587 = vld [vmem:[#allocation2 + $0xfe8] sm:$0xff]
    %v588 = vld [vmem:[#allocation2 + $0xff0] sm:$0xff]
    %v589 = vld [vmem:[#allocation2 + $0xff8] sm:$0xff]
    %v590 = vld [vmem:[#allocation4] sm:$0xff]
    %v591 = vld [vmem:[#allocation4 + $0x8] sm:$0xff]
    %v592 = vld [vmem:[#allocation4 + $0x10] sm:$0xff]
    %v593 = vld [vmem:[#allocation4 + $0x18] sm:$0xff]
    %v598 = vlaneseq
    %v599 = vshrl.u32 %v598, 7
    %v600 = vsub.s32 0, %v599
    %v601 = vrot.slane %v590, %v600
    %v602 = vlaneseq
    %v603 = vshrl.u32 %v602, 7
    %v604 = vsub.s32 1, %v603
    %v605 = vrot.slane %v590, %v604
    %v606 = vlaneseq
    %v607 = vshrl.u32 %v606, 7
    %v608 = vsub.s32 2, %v607
    %v609 = vrot.slane %v590, %v608
    %v610 = vlaneseq
    %v611 = vshrl.u32 %v610, 7
    %v612 = vsub.s32 3, %v611
    %v613 = vrot.slane %v590, %v612
    %v614 = vlaneseq
    %v615 = vshrl.u32 %v614, 7
    %v616 = vsub.s32 4, %v615
    %v617 = vrot.slane %v590, %v616
    %v618 = vlaneseq
    %v619 = vshrl.u32 %v618, 7
    %v620 = vsub.s32 5, %v619
    %v621 = vrot.slane %v590, %v620
    %v622 = vlaneseq
    %v623 = vshrl.u32 %v622, 7
    %v624 = vsub.s32 6, %v623
    %v625 = vrot.slane %v590, %v624
    %v626 = vlaneseq
    %v627 = vshrl.u32 %v626, 7
    %v628 = vsub.s32 7, %v627
    %v629 = vrot.slane %v590, %v628
    %v630 = vlaneseq
    %v631 = vshrl.u32 %v630, 7
    %v632 = vsub.s32 0, %v631
    %v633 = vrot.slane %v591, %v632
    %v634 = vlaneseq
    %v635 = vshrl.u32 %v634, 7
    %v636 = vsub.s32 1, %v635
    %v637 = vrot.slane %v591, %v636
    %v638 = vlaneseq
    %v639 = vshrl.u32 %v638, 7
    %v640 = vsub.s32 2, %v639
    %v641 = vrot.slane %v591, %v640
    %v642 = vlaneseq
    %v643 = vshrl.u32 %v642, 7
    %v644 = vsub.s32 3, %v643
    %v645 = vrot.slane %v591, %v644
    %v646 = vlaneseq
    %v647 = vshrl.u32 %v646, 7
    %v648 = vsub.s32 4, %v647
    %v649 = vrot.slane %v591, %v648
    %v650 = vlaneseq
    %v651 = vshrl.u32 %v650, 7
    %v652 = vsub.s32 5, %v651
    %v653 = vrot.slane %v591, %v652
    %v654 = vlaneseq
    %v655 = vshrl.u32 %v654, 7
    %v656 = vsub.s32 6, %v655
    %v657 = vrot.slane %v591, %v656
    %v658 = vlaneseq
    %v659 = vshrl.u32 %v658, 7
    %v660 = vsub.s32 7, %v659
    %v661 = vrot.slane %v591, %v660
    %v662 = vlaneseq
    %v663 = vshrl.u32 %v662, 7
    %v664 = vsub.s32 0, %v663
    %v665 = vrot.slane %v592, %v664
    %v666 = vlaneseq
    %v667 = vshrl.u32 %v666, 7
    %v668 = vsub.s32 1, %v667
    %v669 = vrot.slane %v592, %v668
    %v670 = vlaneseq
    %v671 = vshrl.u32 %v670, 7
    %v672 = vsub.s32 2, %v671
    %v673 = vrot.slane %v592, %v672
    %v674 = vlaneseq
    %v675 = vshrl.u32 %v674, 7
    %v676 = vsub.s32 3, %v675
    %v677 = vrot.slane %v592, %v676
    %v678 = vlaneseq
    %v679 = vshrl.u32 %v678, 7
    %v680 = vsub.s32 4, %v679
    %v681 = vrot.slane %v592, %v680
    %v682 = vlaneseq
    %v683 = vshrl.u32 %v682, 7
    %v684 = vsub.s32 5, %v683
    %v685 = vrot.slane %v592, %v684
    %v686 = vlaneseq
    %v687 = vshrl.u32 %v686, 7
    %v688 = vsub.s32 6, %v687
    %v689 = vrot.slane %v592, %v688
    %v690 = vlaneseq
    %v691 = vshrl.u32 %v690, 7
    %v692 = vsub.s32 7, %v691
    %v693 = vrot.slane %v592, %v692
    %v694 = vlaneseq
    %v695 = vshrl.u32 %v694, 7
    %v696 = vsub.s32 0, %v695
    %v697 = vrot.slane %v593, %v696
    %v698 = vlaneseq
    %v699 = vshrl.u32 %v698, 7
    %v700 = vsub.s32 1, %v699
    %v701 = vrot.slane %v593, %v700
    %v702 = vlaneseq
    %v703 = vshrl.u32 %v702, 7
    %v704 = vsub.s32 2, %v703
    %v705 = vrot.slane %v593, %v704
    %v706 = vlaneseq
    %v707 = vshrl.u32 %v706, 7
    %v708 = vsub.s32 3, %v707
    %v709 = vrot.slane %v593, %v708
    %v710 = vlaneseq
    %v711 = vshrl.u32 %v710, 7
    %v712 = vsub.s32 4, %v711
    %v713 = vrot.slane %v593, %v712
    %v714 = vlaneseq
    %v715 = vshrl.u32 %v714, 7
    %v716 = vsub.s32 5, %v715
    %v717 = vrot.slane %v593, %v716
    %v718 = vlaneseq
    %v719 = vshrl.u32 %v718, 7
    %v720 = vsub.s32 6, %v719
    %v721 = vrot.slane %v593, %v720
    %v722 = vlaneseq
    %v723 = vshrl.u32 %v722, 7
    %v724 = vsub.s32 7, %v723
    %v725 = vrot.slane %v593, %v724
    %v1270 = vunpack.c.l.b16 %v78
    %v1271 = vunpack.c.h.b16 %v78
    %v1272 = vunpack.c.l.b16 %v79
    %v1273 = vunpack.c.h.b16 %v79
    %v1274 = vunpack.c.l.b16 %v80
    %v1275 = vunpack.c.h.b16 %v80
    %v1276 = vunpack.c.l.b16 %v81
    %v1277 = vunpack.c.h.b16 %v81
    %v1278 = vunpack.c.l.b16 %v82
    %v1279 = vunpack.c.h.b16 %v82
    %v1280 = vunpack.c.l.b16 %v83
    %v1281 = vunpack.c.h.b16 %v83
    %v1282 = vunpack.c.l.b16 %v84
    %v1283 = vunpack.c.h.b16 %v84
    %v1284 = vunpack.c.l.b16 %v85
    %v1285 = vunpack.c.h.b16 %v85
    %v1286 = vunpack.c.l.b16 %v86
    %v1287 = vunpack.c.h.b16 %v86
    %v1288 = vunpack.c.l.b16 %v87
    %v1289 = vunpack.c.h.b16 %v87
    %v1290 = vunpack.c.l.b16 %v88
    %v1291 = vunpack.c.h.b16 %v88
    %v1292 = vunpack.c.l.b16 %v89
    %v1293 = vunpack.c.h.b16 %v89
    %v1294 = vunpack.c.l.b16 %v90
    %v1295 = vunpack.c.h.b16 %v90
    %v1296 = vunpack.c.l.b16 %v91
    %v1297 = vunpack.c.h.b16 %v91
    %v1298 = vunpack.c.l.b16 %v92
    %v1299 = vunpack.c.h.b16 %v92
    %v1300 = vunpack.c.l.b16 %v93
    %v1301 = vunpack.c.h.b16 %v93
    %v1302 = vunpack.c.l.b16 %v94
    %v1303 = vunpack.c.h.b16 %v94
    %v1304 = vunpack.c.l.b16 %v95
    %v1305 = vunpack.c.h.b16 %v95
    %v1306 = vunpack.c.l.b16 %v96
    %v1307 = vunpack.c.h.b16 %v96
    %v1308 = vunpack.c.l.b16 %v97
    %v1309 = vunpack.c.h.b16 %v97
    %v1310 = vunpack.c.l.b16 %v98
    %v1311 = vunpack.c.h.b16 %v98
    %v1312 = vunpack.c.l.b16 %v99
    %v1313 = vunpack.c.h.b16 %v99
    %v1314 = vunpack.c.l.b16 %v100
    %v1315 = vunpack.c.h.b16 %v100
    %v1316 = vunpack.c.l.b16 %v101
    %v1317 = vunpack.c.h.b16 %v101
    %v1318 = vunpack.c.l.b16 %v102
    %v1319 = vunpack.c.h.b16 %v102
    %v1320 = vunpack.c.l.b16 %v103
    %v1321 = vunpack.c.h.b16 %v103
    %v1322 = vunpack.c.l.b16 %v104
    %v1323 = vunpack.c.h.b16 %v104
    %v1324 = vunpack.c.l.b16 %v105
    %v1325 = vunpack.c.h.b16 %v105
    %v1326 = vunpack.c.l.b16 %v106
    %v1327 = vunpack.c.h.b16 %v106
    %v1328 = vunpack.c.l.b16 %v107
    %v1329 = vunpack.c.h.b16 %v107
    %v1330 = vunpack.c.l.b16 %v108
    %v1331 = vunpack.c.h.b16 %v108
    %v1332 = vunpack.c.l.b16 %v109
    %v1333 = vunpack.c.h.b16 %v109
    %v1334 = vunpack.c.l.b16 %v110
    %v1335 = vunpack.c.h.b16 %v110
    %v1336 = vunpack.c.l.b16 %v111
    %v1337 = vunpack.c.h.b16 %v111
    %v1338 = vunpack.c.l.b16 %v112
    %v1339 = vunpack.c.h.b16 %v112
    %v1340 = vunpack.c.l.b16 %v113
    %v1341 = vunpack.c.h.b16 %v113
    %v1342 = vunpack.c.l.b16 %v114
    %v1343 = vunpack.c.h.b16 %v114
    %v1344 = vunpack.c.l.b16 %v115
    %v1345 = vunpack.c.h.b16 %v115
    %v1346 = vunpack.c.l.b16 %v116
    %v1347 = vunpack.c.h.b16 %v116
    %v1348 = vunpack.c.l.b16 %v117
    %v1349 = vunpack.c.h.b16 %v117
    %v1350 = vunpack.c.l.b16 %v118
    %v1351 = vunpack.c.h.b16 %v118
    %v1352 = vunpack.c.l.b16 %v119
    %v1353 = vunpack.c.h.b16 %v119
    %v1354 = vunpack.c.l.b16 %v120
    %v1355 = vunpack.c.h.b16 %v120
    %v1356 = vunpack.c.l.b16 %v121
    %v1357 = vunpack.c.h.b16 %v121
    %v1358 = vunpack.c.l.b16 %v122
    %v1359 = vunpack.c.h.b16 %v122
    %v1360 = vunpack.c.l.b16 %v123
    %v1361 = vunpack.c.h.b16 %v123
    %v1362 = vunpack.c.l.b16 %v124
    %v1363 = vunpack.c.h.b16 %v124
    %v1364 = vunpack.c.l.b16 %v125
    %v1365 = vunpack.c.h.b16 %v125
    %v1366 = vunpack.c.l.b16 %v126
    %v1367 = vunpack.c.h.b16 %v126
    %v1368 = vunpack.c.l.b16 %v127
    %v1369 = vunpack.c.h.b16 %v127
    %v1370 = vunpack.c.l.b16 %v128
    %v1371 = vunpack.c.h.b16 %v128
    %v1372 = vunpack.c.l.b16 %v129
    %v1373 = vunpack.c.h.b16 %v129
    %v1374 = vunpack.c.l.b16 %v130
    %v1375 = vunpack.c.h.b16 %v130
    %v1376 = vunpack.c.l.b16 %v131
    %v1377 = vunpack.c.h.b16 %v131
    %v1378 = vunpack.c.l.b16 %v132
    %v1379 = vunpack.c.h.b16 %v132
    %v1380 = vunpack.c.l.b16 %v133
    %v1381 = vunpack.c.h.b16 %v133
    %v1382 = vunpack.c.l.b16 %v134
    %v1383 = vunpack.c.h.b16 %v134
    %v1384 = vunpack.c.l.b16 %v135
    %v1385 = vunpack.c.h.b16 %v135
    %v1386 = vunpack.c.l.b16 %v136
    %v1387 = vunpack.c.h.b16 %v136
    %v1388 = vunpack.c.l.b16 %v137
    %v1389 = vunpack.c.h.b16 %v137
    %v1390 = vunpack.c.l.b16 %v138
    %v1391 = vunpack.c.h.b16 %v138
    %v1392 = vunpack.c.l.b16 %v139
    %v1393 = vunpack.c.h.b16 %v139
    %v1394 = vunpack.c.l.b16 %v140
    %v1395 = vunpack.c.h.b16 %v140
    %v1396 = vunpack.c.l.b16 %v141
    %v1397 = vunpack.c.h.b16 %v141
    %v1398 = vunpack.c.l.b16 %v142
    %v1399 = vunpack.c.h.b16 %v142
    %v1400 = vunpack.c.l.b16 %v143
    %v1401 = vunpack.c.h.b16 %v143
    %v1402 = vunpack.c.l.b16 %v144
    %v1403 = vunpack.c.h.b16 %v144
    %v1404 = vunpack.c.l.b16 %v145
    %v1405 = vunpack.c.h.b16 %v145
    %v1406 = vunpack.c.l.b16 %v146
    %v1407 = vunpack.c.h.b16 %v146
    %v1408 = vunpack.c.l.b16 %v147
    %v1409 = vunpack.c.h.b16 %v147
    %v1410 = vunpack.c.l.b16 %v148
    %v1411 = vunpack.c.h.b16 %v148
    %v1412 = vunpack.c.l.b16 %v149
    %v1413 = vunpack.c.h.b16 %v149
    %v1414 = vunpack.c.l.b16 %v150
    %v1415 = vunpack.c.h.b16 %v150
    %v1416 = vunpack.c.l.b16 %v151
    %v1417 = vunpack.c.h.b16 %v151
    %v1418 = vunpack.c.l.b16 %v152
    %v1419 = vunpack.c.h.b16 %v152
    %v1420 = vunpack.c.l.b16 %v153
    %v1421 = vunpack.c.h.b16 %v153
    %v1422 = vunpack.c.l.b16 %v154
    %v1423 = vunpack.c.h.b16 %v154
    %v1424 = vunpack.c.l.b16 %v155
    %v1425 = vunpack.c.h.b16 %v155
    %v1426 = vunpack.c.l.b16 %v156
    %v1427 = vunpack.c.h.b16 %v156
    %v1428 = vunpack.c.l.b16 %v157
    %v1429 = vunpack.c.h.b16 %v157
    %v1430 = vunpack.c.l.b16 %v158
    %v1431 = vunpack.c.h.b16 %v158
    %v1432 = vunpack.c.l.b16 %v159
    %v1433 = vunpack.c.h.b16 %v159
    %v1434 = vunpack.c.l.b16 %v160
    %v1435 = vunpack.c.h.b16 %v160
    %v1436 = vunpack.c.l.b16 %v161
    %v1437 = vunpack.c.h.b16 %v161
    %v1438 = vunpack.c.l.b16 %v162
    %v1439 = vunpack.c.h.b16 %v162
    %v1440 = vunpack.c.l.b16 %v163
    %v1441 = vunpack.c.h.b16 %v163
    %v1442 = vunpack.c.l.b16 %v164
    %v1443 = vunpack.c.h.b16 %v164
    %v1444 = vunpack.c.l.b16 %v165
    %v1445 = vunpack.c.h.b16 %v165
    %v1446 = vunpack.c.l.b16 %v166
    %v1447 = vunpack.c.h.b16 %v166
    %v1448 = vunpack.c.l.b16 %v167
    %v1449 = vunpack.c.h.b16 %v167
    %v1450 = vunpack.c.l.b16 %v168
    %v1451 = vunpack.c.h.b16 %v168
    %v1452 = vunpack.c.l.b16 %v169
    %v1453 = vunpack.c.h.b16 %v169
    %v1454 = vunpack.c.l.b16 %v170
    %v1455 = vunpack.c.h.b16 %v170
    %v1456 = vunpack.c.l.b16 %v171
    %v1457 = vunpack.c.h.b16 %v171
    %v1458 = vunpack.c.l.b16 %v172
    %v1459 = vunpack.c.h.b16 %v172
    %v1460 = vunpack.c.l.b16 %v173
    %v1461 = vunpack.c.h.b16 %v173
    %v1462 = vunpack.c.l.b16 %v174
    %v1463 = vunpack.c.h.b16 %v174
    %v1464 = vunpack.c.l.b16 %v175
    %v1465 = vunpack.c.h.b16 %v175
    %v1466 = vunpack.c.l.b16 %v176
    %v1467 = vunpack.c.h.b16 %v176
    %v1468 = vunpack.c.l.b16 %v177
    %v1469 = vunpack.c.h.b16 %v177
    %v1470 = vunpack.c.l.b16 %v178
    %v1471 = vunpack.c.h.b16 %v178
    %v1472 = vunpack.c.l.b16 %v179
    %v1473 = vunpack.c.h.b16 %v179
    %v1474 = vunpack.c.l.b16 %v180
    %v1475 = vunpack.c.h.b16 %v180
    %v1476 = vunpack.c.l.b16 %v181
    %v1477 = vunpack.c.h.b16 %v181
    %v1478 = vunpack.c.l.b16 %v182
    %v1479 = vunpack.c.h.b16 %v182
    %v1480 = vunpack.c.l.b16 %v183
    %v1481 = vunpack.c.h.b16 %v183
    %v1482 = vunpack.c.l.b16 %v184
    %v1483 = vunpack.c.h.b16 %v184
    %v1484 = vunpack.c.l.b16 %v185
    %v1485 = vunpack.c.h.b16 %v185
    %v1486 = vunpack.c.l.b16 %v186
    %v1487 = vunpack.c.h.b16 %v186
    %v1488 = vunpack.c.l.b16 %v187
    %v1489 = vunpack.c.h.b16 %v187
    %v1490 = vunpack.c.l.b16 %v188
    %v1491 = vunpack.c.h.b16 %v188
    %v1492 = vunpack.c.l.b16 %v189
    %v1493 = vunpack.c.h.b16 %v189
    %v1494 = vunpack.c.l.b16 %v190
    %v1495 = vunpack.c.h.b16 %v190
    %v1496 = vunpack.c.l.b16 %v191
    %v1497 = vunpack.c.h.b16 %v191
    %v1498 = vunpack.c.l.b16 %v192
    %v1499 = vunpack.c.h.b16 %v192
    %v1500 = vunpack.c.l.b16 %v193
    %v1501 = vunpack.c.h.b16 %v193
    %v1502 = vunpack.c.l.b16 %v194
    %v1503 = vunpack.c.h.b16 %v194
    %v1504 = vunpack.c.l.b16 %v195
    %v1505 = vunpack.c.h.b16 %v195
    %v1506 = vunpack.c.l.b16 %v196
    %v1507 = vunpack.c.h.b16 %v196
    %v1508 = vunpack.c.l.b16 %v197
    %v1509 = vunpack.c.h.b16 %v197
    %v1510 = vunpack.c.l.b16 %v198
    %v1511 = vunpack.c.h.b16 %v198
    %v1512 = vunpack.c.l.b16 %v199
    %v1513 = vunpack.c.h.b16 %v199
    %v1514 = vunpack.c.l.b16 %v200
    %v1515 = vunpack.c.h.b16 %v200
    %v1516 = vunpack.c.l.b16 %v201
    %v1517 = vunpack.c.h.b16 %v201
    %v1518 = vunpack.c.l.b16 %v202
    %v1519 = vunpack.c.h.b16 %v202
    %v1520 = vunpack.c.l.b16 %v203
    %v1521 = vunpack.c.h.b16 %v203
    %v1522 = vunpack.c.l.b16 %v204
    %v1523 = vunpack.c.h.b16 %v204
    %v1524 = vunpack.c.l.b16 %v205
    %v1525 = vunpack.c.h.b16 %v205
    %v1526 = vunpack.c.l.b16 %v206
    %v1527 = vunpack.c.h.b16 %v206
    %v1528 = vunpack.c.l.b16 %v207
    %v1529 = vunpack.c.h.b16 %v207
    %v1530 = vunpack.c.l.b16 %v208
    %v1531 = vunpack.c.h.b16 %v208
    %v1532 = vunpack.c.l.b16 %v209
    %v1533 = vunpack.c.h.b16 %v209
    %v1534 = vunpack.c.l.b16 %v210
    %v1535 = vunpack.c.h.b16 %v210
    %v1536 = vunpack.c.l.b16 %v211
    %v1537 = vunpack.c.h.b16 %v211
    %v1538 = vunpack.c.l.b16 %v212
    %v1539 = vunpack.c.h.b16 %v212
    %v1540 = vunpack.c.l.b16 %v213
    %v1541 = vunpack.c.h.b16 %v213
    %v1542 = vunpack.c.l.b16 %v214
    %v1543 = vunpack.c.h.b16 %v214
    %v1544 = vunpack.c.l.b16 %v215
    %v1545 = vunpack.c.h.b16 %v215
    %v1546 = vunpack.c.l.b16 %v216
    %v1547 = vunpack.c.h.b16 %v216
    %v1548 = vunpack.c.l.b16 %v217
    %v1549 = vunpack.c.h.b16 %v217
    %v1550 = vunpack.c.l.b16 %v218
    %v1551 = vunpack.c.h.b16 %v218
    %v1552 = vunpack.c.l.b16 %v219
    %v1553 = vunpack.c.h.b16 %v219
    %v1554 = vunpack.c.l.b16 %v220
    %v1555 = vunpack.c.h.b16 %v220
    %v1556 = vunpack.c.l.b16 %v221
    %v1557 = vunpack.c.h.b16 %v221
    %v1558 = vunpack.c.l.b16 %v222
    %v1559 = vunpack.c.h.b16 %v222
    %v1560 = vunpack.c.l.b16 %v223
    %v1561 = vunpack.c.h.b16 %v223
    %v1562 = vunpack.c.l.b16 %v224
    %v1563 = vunpack.c.h.b16 %v224
    %v1564 = vunpack.c.l.b16 %v225
    %v1565 = vunpack.c.h.b16 %v225
    %v1566 = vunpack.c.l.b16 %v226
    %v1567 = vunpack.c.h.b16 %v226
    %v1568 = vunpack.c.l.b16 %v227
    %v1569 = vunpack.c.h.b16 %v227
    %v1570 = vunpack.c.l.b16 %v228
    %v1571 = vunpack.c.h.b16 %v228
    %v1572 = vunpack.c.l.b16 %v229
    %v1573 = vunpack.c.h.b16 %v229
    %v1574 = vunpack.c.l.b16 %v230
    %v1575 = vunpack.c.h.b16 %v230
    %v1576 = vunpack.c.l.b16 %v231
    %v1577 = vunpack.c.h.b16 %v231
    %v1578 = vunpack.c.l.b16 %v232
    %v1579 = vunpack.c.h.b16 %v232
    %v1580 = vunpack.c.l.b16 %v233
    %v1581 = vunpack.c.h.b16 %v233
    %v1582 = vunpack.c.l.b16 %v234
    %v1583 = vunpack.c.h.b16 %v234
    %v1584 = vunpack.c.l.b16 %v235
    %v1585 = vunpack.c.h.b16 %v235
    %v1586 = vunpack.c.l.b16 %v236
    %v1587 = vunpack.c.h.b16 %v236
    %v1588 = vunpack.c.l.b16 %v237
    %v1589 = vunpack.c.h.b16 %v237
    %v1590 = vunpack.c.l.b16 %v238
    %v1591 = vunpack.c.h.b16 %v238
    %v1592 = vunpack.c.l.b16 %v239
    %v1593 = vunpack.c.h.b16 %v239
    %v1594 = vunpack.c.l.b16 %v240
    %v1595 = vunpack.c.h.b16 %v240
    %v1596 = vunpack.c.l.b16 %v241
    %v1597 = vunpack.c.h.b16 %v241
    %v1598 = vunpack.c.l.b16 %v242
    %v1599 = vunpack.c.h.b16 %v242
    %v1600 = vunpack.c.l.b16 %v243
    %v1601 = vunpack.c.h.b16 %v243
    %v1602 = vunpack.c.l.b16 %v244
    %v1603 = vunpack.c.h.b16 %v244
    %v1604 = vunpack.c.l.b16 %v245
    %v1605 = vunpack.c.h.b16 %v245
    %v1606 = vunpack.c.l.b16 %v246
    %v1607 = vunpack.c.h.b16 %v246
    %v1608 = vunpack.c.l.b16 %v247
    %v1609 = vunpack.c.h.b16 %v247
    %v1610 = vunpack.c.l.b16 %v248
    %v1611 = vunpack.c.h.b16 %v248
    %v1612 = vunpack.c.l.b16 %v249
    %v1613 = vunpack.c.h.b16 %v249
    %v1614 = vunpack.c.l.b16 %v250
    %v1615 = vunpack.c.h.b16 %v250
    %v1616 = vunpack.c.l.b16 %v251
    %v1617 = vunpack.c.h.b16 %v251
    %v1618 = vunpack.c.l.b16 %v252
    %v1619 = vunpack.c.h.b16 %v252
    %v1620 = vunpack.c.l.b16 %v253
    %v1621 = vunpack.c.h.b16 %v253
    %v1622 = vunpack.c.l.b16 %v254
    %v1623 = vunpack.c.h.b16 %v254
    %v1624 = vunpack.c.l.b16 %v255
    %v1625 = vunpack.c.h.b16 %v255
    %v1626 = vunpack.c.l.b16 %v256
    %v1627 = vunpack.c.h.b16 %v256
    %v1628 = vunpack.c.l.b16 %v257
    %v1629 = vunpack.c.h.b16 %v257
    %v1630 = vunpack.c.l.b16 %v258
    %v1631 = vunpack.c.h.b16 %v258
    %v1632 = vunpack.c.l.b16 %v259
    %v1633 = vunpack.c.h.b16 %v259
    %v1634 = vunpack.c.l.b16 %v260
    %v1635 = vunpack.c.h.b16 %v260
    %v1636 = vunpack.c.l.b16 %v261
    %v1637 = vunpack.c.h.b16 %v261
    %v1638 = vunpack.c.l.b16 %v262
    %v1639 = vunpack.c.h.b16 %v262
    %v1640 = vunpack.c.l.b16 %v263
    %v1641 = vunpack.c.h.b16 %v263
    %v1642 = vunpack.c.l.b16 %v264
    %v1643 = vunpack.c.h.b16 %v264
    %v1644 = vunpack.c.l.b16 %v265
    %v1645 = vunpack.c.h.b16 %v265
    %v1646 = vunpack.c.l.b16 %v266
    %v1647 = vunpack.c.h.b16 %v266
    %v1648 = vunpack.c.l.b16 %v267
    %v1649 = vunpack.c.h.b16 %v267
    %v1650 = vunpack.c.l.b16 %v268
    %v1651 = vunpack.c.h.b16 %v268
    %v1652 = vunpack.c.l.b16 %v269
    %v1653 = vunpack.c.h.b16 %v269
    %v1654 = vunpack.c.l.b16 %v270
    %v1655 = vunpack.c.h.b16 %v270
    %v1656 = vunpack.c.l.b16 %v271
    %v1657 = vunpack.c.h.b16 %v271
    %v1658 = vunpack.c.l.b16 %v272
    %v1659 = vunpack.c.h.b16 %v272
    %v1660 = vunpack.c.l.b16 %v273
    %v1661 = vunpack.c.h.b16 %v273
    %v1662 = vunpack.c.l.b16 %v274
    %v1663 = vunpack.c.h.b16 %v274
    %v1664 = vunpack.c.l.b16 %v275
    %v1665 = vunpack.c.h.b16 %v275
    %v1666 = vunpack.c.l.b16 %v276
    %v1667 = vunpack.c.h.b16 %v276
    %v1668 = vunpack.c.l.b16 %v277
    %v1669 = vunpack.c.h.b16 %v277
    %v1670 = vunpack.c.l.b16 %v278
    %v1671 = vunpack.c.h.b16 %v278
    %v1672 = vunpack.c.l.b16 %v279
    %v1673 = vunpack.c.h.b16 %v279
    %v1674 = vunpack.c.l.b16 %v280
    %v1675 = vunpack.c.h.b16 %v280
    %v1676 = vunpack.c.l.b16 %v281
    %v1677 = vunpack.c.h.b16 %v281
    %v1678 = vunpack.c.l.b16 %v282
    %v1679 = vunpack.c.h.b16 %v282
    %v1680 = vunpack.c.l.b16 %v283
    %v1681 = vunpack.c.h.b16 %v283
    %v1682 = vunpack.c.l.b16 %v284
    %v1683 = vunpack.c.h.b16 %v284
    %v1684 = vunpack.c.l.b16 %v285
    %v1685 = vunpack.c.h.b16 %v285
    %v1686 = vunpack.c.l.b16 %v286
    %v1687 = vunpack.c.h.b16 %v286
    %v1688 = vunpack.c.l.b16 %v287
    %v1689 = vunpack.c.h.b16 %v287
    %v1690 = vunpack.c.l.b16 %v288
    %v1691 = vunpack.c.h.b16 %v288
    %v1692 = vunpack.c.l.b16 %v289
    %v1693 = vunpack.c.h.b16 %v289
    %v1694 = vunpack.c.l.b16 %v290
    %v1695 = vunpack.c.h.b16 %v290
    %v1696 = vunpack.c.l.b16 %v291
    %v1697 = vunpack.c.h.b16 %v291
    %v1698 = vunpack.c.l.b16 %v292
    %v1699 = vunpack.c.h.b16 %v292
    %v1700 = vunpack.c.l.b16 %v293
    %v1701 = vunpack.c.h.b16 %v293
    %v1702 = vunpack.c.l.b16 %v294
    %v1703 = vunpack.c.h.b16 %v294
    %v1704 = vunpack.c.l.b16 %v295
    %v1705 = vunpack.c.h.b16 %v295
    %v1706 = vunpack.c.l.b16 %v296
    %v1707 = vunpack.c.h.b16 %v296
    %v1708 = vunpack.c.l.b16 %v297
    %v1709 = vunpack.c.h.b16 %v297
    %v1710 = vunpack.c.l.b16 %v298
    %v1711 = vunpack.c.h.b16 %v298
    %v1712 = vunpack.c.l.b16 %v299
    %v1713 = vunpack.c.h.b16 %v299
    %v1714 = vunpack.c.l.b16 %v300
    %v1715 = vunpack.c.h.b16 %v300
    %v1716 = vunpack.c.l.b16 %v301
    %v1717 = vunpack.c.h.b16 %v301
    %v1718 = vunpack.c.l.b16 %v302
    %v1719 = vunpack.c.h.b16 %v302
    %v1720 = vunpack.c.l.b16 %v303
    %v1721 = vunpack.c.h.b16 %v303
    %v1722 = vunpack.c.l.b16 %v304
    %v1723 = vunpack.c.h.b16 %v304
    %v1724 = vunpack.c.l.b16 %v305
    %v1725 = vunpack.c.h.b16 %v305
    %v1726 = vunpack.c.l.b16 %v306
    %v1727 = vunpack.c.h.b16 %v306
    %v1728 = vunpack.c.l.b16 %v307
    %v1729 = vunpack.c.h.b16 %v307
    %v1730 = vunpack.c.l.b16 %v308
    %v1731 = vunpack.c.h.b16 %v308
    %v1732 = vunpack.c.l.b16 %v309
    %v1733 = vunpack.c.h.b16 %v309
    %v1734 = vunpack.c.l.b16 %v310
    %v1735 = vunpack.c.h.b16 %v310
    %v1736 = vunpack.c.l.b16 %v311
    %v1737 = vunpack.c.h.b16 %v311
    %v1738 = vunpack.c.l.b16 %v312
    %v1739 = vunpack.c.h.b16 %v312
    %v1740 = vunpack.c.l.b16 %v313
    %v1741 = vunpack.c.h.b16 %v313
    %v1742 = vunpack.c.l.b16 %v314
    %v1743 = vunpack.c.h.b16 %v314
    %v1744 = vunpack.c.l.b16 %v315
    %v1745 = vunpack.c.h.b16 %v315
    %v1746 = vunpack.c.l.b16 %v316
    %v1747 = vunpack.c.h.b16 %v316
    %v1748 = vunpack.c.l.b16 %v317
    %v1749 = vunpack.c.h.b16 %v317
    %v1750 = vunpack.c.l.b16 %v318
    %v1751 = vunpack.c.h.b16 %v318
    %v1752 = vunpack.c.l.b16 %v319
    %v1753 = vunpack.c.h.b16 %v319
    %v1754 = vunpack.c.l.b16 %v320
    %v1755 = vunpack.c.h.b16 %v320
    %v1756 = vunpack.c.l.b16 %v321
    %v1757 = vunpack.c.h.b16 %v321
    %v1758 = vunpack.c.l.b16 %v322
    %v1759 = vunpack.c.h.b16 %v322
    %v1760 = vunpack.c.l.b16 %v323
    %v1761 = vunpack.c.h.b16 %v323
    %v1762 = vunpack.c.l.b16 %v324
    %v1763 = vunpack.c.h.b16 %v324
    %v1764 = vunpack.c.l.b16 %v325
    %v1765 = vunpack.c.h.b16 %v325
    %v1766 = vunpack.c.l.b16 %v326
    %v1767 = vunpack.c.h.b16 %v326
    %v1768 = vunpack.c.l.b16 %v327
    %v1769 = vunpack.c.h.b16 %v327
    %v1770 = vunpack.c.l.b16 %v328
    %v1771 = vunpack.c.h.b16 %v328
    %v1772 = vunpack.c.l.b16 %v329
    %v1773 = vunpack.c.h.b16 %v329
    %v1774 = vunpack.c.l.b16 %v330
    %v1775 = vunpack.c.h.b16 %v330
    %v1776 = vunpack.c.l.b16 %v331
    %v1777 = vunpack.c.h.b16 %v331
    %v1778 = vunpack.c.l.b16 %v332
    %v1779 = vunpack.c.h.b16 %v332
    %v1780 = vunpack.c.l.b16 %v333
    %v1781 = vunpack.c.h.b16 %v333
    %v1782 = vunpack.c.l.b16 %v334
    %v1783 = vunpack.c.h.b16 %v334
    %v1784 = vunpack.c.l.b16 %v335
    %v1785 = vunpack.c.h.b16 %v335
    %v1786 = vunpack.c.l.b16 %v336
    %v1787 = vunpack.c.h.b16 %v336
    %v1788 = vunpack.c.l.b16 %v337
    %v1789 = vunpack.c.h.b16 %v337
    %v1790 = vunpack.c.l.b16 %v338
    %v1791 = vunpack.c.h.b16 %v338
    %v1792 = vunpack.c.l.b16 %v339
    %v1793 = vunpack.c.h.b16 %v339
    %v1794 = vunpack.c.l.b16 %v340
    %v1795 = vunpack.c.h.b16 %v340
    %v1796 = vunpack.c.l.b16 %v341
    %v1797 = vunpack.c.h.b16 %v341
    %v1798 = vunpack.c.l.b16 %v342
    %v1799 = vunpack.c.h.b16 %v342
    %v1800 = vunpack.c.l.b16 %v343
    %v1801 = vunpack.c.h.b16 %v343
    %v1802 = vunpack.c.l.b16 %v344
    %v1803 = vunpack.c.h.b16 %v344
    %v1804 = vunpack.c.l.b16 %v345
    %v1805 = vunpack.c.h.b16 %v345
    %v1806 = vunpack.c.l.b16 %v346
    %v1807 = vunpack.c.h.b16 %v346
    %v1808 = vunpack.c.l.b16 %v347
    %v1809 = vunpack.c.h.b16 %v347
    %v1810 = vunpack.c.l.b16 %v348
    %v1811 = vunpack.c.h.b16 %v348
    %v1812 = vunpack.c.l.b16 %v349
    %v1813 = vunpack.c.h.b16 %v349
    %v1814 = vunpack.c.l.b16 %v350
    %v1815 = vunpack.c.h.b16 %v350
    %v1816 = vunpack.c.l.b16 %v351
    %v1817 = vunpack.c.h.b16 %v351
    %v1818 = vunpack.c.l.b16 %v352
    %v1819 = vunpack.c.h.b16 %v352
    %v1820 = vunpack.c.l.b16 %v353
    %v1821 = vunpack.c.h.b16 %v353
    %v1822 = vunpack.c.l.b16 %v354
    %v1823 = vunpack.c.h.b16 %v354
    %v1824 = vunpack.c.l.b16 %v355
    %v1825 = vunpack.c.h.b16 %v355
    %v1826 = vunpack.c.l.b16 %v356
    %v1827 = vunpack.c.h.b16 %v356
    %v1828 = vunpack.c.l.b16 %v357
    %v1829 = vunpack.c.h.b16 %v357
    %v1830 = vunpack.c.l.b16 %v358
    %v1831 = vunpack.c.h.b16 %v358
    %v1832 = vunpack.c.l.b16 %v359
    %v1833 = vunpack.c.h.b16 %v359
    %v1834 = vunpack.c.l.b16 %v360
    %v1835 = vunpack.c.h.b16 %v360
    %v1836 = vunpack.c.l.b16 %v361
    %v1837 = vunpack.c.h.b16 %v361
    %v1838 = vunpack.c.l.b16 %v362
    %v1839 = vunpack.c.h.b16 %v362
    %v1840 = vunpack.c.l.b16 %v363
    %v1841 = vunpack.c.h.b16 %v363
    %v1842 = vunpack.c.l.b16 %v364
    %v1843 = vunpack.c.h.b16 %v364
    %v1844 = vunpack.c.l.b16 %v365
    %v1845 = vunpack.c.h.b16 %v365
    %v1846 = vunpack.c.l.b16 %v366
    %v1847 = vunpack.c.h.b16 %v366
    %v1848 = vunpack.c.l.b16 %v367
    %v1849 = vunpack.c.h.b16 %v367
    %v1850 = vunpack.c.l.b16 %v368
    %v1851 = vunpack.c.h.b16 %v368
    %v1852 = vunpack.c.l.b16 %v369
    %v1853 = vunpack.c.h.b16 %v369
    %v1854 = vunpack.c.l.b16 %v370
    %v1855 = vunpack.c.h.b16 %v370
    %v1856 = vunpack.c.l.b16 %v371
    %v1857 = vunpack.c.h.b16 %v371
    %v1858 = vunpack.c.l.b16 %v372
    %v1859 = vunpack.c.h.b16 %v372
    %v1860 = vunpack.c.l.b16 %v373
    %v1861 = vunpack.c.h.b16 %v373
    %v1862 = vunpack.c.l.b16 %v374
    %v1863 = vunpack.c.h.b16 %v374
    %v1864 = vunpack.c.l.b16 %v375
    %v1865 = vunpack.c.h.b16 %v375
    %v1866 = vunpack.c.l.b16 %v376
    %v1867 = vunpack.c.h.b16 %v376
    %v1868 = vunpack.c.l.b16 %v377
    %v1869 = vunpack.c.h.b16 %v377
    %v1870 = vunpack.c.l.b16 %v378
    %v1871 = vunpack.c.h.b16 %v378
    %v1872 = vunpack.c.l.b16 %v379
    %v1873 = vunpack.c.h.b16 %v379
    %v1874 = vunpack.c.l.b16 %v380
    %v1875 = vunpack.c.h.b16 %v380
    %v1876 = vunpack.c.l.b16 %v381
    %v1877 = vunpack.c.h.b16 %v381
    %v1878 = vunpack.c.l.b16 %v382
    %v1879 = vunpack.c.h.b16 %v382
    %v1880 = vunpack.c.l.b16 %v383
    %v1881 = vunpack.c.h.b16 %v383
    %v1882 = vunpack.c.l.b16 %v384
    %v1883 = vunpack.c.h.b16 %v384
    %v1884 = vunpack.c.l.b16 %v385
    %v1885 = vunpack.c.h.b16 %v385
    %v1886 = vunpack.c.l.b16 %v386
    %v1887 = vunpack.c.h.b16 %v386
    %v1888 = vunpack.c.l.b16 %v387
    %v1889 = vunpack.c.h.b16 %v387
    %v1890 = vunpack.c.l.b16 %v388
    %v1891 = vunpack.c.h.b16 %v388
    %v1892 = vunpack.c.l.b16 %v389
    %v1893 = vunpack.c.h.b16 %v389
    %v1894 = vunpack.c.l.b16 %v390
    %v1895 = vunpack.c.h.b16 %v390
    %v1896 = vunpack.c.l.b16 %v391
    %v1897 = vunpack.c.h.b16 %v391
    %v1898 = vunpack.c.l.b16 %v392
    %v1899 = vunpack.c.h.b16 %v392
    %v1900 = vunpack.c.l.b16 %v393
    %v1901 = vunpack.c.h.b16 %v393
    %v1902 = vunpack.c.l.b16 %v394
    %v1903 = vunpack.c.h.b16 %v394
    %v1904 = vunpack.c.l.b16 %v395
    %v1905 = vunpack.c.h.b16 %v395
    %v1906 = vunpack.c.l.b16 %v396
    %v1907 = vunpack.c.h.b16 %v396
    %v1908 = vunpack.c.l.b16 %v397
    %v1909 = vunpack.c.h.b16 %v397
    %v1910 = vunpack.c.l.b16 %v398
    %v1911 = vunpack.c.h.b16 %v398
    %v1912 = vunpack.c.l.b16 %v399
    %v1913 = vunpack.c.h.b16 %v399
    %v1914 = vunpack.c.l.b16 %v400
    %v1915 = vunpack.c.h.b16 %v400
    %v1916 = vunpack.c.l.b16 %v401
    %v1917 = vunpack.c.h.b16 %v401
    %v1918 = vunpack.c.l.b16 %v402
    %v1919 = vunpack.c.h.b16 %v402
    %v1920 = vunpack.c.l.b16 %v403
    %v1921 = vunpack.c.h.b16 %v403
    %v1922 = vunpack.c.l.b16 %v404
    %v1923 = vunpack.c.h.b16 %v404
    %v1924 = vunpack.c.l.b16 %v405
    %v1925 = vunpack.c.h.b16 %v405
    %v1926 = vunpack.c.l.b16 %v406
    %v1927 = vunpack.c.h.b16 %v406
    %v1928 = vunpack.c.l.b16 %v407
    %v1929 = vunpack.c.h.b16 %v407
    %v1930 = vunpack.c.l.b16 %v408
    %v1931 = vunpack.c.h.b16 %v408
    %v1932 = vunpack.c.l.b16 %v409
    %v1933 = vunpack.c.h.b16 %v409
    %v1934 = vunpack.c.l.b16 %v410
    %v1935 = vunpack.c.h.b16 %v410
    %v1936 = vunpack.c.l.b16 %v411
    %v1937 = vunpack.c.h.b16 %v411
    %v1938 = vunpack.c.l.b16 %v412
    %v1939 = vunpack.c.h.b16 %v412
    %v1940 = vunpack.c.l.b16 %v413
    %v1941 = vunpack.c.h.b16 %v413
    %v1942 = vunpack.c.l.b16 %v414
    %v1943 = vunpack.c.h.b16 %v414
    %v1944 = vunpack.c.l.b16 %v415
    %v1945 = vunpack.c.h.b16 %v415
    %v1946 = vunpack.c.l.b16 %v416
    %v1947 = vunpack.c.h.b16 %v416
    %v1948 = vunpack.c.l.b16 %v417
    %v1949 = vunpack.c.h.b16 %v417
    %v1950 = vunpack.c.l.b16 %v418
    %v1951 = vunpack.c.h.b16 %v418
    %v1952 = vunpack.c.l.b16 %v419
    %v1953 = vunpack.c.h.b16 %v419
    %v1954 = vunpack.c.l.b16 %v420
    %v1955 = vunpack.c.h.b16 %v420
    %v1956 = vunpack.c.l.b16 %v421
    %v1957 = vunpack.c.h.b16 %v421
    %v1958 = vunpack.c.l.b16 %v422
    %v1959 = vunpack.c.h.b16 %v422
    %v1960 = vunpack.c.l.b16 %v423
    %v1961 = vunpack.c.h.b16 %v423
    %v1962 = vunpack.c.l.b16 %v424
    %v1963 = vunpack.c.h.b16 %v424
    %v1964 = vunpack.c.l.b16 %v425
    %v1965 = vunpack.c.h.b16 %v425
    %v1966 = vunpack.c.l.b16 %v426
    %v1967 = vunpack.c.h.b16 %v426
    %v1968 = vunpack.c.l.b16 %v427
    %v1969 = vunpack.c.h.b16 %v427
    %v1970 = vunpack.c.l.b16 %v428
    %v1971 = vunpack.c.h.b16 %v428
    %v1972 = vunpack.c.l.b16 %v429
    %v1973 = vunpack.c.h.b16 %v429
    %v1974 = vunpack.c.l.b16 %v430
    %v1975 = vunpack.c.h.b16 %v430
    %v1976 = vunpack.c.l.b16 %v431
    %v1977 = vunpack.c.h.b16 %v431
    %v1978 = vunpack.c.l.b16 %v432
    %v1979 = vunpack.c.h.b16 %v432
    %v1980 = vunpack.c.l.b16 %v433
    %v1981 = vunpack.c.h.b16 %v433
    %v1982 = vunpack.c.l.b16 %v434
    %v1983 = vunpack.c.h.b16 %v434
    %v1984 = vunpack.c.l.b16 %v435
    %v1985 = vunpack.c.h.b16 %v435
    %v1986 = vunpack.c.l.b16 %v436
    %v1987 = vunpack.c.h.b16 %v436
    %v1988 = vunpack.c.l.b16 %v437
    %v1989 = vunpack.c.h.b16 %v437
    %v1990 = vunpack.c.l.b16 %v438
    %v1991 = vunpack.c.h.b16 %v438
    %v1992 = vunpack.c.l.b16 %v439
    %v1993 = vunpack.c.h.b16 %v439
    %v1994 = vunpack.c.l.b16 %v440
    %v1995 = vunpack.c.h.b16 %v440
    %v1996 = vunpack.c.l.b16 %v441
    %v1997 = vunpack.c.h.b16 %v441
    %v1998 = vunpack.c.l.b16 %v442
    %v1999 = vunpack.c.h.b16 %v442
    %v2000 = vunpack.c.l.b16 %v443
    %v2001 = vunpack.c.h.b16 %v443
    %v2002 = vunpack.c.l.b16 %v444
    %v2003 = vunpack.c.h.b16 %v444
    %v2004 = vunpack.c.l.b16 %v445
    %v2005 = vunpack.c.h.b16 %v445
    %v2006 = vunpack.c.l.b16 %v446
    %v2007 = vunpack.c.h.b16 %v446
    %v2008 = vunpack.c.l.b16 %v447
    %v2009 = vunpack.c.h.b16 %v447
    %v2010 = vunpack.c.l.b16 %v448
    %v2011 = vunpack.c.h.b16 %v448
    %v2012 = vunpack.c.l.b16 %v449
    %v2013 = vunpack.c.h.b16 %v449
    %v2014 = vunpack.c.l.b16 %v450
    %v2015 = vunpack.c.h.b16 %v450
    %v2016 = vunpack.c.l.b16 %v451
    %v2017 = vunpack.c.h.b16 %v451
    %v2018 = vunpack.c.l.b16 %v452
    %v2019 = vunpack.c.h.b16 %v452
    %v2020 = vunpack.c.l.b16 %v453
    %v2021 = vunpack.c.h.b16 %v453
    %v2022 = vunpack.c.l.b16 %v454
    %v2023 = vunpack.c.h.b16 %v454
    %v2024 = vunpack.c.l.b16 %v455
    %v2025 = vunpack.c.h.b16 %v455
    %v2026 = vunpack.c.l.b16 %v456
    %v2027 = vunpack.c.h.b16 %v456
    %v2028 = vunpack.c.l.b16 %v457
    %v2029 = vunpack.c.h.b16 %v457
    %v2030 = vunpack.c.l.b16 %v458
    %v2031 = vunpack.c.h.b16 %v458
    %v2032 = vunpack.c.l.b16 %v459
    %v2033 = vunpack.c.h.b16 %v459
    %v2034 = vunpack.c.l.b16 %v460
    %v2035 = vunpack.c.h.b16 %v460
    %v2036 = vunpack.c.l.b16 %v461
    %v2037 = vunpack.c.h.b16 %v461
    %v2038 = vunpack.c.l.b16 %v462
    %v2039 = vunpack.c.h.b16 %v462
    %v2040 = vunpack.c.l.b16 %v463
    %v2041 = vunpack.c.h.b16 %v463
    %v2042 = vunpack.c.l.b16 %v464
    %v2043 = vunpack.c.h.b16 %v464
    %v2044 = vunpack.c.l.b16 %v465
    %v2045 = vunpack.c.h.b16 %v465
    %v2046 = vunpack.c.l.b16 %v466
    %v2047 = vunpack.c.h.b16 %v466
    %v2048 = vunpack.c.l.b16 %v467
    %v2049 = vunpack.c.h.b16 %v467
    %v2050 = vunpack.c.l.b16 %v468
    %v2051 = vunpack.c.h.b16 %v468
    %v2052 = vunpack.c.l.b16 %v469
    %v2053 = vunpack.c.h.b16 %v469
    %v2054 = vunpack.c.l.b16 %v470
    %v2055 = vunpack.c.h.b16 %v470
    %v2056 = vunpack.c.l.b16 %v471
    %v2057 = vunpack.c.h.b16 %v471
    %v2058 = vunpack.c.l.b16 %v472
    %v2059 = vunpack.c.h.b16 %v472
    %v2060 = vunpack.c.l.b16 %v473
    %v2061 = vunpack.c.h.b16 %v473
    %v2062 = vunpack.c.l.b16 %v474
    %v2063 = vunpack.c.h.b16 %v474
    %v2064 = vunpack.c.l.b16 %v475
    %v2065 = vunpack.c.h.b16 %v475
    %v2066 = vunpack.c.l.b16 %v476
    %v2067 = vunpack.c.h.b16 %v476
    %v2068 = vunpack.c.l.b16 %v477
    %v2069 = vunpack.c.h.b16 %v477
    %v2070 = vunpack.c.l.b16 %v478
    %v2071 = vunpack.c.h.b16 %v478
    %v2072 = vunpack.c.l.b16 %v479
    %v2073 = vunpack.c.h.b16 %v479
    %v2074 = vunpack.c.l.b16 %v480
    %v2075 = vunpack.c.h.b16 %v480
    %v2076 = vunpack.c.l.b16 %v481
    %v2077 = vunpack.c.h.b16 %v481
    %v2078 = vunpack.c.l.b16 %v482
    %v2079 = vunpack.c.h.b16 %v482
    %v2080 = vunpack.c.l.b16 %v483
    %v2081 = vunpack.c.h.b16 %v483
    %v2082 = vunpack.c.l.b16 %v484
    %v2083 = vunpack.c.h.b16 %v484
    %v2084 = vunpack.c.l.b16 %v485
    %v2085 = vunpack.c.h.b16 %v485
    %v2086 = vunpack.c.l.b16 %v486
    %v2087 = vunpack.c.h.b16 %v486
    %v2088 = vunpack.c.l.b16 %v487
    %v2089 = vunpack.c.h.b16 %v487
    %v2090 = vunpack.c.l.b16 %v488
    %v2091 = vunpack.c.h.b16 %v488
    %v2092 = vunpack.c.l.b16 %v489
    %v2093 = vunpack.c.h.b16 %v489
    %v2094 = vunpack.c.l.b16 %v490
    %v2095 = vunpack.c.h.b16 %v490
    %v2096 = vunpack.c.l.b16 %v491
    %v2097 = vunpack.c.h.b16 %v491
    %v2098 = vunpack.c.l.b16 %v492
    %v2099 = vunpack.c.h.b16 %v492
    %v2100 = vunpack.c.l.b16 %v493
    %v2101 = vunpack.c.h.b16 %v493
    %v2102 = vunpack.c.l.b16 %v494
    %v2103 = vunpack.c.h.b16 %v494
    %v2104 = vunpack.c.l.b16 %v495
    %v2105 = vunpack.c.h.b16 %v495
    %v2106 = vunpack.c.l.b16 %v496
    %v2107 = vunpack.c.h.b16 %v496
    %v2108 = vunpack.c.l.b16 %v497
    %v2109 = vunpack.c.h.b16 %v497
    %v2110 = vunpack.c.l.b16 %v498
    %v2111 = vunpack.c.h.b16 %v498
    %v2112 = vunpack.c.l.b16 %v499
    %v2113 = vunpack.c.h.b16 %v499
    %v2114 = vunpack.c.l.b16 %v500
    %v2115 = vunpack.c.h.b16 %v500
    %v2116 = vunpack.c.l.b16 %v501
    %v2117 = vunpack.c.h.b16 %v501
    %v2118 = vunpack.c.l.b16 %v502
    %v2119 = vunpack.c.h.b16 %v502
    %v2120 = vunpack.c.l.b16 %v503
    %v2121 = vunpack.c.h.b16 %v503
    %v2122 = vunpack.c.l.b16 %v504
    %v2123 = vunpack.c.h.b16 %v504
    %v2124 = vunpack.c.l.b16 %v505
    %v2125 = vunpack.c.h.b16 %v505
    %v2126 = vunpack.c.l.b16 %v506
    %v2127 = vunpack.c.h.b16 %v506
    %v2128 = vunpack.c.l.b16 %v507
    %v2129 = vunpack.c.h.b16 %v507
    %v2130 = vunpack.c.l.b16 %v508
    %v2131 = vunpack.c.h.b16 %v508
    %v2132 = vunpack.c.l.b16 %v509
    %v2133 = vunpack.c.h.b16 %v509
    %v2134 = vunpack.c.l.b16 %v510
    %v2135 = vunpack.c.h.b16 %v510
    %v2136 = vunpack.c.l.b16 %v511
    %v2137 = vunpack.c.h.b16 %v511
    %v2138 = vunpack.c.l.b16 %v512
    %v2139 = vunpack.c.h.b16 %v512
    %v2140 = vunpack.c.l.b16 %v513
    %v2141 = vunpack.c.h.b16 %v513
    %v2142 = vunpack.c.l.b16 %v514
    %v2143 = vunpack.c.h.b16 %v514
    %v2144 = vunpack.c.l.b16 %v515
    %v2145 = vunpack.c.h.b16 %v515
    %v2146 = vunpack.c.l.b16 %v516
    %v2147 = vunpack.c.h.b16 %v516
    %v2148 = vunpack.c.l.b16 %v517
    %v2149 = vunpack.c.h.b16 %v517
    %v2150 = vunpack.c.l.b16 %v518
    %v2151 = vunpack.c.h.b16 %v518
    %v2152 = vunpack.c.l.b16 %v519
    %v2153 = vunpack.c.h.b16 %v519
    %v2154 = vunpack.c.l.b16 %v520
    %v2155 = vunpack.c.h.b16 %v520
    %v2156 = vunpack.c.l.b16 %v521
    %v2157 = vunpack.c.h.b16 %v521
    %v2158 = vunpack.c.l.b16 %v522
    %v2159 = vunpack.c.h.b16 %v522
    %v2160 = vunpack.c.l.b16 %v523
    %v2161 = vunpack.c.h.b16 %v523
    %v2162 = vunpack.c.l.b16 %v524
    %v2163 = vunpack.c.h.b16 %v524
    %v2164 = vunpack.c.l.b16 %v525
    %v2165 = vunpack.c.h.b16 %v525
    %v2166 = vunpack.c.l.b16 %v526
    %v2167 = vunpack.c.h.b16 %v526
    %v2168 = vunpack.c.l.b16 %v527
    %v2169 = vunpack.c.h.b16 %v527
    %v2170 = vunpack.c.l.b16 %v528
    %v2171 = vunpack.c.h.b16 %v528
    %v2172 = vunpack.c.l.b16 %v529
    %v2173 = vunpack.c.h.b16 %v529
    %v2174 = vunpack.c.l.b16 %v530
    %v2175 = vunpack.c.h.b16 %v530
    %v2176 = vunpack.c.l.b16 %v531
    %v2177 = vunpack.c.h.b16 %v531
    %v2178 = vunpack.c.l.b16 %v532
    %v2179 = vunpack.c.h.b16 %v532
    %v2180 = vunpack.c.l.b16 %v533
    %v2181 = vunpack.c.h.b16 %v533
    %v2182 = vunpack.c.l.b16 %v534
    %v2183 = vunpack.c.h.b16 %v534
    %v2184 = vunpack.c.l.b16 %v535
    %v2185 = vunpack.c.h.b16 %v535
    %v2186 = vunpack.c.l.b16 %v536
    %v2187 = vunpack.c.h.b16 %v536
    %v2188 = vunpack.c.l.b16 %v537
    %v2189 = vunpack.c.h.b16 %v537
    %v2190 = vunpack.c.l.b16 %v538
    %v2191 = vunpack.c.h.b16 %v538
    %v2192 = vunpack.c.l.b16 %v539
    %v2193 = vunpack.c.h.b16 %v539
    %v2194 = vunpack.c.l.b16 %v540
    %v2195 = vunpack.c.h.b16 %v540
    %v2196 = vunpack.c.l.b16 %v541
    %v2197 = vunpack.c.h.b16 %v541
    %v2198 = vunpack.c.l.b16 %v542
    %v2199 = vunpack.c.h.b16 %v542
    %v2200 = vunpack.c.l.b16 %v543
    %v2201 = vunpack.c.h.b16 %v543
    %v2202 = vunpack.c.l.b16 %v544
    %v2203 = vunpack.c.h.b16 %v544
    %v2204 = vunpack.c.l.b16 %v545
    %v2205 = vunpack.c.h.b16 %v545
    %v2206 = vunpack.c.l.b16 %v546
    %v2207 = vunpack.c.h.b16 %v546
    %v2208 = vunpack.c.l.b16 %v547
    %v2209 = vunpack.c.h.b16 %v547
    %v2210 = vunpack.c.l.b16 %v548
    %v2211 = vunpack.c.h.b16 %v548
    %v2212 = vunpack.c.l.b16 %v549
    %v2213 = vunpack.c.h.b16 %v549
    %v2214 = vunpack.c.l.b16 %v550
    %v2215 = vunpack.c.h.b16 %v550
    %v2216 = vunpack.c.l.b16 %v551
    %v2217 = vunpack.c.h.b16 %v551
    %v2218 = vunpack.c.l.b16 %v552
    %v2219 = vunpack.c.h.b16 %v552
    %v2220 = vunpack.c.l.b16 %v553
    %v2221 = vunpack.c.h.b16 %v553
    %v2222 = vunpack.c.l.b16 %v554
    %v2223 = vunpack.c.h.b16 %v554
    %v2224 = vunpack.c.l.b16 %v555
    %v2225 = vunpack.c.h.b16 %v555
    %v2226 = vunpack.c.l.b16 %v556
    %v2227 = vunpack.c.h.b16 %v556
    %v2228 = vunpack.c.l.b16 %v557
    %v2229 = vunpack.c.h.b16 %v557
    %v2230 = vunpack.c.l.b16 %v558
    %v2231 = vunpack.c.h.b16 %v558
    %v2232 = vunpack.c.l.b16 %v559
    %v2233 = vunpack.c.h.b16 %v559
    %v2234 = vunpack.c.l.b16 %v560
    %v2235 = vunpack.c.h.b16 %v560
    %v2236 = vunpack.c.l.b16 %v561
    %v2237 = vunpack.c.h.b16 %v561
    %v2238 = vunpack.c.l.b16 %v562
    %v2239 = vunpack.c.h.b16 %v562
    %v2240 = vunpack.c.l.b16 %v563
    %v2241 = vunpack.c.h.b16 %v563
    %v2242 = vunpack.c.l.b16 %v564
    %v2243 = vunpack.c.h.b16 %v564
    %v2244 = vunpack.c.l.b16 %v565
    %v2245 = vunpack.c.h.b16 %v565
    %v2246 = vunpack.c.l.b16 %v566
    %v2247 = vunpack.c.h.b16 %v566
    %v2248 = vunpack.c.l.b16 %v567
    %v2249 = vunpack.c.h.b16 %v567
    %v2250 = vunpack.c.l.b16 %v568
    %v2251 = vunpack.c.h.b16 %v568
    %v2252 = vunpack.c.l.b16 %v569
    %v2253 = vunpack.c.h.b16 %v569
    %v2254 = vunpack.c.l.b16 %v570
    %v2255 = vunpack.c.h.b16 %v570
    %v2256 = vunpack.c.l.b16 %v571
    %v2257 = vunpack.c.h.b16 %v571
    %v2258 = vunpack.c.l.b16 %v572
    %v2259 = vunpack.c.h.b16 %v572
    %v2260 = vunpack.c.l.b16 %v573
    %v2261 = vunpack.c.h.b16 %v573
    %v2262 = vunpack.c.l.b16 %v574
    %v2263 = vunpack.c.h.b16 %v574
    %v2264 = vunpack.c.l.b16 %v575
    %v2265 = vunpack.c.h.b16 %v575
    %v2266 = vunpack.c.l.b16 %v576
    %v2267 = vunpack.c.h.b16 %v576
    %v2268 = vunpack.c.l.b16 %v577
    %v2269 = vunpack.c.h.b16 %v577
    %v2270 = vunpack.c.l.b16 %v578
    %v2271 = vunpack.c.h.b16 %v578
    %v2272 = vunpack.c.l.b16 %v579
    %v2273 = vunpack.c.h.b16 %v579
    %v2274 = vunpack.c.l.b16 %v580
    %v2275 = vunpack.c.h.b16 %v580
    %v2276 = vunpack.c.l.b16 %v581
    %v2277 = vunpack.c.h.b16 %v581
    %v2278 = vunpack.c.l.b16 %v582
    %v2279 = vunpack.c.h.b16 %v582
    %v2280 = vunpack.c.l.b16 %v583
    %v2281 = vunpack.c.h.b16 %v583
    %v2282 = vunpack.c.l.b16 %v584
    %v2283 = vunpack.c.h.b16 %v584
    %v2284 = vunpack.c.l.b16 %v585
    %v2285 = vunpack.c.h.b16 %v585
    %v2286 = vunpack.c.l.b16 %v586
    %v2287 = vunpack.c.h.b16 %v586
    %v2288 = vunpack.c.l.b16 %v587
    %v2289 = vunpack.c.h.b16 %v587
    %v2290 = vunpack.c.l.b16 %v588
    %v2291 = vunpack.c.h.b16 %v588
    %v2292 = vunpack.c.l.b16 %v589
    %v2293 = vunpack.c.h.b16 %v589
    %v2294 = vpack.c.b16 %v1302, %v1270
    %v2295 = vpack.c.b16 %v1303, %v1271
    %v2296 = vpack.c.b16 %v1304, %v1272
    %v2297 = vpack.c.b16 %v1305, %v1273
    %v2298 = vpack.c.b16 %v1306, %v1274
    %v2299 = vpack.c.b16 %v1307, %v1275
    %v2300 = vpack.c.b16 %v1308, %v1276
    %v2301 = vpack.c.b16 %v1309, %v1277
    %v2302 = vpack.c.b16 %v1310, %v1278
    %v2303 = vpack.c.b16 %v1311, %v1279
    %v2304 = vpack.c.b16 %v1312, %v1280
    %v2305 = vpack.c.b16 %v1313, %v1281
    %v2306 = vpack.c.b16 %v1314, %v1282
    %v2307 = vpack.c.b16 %v1315, %v1283
    %v2308 = vpack.c.b16 %v1316, %v1284
    %v2309 = vpack.c.b16 %v1317, %v1285
    %v2310 = vpack.c.b16 %v1318, %v1286
    %v2311 = vpack.c.b16 %v1319, %v1287
    %v2312 = vpack.c.b16 %v1320, %v1288
    %v2313 = vpack.c.b16 %v1321, %v1289
    %v2314 = vpack.c.b16 %v1322, %v1290
    %v2315 = vpack.c.b16 %v1323, %v1291
    %v2316 = vpack.c.b16 %v1324, %v1292
    %v2317 = vpack.c.b16 %v1325, %v1293
    %v2318 = vpack.c.b16 %v1326, %v1294
    %v2319 = vpack.c.b16 %v1327, %v1295
    %v2320 = vpack.c.b16 %v1328, %v1296
    %v2321 = vpack.c.b16 %v1329, %v1297
    %v2322 = vpack.c.b16 %v1330, %v1298
    %v2323 = vpack.c.b16 %v1331, %v1299
    %v2324 = vpack.c.b16 %v1332, %v1300
    %v2325 = vpack.c.b16 %v1333, %v1301
    %v2326 = vpack.c.b16 %v1366, %v1334
    %v2327 = vpack.c.b16 %v1367, %v1335
    %v2328 = vpack.c.b16 %v1368, %v1336
    %v2329 = vpack.c.b16 %v1369, %v1337
    %v2330 = vpack.c.b16 %v1370, %v1338
    %v2331 = vpack.c.b16 %v1371, %v1339
    %v2332 = vpack.c.b16 %v1372, %v1340
    %v2333 = vpack.c.b16 %v1373, %v1341
    %v2334 = vpack.c.b16 %v1374, %v1342
    %v2335 = vpack.c.b16 %v1375, %v1343
    %v2336 = vpack.c.b16 %v1376, %v1344
    %v2337 = vpack.c.b16 %v1377, %v1345
    %v2338 = vpack.c.b16 %v1378, %v1346
    %v2339 = vpack.c.b16 %v1379, %v1347
    %v2340 = vpack.c.b16 %v1380, %v1348
    %v2341 = vpack.c.b16 %v1381, %v1349
    %v2342 = vpack.c.b16 %v1382, %v1350
    %v2343 = vpack.c.b16 %v1383, %v1351
    %v2344 = vpack.c.b16 %v1384, %v1352
    %v2345 = vpack.c.b16 %v1385, %v1353
    %v2346 = vpack.c.b16 %v1386, %v1354
    %v2347 = vpack.c.b16 %v1387, %v1355
    %v2348 = vpack.c.b16 %v1388, %v1356
    %v2349 = vpack.c.b16 %v1389, %v1357
    %v2350 = vpack.c.b16 %v1390, %v1358
    %v2351 = vpack.c.b16 %v1391, %v1359
    %v2352 = vpack.c.b16 %v1392, %v1360
    %v2353 = vpack.c.b16 %v1393, %v1361
    %v2354 = vpack.c.b16 %v1394, %v1362
    %v2355 = vpack.c.b16 %v1395, %v1363
    %v2356 = vpack.c.b16 %v1396, %v1364
    %v2357 = vpack.c.b16 %v1397, %v1365
    %v2358 = vpack.c.b16 %v1430, %v1398
    %v2359 = vpack.c.b16 %v1431, %v1399
    %v2360 = vpack.c.b16 %v1432, %v1400
    %v2361 = vpack.c.b16 %v1433, %v1401
    %v2362 = vpack.c.b16 %v1434, %v1402
    %v2363 = vpack.c.b16 %v1435, %v1403
    %v2364 = vpack.c.b16 %v1436, %v1404
    %v2365 = vpack.c.b16 %v1437, %v1405
    %v2366 = vpack.c.b16 %v1438, %v1406
    %v2367 = vpack.c.b16 %v1439, %v1407
    %v2368 = vpack.c.b16 %v1440, %v1408
    %v2369 = vpack.c.b16 %v1441, %v1409
    %v2370 = vpack.c.b16 %v1442, %v1410
    %v2371 = vpack.c.b16 %v1443, %v1411
    %v2372 = vpack.c.b16 %v1444, %v1412
    %v2373 = vpack.c.b16 %v1445, %v1413
    %v2374 = vpack.c.b16 %v1446, %v1414
    %v2375 = vpack.c.b16 %v1447, %v1415
    %v2376 = vpack.c.b16 %v1448, %v1416
    %v2377 = vpack.c.b16 %v1449, %v1417
    %v2378 = vpack.c.b16 %v1450, %v1418
    %v2379 = vpack.c.b16 %v1451, %v1419
    %v2380 = vpack.c.b16 %v1452, %v1420
    %v2381 = vpack.c.b16 %v1453, %v1421
    %v2382 = vpack.c.b16 %v1454, %v1422
    %v2383 = vpack.c.b16 %v1455, %v1423
    %v2384 = vpack.c.b16 %v1456, %v1424
    %v2385 = vpack.c.b16 %v1457, %v1425
    %v2386 = vpack.c.b16 %v1458, %v1426
    %v2387 = vpack.c.b16 %v1459, %v1427
    %v2388 = vpack.c.b16 %v1460, %v1428
    %v2389 = vpack.c.b16 %v1461, %v1429
    %v2390 = vpack.c.b16 %v1494, %v1462
    %v2391 = vpack.c.b16 %v1495, %v1463
    %v2392 = vpack.c.b16 %v1496, %v1464
    %v2393 = vpack.c.b16 %v1497, %v1465
    %v2394 = vpack.c.b16 %v1498, %v1466
    %v2395 = vpack.c.b16 %v1499, %v1467
    %v2396 = vpack.c.b16 %v1500, %v1468
    %v2397 = vpack.c.b16 %v1501, %v1469
    %v2398 = vpack.c.b16 %v1502, %v1470
    %v2399 = vpack.c.b16 %v1503, %v1471
    %v2400 = vpack.c.b16 %v1504, %v1472
    %v2401 = vpack.c.b16 %v1505, %v1473
    %v2402 = vpack.c.b16 %v1506, %v1474
    %v2403 = vpack.c.b16 %v1507, %v1475
    %v2404 = vpack.c.b16 %v1508, %v1476
    %v2405 = vpack.c.b16 %v1509, %v1477
    %v2406 = vpack.c.b16 %v1510, %v1478
    %v2407 = vpack.c.b16 %v1511, %v1479
    %v2408 = vpack.c.b16 %v1512, %v1480
    %v2409 = vpack.c.b16 %v1513, %v1481
    %v2410 = vpack.c.b16 %v1514, %v1482
    %v2411 = vpack.c.b16 %v1515, %v1483
    %v2412 = vpack.c.b16 %v1516, %v1484
    %v2413 = vpack.c.b16 %v1517, %v1485
    %v2414 = vpack.c.b16 %v1518, %v1486
    %v2415 = vpack.c.b16 %v1519, %v1487
    %v2416 = vpack.c.b16 %v1520, %v1488
    %v2417 = vpack.c.b16 %v1521, %v1489
    %v2418 = vpack.c.b16 %v1522, %v1490
    %v2419 = vpack.c.b16 %v1523, %v1491
    %v2420 = vpack.c.b16 %v1524, %v1492
    %v2421 = vpack.c.b16 %v1525, %v1493
    %v2422 = vpack.c.b16 %v1558, %v1526
    %v2423 = vpack.c.b16 %v1559, %v1527
    %v2424 = vpack.c.b16 %v1560, %v1528
    %v2425 = vpack.c.b16 %v1561, %v1529
    %v2426 = vpack.c.b16 %v1562, %v1530
    %v2427 = vpack.c.b16 %v1563, %v1531
    %v2428 = vpack.c.b16 %v1564, %v1532
    %v2429 = vpack.c.b16 %v1565, %v1533
    %v2430 = vpack.c.b16 %v1566, %v1534
    %v2431 = vpack.c.b16 %v1567, %v1535
    %v2432 = vpack.c.b16 %v1568, %v1536
    %v2433 = vpack.c.b16 %v1569, %v1537
    %v2434 = vpack.c.b16 %v1570, %v1538
    %v2435 = vpack.c.b16 %v1571, %v1539
    %v2436 = vpack.c.b16 %v1572, %v1540
    %v2437 = vpack.c.b16 %v1573, %v1541
    %v2438 = vpack.c.b16 %v1574, %v1542
    %v2439 = vpack.c.b16 %v1575, %v1543
    %v2440 = vpack.c.b16 %v1576, %v1544
    %v2441 = vpack.c.b16 %v1577, %v1545
    %v2442 = vpack.c.b16 %v1578, %v1546
    %v2443 = vpack.c.b16 %v1579, %v1547
    %v2444 = vpack.c.b16 %v1580, %v1548
    %v2445 = vpack.c.b16 %v1581, %v1549
    %v2446 = vpack.c.b16 %v1582, %v1550
    %v2447 = vpack.c.b16 %v1583, %v1551
    %v2448 = vpack.c.b16 %v1584, %v1552
    %v2449 = vpack.c.b16 %v1585, %v1553
    %v2450 = vpack.c.b16 %v1586, %v1554
    %v2451 = vpack.c.b16 %v1587, %v1555
    %v2452 = vpack.c.b16 %v1588, %v1556
    %v2453 = vpack.c.b16 %v1589, %v1557
    %v2454 = vpack.c.b16 %v1622, %v1590
    %v2455 = vpack.c.b16 %v1623, %v1591
    %v2456 = vpack.c.b16 %v1624, %v1592
    %v2457 = vpack.c.b16 %v1625, %v1593
    %v2458 = vpack.c.b16 %v1626, %v1594
    %v2459 = vpack.c.b16 %v1627, %v1595
    %v2460 = vpack.c.b16 %v1628, %v1596
    %v2461 = vpack.c.b16 %v1629, %v1597
    %v2462 = vpack.c.b16 %v1630, %v1598
    %v2463 = vpack.c.b16 %v1631, %v1599
    %v2464 = vpack.c.b16 %v1632, %v1600
    %v2465 = vpack.c.b16 %v1633, %v1601
    %v2466 = vpack.c.b16 %v1634, %v1602
    %v2467 = vpack.c.b16 %v1635, %v1603
    %v2468 = vpack.c.b16 %v1636, %v1604
    %v2469 = vpack.c.b16 %v1637, %v1605
    %v2470 = vpack.c.b16 %v1638, %v1606
    %v2471 = vpack.c.b16 %v1639, %v1607
    %v2472 = vpack.c.b16 %v1640, %v1608
    %v2473 = vpack.c.b16 %v1641, %v1609
    %v2474 = vpack.c.b16 %v1642, %v1610
    %v2475 = vpack.c.b16 %v1643, %v1611
    %v2476 = vpack.c.b16 %v1644, %v1612
    %v2477 = vpack.c.b16 %v1645, %v1613
    %v2478 = vpack.c.b16 %v1646, %v1614
    %v2479 = vpack.c.b16 %v1647, %v1615
    %v2480 = vpack.c.b16 %v1648, %v1616
    %v2481 = vpack.c.b16 %v1649, %v1617
    %v2482 = vpack.c.b16 %v1650, %v1618
    %v2483 = vpack.c.b16 %v1651, %v1619
    %v2484 = vpack.c.b16 %v1652, %v1620
    %v2485 = vpack.c.b16 %v1653, %v1621
    %v2486 = vpack.c.b16 %v1686, %v1654
    %v2487 = vpack.c.b16 %v1687, %v1655
    %v2488 = vpack.c.b16 %v1688, %v1656
    %v2489 = vpack.c.b16 %v1689, %v1657
    %v2490 = vpack.c.b16 %v1690, %v1658
    %v2491 = vpack.c.b16 %v1691, %v1659
    %v2492 = vpack.c.b16 %v1692, %v1660
    %v2493 = vpack.c.b16 %v1693, %v1661
    %v2494 = vpack.c.b16 %v1694, %v1662
    %v2495 = vpack.c.b16 %v1695, %v1663
    %v2496 = vpack.c.b16 %v1696, %v1664
    %v2497 = vpack.c.b16 %v1697, %v1665
    %v2498 = vpack.c.b16 %v1698, %v1666
    %v2499 = vpack.c.b16 %v1699, %v1667
    %v2500 = vpack.c.b16 %v1700, %v1668
    %v2501 = vpack.c.b16 %v1701, %v1669
    %v2502 = vpack.c.b16 %v1702, %v1670
    %v2503 = vpack.c.b16 %v1703, %v1671
    %v2504 = vpack.c.b16 %v1704, %v1672
    %v2505 = vpack.c.b16 %v1705, %v1673
    %v2506 = vpack.c.b16 %v1706, %v1674
    %v2507 = vpack.c.b16 %v1707, %v1675
    %v2508 = vpack.c.b16 %v1708, %v1676
    %v2509 = vpack.c.b16 %v1709, %v1677
    %v2510 = vpack.c.b16 %v1710, %v1678
    %v2511 = vpack.c.b16 %v1711, %v1679
    %v2512 = vpack.c.b16 %v1712, %v1680
    %v2513 = vpack.c.b16 %v1713, %v1681
    %v2514 = vpack.c.b16 %v1714, %v1682
    %v2515 = vpack.c.b16 %v1715, %v1683
    %v2516 = vpack.c.b16 %v1716, %v1684
    %v2517 = vpack.c.b16 %v1717, %v1685
    %v2518 = vpack.c.b16 %v1750, %v1718
    %v2519 = vpack.c.b16 %v1751, %v1719
    %v2520 = vpack.c.b16 %v1752, %v1720
    %v2521 = vpack.c.b16 %v1753, %v1721
    %v2522 = vpack.c.b16 %v1754, %v1722
    %v2523 = vpack.c.b16 %v1755, %v1723
    %v2524 = vpack.c.b16 %v1756, %v1724
    %v2525 = vpack.c.b16 %v1757, %v1725
    %v2526 = vpack.c.b16 %v1758, %v1726
    %v2527 = vpack.c.b16 %v1759, %v1727
    %v2528 = vpack.c.b16 %v1760, %v1728
    %v2529 = vpack.c.b16 %v1761, %v1729
    %v2530 = vpack.c.b16 %v1762, %v1730
    %v2531 = vpack.c.b16 %v1763, %v1731
    %v2532 = vpack.c.b16 %v1764, %v1732
    %v2533 = vpack.c.b16 %v1765, %v1733
    %v2534 = vpack.c.b16 %v1766, %v1734
    %v2535 = vpack.c.b16 %v1767, %v1735
    %v2536 = vpack.c.b16 %v1768, %v1736
    %v2537 = vpack.c.b16 %v1769, %v1737
    %v2538 = vpack.c.b16 %v1770, %v1738
    %v2539 = vpack.c.b16 %v1771, %v1739
    %v2540 = vpack.c.b16 %v1772, %v1740
    %v2541 = vpack.c.b16 %v1773, %v1741
    %v2542 = vpack.c.b16 %v1774, %v1742
    %v2543 = vpack.c.b16 %v1775, %v1743
    %v2544 = vpack.c.b16 %v1776, %v1744
    %v2545 = vpack.c.b16 %v1777, %v1745
    %v2546 = vpack.c.b16 %v1778, %v1746
    %v2547 = vpack.c.b16 %v1779, %v1747
    %v2548 = vpack.c.b16 %v1780, %v1748
    %v2549 = vpack.c.b16 %v1781, %v1749
    %v2550 = vpack.c.b16 %v1814, %v1782
    %v2551 = vpack.c.b16 %v1815, %v1783
    %v2552 = vpack.c.b16 %v1816, %v1784
    %v2553 = vpack.c.b16 %v1817, %v1785
    %v2554 = vpack.c.b16 %v1818, %v1786
    %v2555 = vpack.c.b16 %v1819, %v1787
    %v2556 = vpack.c.b16 %v1820, %v1788
    %v2557 = vpack.c.b16 %v1821, %v1789
    %v2558 = vpack.c.b16 %v1822, %v1790
    %v2559 = vpack.c.b16 %v1823, %v1791
    %v2560 = vpack.c.b16 %v1824, %v1792
    %v2561 = vpack.c.b16 %v1825, %v1793
    %v2562 = vpack.c.b16 %v1826, %v1794
    %v2563 = vpack.c.b16 %v1827, %v1795
    %v2564 = vpack.c.b16 %v1828, %v1796
    %v2565 = vpack.c.b16 %v1829, %v1797
    %v2566 = vpack.c.b16 %v1830, %v1798
    %v2567 = vpack.c.b16 %v1831, %v1799
    %v2568 = vpack.c.b16 %v1832, %v1800
    %v2569 = vpack.c.b16 %v1833, %v1801
    %v2570 = vpack.c.b16 %v1834, %v1802
    %v2571 = vpack.c.b16 %v1835, %v1803
    %v2572 = vpack.c.b16 %v1836, %v1804
    %v2573 = vpack.c.b16 %v1837, %v1805
    %v2574 = vpack.c.b16 %v1838, %v1806
    %v2575 = vpack.c.b16 %v1839, %v1807
    %v2576 = vpack.c.b16 %v1840, %v1808
    %v2577 = vpack.c.b16 %v1841, %v1809
    %v2578 = vpack.c.b16 %v1842, %v1810
    %v2579 = vpack.c.b16 %v1843, %v1811
    %v2580 = vpack.c.b16 %v1844, %v1812
    %v2581 = vpack.c.b16 %v1845, %v1813
    %v2582 = vpack.c.b16 %v1878, %v1846
    %v2583 = vpack.c.b16 %v1879, %v1847
    %v2584 = vpack.c.b16 %v1880, %v1848
    %v2585 = vpack.c.b16 %v1881, %v1849
    %v2586 = vpack.c.b16 %v1882, %v1850
    %v2587 = vpack.c.b16 %v1883, %v1851
    %v2588 = vpack.c.b16 %v1884, %v1852
    %v2589 = vpack.c.b16 %v1885, %v1853
    %v2590 = vpack.c.b16 %v1886, %v1854
    %v2591 = vpack.c.b16 %v1887, %v1855
    %v2592 = vpack.c.b16 %v1888, %v1856
    %v2593 = vpack.c.b16 %v1889, %v1857
    %v2594 = vpack.c.b16 %v1890, %v1858
    %v2595 = vpack.c.b16 %v1891, %v1859
    %v2596 = vpack.c.b16 %v1892, %v1860
    %v2597 = vpack.c.b16 %v1893, %v1861
    %v2598 = vpack.c.b16 %v1894, %v1862
    %v2599 = vpack.c.b16 %v1895, %v1863
    %v2600 = vpack.c.b16 %v1896, %v1864
    %v2601 = vpack.c.b16 %v1897, %v1865
    %v2602 = vpack.c.b16 %v1898, %v1866
    %v2603 = vpack.c.b16 %v1899, %v1867
    %v2604 = vpack.c.b16 %v1900, %v1868
    %v2605 = vpack.c.b16 %v1901, %v1869
    %v2606 = vpack.c.b16 %v1902, %v1870
    %v2607 = vpack.c.b16 %v1903, %v1871
    %v2608 = vpack.c.b16 %v1904, %v1872
    %v2609 = vpack.c.b16 %v1905, %v1873
    %v2610 = vpack.c.b16 %v1906, %v1874
    %v2611 = vpack.c.b16 %v1907, %v1875
    %v2612 = vpack.c.b16 %v1908, %v1876
    %v2613 = vpack.c.b16 %v1909, %v1877
    %v2614 = vpack.c.b16 %v1942, %v1910
    %v2615 = vpack.c.b16 %v1943, %v1911
    %v2616 = vpack.c.b16 %v1944, %v1912
    %v2617 = vpack.c.b16 %v1945, %v1913
    %v2618 = vpack.c.b16 %v1946, %v1914
    %v2619 = vpack.c.b16 %v1947, %v1915
    %v2620 = vpack.c.b16 %v1948, %v1916
    %v2621 = vpack.c.b16 %v1949, %v1917
    %v2622 = vpack.c.b16 %v1950, %v1918
    %v2623 = vpack.c.b16 %v1951, %v1919
    %v2624 = vpack.c.b16 %v1952, %v1920
    %v2625 = vpack.c.b16 %v1953, %v1921
    %v2626 = vpack.c.b16 %v1954, %v1922
    %v2627 = vpack.c.b16 %v1955, %v1923
    %v2628 = vpack.c.b16 %v1956, %v1924
    %v2629 = vpack.c.b16 %v1957, %v1925
    %v2630 = vpack.c.b16 %v1958, %v1926
    %v2631 = vpack.c.b16 %v1959, %v1927
    %v2632 = vpack.c.b16 %v1960, %v1928
    %v2633 = vpack.c.b16 %v1961, %v1929
    %v2634 = vpack.c.b16 %v1962, %v1930
    %v2635 = vpack.c.b16 %v1963, %v1931
    %v2636 = vpack.c.b16 %v1964, %v1932
    %v2637 = vpack.c.b16 %v1965, %v1933
    %v2638 = vpack.c.b16 %v1966, %v1934
    %v2639 = vpack.c.b16 %v1967, %v1935
    %v2640 = vpack.c.b16 %v1968, %v1936
    %v2641 = vpack.c.b16 %v1969, %v1937
    %v2642 = vpack.c.b16 %v1970, %v1938
    %v2643 = vpack.c.b16 %v1971, %v1939
    %v2644 = vpack.c.b16 %v1972, %v1940
    %v2645 = vpack.c.b16 %v1973, %v1941
    %v2646 = vpack.c.b16 %v2006, %v1974
    %v2647 = vpack.c.b16 %v2007, %v1975
    %v2648 = vpack.c.b16 %v2008, %v1976
    %v2649 = vpack.c.b16 %v2009, %v1977
    %v2650 = vpack.c.b16 %v2010, %v1978
    %v2651 = vpack.c.b16 %v2011, %v1979
    %v2652 = vpack.c.b16 %v2012, %v1980
    %v2653 = vpack.c.b16 %v2013, %v1981
    %v2654 = vpack.c.b16 %v2014, %v1982
    %v2655 = vpack.c.b16 %v2015, %v1983
    %v2656 = vpack.c.b16 %v2016, %v1984
    %v2657 = vpack.c.b16 %v2017, %v1985
    %v2658 = vpack.c.b16 %v2018, %v1986
    %v2659 = vpack.c.b16 %v2019, %v1987
    %v2660 = vpack.c.b16 %v2020, %v1988
    %v2661 = vpack.c.b16 %v2021, %v1989
    %v2662 = vpack.c.b16 %v2022, %v1990
    %v2663 = vpack.c.b16 %v2023, %v1991
    %v2664 = vpack.c.b16 %v2024, %v1992
    %v2665 = vpack.c.b16 %v2025, %v1993
    %v2666 = vpack.c.b16 %v2026, %v1994
    %v2667 = vpack.c.b16 %v2027, %v1995
    %v2668 = vpack.c.b16 %v2028, %v1996
    %v2669 = vpack.c.b16 %v2029, %v1997
    %v2670 = vpack.c.b16 %v2030, %v1998
    %v2671 = vpack.c.b16 %v2031, %v1999
    %v2672 = vpack.c.b16 %v2032, %v2000
    %v2673 = vpack.c.b16 %v2033, %v2001
    %v2674 = vpack.c.b16 %v2034, %v2002
    %v2675 = vpack.c.b16 %v2035, %v2003
    %v2676 = vpack.c.b16 %v2036, %v2004
    %v2677 = vpack.c.b16 %v2037, %v2005
    %v2678 = vpack.c.b16 %v2070, %v2038
    %v2679 = vpack.c.b16 %v2071, %v2039
    %v2680 = vpack.c.b16 %v2072, %v2040
    %v2681 = vpack.c.b16 %v2073, %v2041
    %v2682 = vpack.c.b16 %v2074, %v2042
    %v2683 = vpack.c.b16 %v2075, %v2043
    %v2684 = vpack.c.b16 %v2076, %v2044
    %v2685 = vpack.c.b16 %v2077, %v2045
    %v2686 = vpack.c.b16 %v2078, %v2046
    %v2687 = vpack.c.b16 %v2079, %v2047
    %v2688 = vpack.c.b16 %v2080, %v2048
    %v2689 = vpack.c.b16 %v2081, %v2049
    %v2690 = vpack.c.b16 %v2082, %v2050
    %v2691 = vpack.c.b16 %v2083, %v2051
    %v2692 = vpack.c.b16 %v2084, %v2052
    %v2693 = vpack.c.b16 %v2085, %v2053
    %v2694 = vpack.c.b16 %v2086, %v2054
    %v2695 = vpack.c.b16 %v2087, %v2055
    %v2696 = vpack.c.b16 %v2088, %v2056
    %v2697 = vpack.c.b16 %v2089, %v2057
    %v2698 = vpack.c.b16 %v2090, %v2058
    %v2699 = vpack.c.b16 %v2091, %v2059
    %v2700 = vpack.c.b16 %v2092, %v2060
    %v2701 = vpack.c.b16 %v2093, %v2061
    %v2702 = vpack.c.b16 %v2094, %v2062
    %v2703 = vpack.c.b16 %v2095, %v2063
    %v2704 = vpack.c.b16 %v2096, %v2064
    %v2705 = vpack.c.b16 %v2097, %v2065
    %v2706 = vpack.c.b16 %v2098, %v2066
    %v2707 = vpack.c.b16 %v2099, %v2067
    %v2708 = vpack.c.b16 %v2100, %v2068
    %v2709 = vpack.c.b16 %v2101, %v2069
    %v2710 = vpack.c.b16 %v2134, %v2102
    %v2711 = vpack.c.b16 %v2135, %v2103
    %v2712 = vpack.c.b16 %v2136, %v2104
    %v2713 = vpack.c.b16 %v2137, %v2105
    %v2714 = vpack.c.b16 %v2138, %v2106
    %v2715 = vpack.c.b16 %v2139, %v2107
    %v2716 = vpack.c.b16 %v2140, %v2108
    %v2717 = vpack.c.b16 %v2141, %v2109
    %v2718 = vpack.c.b16 %v2142, %v2110
    %v2719 = vpack.c.b16 %v2143, %v2111
    %v2720 = vpack.c.b16 %v2144, %v2112
    %v2721 = vpack.c.b16 %v2145, %v2113
    %v2722 = vpack.c.b16 %v2146, %v2114
    %v2723 = vpack.c.b16 %v2147, %v2115
    %v2724 = vpack.c.b16 %v2148, %v2116
    %v2725 = vpack.c.b16 %v2149, %v2117
    %v2726 = vpack.c.b16 %v2150, %v2118
    %v2727 = vpack.c.b16 %v2151, %v2119
    %v2728 = vpack.c.b16 %v2152, %v2120
    %v2729 = vpack.c.b16 %v2153, %v2121
    %v2730 = vpack.c.b16 %v2154, %v2122
    %v2731 = vpack.c.b16 %v2155, %v2123
    %v2732 = vpack.c.b16 %v2156, %v2124
    %v2733 = vpack.c.b16 %v2157, %v2125
    %v2734 = vpack.c.b16 %v2158, %v2126
    %v2735 = vpack.c.b16 %v2159, %v2127
    %v2736 = vpack.c.b16 %v2160, %v2128
    %v2737 = vpack.c.b16 %v2161, %v2129
    %v2738 = vpack.c.b16 %v2162, %v2130
    %v2739 = vpack.c.b16 %v2163, %v2131
    %v2740 = vpack.c.b16 %v2164, %v2132
    %v2741 = vpack.c.b16 %v2165, %v2133
    %v2742 = vpack.c.b16 %v2198, %v2166
    %v2743 = vpack.c.b16 %v2199, %v2167
    %v2744 = vpack.c.b16 %v2200, %v2168
    %v2745 = vpack.c.b16 %v2201, %v2169
    %v2746 = vpack.c.b16 %v2202, %v2170
    %v2747 = vpack.c.b16 %v2203, %v2171
    %v2748 = vpack.c.b16 %v2204, %v2172
    %v2749 = vpack.c.b16 %v2205, %v2173
    %v2750 = vpack.c.b16 %v2206, %v2174
    %v2751 = vpack.c.b16 %v2207, %v2175
    %v2752 = vpack.c.b16 %v2208, %v2176
    %v2753 = vpack.c.b16 %v2209, %v2177
    %v2754 = vpack.c.b16 %v2210, %v2178
    %v2755 = vpack.c.b16 %v2211, %v2179
    %v2756 = vpack.c.b16 %v2212, %v2180
    %v2757 = vpack.c.b16 %v2213, %v2181
    %v2758 = vpack.c.b16 %v2214, %v2182
    %v2759 = vpack.c.b16 %v2215, %v2183
    %v2760 = vpack.c.b16 %v2216, %v2184
    %v2761 = vpack.c.b16 %v2217, %v2185
    %v2762 = vpack.c.b16 %v2218, %v2186
    %v2763 = vpack.c.b16 %v2219, %v2187
    %v2764 = vpack.c.b16 %v2220, %v2188
    %v2765 = vpack.c.b16 %v2221, %v2189
    %v2766 = vpack.c.b16 %v2222, %v2190
    %v2767 = vpack.c.b16 %v2223, %v2191
    %v2768 = vpack.c.b16 %v2224, %v2192
    %v2769 = vpack.c.b16 %v2225, %v2193
    %v2770 = vpack.c.b16 %v2226, %v2194
    %v2771 = vpack.c.b16 %v2227, %v2195
    %v2772 = vpack.c.b16 %v2228, %v2196
    %v2773 = vpack.c.b16 %v2229, %v2197
    %v2774 = vpack.c.b16 %v2262, %v2230
    %v2775 = vpack.c.b16 %v2263, %v2231
    %v2776 = vpack.c.b16 %v2264, %v2232
    %v2777 = vpack.c.b16 %v2265, %v2233
    %v2778 = vpack.c.b16 %v2266, %v2234
    %v2779 = vpack.c.b16 %v2267, %v2235
    %v2780 = vpack.c.b16 %v2268, %v2236
    %v2781 = vpack.c.b16 %v2269, %v2237
    %v2782 = vpack.c.b16 %v2270, %v2238
    %v2783 = vpack.c.b16 %v2271, %v2239
    %v2784 = vpack.c.b16 %v2272, %v2240
    %v2785 = vpack.c.b16 %v2273, %v2241
    %v2786 = vpack.c.b16 %v2274, %v2242
    %v2787 = vpack.c.b16 %v2275, %v2243
    %v2788 = vpack.c.b16 %v2276, %v2244
    %v2789 = vpack.c.b16 %v2277, %v2245
    %v2790 = vpack.c.b16 %v2278, %v2246
    %v2791 = vpack.c.b16 %v2279, %v2247
    %v2792 = vpack.c.b16 %v2280, %v2248
    %v2793 = vpack.c.b16 %v2281, %v2249
    %v2794 = vpack.c.b16 %v2282, %v2250
    %v2795 = vpack.c.b16 %v2283, %v2251
    %v2796 = vpack.c.b16 %v2284, %v2252
    %v2797 = vpack.c.b16 %v2285, %v2253
    %v2798 = vpack.c.b16 %v2286, %v2254
    %v2799 = vpack.c.b16 %v2287, %v2255
    %v2800 = vpack.c.b16 %v2288, %v2256
    %v2801 = vpack.c.b16 %v2289, %v2257
    %v2802 = vpack.c.b16 %v2290, %v2258
    %v2803 = vpack.c.b16 %v2291, %v2259
    %v2804 = vpack.c.b16 %v2292, %v2260
    %v2805 = vpack.c.b16 %v2293, %v2261
    %3318 = vmatprep.subr.bf16.mxu0 %v2295
    %3319 = vmatpush1.bf16.msra.mxu0 %v2294
    %3320 = vmatprep.subr.bf16.mxu0 %v2327
    %3321 = vmatpush1.bf16.msra.mxu0 %v2326
    %3322 = vmatprep.subr.bf16.mxu0 %v2359
    %3323 = vmatpush1.bf16.msra.mxu0 %v2358
    %3324 = vmatprep.subr.bf16.mxu0 %v2391
    %3325 = vmatpush1.bf16.msra.mxu0 %v2390
    %3326 = vmatprep.subr.bf16.mxu0 %v2423
    %3327 = vmatpush1.bf16.msra.mxu0 %v2422
    %3328 = vmatprep.subr.bf16.mxu0 %v2455
    %3329 = vmatpush1.bf16.msra.mxu0 %v2454
    %3330 = vmatprep.subr.bf16.mxu0 %v2487
    %3331 = vmatpush1.bf16.msra.mxu0 %v2486
    %3332 = vmatprep.subr.bf16.mxu0 %v2519
    %3333 = vmatpush1.bf16.msra.mxu0 %v2518
    %3334 = vmatprep.subr.bf16.mxu0 %v2551
    %3335 = vmatpush1.bf16.msra.mxu0 %v2550
    %3336 = vmatprep.subr.bf16.mxu0 %v2583
    %3337 = vmatpush1.bf16.msra.mxu0 %v2582
    %3338 = vmatprep.subr.bf16.mxu0 %v2615
    %3339 = vmatpush1.bf16.msra.mxu0 %v2614
    %3340 = vmatprep.subr.bf16.mxu0 %v2647
    %3341 = vmatpush1.bf16.msra.mxu0 %v2646
    %3342 = vmatprep.subr.bf16.mxu0 %v2679
    %3343 = vmatpush1.bf16.msra.mxu0 %v2678
    %3344 = vmatprep.subr.bf16.mxu0 %v2711
    %3345 = vmatpush1.bf16.msra.mxu0 %v2710
    %3346 = vmatprep.subr.bf16.mxu0 %v2743
    %3347 = vmatpush1.bf16.msra.mxu0 %v2742
    %3348 = vmatprep.subr.bf16.mxu0 %v2775
    %3349 = vmatpush1.bf16.msra.mxu0 %v2774
    %3350 = vmatprep.mubr.bf16.mxu0 %v77
    %3351 = vmatmul.mubr.bf16.gmra.mrb[0].mxu0 %v76
    %v3352 = vpop.f32.mrb[0].mxu0
    %v3353 = vadd.f32 %v601, %v3352
    %v3354 = vpop.f32.mrb[0].mxu0
    %v3355 = vadd.f32 %v605, %v3354
    %v3356 = vpop.f32.mrb[0].mxu0
    %v3357 = vadd.f32 %v601, %v3356
    %v3358 = vpop.f32.mrb[0].mxu0
    %v3359 = vadd.f32 %v605, %v3358
    %3360 = vdwg.mxu0
    %3361 = vmatprep.subr.bf16.mxu0 %v2297
    %3362 = vmatpush1.bf16.msra.mxu0 %v2296
    %3363 = vmatprep.subr.bf16.mxu0 %v2329
    %3364 = vmatpush1.bf16.msra.mxu0 %v2328
    %3365 = vmatprep.subr.bf16.mxu0 %v2361
    %3366 = vmatpush1.bf16.msra.mxu0 %v2360
    %3367 = vmatprep.subr.bf16.mxu0 %v2393
    %3368 = vmatpush1.bf16.msra.mxu0 %v2392
    %3369 = vmatprep.subr.bf16.mxu0 %v2425
    %3370 = vmatpush1.bf16.msra.mxu0 %v2424
    %3371 = vmatprep.subr.bf16.mxu0 %v2457
    %3372 = vmatpush1.bf16.msra.mxu0 %v2456
    %3373 = vmatprep.subr.bf16.mxu0 %v2489
    %3374 = vmatpush1.bf16.msra.mxu0 %v2488
    %3375 = vmatprep.subr.bf16.mxu0 %v2521
    %3376 = vmatpush1.bf16.msra.mxu0 %v2520
    %3377 = vmatprep.subr.bf16.mxu0 %v2553
    %3378 = vmatpush1.bf16.msra.mxu0 %v2552
    %3379 = vmatprep.subr.bf16.mxu0 %v2585
    %3380 = vmatpush1.bf16.msra.mxu0 %v2584
    %3381 = vmatprep.subr.bf16.mxu0 %v2617
    %3382 = vmatpush1.bf16.msra.mxu0 %v2616
    %3383 = vmatprep.subr.bf16.mxu0 %v2649
    %3384 = vmatpush1.bf16.msra.mxu0 %v2648
    %3385 = vmatprep.subr.bf16.mxu0 %v2681
    %3386 = vmatpush1.bf16.msra.mxu0 %v2680
    %3387 = vmatprep.subr.bf16.mxu0 %v2713
    %3388 = vmatpush1.bf16.msra.mxu0 %v2712
    %3389 = vmatprep.subr.bf16.mxu0 %v2745
    %3390 = vmatpush1.bf16.msra.mxu0 %v2744
    %3391 = vmatprep.subr.bf16.mxu0 %v2777
    %3392 = vmatpush1.bf16.msra.mxu0 %v2776
    %3393 = vmatprep.mubr.bf16.mxu0 %v77
    %3394 = vmatmul.mubr.bf16.gmra.mrb[0].mxu0 %v76
    %v3395 = vpop.f32.mrb[0].mxu0
    %v3396 = vadd.f32 %v609, %v3395
    %v3397 = vpop.f32.mrb[0].mxu0
    %v3398 = vadd.f32 %v613, %v3397
    %v3399 = vpop.f32.mrb[0].mxu0
    %v3400 = vadd.f32 %v609, %v3399
    %v3401 = vpop.f32.mrb[0].mxu0
    %v3402 = vadd.f32 %v613, %v3401
    %3403 = vdwg.mxu0
    %3404 = vmatprep.subr.bf16.mxu0 %v2299
    %3405 = vmatpush1.bf16.msra.mxu0 %v2298
    %3406 = vmatprep.subr.bf16.mxu0 %v2331
    %3407 = vmatpush1.bf16.msra.mxu0 %v2330
    %3408 = vmatprep.subr.bf16.mxu0 %v2363
    %3409 = vmatpush1.bf16.msra.mxu0 %v2362
    %3410 = vmatprep.subr.bf16.mxu0 %v2395
    %3411 = vmatpush1.bf16.msra.mxu0 %v2394
    %3412 = vmatprep.subr.bf16.mxu0 %v2427
    %3413 = vmatpush1.bf16.msra.mxu0 %v2426
    %3414 = vmatprep.subr.bf16.mxu0 %v2459
    %3415 = vmatpush1.bf16.msra.mxu0 %v2458
    %3416 = vmatprep.subr.bf16.mxu0 %v2491
    %3417 = vmatpush1.bf16.msra.mxu0 %v2490
    %3418 = vmatprep.subr.bf16.mxu0 %v2523
    %3419 = vmatpush1.bf16.msra.mxu0 %v2522
    %3420 = vmatprep.subr.bf16.mxu0 %v2555
    %3421 = vmatpush1.bf16.msra.mxu0 %v2554
    %3422 = vmatprep.subr.bf16.mxu0 %v2587
    %3423 = vmatpush1.bf16.msra.mxu0 %v2586
    %3424 = vmatprep.subr.bf16.mxu0 %v2619
    %3425 = vmatpush1.bf16.msra.mxu0 %v2618
    %3426 = vmatprep.subr.bf16.mxu0 %v2651
    %3427 = vmatpush1.bf16.msra.mxu0 %v2650
    %3428 = vmatprep.subr.bf16.mxu0 %v2683
    %3429 = vmatpush1.bf16.msra.mxu0 %v2682
    %3430 = vmatprep.subr.bf16.mxu0 %v2715
    %3431 = vmatpush1.bf16.msra.mxu0 %v2714
    %3432 = vmatprep.subr.bf16.mxu0 %v2747
    %3433 = vmatpush1.bf16.msra.mxu0 %v2746
    %3434 = vmatprep.subr.bf16.mxu0 %v2779
    %3435 = vmatpush1.bf16.msra.mxu0 %v2778
    %3436 = vmatprep.mubr.bf16.mxu0 %v77
    %3437 = vmatmul.mubr.bf16.gmra.mrb[0].mxu0 %v76
    %v3438 = vpop.f32.mrb[0].mxu0
    %v3439 = vadd.f32 %v617, %v3438
    %v3440 = vpop.f32.mrb[0].mxu0
    %v3441 = vadd.f32 %v621, %v3440
    %v3442 = vpop.f32.mrb[0].mxu0
    %v3443 = vadd.f32 %v617, %v3442
    %v3444 = vpop.f32.mrb[0].mxu0
    %v3445 = vadd.f32 %v621, %v3444
    %3446 = vdwg.mxu0
    %3447 = vmatprep.subr.bf16.mxu0 %v2301
    %3448 = vmatpush1.bf16.msra.mxu0 %v2300
    %3449 = vmatprep.subr.bf16.mxu0 %v2333
    %3450 = vmatpush1.bf16.msra.mxu0 %v2332
    %3451 = vmatprep.subr.bf16.mxu0 %v2365
    %3452 = vmatpush1.bf16.msra.mxu0 %v2364
    %3453 = vmatprep.subr.bf16.mxu0 %v2397
    %3454 = vmatpush1.bf16.msra.mxu0 %v2396
    %3455 = vmatprep.subr.bf16.mxu0 %v2429
    %3456 = vmatpush1.bf16.msra.mxu0 %v2428
    %3457 = vmatprep.subr.bf16.mxu0 %v2461
    %3458 = vmatpush1.bf16.msra.mxu0 %v2460
    %3459 = vmatprep.subr.bf16.mxu0 %v2493
    %3460 = vmatpush1.bf16.msra.mxu0 %v2492
    %3461 = vmatprep.subr.bf16.mxu0 %v2525
    %3462 = vmatpush1.bf16.msra.mxu0 %v2524
    %3463 = vmatprep.subr.bf16.mxu0 %v2557
    %3464 = vmatpush1.bf16.msra.mxu0 %v2556
    %3465 = vmatprep.subr.bf16.mxu0 %v2589
    %3466 = vmatpush1.bf16.msra.mxu0 %v2588
    %3467 = vmatprep.subr.bf16.mxu0 %v2621
    %3468 = vmatpush1.bf16.msra.mxu0 %v2620
    %3469 = vmatprep.subr.bf16.mxu0 %v2653
    %3470 = vmatpush1.bf16.msra.mxu0 %v2652
    %3471 = vmatprep.subr.bf16.mxu0 %v2685
    %3472 = vmatpush1.bf16.msra.mxu0 %v2684
    %3473 = vmatprep.subr.bf16.mxu0 %v2717
    %3474 = vmatpush1.bf16.msra.mxu0 %v2716
    %3475 = vmatprep.subr.bf16.mxu0 %v2749
    %3476 = vmatpush1.bf16.msra.mxu0 %v2748
    %3477 = vmatprep.subr.bf16.mxu0 %v2781
    %3478 = vmatpush1.bf16.msra.mxu0 %v2780
    %3479 = vmatprep.mubr.bf16.mxu0 %v77
    %3480 = vmatmul.mubr.bf16.gmra.mrb[0].mxu0 %v76
    %v3481 = vpop.f32.mrb[0].mxu0
    %v3482 = vadd.f32 %v625, %v3481
    %v3483 = vpop.f32.mrb[0].mxu0
    %v3484 = vadd.f32 %v629, %v3483
    %v3485 = vpop.f32.mrb[0].mxu0
    %v3486 = vadd.f32 %v625, %v3485
    %v3487 = vpop.f32.mrb[0].mxu0
    %v3488 = vadd.f32 %v629, %v3487
    %3489 = vdwg.mxu0
    %3490 = vmatprep.subr.bf16.mxu0 %v2303
    %3491 = vmatpush1.bf16.msra.mxu0 %v2302
    %3492 = vmatprep.subr.bf16.mxu0 %v2335
    %3493 = vmatpush1.bf16.msra.mxu0 %v2334
    %3494 = vmatprep.subr.bf16.mxu0 %v2367
    %3495 = vmatpush1.bf16.msra.mxu0 %v2366
    %3496 = vmatprep.subr.bf16.mxu0 %v2399
    %3497 = vmatpush1.bf16.msra.mxu0 %v2398
    %3498 = vmatprep.subr.bf16.mxu0 %v2431
    %3499 = vmatpush1.bf16.msra.mxu0 %v2430
    %3500 = vmatprep.subr.bf16.mxu0 %v2463
    %3501 = vmatpush1.bf16.msra.mxu0 %v2462
    %3502 = vmatprep.subr.bf16.mxu0 %v2495
    %3503 = vmatpush1.bf16.msra.mxu0 %v2494
    %3504 = vmatprep.subr.bf16.mxu0 %v2527
    %3505 = vmatpush1.bf16.msra.mxu0 %v2526
    %3506 = vmatprep.subr.bf16.mxu0 %v2559
    %3507 = vmatpush1.bf16.msra.mxu0 %v2558
    %3508 = vmatprep.subr.bf16.mxu0 %v2591
    %3509 = vmatpush1.bf16.msra.mxu0 %v2590
    %3510 = vmatprep.subr.bf16.mxu0 %v2623
    %3511 = vmatpush1.bf16.msra.mxu0 %v2622
    %3512 = vmatprep.subr.bf16.mxu0 %v2655
    %3513 = vmatpush1.bf16.msra.mxu0 %v2654
    %3514 = vmatprep.subr.bf16.mxu0 %v2687
    %3515 = vmatpush1.bf16.msra.mxu0 %v2686
    %3516 = vmatprep.subr.bf16.mxu0 %v2719
    %3517 = vmatpush1.bf16.msra.mxu0 %v2718
    %3518 = vmatprep.subr.bf16.mxu0 %v2751
    %3519 = vmatpush1.bf16.msra.mxu0 %v2750
    %3520 = vmatprep.subr.bf16.mxu0 %v2783
    %3521 = vmatpush1.bf16.msra.mxu0 %v2782
    %3522 = vmatprep.mubr.bf16.mxu0 %v77
    %3523 = vmatmul.mubr.bf16.gmra.mrb[0].mxu0 %v76
    %v3524 = vpop.f32.mrb[0].mxu0
    %v3525 = vadd.f32 %v633, %v3524
    %v3526 = vpop.f32.mrb[0].mxu0
    %v3527 = vadd.f32 %v637, %v3526
    %v3528 = vpop.f32.mrb[0].mxu0
    %v3529 = vadd.f32 %v633, %v3528
    %v3530 = vpop.f32.mrb[0].mxu0
    %v3531 = vadd.f32 %v637, %v3530
    %3532 = vdwg.mxu0
    %3533 = vmatprep.subr.bf16.mxu0 %v2305
    %3534 = vmatpush1.bf16.msra.mxu0 %v2304
    %3535 = vmatprep.subr.bf16.mxu0 %v2337
    %3536 = vmatpush1.bf16.msra.mxu0 %v2336
    %3537 = vmatprep.subr.bf16.mxu0 %v2369
    %3538 = vmatpush1.bf16.msra.mxu0 %v2368
    %3539 = vmatprep.subr.bf16.mxu0 %v2401
    %3540 = vmatpush1.bf16.msra.mxu0 %v2400
    %3541 = vmatprep.subr.bf16.mxu0 %v2433
    %3542 = vmatpush1.bf16.msra.mxu0 %v2432
    %3543 = vmatprep.subr.bf16.mxu0 %v2465
    %3544 = vmatpush1.bf16.msra.mxu0 %v2464
    %3545 = vmatprep.subr.bf16.mxu0 %v2497
    %3546 = vmatpush1.bf16.msra.mxu0 %v2496
    %3547 = vmatprep.subr.bf16.mxu0 %v2529
    %3548 = vmatpush1.bf16.msra.mxu0 %v2528
    %3549 = vmatprep.subr.bf16.mxu0 %v2561
    %3550 = vmatpush1.bf16.msra.mxu0 %v2560
    %3551 = vmatprep.subr.bf16.mxu0 %v2593
    %3552 = vmatpush1.bf16.msra.mxu0 %v2592
    %3553 = vmatprep.subr.bf16.mxu0 %v2625
    %3554 = vmatpush1.bf16.msra.mxu0 %v2624
    %3555 = vmatprep.subr.bf16.mxu0 %v2657
    %3556 = vmatpush1.bf16.msra.mxu0 %v2656
    %3557 = vmatprep.subr.bf16.mxu0 %v2689
    %3558 = vmatpush1.bf16.msra.mxu0 %v2688
    %3559 = vmatprep.subr.bf16.mxu0 %v2721
    %3560 = vmatpush1.bf16.msra.mxu0 %v2720
    %3561 = vmatprep.subr.bf16.mxu0 %v2753
    %3562 = vmatpush1.bf16.msra.mxu0 %v2752
    %3563 = vmatprep.subr.bf16.mxu0 %v2785
    %3564 = vmatpush1.bf16.msra.mxu0 %v2784
    %3565 = vmatprep.mubr.bf16.mxu0 %v77
    %3566 = vmatmul.mubr.bf16.gmra.mrb[0].mxu0 %v76
    %v3567 = vpop.f32.mrb[0].mxu0
    %v3568 = vadd.f32 %v641, %v3567
    %v3569 = vpop.f32.mrb[0].mxu0
    %v3570 = vadd.f32 %v645, %v3569
    %v3571 = vpop.f32.mrb[0].mxu0
    %v3572 = vadd.f32 %v641, %v3571
    %v3573 = vpop.f32.mrb[0].mxu0
    %v3574 = vadd.f32 %v645, %v3573
    %3575 = vdwg.mxu0
    %3576 = vmatprep.subr.bf16.mxu0 %v2307
    %3577 = vmatpush1.bf16.msra.mxu0 %v2306
    %3578 = vmatprep.subr.bf16.mxu0 %v2339
    %3579 = vmatpush1.bf16.msra.mxu0 %v2338
    %3580 = vmatprep.subr.bf16.mxu0 %v2371
    %3581 = vmatpush1.bf16.msra.mxu0 %v2370
    %3582 = vmatprep.subr.bf16.mxu0 %v2403
    %3583 = vmatpush1.bf16.msra.mxu0 %v2402
    %3584 = vmatprep.subr.bf16.mxu0 %v2435
    %3585 = vmatpush1.bf16.msra.mxu0 %v2434
    %3586 = vmatprep.subr.bf16.mxu0 %v2467
    %3587 = vmatpush1.bf16.msra.mxu0 %v2466
    %3588 = vmatprep.subr.bf16.mxu0 %v2499
    %3589 = vmatpush1.bf16.msra.mxu0 %v2498
    %3590 = vmatprep.subr.bf16.mxu0 %v2531
    %3591 = vmatpush1.bf16.msra.mxu0 %v2530
    %3592 = vmatprep.subr.bf16.mxu0 %v2563
    %3593 = vmatpush1.bf16.msra.mxu0 %v2562
    %3594 = vmatprep.subr.bf16.mxu0 %v2595
    %3595 = vmatpush1.bf16.msra.mxu0 %v2594
    %3596 = vmatprep.subr.bf16.mxu0 %v2627
    %3597 = vmatpush1.bf16.msra.mxu0 %v2626
    %3598 = vmatprep.subr.bf16.mxu0 %v2659
    %3599 = vmatpush1.bf16.msra.mxu0 %v2658
    %3600 = vmatprep.subr.bf16.mxu0 %v2691
    %3601 = vmatpush1.bf16.msra.mxu0 %v2690
    %3602 = vmatprep.subr.bf16.mxu0 %v2723
    %3603 = vmatpush1.bf16.msra.mxu0 %v2722
    %3604 = vmatprep.subr.bf16.mxu0 %v2755
    %3605 = vmatpush1.bf16.msra.mxu0 %v2754
    %3606 = vmatprep.subr.bf16.mxu0 %v2787
    %3607 = vmatpush1.bf16.msra.mxu0 %v2786
    %3608 = vmatprep.mubr.bf16.mxu0 %v77
    %3609 = vmatmul.mubr.bf16.gmra.mrb[0].mxu0 %v76
    %v3610 = vpop.f32.mrb[0].mxu0
    %v3611 = vadd.f32 %v649, %v3610
    %v3612 = vpop.f32.mrb[0].mxu0
    %v3613 = vadd.f32 %v653, %v3612
    %v3614 = vpop.f32.mrb[0].mxu0
    %v3615 = vadd.f32 %v649, %v3614
    %v3616 = vpop.f32.mrb[0].mxu0
    %v3617 = vadd.f32 %v653, %v3616
    %3618 = vdwg.mxu0
    %3619 = vmatprep.subr.bf16.mxu0 %v2309
    %3620 = vmatpush1.bf16.msra.mxu0 %v2308
    %3621 = vmatprep.subr.bf16.mxu0 %v2341
    %3622 = vmatpush1.bf16.msra.mxu0 %v2340
    %3623 = vmatprep.subr.bf16.mxu0 %v2373
    %3624 = vmatpush1.bf16.msra.mxu0 %v2372
    %3625 = vmatprep.subr.bf16.mxu0 %v2405
    %3626 = vmatpush1.bf16.msra.mxu0 %v2404
    %3627 = vmatprep.subr.bf16.mxu0 %v2437
    %3628 = vmatpush1.bf16.msra.mxu0 %v2436
    %3629 = vmatprep.subr.bf16.mxu0 %v2469
    %3630 = vmatpush1.bf16.msra.mxu0 %v2468
    %3631 = vmatprep.subr.bf16.mxu0 %v2501
    %3632 = vmatpush1.bf16.msra.mxu0 %v2500
    %3633 = vmatprep.subr.bf16.mxu0 %v2533
    %3634 = vmatpush1.bf16.msra.mxu0 %v2532
    %3635 = vmatprep.subr.bf16.mxu0 %v2565
    %3636 = vmatpush1.bf16.msra.mxu0 %v2564
    %3637 = vmatprep.subr.bf16.mxu0 %v2597
    %3638 = vmatpush1.bf16.msra.mxu0 %v2596
    %3639 = vmatprep.subr.bf16.mxu0 %v2629
    %3640 = vmatpush1.bf16.msra.mxu0 %v2628
    %3641 = vmatprep.subr.bf16.mxu0 %v2661
    %3642 = vmatpush1.bf16.msra.mxu0 %v2660
    %3643 = vmatprep.subr.bf16.mxu0 %v2693
    %3644 = vmatpush1.bf16.msra.mxu0 %v2692
    %3645 = vmatprep.subr.bf16.mxu0 %v2725
    %3646 = vmatpush1.bf16.msra.mxu0 %v2724
    %3647 = vmatprep.subr.bf16.mxu0 %v2757
    %3648 = vmatpush1.bf16.msra.mxu0 %v2756
    %3649 = vmatprep.subr.bf16.mxu0 %v2789
    %3650 = vmatpush1.bf16.msra.mxu0 %v2788
    %3651 = vmatprep.mubr.bf16.mxu0 %v77
    %3652 = vmatmul.mubr.bf16.gmra.mrb[0].mxu0 %v76
    %v3653 = vpop.f32.mrb[0].mxu0
    %v3654 = vadd.f32 %v657, %v3653
    %v3655 = vpop.f32.mrb[0].mxu0
    %v3656 = vadd.f32 %v661, %v3655
    %v3657 = vpop.f32.mrb[0].mxu0
    %v3658 = vadd.f32 %v657, %v3657
    %v3659 = vpop.f32.mrb[0].mxu0
    %v3660 = vadd.f32 %v661, %v3659
    %3661 = vdwg.mxu0
    %3662 = vmatprep.subr.bf16.mxu0 %v2311
    %3663 = vmatpush1.bf16.msra.mxu0 %v2310
    %3664 = vmatprep.subr.bf16.mxu0 %v2343
    %3665 = vmatpush1.bf16.msra.mxu0 %v2342
    %3666 = vmatprep.subr.bf16.mxu0 %v2375
    %3667 = vmatpush1.bf16.msra.mxu0 %v2374
    %3668 = vmatprep.subr.bf16.mxu0 %v2407
    %3669 = vmatpush1.bf16.msra.mxu0 %v2406
    %3670 = vmatprep.subr.bf16.mxu0 %v2439
    %3671 = vmatpush1.bf16.msra.mxu0 %v2438
    %3672 = vmatprep.subr.bf16.mxu0 %v2471
    %3673 = vmatpush1.bf16.msra.mxu0 %v2470
    %3674 = vmatprep.subr.bf16.mxu0 %v2503
    %3675 = vmatpush1.bf16.msra.mxu0 %v2502
    %3676 = vmatprep.subr.bf16.mxu0 %v2535
    %3677 = vmatpush1.bf16.msra.mxu0 %v2534
    %3678 = vmatprep.subr.bf16.mxu0 %v2567
    %3679 = vmatpush1.bf16.msra.mxu0 %v2566
    %3680 = vmatprep.subr.bf16.mxu0 %v2599
    %3681 = vmatpush1.bf16.msra.mxu0 %v2598
    %3682 = vmatprep.subr.bf16.mxu0 %v2631
    %3683 = vmatpush1.bf16.msra.mxu0 %v2630
    %3684 = vmatprep.subr.bf16.mxu0 %v2663
    %3685 = vmatpush1.bf16.msra.mxu0 %v2662
    %3686 = vmatprep.subr.bf16.mxu0 %v2695
    %3687 = vmatpush1.bf16.msra.mxu0 %v2694
    %3688 = vmatprep.subr.bf16.mxu0 %v2727
    %3689 = vmatpush1.bf16.msra.mxu0 %v2726
    %3690 = vmatprep.subr.bf16.mxu0 %v2759
    %3691 = vmatpush1.bf16.msra.mxu0 %v2758
    %3692 = vmatprep.subr.bf16.mxu0 %v2791
    %3693 = vmatpush1.bf16.msra.mxu0 %v2790
    %3694 = vmatprep.mubr.bf16.mxu0 %v77
    %3695 = vmatmul.mubr.bf16.gmra.mrb[0].mxu0 %v76
    %v3696 = vpop.f32.mrb[0].mxu0
    %v3697 = vadd.f32 %v665, %v3696
    %v3698 = vpop.f32.mrb[0].mxu0
    %v3699 = vadd.f32 %v669, %v3698
    %v3700 = vpop.f32.mrb[0].mxu0
    %v3701 = vadd.f32 %v665, %v3700
    %v3702 = vpop.f32.mrb[0].mxu0
    %v3703 = vadd.f32 %v669, %v3702
    %3704 = vdwg.mxu0
    %3705 = vmatprep.subr.bf16.mxu0 %v2313
    %3706 = vmatpush1.bf16.msra.mxu0 %v2312
    %3707 = vmatprep.subr.bf16.mxu0 %v2345
    %3708 = vmatpush1.bf16.msra.mxu0 %v2344
    %3709 = vmatprep.subr.bf16.mxu0 %v2377
    %3710 = vmatpush1.bf16.msra.mxu0 %v2376
    %3711 = vmatprep.subr.bf16.mxu0 %v2409
    %3712 = vmatpush1.bf16.msra.mxu0 %v2408
    %3713 = vmatprep.subr.bf16.mxu0 %v2441
    %3714 = vmatpush1.bf16.msra.mxu0 %v2440
    %3715 = vmatprep.subr.bf16.mxu0 %v2473
    %3716 = vmatpush1.bf16.msra.mxu0 %v2472
    %3717 = vmatprep.subr.bf16.mxu0 %v2505
    %3718 = vmatpush1.bf16.msra.mxu0 %v2504
    %3719 = vmatprep.subr.bf16.mxu0 %v2537
    %3720 = vmatpush1.bf16.msra.mxu0 %v2536
    %3721 = vmatprep.subr.bf16.mxu0 %v2569
    %3722 = vmatpush1.bf16.msra.mxu0 %v2568
    %3723 = vmatprep.subr.bf16.mxu0 %v2601
    %3724 = vmatpush1.bf16.msra.mxu0 %v2600
    %3725 = vmatprep.subr.bf16.mxu0 %v2633
    %3726 = vmatpush1.bf16.msra.mxu0 %v2632
    %3727 = vmatprep.subr.bf16.mxu0 %v2665
    %3728 = vmatpush1.bf16.msra.mxu0 %v2664
    %3729 = vmatprep.subr.bf16.mxu0 %v2697
    %3730 = vmatpush1.bf16.msra.mxu0 %v2696
    %3731 = vmatprep.subr.bf16.mxu0 %v2729
    %3732 = vmatpush1.bf16.msra.mxu0 %v2728
    %3733 = vmatprep.subr.bf16.mxu0 %v2761
    %3734 = vmatpush1.bf16.msra.mxu0 %v2760
    %3735 = vmatprep.subr.bf16.mxu0 %v2793
    %3736 = vmatpush1.bf16.msra.mxu0 %v2792
    %3737 = vmatprep.mubr.bf16.mxu0 %v77
    %3738 = vmatmul.mubr.bf16.gmra.mrb[0].mxu0 %v76
    %v3739 = vpop.f32.mrb[0].mxu0
    %v3740 = vadd.f32 %v673, %v3739
    %v3741 = vpop.f32.mrb[0].mxu0
    %v3742 = vadd.f32 %v677, %v3741
    %v3743 = vpop.f32.mrb[0].mxu0
    %v3744 = vadd.f32 %v673, %v3743
    %v3745 = vpop.f32.mrb[0].mxu0
    %v3746 = vadd.f32 %v677, %v3745
    %3747 = vdwg.mxu0
    %3748 = vmatprep.subr.bf16.mxu0 %v2315
    %3749 = vmatpush1.bf16.msra.mxu0 %v2314
    %3750 = vmatprep.subr.bf16.mxu0 %v2347
    %3751 = vmatpush1.bf16.msra.mxu0 %v2346
    %3752 = vmatprep.subr.bf16.mxu0 %v2379
    %3753 = vmatpush1.bf16.msra.mxu0 %v2378
    %3754 = vmatprep.subr.bf16.mxu0 %v2411
    %3755 = vmatpush1.bf16.msra.mxu0 %v2410
    %3756 = vmatprep.subr.bf16.mxu0 %v2443
    %3757 = vmatpush1.bf16.msra.mxu0 %v2442
    %3758 = vmatprep.subr.bf16.mxu0 %v2475
    %3759 = vmatpush1.bf16.msra.mxu0 %v2474
    %3760 = vmatprep.subr.bf16.mxu0 %v2507
    %3761 = vmatpush1.bf16.msra.mxu0 %v2506
    %3762 = vmatprep.subr.bf16.mxu0 %v2539
    %3763 = vmatpush1.bf16.msra.mxu0 %v2538
    %3764 = vmatprep.subr.bf16.mxu0 %v2571
    %3765 = vmatpush1.bf16.msra.mxu0 %v2570
    %3766 = vmatprep.subr.bf16.mxu0 %v2603
    %3767 = vmatpush1.bf16.msra.mxu0 %v2602
    %3768 = vmatprep.subr.bf16.mxu0 %v2635
    %3769 = vmatpush1.bf16.msra.mxu0 %v2634
    %3770 = vmatprep.subr.bf16.mxu0 %v2667
    %3771 = vmatpush1.bf16.msra.mxu0 %v2666
    %3772 = vmatprep.subr.bf16.mxu0 %v2699
    %3773 = vmatpush1.bf16.msra.mxu0 %v2698
    %3774 = vmatprep.subr.bf16.mxu0 %v2731
    %3775 = vmatpush1.bf16.msra.mxu0 %v2730
    %3776 = vmatprep.subr.bf16.mxu0 %v2763
    %3777 = vmatpush1.bf16.msra.mxu0 %v2762
    %3778 = vmatprep.subr.bf16.mxu0 %v2795
    %3779 = vmatpush1.bf16.msra.mxu0 %v2794
    %3780 = vmatprep.mubr.bf16.mxu0 %v77
    %3781 = vmatmul.mubr.bf16.gmra.mrb[0].mxu0 %v76
    %v3782 = vpop.f32.mrb[0].mxu0
    %v3783 = vadd.f32 %v681, %v3782
    %v3784 = vpop.f32.mrb[0].mxu0
    %v3785 = vadd.f32 %v685, %v3784
    %v3786 = vpop.f32.mrb[0].mxu0
    %v3787 = vadd.f32 %v681, %v3786
    %v3788 = vpop.f32.mrb[0].mxu0
    %v3789 = vadd.f32 %v685, %v3788
    %3790 = vdwg.mxu0
    %3791 = vmatprep.subr.bf16.mxu0 %v2317
    %3792 = vmatpush1.bf16.msra.mxu0 %v2316
    %3793 = vmatprep.subr.bf16.mxu0 %v2349
    %3794 = vmatpush1.bf16.msra.mxu0 %v2348
    %3795 = vmatprep.subr.bf16.mxu0 %v2381
    %3796 = vmatpush1.bf16.msra.mxu0 %v2380
    %3797 = vmatprep.subr.bf16.mxu0 %v2413
    %3798 = vmatpush1.bf16.msra.mxu0 %v2412
    %3799 = vmatprep.subr.bf16.mxu0 %v2445
    %3800 = vmatpush1.bf16.msra.mxu0 %v2444
    %3801 = vmatprep.subr.bf16.mxu0 %v2477
    %3802 = vmatpush1.bf16.msra.mxu0 %v2476
    %3803 = vmatprep.subr.bf16.mxu0 %v2509
    %3804 = vmatpush1.bf16.msra.mxu0 %v2508
    %3805 = vmatprep.subr.bf16.mxu0 %v2541
    %3806 = vmatpush1.bf16.msra.mxu0 %v2540
    %3807 = vmatprep.subr.bf16.mxu0 %v2573
    %3808 = vmatpush1.bf16.msra.mxu0 %v2572
    %3809 = vmatprep.subr.bf16.mxu0 %v2605
    %3810 = vmatpush1.bf16.msra.mxu0 %v2604
    %3811 = vmatprep.subr.bf16.mxu0 %v2637
    %3812 = vmatpush1.bf16.msra.mxu0 %v2636
    %3813 = vmatprep.subr.bf16.mxu0 %v2669
    %3814 = vmatpush1.bf16.msra.mxu0 %v2668
    %3815 = vmatprep.subr.bf16.mxu0 %v2701
    %3816 = vmatpush1.bf16.msra.mxu0 %v2700
    %3817 = vmatprep.subr.bf16.mxu0 %v2733
    %3818 = vmatpush1.bf16.msra.mxu0 %v2732
    %3819 = vmatprep.subr.bf16.mxu0 %v2765
    %3820 = vmatpush1.bf16.msra.mxu0 %v2764
    %3821 = vmatprep.subr.bf16.mxu0 %v2797
    %3822 = vmatpush1.bf16.msra.mxu0 %v2796
    %3823 = vmatprep.mubr.bf16.mxu0 %v77
    %3824 = vmatmul.mubr.bf16.gmra.mrb[0].mxu0 %v76
    %v3825 = vpop.f32.mrb[0].mxu0
    %v3826 = vadd.f32 %v689, %v3825
    %v3827 = vpop.f32.mrb[0].mxu0
    %v3828 = vadd.f32 %v693, %v3827
    %v3829 = vpop.f32.mrb[0].mxu0
    %v3830 = vadd.f32 %v689, %v3829
    %v3831 = vpop.f32.mrb[0].mxu0
    %v3832 = vadd.f32 %v693, %v3831
    %3833 = vdwg.mxu0
    %3834 = vmatprep.subr.bf16.mxu0 %v2319
    %3835 = vmatpush1.bf16.msra.mxu0 %v2318
    %3836 = vmatprep.subr.bf16.mxu0 %v2351
    %3837 = vmatpush1.bf16.msra.mxu0 %v2350
    %3838 = vmatprep.subr.bf16.mxu0 %v2383
    %3839 = vmatpush1.bf16.msra.mxu0 %v2382
    %3840 = vmatprep.subr.bf16.mxu0 %v2415
    %3841 = vmatpush1.bf16.msra.mxu0 %v2414
    %3842 = vmatprep.subr.bf16.mxu0 %v2447
    %3843 = vmatpush1.bf16.msra.mxu0 %v2446
    %3844 = vmatprep.subr.bf16.mxu0 %v2479
    %3845 = vmatpush1.bf16.msra.mxu0 %v2478
    %3846 = vmatprep.subr.bf16.mxu0 %v2511
    %3847 = vmatpush1.bf16.msra.mxu0 %v2510
    %3848 = vmatprep.subr.bf16.mxu0 %v2543
    %3849 = vmatpush1.bf16.msra.mxu0 %v2542
    %3850 = vmatprep.subr.bf16.mxu0 %v2575
    %3851 = vmatpush1.bf16.msra.mxu0 %v2574
    %3852 = vmatprep.subr.bf16.mxu0 %v2607
    %3853 = vmatpush1.bf16.msra.mxu0 %v2606
    %3854 = vmatprep.subr.bf16.mxu0 %v2639
    %3855 = vmatpush1.bf16.msra.mxu0 %v2638
    %3856 = vmatprep.subr.bf16.mxu0 %v2671
    %3857 = vmatpush1.bf16.msra.mxu0 %v2670
    %3858 = vmatprep.subr.bf16.mxu0 %v2703
    %3859 = vmatpush1.bf16.msra.mxu0 %v2702
    %3860 = vmatprep.subr.bf16.mxu0 %v2735
    %3861 = vmatpush1.bf16.msra.mxu0 %v2734
    %3862 = vmatprep.subr.bf16.mxu0 %v2767
    %3863 = vmatpush1.bf16.msra.mxu0 %v2766
    %3864 = vmatprep.subr.bf16.mxu0 %v2799
    %3865 = vmatpush1.bf16.msra.mxu0 %v2798
    %3866 = vmatprep.mubr.bf16.mxu0 %v77
    %3867 = vmatmul.mubr.bf16.gmra.mrb[0].mxu0 %v76
    %v3868 = vpop.f32.mrb[0].mxu0
    %v3869 = vadd.f32 %v697, %v3868
    %v3870 = vpop.f32.mrb[0].mxu0
    %v3871 = vadd.f32 %v701, %v3870
    %v3872 = vpop.f32.mrb[0].mxu0
    %v3873 = vadd.f32 %v697, %v3872
    %v3874 = vpop.f32.mrb[0].mxu0
    %v3875 = vadd.f32 %v701, %v3874
    %3876 = vdwg.mxu0
    %3877 = vmatprep.subr.bf16.mxu0 %v2321
    %3878 = vmatpush1.bf16.msra.mxu0 %v2320
    %3879 = vmatprep.subr.bf16.mxu0 %v2353
    %3880 = vmatpush1.bf16.msra.mxu0 %v2352
    %3881 = vmatprep.subr.bf16.mxu0 %v2385
    %3882 = vmatpush1.bf16.msra.mxu0 %v2384
    %3883 = vmatprep.subr.bf16.mxu0 %v2417
    %3884 = vmatpush1.bf16.msra.mxu0 %v2416
    %3885 = vmatprep.subr.bf16.mxu0 %v2449
    %3886 = vmatpush1.bf16.msra.mxu0 %v2448
    %3887 = vmatprep.subr.bf16.mxu0 %v2481
    %3888 = vmatpush1.bf16.msra.mxu0 %v2480
    %3889 = vmatprep.subr.bf16.mxu0 %v2513
    %3890 = vmatpush1.bf16.msra.mxu0 %v2512
    %3891 = vmatprep.subr.bf16.mxu0 %v2545
    %3892 = vmatpush1.bf16.msra.mxu0 %v2544
    %3893 = vmatprep.subr.bf16.mxu0 %v2577
    %3894 = vmatpush1.bf16.msra.mxu0 %v2576
    %3895 = vmatprep.subr.bf16.mxu0 %v2609
    %3896 = vmatpush1.bf16.msra.mxu0 %v2608
    %3897 = vmatprep.subr.bf16.mxu0 %v2641
    %3898 = vmatpush1.bf16.msra.mxu0 %v2640
    %3899 = vmatprep.subr.bf16.mxu0 %v2673
    %3900 = vmatpush1.bf16.msra.mxu0 %v2672
    %3901 = vmatprep.subr.bf16.mxu0 %v2705
    %3902 = vmatpush1.bf16.msra.mxu0 %v2704
    %3903 = vmatprep.subr.bf16.mxu0 %v2737
    %3904 = vmatpush1.bf16.msra.mxu0 %v2736
    %3905 = vmatprep.subr.bf16.mxu0 %v2769
    %3906 = vmatpush1.bf16.msra.mxu0 %v2768
    %3907 = vmatprep.subr.bf16.mxu0 %v2801
    %3908 = vmatpush1.bf16.msra.mxu0 %v2800
    %3909 = vmatprep.mubr.bf16.mxu0 %v77
    %3910 = vmatmul.mubr.bf16.gmra.mrb[0].mxu0 %v76
    %v3911 = vpop.f32.mrb[0].mxu0
    %v3912 = vadd.f32 %v705, %v3911
    %v3913 = vpop.f32.mrb[0].mxu0
    %v3914 = vadd.f32 %v709, %v3913
    %v3915 = vpop.f32.mrb[0].mxu0
    %v3916 = vadd.f32 %v705, %v3915
    %v3917 = vpop.f32.mrb[0].mxu0
    %v3918 = vadd.f32 %v709, %v3917
    %3919 = vdwg.mxu0
    %3920 = vmatprep.subr.bf16.mxu0 %v2323
    %3921 = vmatpush1.bf16.msra.mxu0 %v2322
    %3922 = vmatprep.subr.bf16.mxu0 %v2355
    %3923 = vmatpush1.bf16.msra.mxu0 %v2354
    %3924 = vmatprep.subr.bf16.mxu0 %v2387
    %3925 = vmatpush1.bf16.msra.mxu0 %v2386
    %3926 = vmatprep.subr.bf16.mxu0 %v2419
    %3927 = vmatpush1.bf16.msra.mxu0 %v2418
    %3928 = vmatprep.subr.bf16.mxu0 %v2451
    %3929 = vmatpush1.bf16.msra.mxu0 %v2450
    %3930 = vmatprep.subr.bf16.mxu0 %v2483
    %3931 = vmatpush1.bf16.msra.mxu0 %v2482
    %3932 = vmatprep.subr.bf16.mxu0 %v2515
    %3933 = vmatpush1.bf16.msra.mxu0 %v2514
    %3934 = vmatprep.subr.bf16.mxu0 %v2547
    %3935 = vmatpush1.bf16.msra.mxu0 %v2546
    %3936 = vmatprep.subr.bf16.mxu0 %v2579
    %3937 = vmatpush1.bf16.msra.mxu0 %v2578
    %3938 = vmatprep.subr.bf16.mxu0 %v2611
    %3939 = vmatpush1.bf16.msra.mxu0 %v2610
    %3940 = vmatprep.subr.bf16.mxu0 %v2643
    %3941 = vmatpush1.bf16.msra.mxu0 %v2642
    %3942 = vmatprep.subr.bf16.mxu0 %v2675
    %3943 = vmatpush1.bf16.msra.mxu0 %v2674
    %3944 = vmatprep.subr.bf16.mxu0 %v2707
    %3945 = vmatpush1.bf16.msra.mxu0 %v2706
    %3946 = vmatprep.subr.bf16.mxu0 %v2739
    %3947 = vmatpush1.bf16.msra.mxu0 %v2738
    %3948 = vmatprep.subr.bf16.mxu0 %v2771
    %3949 = vmatpush1.bf16.msra.mxu0 %v2770
    %3950 = vmatprep.subr.bf16.mxu0 %v2803
    %3951 = vmatpush1.bf16.msra.mxu0 %v2802
    %3952 = vmatprep.mubr.bf16.mxu0 %v77
    %3953 = vmatmul.mubr.bf16.gmra.mrb[0].mxu0 %v76
    %v3954 = vpop.f32.mrb[0].mxu0
    %v3955 = vadd.f32 %v713, %v3954
    %v3956 = vpop.f32.mrb[0].mxu0
    %v3957 = vadd.f32 %v717, %v3956
    %v3958 = vpop.f32.mrb[0].mxu0
    %v3959 = vadd.f32 %v713, %v3958
    %v3960 = vpop.f32.mrb[0].mxu0
    %v3961 = vadd.f32 %v717, %v3960
    %3962 = vdwg.mxu0
    %3963 = vmatprep.subr.bf16.mxu0 %v2325
    %3964 = vmatpush1.bf16.msra.mxu0 %v2324
    %3965 = vmatprep.subr.bf16.mxu0 %v2357
    %3966 = vmatpush1.bf16.msra.mxu0 %v2356
    %3967 = vmatprep.subr.bf16.mxu0 %v2389
    %3968 = vmatpush1.bf16.msra.mxu0 %v2388
    %3969 = vmatprep.subr.bf16.mxu0 %v2421
    %3970 = vmatpush1.bf16.msra.mxu0 %v2420
    %3971 = vmatprep.subr.bf16.mxu0 %v2453
    %3972 = vmatpush1.bf16.msra.mxu0 %v2452
    %3973 = vmatprep.subr.bf16.mxu0 %v2485
    %3974 = vmatpush1.bf16.msra.mxu0 %v2484
    %3975 = vmatprep.subr.bf16.mxu0 %v2517
    %3976 = vmatpush1.bf16.msra.mxu0 %v2516
    %3977 = vmatprep.subr.bf16.mxu0 %v2549
    %3978 = vmatpush1.bf16.msra.mxu0 %v2548
    %3979 = vmatprep.subr.bf16.mxu0 %v2581
    %3980 = vmatpush1.bf16.msra.mxu0 %v2580
    %3981 = vmatprep.subr.bf16.mxu0 %v2613
    %3982 = vmatpush1.bf16.msra.mxu0 %v2612
    %3983 = vmatprep.subr.bf16.mxu0 %v2645
    %3984 = vmatpush1.bf16.msra.mxu0 %v2644
    %3985 = vmatprep.subr.bf16.mxu0 %v2677
    %3986 = vmatpush1.bf16.msra.mxu0 %v2676
    %3987 = vmatprep.subr.bf16.mxu0 %v2709
    %3988 = vmatpush1.bf16.msra.mxu0 %v2708
    %3989 = vmatprep.subr.bf16.mxu0 %v2741
    %3990 = vmatpush1.bf16.msra.mxu0 %v2740
    %3991 = vmatprep.subr.bf16.mxu0 %v2773
    %3992 = vmatpush1.bf16.msra.mxu0 %v2772
    %3993 = vmatprep.subr.bf16.mxu0 %v2805
    %3994 = vmatpush1.bf16.msra.mxu0 %v2804
    %3995 = vmatprep.mubr.bf16.mxu0 %v77
    %3996 = vmatmul.mubr.bf16.gmra.mrb[0].mxu0 %v76
    %v3997 = vpop.f32.mrb[0].mxu0
    %v3998 = vadd.f32 %v721, %v3997
    %v3999 = vpop.f32.mrb[0].mxu0
    %v4000 = vadd.f32 %v725, %v3999
    %v4001 = vpop.f32.mrb[0].mxu0
    %v4002 = vadd.f32 %v721, %v4001
    %v4003 = vpop.f32.mrb[0].mxu0
    %v4004 = vadd.f32 %v725, %v4003
    %4005 = vdwg.mxu0
    %v4006 = vmax.f32 %v3353, 0.0
    %v4007 = vmax.f32 %v3355, 0.0
    %v4008 = vmax.f32 %v3396, 0.0
    %v4009 = vmax.f32 %v3398, 0.0
    %v4010 = vmax.f32 %v3439, 0.0
    %v4011 = vmax.f32 %v3441, 0.0
    %v4012 = vmax.f32 %v3482, 0.0
    %v4013 = vmax.f32 %v3484, 0.0
    %v4014 = vmax.f32 %v3525, 0.0
    %v4015 = vmax.f32 %v3527, 0.0
    %v4016 = vmax.f32 %v3568, 0.0
    %v4017 = vmax.f32 %v3570, 0.0
    %v4018 = vmax.f32 %v3611, 0.0
    %v4019 = vmax.f32 %v3613, 0.0
    %v4020 = vmax.f32 %v3654, 0.0
    %v4021 = vmax.f32 %v3656, 0.0
    %v4022 = vmax.f32 %v3697, 0.0
    %v4023 = vmax.f32 %v3699, 0.0
    %v4024 = vmax.f32 %v3740, 0.0
    %v4025 = vmax.f32 %v3742, 0.0
    %v4026 = vmax.f32 %v3783, 0.0
    %v4027 = vmax.f32 %v3785, 0.0
    %v4028 = vmax.f32 %v3826, 0.0
    %v4029 = vmax.f32 %v3828, 0.0
    %v4030 = vmax.f32 %v3869, 0.0
    %v4031 = vmax.f32 %v3871, 0.0
    %v4032 = vmax.f32 %v3912, 0.0
    %v4033 = vmax.f32 %v3914, 0.0
    %v4034 = vmax.f32 %v3955, 0.0
    %v4035 = vmax.f32 %v3957, 0.0
    %v4036 = vmax.f32 %v3998, 0.0
    %v4037 = vmax.f32 %v4000, 0.0
    %v4038 = vmax.f32 %v3357, 0.0
    %v4039 = vmax.f32 %v3359, 0.0
    %v4040 = vmax.f32 %v3400, 0.0
    %v4041 = vmax.f32 %v3402, 0.0
    %v4042 = vmax.f32 %v3443, 0.0
    %v4043 = vmax.f32 %v3445, 0.0
    %v4044 = vmax.f32 %v3486, 0.0
    %v4045 = vmax.f32 %v3488, 0.0
    %v4046 = vmax.f32 %v3529, 0.0
    %v4047 = vmax.f32 %v3531, 0.0
    %v4048 = vmax.f32 %v3572, 0.0
    %v4049 = vmax.f32 %v3574, 0.0
    %v4050 = vmax.f32 %v3615, 0.0
    %v4051 = vmax.f32 %v3617, 0.0
    %v4052 = vmax.f32 %v3658, 0.0
    %v4053 = vmax.f32 %v3660, 0.0
    %v4054 = vmax.f32 %v3701, 0.0
    %v4055 = vmax.f32 %v3703, 0.0
    %v4056 = vmax.f32 %v3744, 0.0
    %v4057 = vmax.f32 %v3746, 0.0
    %v4058 = vmax.f32 %v3787, 0.0
    %v4059 = vmax.f32 %v3789, 0.0
    %v4060 = vmax.f32 %v3830, 0.0
    %v4061 = vmax.f32 %v3832, 0.0
    %v4062 = vmax.f32 %v3873, 0.0
    %v4063 = vmax.f32 %v3875, 0.0
    %v4064 = vmax.f32 %v3916, 0.0
    %v4065 = vmax.f32 %v3918, 0.0
    %v4066 = vmax.f32 %v3959, 0.0
    %v4067 = vmax.f32 %v3961, 0.0
    %v4068 = vmax.f32 %v4002, 0.0
    %v4069 = vmax.f32 %v4004, 0.0
    %v4070 = vpack.c.bf16 %v4038, %v4006
    %v4071 = vpack.c.bf16 %v4039, %v4007
    %v4072 = vpack.c.bf16 %v4040, %v4008
    %v4073 = vpack.c.bf16 %v4041, %v4009
    %v4074 = vpack.c.bf16 %v4042, %v4010
    %v4075 = vpack.c.bf16 %v4043, %v4011
    %v4076 = vpack.c.bf16 %v4044, %v4012
    %v4077 = vpack.c.bf16 %v4045, %v4013
    %v4078 = vpack.c.bf16 %v4046, %v4014
    %v4079 = vpack.c.bf16 %v4047, %v4015
    %v4080 = vpack.c.bf16 %v4048, %v4016
    %v4081 = vpack.c.bf16 %v4049, %v4017
    %v4082 = vpack.c.bf16 %v4050, %v4018
    %v4083 = vpack.c.bf16 %v4051, %v4019
    %v4084 = vpack.c.bf16 %v4052, %v4020
    %v4085 = vpack.c.bf16 %v4053, %v4021
    %v4086 = vpack.c.bf16 %v4054, %v4022
    %v4087 = vpack.c.bf16 %v4055, %v4023
    %v4088 = vpack.c.bf16 %v4056, %v4024
    %v4089 = vpack.c.bf16 %v4057, %v4025
    %v4090 = vpack.c.bf16 %v4058, %v4026
    %v4091 = vpack.c.bf16 %v4059, %v4027
    %v4092 = vpack.c.bf16 %v4060, %v4028
    %v4093 = vpack.c.bf16 %v4061, %v4029
    %v4094 = vpack.c.bf16 %v4062, %v4030
    %v4095 = vpack.c.bf16 %v4063, %v4031
    %v4096 = vpack.c.bf16 %v4064, %v4032
    %v4097 = vpack.c.bf16 %v4065, %v4033
    %v4098 = vpack.c.bf16 %v4066, %v4034
    %v4099 = vpack.c.bf16 %v4067, %v4035
    %v4100 = vpack.c.bf16 %v4068, %v4036
    %v4101 = vpack.c.bf16 %v4069, %v4037
    %v4102 = vld [vmem:[#allocation6] sm:$0xf]
    %v4103 = vld [vmem:[#allocation6 + $0x4] sm:$0xf]
    %v4104 = vld [vmem:[#allocation6 + $0x8] sm:$0xf]
    %v4105 = vld [vmem:[#allocation6 + $0xc] sm:$0xf]
    %v4106 = vld [vmem:[#allocation6 + $0x10] sm:$0xf]
    %v4107 = vld [vmem:[#allocation6 + $0x14] sm:$0xf]
    %v4108 = vld [vmem:[#allocation6 + $0x18] sm:$0xf]
    %v4109 = vld [vmem:[#allocation6 + $0x1c] sm:$0xf]
    %v4110 = vld [vmem:[#allocation6 + $0x20] sm:$0xf]
    %v4111 = vld [vmem:[#allocation6 + $0x24] sm:$0xf]
    %v4112 = vld [vmem:[#allocation6 + $0x28] sm:$0xf]
    %v4113 = vld [vmem:[#allocation6 + $0x2c] sm:$0xf]
    %v4114 = vld [vmem:[#allocation6 + $0x30] sm:$0xf]
    %v4115 = vld [vmem:[#allocation6 + $0x34] sm:$0xf]
    %v4116 = vld [vmem:[#allocation6 + $0x38] sm:$0xf]
    %v4117 = vld [vmem:[#allocation6 + $0x3c] sm:$0xf]
    %v4118 = vld [vmem:[#allocation6 + $0x40] sm:$0xf]
    %v4119 = vld [vmem:[#allocation6 + $0x44] sm:$0xf]
    %v4120 = vld [vmem:[#allocation6 + $0x48] sm:$0xf]
    %v4121 = vld [vmem:[#allocation6 + $0x4c] sm:$0xf]
    %v4122 = vld [vmem:[#allocation6 + $0x50] sm:$0xf]
    %v4123 = vld [vmem:[#allocation6 + $0x54] sm:$0xf]
    %v4124 = vld [vmem:[#allocation6 + $0x58] sm:$0xf]
    %v4125 = vld [vmem:[#allocation6 + $0x5c] sm:$0xf]
    %v4126 = vld [vmem:[#allocation6 + $0x60] sm:$0xf]
    %v4127 = vld [vmem:[#allocation6 + $0x64] sm:$0xf]
    %v4128 = vld [vmem:[#allocation6 + $0x68] sm:$0xf]
    %v4129 = vld [vmem:[#allocation6 + $0x6c] sm:$0xf]
    %v4130 = vld [vmem:[#allocation6 + $0x70] sm:$0xf]
    %v4131 = vld [vmem:[#allocation6 + $0x74] sm:$0xf]
    %v4132 = vld [vmem:[#allocation6 + $0x78] sm:$0xf]
    %v4133 = vld [vmem:[#allocation6 + $0x7c] sm:$0xf]
    %v4134 = vld [vmem:[#allocation6 + $0x80] sm:$0xf]
    %v4135 = vld [vmem:[#allocation6 + $0x84] sm:$0xf]
    %v4136 = vld [vmem:[#allocation6 + $0x88] sm:$0xf]
    %v4137 = vld [vmem:[#allocation6 + $0x8c] sm:$0xf]
    %v4138 = vld [vmem:[#allocation6 + $0x90] sm:$0xf]
    %v4139 = vld [vmem:[#allocation6 + $0x94] sm:$0xf]
    %v4140 = vld [vmem:[#allocation6 + $0x98] sm:$0xf]
    %v4141 = vld [vmem:[#allocation6 + $0x9c] sm:$0xf]
    %v4142 = vld [vmem:[#allocation6 + $0xa0] sm:$0xf]
    %v4143 = vld [vmem:[#allocation6 + $0xa4] sm:$0xf]
    %v4144 = vld [vmem:[#allocation6 + $0xa8] sm:$0xf]
    %v4145 = vld [vmem:[#allocation6 + $0xac] sm:$0xf]
    %v4146 = vld [vmem:[#allocation6 + $0xb0] sm:$0xf]
    %v4147 = vld [vmem:[#allocation6 + $0xb4] sm:$0xf]
    %v4148 = vld [vmem:[#allocation6 + $0xb8] sm:$0xf]
    %v4149 = vld [vmem:[#allocation6 + $0xbc] sm:$0xf]
    %v4150 = vld [vmem:[#allocation6 + $0xc0] sm:$0xf]
    %v4151 = vld [vmem:[#allocation6 + $0xc4] sm:$0xf]
    %v4152 = vld [vmem:[#allocation6 + $0xc8] sm:$0xf]
    %v4153 = vld [vmem:[#allocation6 + $0xcc] sm:$0xf]
    %v4154 = vld [vmem:[#allocation6 + $0xd0] sm:$0xf]
    %v4155 = vld [vmem:[#allocation6 + $0xd4] sm:$0xf]
    %v4156 = vld [vmem:[#allocation6 + $0xd8] sm:$0xf]
    %v4157 = vld [vmem:[#allocation6 + $0xdc] sm:$0xf]
    %v4158 = vld [vmem:[#allocation6 + $0xe0] sm:$0xf]
    %v4159 = vld [vmem:[#allocation6 + $0xe4] sm:$0xf]
    %v4160 = vld [vmem:[#allocation6 + $0xe8] sm:$0xf]
    %v4161 = vld [vmem:[#allocation6 + $0xec] sm:$0xf]
    %v4162 = vld [vmem:[#allocation6 + $0xf0] sm:$0xf]
    %v4163 = vld [vmem:[#allocation6 + $0xf4] sm:$0xf]
    %v4164 = vld [vmem:[#allocation6 + $0xf8] sm:$0xf]
    %v4165 = vld [vmem:[#allocation6 + $0xfc] sm:$0xf]
    %v4166 = vld [vmem:[#allocation6 + $0x100] sm:$0xf]
    %v4167 = vld [vmem:[#allocation6 + $0x104] sm:$0xf]
    %v4168 = vld [vmem:[#allocation6 + $0x108] sm:$0xf]
    %v4169 = vld [vmem:[#allocation6 + $0x10c] sm:$0xf]
    %v4170 = vld [vmem:[#allocation6 + $0x110] sm:$0xf]
    %v4171 = vld [vmem:[#allocation6 + $0x114] sm:$0xf]
    %v4172 = vld [vmem:[#allocation6 + $0x118] sm:$0xf]
    %v4173 = vld [vmem:[#allocation6 + $0x11c] sm:$0xf]
    %v4174 = vld [vmem:[#allocation6 + $0x120] sm:$0xf]
    %v4175 = vld [vmem:[#allocation6 + $0x124] sm:$0xf]
    %v4176 = vld [vmem:[#allocation6 + $0x128] sm:$0xf]
    %v4177 = vld [vmem:[#allocation6 + $0x12c] sm:$0xf]
    %v4178 = vld [vmem:[#allocation6 + $0x130] sm:$0xf]
    %v4179 = vld [vmem:[#allocation6 + $0x134] sm:$0xf]
    %v4180 = vld [vmem:[#allocation6 + $0x138] sm:$0xf]
    %v4181 = vld [vmem:[#allocation6 + $0x13c] sm:$0xf]
    %v4182 = vld [vmem:[#allocation6 + $0x140] sm:$0xf]
    %v4183 = vld [vmem:[#allocation6 + $0x144] sm:$0xf]
    %v4184 = vld [vmem:[#allocation6 + $0x148] sm:$0xf]
    %v4185 = vld [vmem:[#allocation6 + $0x14c] sm:$0xf]
    %v4186 = vld [vmem:[#allocation6 + $0x150] sm:$0xf]
    %v4187 = vld [vmem:[#allocation6 + $0x154] sm:$0xf]
    %v4188 = vld [vmem:[#allocation6 + $0x158] sm:$0xf]
    %v4189 = vld [vmem:[#allocation6 + $0x15c] sm:$0xf]
    %v4190 = vld [vmem:[#allocation6 + $0x160] sm:$0xf]
    %v4191 = vld [vmem:[#allocation6 + $0x164] sm:$0xf]
    %v4192 = vld [vmem:[#allocation6 + $0x168] sm:$0xf]
    %v4193 = vld [vmem:[#allocation6 + $0x16c] sm:$0xf]
    %v4194 = vld [vmem:[#allocation6 + $0x170] sm:$0xf]
    %v4195 = vld [vmem:[#allocation6 + $0x174] sm:$0xf]
    %v4196 = vld [vmem:[#allocation6 + $0x178] sm:$0xf]
    %v4197 = vld [vmem:[#allocation6 + $0x17c] sm:$0xf]
    %v4198 = vld [vmem:[#allocation6 + $0x180] sm:$0xf]
    %v4199 = vld [vmem:[#allocation6 + $0x184] sm:$0xf]
    %v4200 = vld [vmem:[#allocation6 + $0x188] sm:$0xf]
    %v4201 = vld [vmem:[#allocation6 + $0x18c] sm:$0xf]
    %v4202 = vld [vmem:[#allocation6 + $0x190] sm:$0xf]
    %v4203 = vld [vmem:[#allocation6 + $0x194] sm:$0xf]
    %v4204 = vld [vmem:[#allocation6 + $0x198] sm:$0xf]
    %v4205 = vld [vmem:[#allocation6 + $0x19c] sm:$0xf]
    %v4206 = vld [vmem:[#allocation6 + $0x1a0] sm:$0xf]
    %v4207 = vld [vmem:[#allocation6 + $0x1a4] sm:$0xf]
    %v4208 = vld [vmem:[#allocation6 + $0x1a8] sm:$0xf]
    %v4209 = vld [vmem:[#allocation6 + $0x1ac] sm:$0xf]
    %v4210 = vld [vmem:[#allocation6 + $0x1b0] sm:$0xf]
    %v4211 = vld [vmem:[#allocation6 + $0x1b4] sm:$0xf]
    %v4212 = vld [vmem:[#allocation6 + $0x1b8] sm:$0xf]
    %v4213 = vld [vmem:[#allocation6 + $0x1bc] sm:$0xf]
    %v4214 = vld [vmem:[#allocation6 + $0x1c0] sm:$0xf]
    %v4215 = vld [vmem:[#allocation6 + $0x1c4] sm:$0xf]
    %v4216 = vld [vmem:[#allocation6 + $0x1c8] sm:$0xf]
    %v4217 = vld [vmem:[#allocation6 + $0x1cc] sm:$0xf]
    %v4218 = vld [vmem:[#allocation6 + $0x1d0] sm:$0xf]
    %v4219 = vld [vmem:[#allocation6 + $0x1d4] sm:$0xf]
    %v4220 = vld [vmem:[#allocation6 + $0x1d8] sm:$0xf]
    %v4221 = vld [vmem:[#allocation6 + $0x1dc] sm:$0xf]
    %v4222 = vld [vmem:[#allocation6 + $0x1e0] sm:$0xf]
    %v4223 = vld [vmem:[#allocation6 + $0x1e4] sm:$0xf]
    %v4224 = vld [vmem:[#allocation6 + $0x1e8] sm:$0xf]
    %v4225 = vld [vmem:[#allocation6 + $0x1ec] sm:$0xf]
    %v4226 = vld [vmem:[#allocation6 + $0x1f0] sm:$0xf]
    %v4227 = vld [vmem:[#allocation6 + $0x1f4] sm:$0xf]
    %v4228 = vld [vmem:[#allocation6 + $0x1f8] sm:$0xf]
    %v4229 = vld [vmem:[#allocation6 + $0x1fc] sm:$0xf]
    %v4230 = vld [vmem:[#allocation6 + $0x200] sm:$0xf]
    %v4231 = vld [vmem:[#allocation6 + $0x204] sm:$0xf]
    %v4232 = vld [vmem:[#allocation6 + $0x208] sm:$0xf]
    %v4233 = vld [vmem:[#allocation6 + $0x20c] sm:$0xf]
    %v4234 = vld [vmem:[#allocation6 + $0x210] sm:$0xf]
    %v4235 = vld [vmem:[#allocation6 + $0x214] sm:$0xf]
    %v4236 = vld [vmem:[#allocation6 + $0x218] sm:$0xf]
    %v4237 = vld [vmem:[#allocation6 + $0x21c] sm:$0xf]
    %v4238 = vld [vmem:[#allocation6 + $0x220] sm:$0xf]
    %v4239 = vld [vmem:[#allocation6 + $0x224] sm:$0xf]
    %v4240 = vld [vmem:[#allocation6 + $0x228] sm:$0xf]
    %v4241 = vld [vmem:[#allocation6 + $0x22c] sm:$0xf]
    %v4242 = vld [vmem:[#allocation6 + $0x230] sm:$0xf]
    %v4243 = vld [vmem:[#allocation6 + $0x234] sm:$0xf]
    %v4244 = vld [vmem:[#allocation6 + $0x238] sm:$0xf]
    %v4245 = vld [vmem:[#allocation6 + $0x23c] sm:$0xf]
    %v4246 = vld [vmem:[#allocation6 + $0x240] sm:$0xf]
    %v4247 = vld [vmem:[#allocation6 + $0x244] sm:$0xf]
    %v4248 = vld [vmem:[#allocation6 + $0x248] sm:$0xf]
    %v4249 = vld [vmem:[#allocation6 + $0x24c] sm:$0xf]
    %v4250 = vld [vmem:[#allocation6 + $0x250] sm:$0xf]
    %v4251 = vld [vmem:[#allocation6 + $0x254] sm:$0xf]
    %v4252 = vld [vmem:[#allocation6 + $0x258] sm:$0xf]
    %v4253 = vld [vmem:[#allocation6 + $0x25c] sm:$0xf]
    %v4254 = vld [vmem:[#allocation6 + $0x260] sm:$0xf]
    %v4255 = vld [vmem:[#allocation6 + $0x264] sm:$0xf]
    %v4256 = vld [vmem:[#allocation6 + $0x268] sm:$0xf]
    %v4257 = vld [vmem:[#allocation6 + $0x26c] sm:$0xf]
    %v4258 = vld [vmem:[#allocation6 + $0x270] sm:$0xf]
    %v4259 = vld [vmem:[#allocation6 + $0x274] sm:$0xf]
    %v4260 = vld [vmem:[#allocation6 + $0x278] sm:$0xf]
    %v4261 = vld [vmem:[#allocation6 + $0x27c] sm:$0xf]
    %v4262 = vld [vmem:[#allocation6 + $0x280] sm:$0xf]
    %v4263 = vld [vmem:[#allocation6 + $0x284] sm:$0xf]
    %v4264 = vld [vmem:[#allocation6 + $0x288] sm:$0xf]
    %v4265 = vld [vmem:[#allocation6 + $0x28c] sm:$0xf]
    %v4266 = vld [vmem:[#allocation6 + $0x290] sm:$0xf]
    %v4267 = vld [vmem:[#allocation6 + $0x294] sm:$0xf]
    %v4268 = vld [vmem:[#allocation6 + $0x298] sm:$0xf]
    %v4269 = vld [vmem:[#allocation6 + $0x29c] sm:$0xf]
    %v4270 = vld [vmem:[#allocation6 + $0x2a0] sm:$0xf]
    %v4271 = vld [vmem:[#allocation6 + $0x2a4] sm:$0xf]
    %v4272 = vld [vmem:[#allocation6 + $0x2a8] sm:$0xf]
    %v4273 = vld [vmem:[#allocation6 + $0x2ac] sm:$0xf]
    %v4274 = vld [vmem:[#allocation6 + $0x2b0] sm:$0xf]
    %v4275 = vld [vmem:[#allocation6 + $0x2b4] sm:$0xf]
    %v4276 = vld [vmem:[#allocation6 + $0x2b8] sm:$0xf]
    %v4277 = vld [vmem:[#allocation6 + $0x2bc] sm:$0xf]
    %v4278 = vld [vmem:[#allocation6 + $0x2c0] sm:$0xf]
    %v4279 = vld [vmem:[#allocation6 + $0x2c4] sm:$0xf]
    %v4280 = vld [vmem:[#allocation6 + $0x2c8] sm:$0xf]
    %v4281 = vld [vmem:[#allocation6 + $0x2cc] sm:$0xf]
    %v4282 = vld [vmem:[#allocation6 + $0x2d0] sm:$0xf]
    %v4283 = vld [vmem:[#allocation6 + $0x2d4] sm:$0xf]
    %v4284 = vld [vmem:[#allocation6 + $0x2d8] sm:$0xf]
    %v4285 = vld [vmem:[#allocation6 + $0x2dc] sm:$0xf]
    %v4286 = vld [vmem:[#allocation6 + $0x2e0] sm:$0xf]
    %v4287 = vld [vmem:[#allocation6 + $0x2e4] sm:$0xf]
    %v4288 = vld [vmem:[#allocation6 + $0x2e8] sm:$0xf]
    %v4289 = vld [vmem:[#allocation6 + $0x2ec] sm:$0xf]
    %v4290 = vld [vmem:[#allocation6 + $0x2f0] sm:$0xf]
    %v4291 = vld [vmem:[#allocation6 + $0x2f4] sm:$0xf]
    %v4292 = vld [vmem:[#allocation6 + $0x2f8] sm:$0xf]
    %v4293 = vld [vmem:[#allocation6 + $0x2fc] sm:$0xf]
    %v4294 = vld [vmem:[#allocation6 + $0x300] sm:$0xf]
    %v4295 = vld [vmem:[#allocation6 + $0x304] sm:$0xf]
    %v4296 = vld [vmem:[#allocation6 + $0x308] sm:$0xf]
    %v4297 = vld [vmem:[#allocation6 + $0x30c] sm:$0xf]
    %v4298 = vld [vmem:[#allocation6 + $0x310] sm:$0xf]
    %v4299 = vld [vmem:[#allocation6 + $0x314] sm:$0xf]
    %v4300 = vld [vmem:[#allocation6 + $0x318] sm:$0xf]
    %v4301 = vld [vmem:[#allocation6 + $0x31c] sm:$0xf]
    %v4302 = vld [vmem:[#allocation6 + $0x320] sm:$0xf]
    %v4303 = vld [vmem:[#allocation6 + $0x324] sm:$0xf]
    %v4304 = vld [vmem:[#allocation6 + $0x328] sm:$0xf]
    %v4305 = vld [vmem:[#allocation6 + $0x32c] sm:$0xf]
    %v4306 = vld [vmem:[#allocation6 + $0x330] sm:$0xf]
    %v4307 = vld [vmem:[#allocation6 + $0x334] sm:$0xf]
    %v4308 = vld [vmem:[#allocation6 + $0x338] sm:$0xf]
    %v4309 = vld [vmem:[#allocation6 + $0x33c] sm:$0xf]
    %v4310 = vld [vmem:[#allocation6 + $0x340] sm:$0xf]
    %v4311 = vld [vmem:[#allocation6 + $0x344] sm:$0xf]
    %v4312 = vld [vmem:[#allocation6 + $0x348] sm:$0xf]
    %v4313 = vld [vmem:[#allocation6 + $0x34c] sm:$0xf]
    %v4314 = vld [vmem:[#allocation6 + $0x350] sm:$0xf]
    %v4315 = vld [vmem:[#allocation6 + $0x354] sm:$0xf]
    %v4316 = vld [vmem:[#allocation6 + $0x358] sm:$0xf]
    %v4317 = vld [vmem:[#allocation6 + $0x35c] sm:$0xf]
    %v4318 = vld [vmem:[#allocation6 + $0x360] sm:$0xf]
    %v4319 = vld [vmem:[#allocation6 + $0x364] sm:$0xf]
    %v4320 = vld [vmem:[#allocation6 + $0x368] sm:$0xf]
    %v4321 = vld [vmem:[#allocation6 + $0x36c] sm:$0xf]
    %v4322 = vld [vmem:[#allocation6 + $0x370] sm:$0xf]
    %v4323 = vld [vmem:[#allocation6 + $0x374] sm:$0xf]
    %v4324 = vld [vmem:[#allocation6 + $0x378] sm:$0xf]
    %v4325 = vld [vmem:[#allocation6 + $0x37c] sm:$0xf]
    %v4326 = vld [vmem:[#allocation6 + $0x380] sm:$0xf]
    %v4327 = vld [vmem:[#allocation6 + $0x384] sm:$0xf]
    %v4328 = vld [vmem:[#allocation6 + $0x388] sm:$0xf]
    %v4329 = vld [vmem:[#allocation6 + $0x38c] sm:$0xf]
    %v4330 = vld [vmem:[#allocation6 + $0x390] sm:$0xf]
    %v4331 = vld [vmem:[#allocation6 + $0x394] sm:$0xf]
    %v4332 = vld [vmem:[#allocation6 + $0x398] sm:$0xf]
    %v4333 = vld [vmem:[#allocation6 + $0x39c] sm:$0xf]
    %v4334 = vld [vmem:[#allocation6 + $0x3a0] sm:$0xf]
    %v4335 = vld [vmem:[#allocation6 + $0x3a4] sm:$0xf]
    %v4336 = vld [vmem:[#allocation6 + $0x3a8] sm:$0xf]
    %v4337 = vld [vmem:[#allocation6 + $0x3ac] sm:$0xf]
    %v4338 = vld [vmem:[#allocation6 + $0x3b0] sm:$0xf]
    %v4339 = vld [vmem:[#allocation6 + $0x3b4] sm:$0xf]
    %v4340 = vld [vmem:[#allocation6 + $0x3b8] sm:$0xf]
    %v4341 = vld [vmem:[#allocation6 + $0x3bc] sm:$0xf]
    %v4342 = vld [vmem:[#allocation6 + $0x3c0] sm:$0xf]
    %v4343 = vld [vmem:[#allocation6 + $0x3c4] sm:$0xf]
    %v4344 = vld [vmem:[#allocation6 + $0x3c8] sm:$0xf]
    %v4345 = vld [vmem:[#allocation6 + $0x3cc] sm:$0xf]
    %v4346 = vld [vmem:[#allocation6 + $0x3d0] sm:$0xf]
    %v4347 = vld [vmem:[#allocation6 + $0x3d4] sm:$0xf]
    %v4348 = vld [vmem:[#allocation6 + $0x3d8] sm:$0xf]
    %v4349 = vld [vmem:[#allocation6 + $0x3dc] sm:$0xf]
    %v4350 = vld [vmem:[#allocation6 + $0x3e0] sm:$0xf]
    %v4351 = vld [vmem:[#allocation6 + $0x3e4] sm:$0xf]
    %v4352 = vld [vmem:[#allocation6 + $0x3e8] sm:$0xf]
    %v4353 = vld [vmem:[#allocation6 + $0x3ec] sm:$0xf]
    %v4354 = vld [vmem:[#allocation6 + $0x3f0] sm:$0xf]
    %v4355 = vld [vmem:[#allocation6 + $0x3f4] sm:$0xf]
    %v4356 = vld [vmem:[#allocation6 + $0x3f8] sm:$0xf]
    %v4357 = vld [vmem:[#allocation6 + $0x3fc] sm:$0xf]
    %v4358 = vld [vmem:[#allocation6 + $0x400] sm:$0xf]
    %v4359 = vld [vmem:[#allocation6 + $0x404] sm:$0xf]
    %v4360 = vld [vmem:[#allocation6 + $0x408] sm:$0xf]
    %v4361 = vld [vmem:[#allocation6 + $0x40c] sm:$0xf]
    %v4362 = vld [vmem:[#allocation6 + $0x410] sm:$0xf]
    %v4363 = vld [vmem:[#allocation6 + $0x414] sm:$0xf]
    %v4364 = vld [vmem:[#allocation6 + $0x418] sm:$0xf]
    %v4365 = vld [vmem:[#allocation6 + $0x41c] sm:$0xf]
    %v4366 = vld [vmem:[#allocation6 + $0x420] sm:$0xf]
    %v4367 = vld [vmem:[#allocation6 + $0x424] sm:$0xf]
    %v4368 = vld [vmem:[#allocation6 + $0x428] sm:$0xf]
    %v4369 = vld [vmem:[#allocation6 + $0x42c] sm:$0xf]
    %v4370 = vld [vmem:[#allocation6 + $0x430] sm:$0xf]
    %v4371 = vld [vmem:[#allocation6 + $0x434] sm:$0xf]
    %v4372 = vld [vmem:[#allocation6 + $0x438] sm:$0xf]
    %v4373 = vld [vmem:[#allocation6 + $0x43c] sm:$0xf]
    %v4374 = vld [vmem:[#allocation6 + $0x440] sm:$0xf]
    %v4375 = vld [vmem:[#allocation6 + $0x444] sm:$0xf]
    %v4376 = vld [vmem:[#allocation6 + $0x448] sm:$0xf]
    %v4377 = vld [vmem:[#allocation6 + $0x44c] sm:$0xf]
    %v4378 = vld [vmem:[#allocation6 + $0x450] sm:$0xf]
    %v4379 = vld [vmem:[#allocation6 + $0x454] sm:$0xf]
    %v4380 = vld [vmem:[#allocation6 + $0x458] sm:$0xf]
    %v4381 = vld [vmem:[#allocation6 + $0x45c] sm:$0xf]
    %v4382 = vld [vmem:[#allocation6 + $0x460] sm:$0xf]
    %v4383 = vld [vmem:[#allocation6 + $0x464] sm:$0xf]
    %v4384 = vld [vmem:[#allocation6 + $0x468] sm:$0xf]
    %v4385 = vld [vmem:[#allocation6 + $0x46c] sm:$0xf]
    %v4386 = vld [vmem:[#allocation6 + $0x470] sm:$0xf]
    %v4387 = vld [vmem:[#allocation6 + $0x474] sm:$0xf]
    %v4388 = vld [vmem:[#allocation6 + $0x478] sm:$0xf]
    %v4389 = vld [vmem:[#allocation6 + $0x47c] sm:$0xf]
    %v4390 = vld [vmem:[#allocation6 + $0x480] sm:$0xf]
    %v4391 = vld [vmem:[#allocation6 + $0x484] sm:$0xf]
    %v4392 = vld [vmem:[#allocation6 + $0x488] sm:$0xf]
    %v4393 = vld [vmem:[#allocation6 + $0x48c] sm:$0xf]
    %v4394 = vld [vmem:[#allocation6 + $0x490] sm:$0xf]
    %v4395 = vld [vmem:[#allocation6 + $0x494] sm:$0xf]
    %v4396 = vld [vmem:[#allocation6 + $0x498] sm:$0xf]
    %v4397 = vld [vmem:[#allocation6 + $0x49c] sm:$0xf]
    %v4398 = vld [vmem:[#allocation6 + $0x4a0] sm:$0xf]
    %v4399 = vld [vmem:[#allocation6 + $0x4a4] sm:$0xf]
    %v4400 = vld [vmem:[#allocation6 + $0x4a8] sm:$0xf]
    %v4401 = vld [vmem:[#allocation6 + $0x4ac] sm:$0xf]
    %v4402 = vld [vmem:[#allocation6 + $0x4b0] sm:$0xf]
    %v4403 = vld [vmem:[#allocation6 + $0x4b4] sm:$0xf]
    %v4404 = vld [vmem:[#allocation6 + $0x4b8] sm:$0xf]
    %v4405 = vld [vmem:[#allocation6 + $0x4bc] sm:$0xf]
    %v4406 = vld [vmem:[#allocation6 + $0x4c0] sm:$0xf]
    %v4407 = vld [vmem:[#allocation6 + $0x4c4] sm:$0xf]
    %v4408 = vld [vmem:[#allocation6 + $0x4c8] sm:$0xf]
    %v4409 = vld [vmem:[#allocation6 + $0x4cc] sm:$0xf]
    %v4410 = vld [vmem:[#allocation6 + $0x4d0] sm:$0xf]
    %v4411 = vld [vmem:[#allocation6 + $0x4d4] sm:$0xf]
    %v4412 = vld [vmem:[#allocation6 + $0x4d8] sm:$0xf]
    %v4413 = vld [vmem:[#allocation6 + $0x4dc] sm:$0xf]
    %v4414 = vld [vmem:[#allocation6 + $0x4e0] sm:$0xf]
    %v4415 = vld [vmem:[#allocation6 + $0x4e4] sm:$0xf]
    %v4416 = vld [vmem:[#allocation6 + $0x4e8] sm:$0xf]
    %v4417 = vld [vmem:[#allocation6 + $0x4ec] sm:$0xf]
    %v4418 = vld [vmem:[#allocation6 + $0x4f0] sm:$0xf]
    %v4419 = vld [vmem:[#allocation6 + $0x4f4] sm:$0xf]
    %v4420 = vld [vmem:[#allocation6 + $0x4f8] sm:$0xf]
    %v4421 = vld [vmem:[#allocation6 + $0x4fc] sm:$0xf]
    %v4422 = vld [vmem:[#allocation6 + $0x500] sm:$0xf]
    %v4423 = vld [vmem:[#allocation6 + $0x504] sm:$0xf]
    %v4424 = vld [vmem:[#allocation6 + $0x508] sm:$0xf]
    %v4425 = vld [vmem:[#allocation6 + $0x50c] sm:$0xf]
    %v4426 = vld [vmem:[#allocation6 + $0x510] sm:$0xf]
    %v4427 = vld [vmem:[#allocation6 + $0x514] sm:$0xf]
    %v4428 = vld [vmem:[#allocation6 + $0x518] sm:$0xf]
    %v4429 = vld [vmem:[#allocation6 + $0x51c] sm:$0xf]
    %v4430 = vld [vmem:[#allocation6 + $0x520] sm:$0xf]
    %v4431 = vld [vmem:[#allocation6 + $0x524] sm:$0xf]
    %v4432 = vld [vmem:[#allocation6 + $0x528] sm:$0xf]
    %v4433 = vld [vmem:[#allocation6 + $0x52c] sm:$0xf]
    %v4434 = vld [vmem:[#allocation6 + $0x530] sm:$0xf]
    %v4435 = vld [vmem:[#allocation6 + $0x534] sm:$0xf]
    %v4436 = vld [vmem:[#allocation6 + $0x538] sm:$0xf]
    %v4437 = vld [vmem:[#allocation6 + $0x53c] sm:$0xf]
    %v4438 = vld [vmem:[#allocation6 + $0x540] sm:$0xf]
    %v4439 = vld [vmem:[#allocation6 + $0x544] sm:$0xf]
    %v4440 = vld [vmem:[#allocation6 + $0x548] sm:$0xf]
    %v4441 = vld [vmem:[#allocation6 + $0x54c] sm:$0xf]
    %v4442 = vld [vmem:[#allocation6 + $0x550] sm:$0xf]
    %v4443 = vld [vmem:[#allocation6 + $0x554] sm:$0xf]
    %v4444 = vld [vmem:[#allocation6 + $0x558] sm:$0xf]
    %v4445 = vld [vmem:[#allocation6 + $0x55c] sm:$0xf]
    %v4446 = vld [vmem:[#allocation6 + $0x560] sm:$0xf]
    %v4447 = vld [vmem:[#allocation6 + $0x564] sm:$0xf]
    %v4448 = vld [vmem:[#allocation6 + $0x568] sm:$0xf]
    %v4449 = vld [vmem:[#allocation6 + $0x56c] sm:$0xf]
    %v4450 = vld [vmem:[#allocation6 + $0x570] sm:$0xf]
    %v4451 = vld [vmem:[#allocation6 + $0x574] sm:$0xf]
    %v4452 = vld [vmem:[#allocation6 + $0x578] sm:$0xf]
    %v4453 = vld [vmem:[#allocation6 + $0x57c] sm:$0xf]
    %v4454 = vld [vmem:[#allocation6 + $0x580] sm:$0xf]
    %v4455 = vld [vmem:[#allocation6 + $0x584] sm:$0xf]
    %v4456 = vld [vmem:[#allocation6 + $0x588] sm:$0xf]
    %v4457 = vld [vmem:[#allocation6 + $0x58c] sm:$0xf]
    %v4458 = vld [vmem:[#allocation6 + $0x590] sm:$0xf]
    %v4459 = vld [vmem:[#allocation6 + $0x594] sm:$0xf]
    %v4460 = vld [vmem:[#allocation6 + $0x598] sm:$0xf]
    %v4461 = vld [vmem:[#allocation6 + $0x59c] sm:$0xf]
    %v4462 = vld [vmem:[#allocation6 + $0x5a0] sm:$0xf]
    %v4463 = vld [vmem:[#allocation6 + $0x5a4] sm:$0xf]
    %v4464 = vld [vmem:[#allocation6 + $0x5a8] sm:$0xf]
    %v4465 = vld [vmem:[#allocation6 + $0x5ac] sm:$0xf]
    %v4466 = vld [vmem:[#allocation6 + $0x5b0] sm:$0xf]
    %v4467 = vld [vmem:[#allocation6 + $0x5b4] sm:$0xf]
    %v4468 = vld [vmem:[#allocation6 + $0x5b8] sm:$0xf]
    %v4469 = vld [vmem:[#allocation6 + $0x5bc] sm:$0xf]
    %v4470 = vld [vmem:[#allocation6 + $0x5c0] sm:$0xf]
    %v4471 = vld [vmem:[#allocation6 + $0x5c4] sm:$0xf]
    %v4472 = vld [vmem:[#allocation6 + $0x5c8] sm:$0xf]
    %v4473 = vld [vmem:[#allocation6 + $0x5cc] sm:$0xf]
    %v4474 = vld [vmem:[#allocation6 + $0x5d0] sm:$0xf]
    %v4475 = vld [vmem:[#allocation6 + $0x5d4] sm:$0xf]
    %v4476 = vld [vmem:[#allocation6 + $0x5d8] sm:$0xf]
    %v4477 = vld [vmem:[#allocation6 + $0x5dc] sm:$0xf]
    %v4478 = vld [vmem:[#allocation6 + $0x5e0] sm:$0xf]
    %v4479 = vld [vmem:[#allocation6 + $0x5e4] sm:$0xf]
    %v4480 = vld [vmem:[#allocation6 + $0x5e8] sm:$0xf]
    %v4481 = vld [vmem:[#allocation6 + $0x5ec] sm:$0xf]
    %v4482 = vld [vmem:[#allocation6 + $0x5f0] sm:$0xf]
    %v4483 = vld [vmem:[#allocation6 + $0x5f4] sm:$0xf]
    %v4484 = vld [vmem:[#allocation6 + $0x5f8] sm:$0xf]
    %v4485 = vld [vmem:[#allocation6 + $0x5fc] sm:$0xf]
    %v4486 = vld [vmem:[#allocation6 + $0x600] sm:$0xf]
    %v4487 = vld [vmem:[#allocation6 + $0x604] sm:$0xf]
    %v4488 = vld [vmem:[#allocation6 + $0x608] sm:$0xf]
    %v4489 = vld [vmem:[#allocation6 + $0x60c] sm:$0xf]
    %v4490 = vld [vmem:[#allocation6 + $0x610] sm:$0xf]
    %v4491 = vld [vmem:[#allocation6 + $0x614] sm:$0xf]
    %v4492 = vld [vmem:[#allocation6 + $0x618] sm:$0xf]
    %v4493 = vld [vmem:[#allocation6 + $0x61c] sm:$0xf]
    %v4494 = vld [vmem:[#allocation6 + $0x620] sm:$0xf]
    %v4495 = vld [vmem:[#allocation6 + $0x624] sm:$0xf]
    %v4496 = vld [vmem:[#allocation6 + $0x628] sm:$0xf]
    %v4497 = vld [vmem:[#allocation6 + $0x62c] sm:$0xf]
    %v4498 = vld [vmem:[#allocation6 + $0x630] sm:$0xf]
    %v4499 = vld [vmem:[#allocation6 + $0x634] sm:$0xf]
    %v4500 = vld [vmem:[#allocation6 + $0x638] sm:$0xf]
    %v4501 = vld [vmem:[#allocation6 + $0x63c] sm:$0xf]
    %v4502 = vld [vmem:[#allocation6 + $0x640] sm:$0xf]
    %v4503 = vld [vmem:[#allocation6 + $0x644] sm:$0xf]
    %v4504 = vld [vmem:[#allocation6 + $0x648] sm:$0xf]
    %v4505 = vld [vmem:[#allocation6 + $0x64c] sm:$0xf]
    %v4506 = vld [vmem:[#allocation6 + $0x650] sm:$0xf]
    %v4507 = vld [vmem:[#allocation6 + $0x654] sm:$0xf]
    %v4508 = vld [vmem:[#allocation6 + $0x658] sm:$0xf]
    %v4509 = vld [vmem:[#allocation6 + $0x65c] sm:$0xf]
    %v4510 = vld [vmem:[#allocation6 + $0x660] sm:$0xf]
    %v4511 = vld [vmem:[#allocation6 + $0x664] sm:$0xf]
    %v4512 = vld [vmem:[#allocation6 + $0x668] sm:$0xf]
    %v4513 = vld [vmem:[#allocation6 + $0x66c] sm:$0xf]
    %v4514 = vld [vmem:[#allocation6 + $0x670] sm:$0xf]
    %v4515 = vld [vmem:[#allocation6 + $0x674] sm:$0xf]
    %v4516 = vld [vmem:[#allocation6 + $0x678] sm:$0xf]
    %v4517 = vld [vmem:[#allocation6 + $0x67c] sm:$0xf]
    %v4518 = vld [vmem:[#allocation6 + $0x680] sm:$0xf]
    %v4519 = vld [vmem:[#allocation6 + $0x684] sm:$0xf]
    %v4520 = vld [vmem:[#allocation6 + $0x688] sm:$0xf]
    %v4521 = vld [vmem:[#allocation6 + $0x68c] sm:$0xf]
    %v4522 = vld [vmem:[#allocation6 + $0x690] sm:$0xf]
    %v4523 = vld [vmem:[#allocation6 + $0x694] sm:$0xf]
    %v4524 = vld [vmem:[#allocation6 + $0x698] sm:$0xf]
    %v4525 = vld [vmem:[#allocation6 + $0x69c] sm:$0xf]
    %v4526 = vld [vmem:[#allocation6 + $0x6a0] sm:$0xf]
    %v4527 = vld [vmem:[#allocation6 + $0x6a4] sm:$0xf]
    %v4528 = vld [vmem:[#allocation6 + $0x6a8] sm:$0xf]
    %v4529 = vld [vmem:[#allocation6 + $0x6ac] sm:$0xf]
    %v4530 = vld [vmem:[#allocation6 + $0x6b0] sm:$0xf]
    %v4531 = vld [vmem:[#allocation6 + $0x6b4] sm:$0xf]
    %v4532 = vld [vmem:[#allocation6 + $0x6b8] sm:$0xf]
    %v4533 = vld [vmem:[#allocation6 + $0x6bc] sm:$0xf]
    %v4534 = vld [vmem:[#allocation6 + $0x6c0] sm:$0xf]
    %v4535 = vld [vmem:[#allocation6 + $0x6c4] sm:$0xf]
    %v4536 = vld [vmem:[#allocation6 + $0x6c8] sm:$0xf]
    %v4537 = vld [vmem:[#allocation6 + $0x6cc] sm:$0xf]
    %v4538 = vld [vmem:[#allocation6 + $0x6d0] sm:$0xf]
    %v4539 = vld [vmem:[#allocation6 + $0x6d4] sm:$0xf]
    %v4540 = vld [vmem:[#allocation6 + $0x6d8] sm:$0xf]
    %v4541 = vld [vmem:[#allocation6 + $0x6dc] sm:$0xf]
    %v4542 = vld [vmem:[#allocation6 + $0x6e0] sm:$0xf]
    %v4543 = vld [vmem:[#allocation6 + $0x6e4] sm:$0xf]
    %v4544 = vld [vmem:[#allocation6 + $0x6e8] sm:$0xf]
    %v4545 = vld [vmem:[#allocation6 + $0x6ec] sm:$0xf]
    %v4546 = vld [vmem:[#allocation6 + $0x6f0] sm:$0xf]
    %v4547 = vld [vmem:[#allocation6 + $0x6f4] sm:$0xf]
    %v4548 = vld [vmem:[#allocation6 + $0x6f8] sm:$0xf]
    %v4549 = vld [vmem:[#allocation6 + $0x6fc] sm:$0xf]
    %v4550 = vld [vmem:[#allocation6 + $0x700] sm:$0xf]
    %v4551 = vld [vmem:[#allocation6 + $0x704] sm:$0xf]
    %v4552 = vld [vmem:[#allocation6 + $0x708] sm:$0xf]
    %v4553 = vld [vmem:[#allocation6 + $0x70c] sm:$0xf]
    %v4554 = vld [vmem:[#allocation6 + $0x710] sm:$0xf]
    %v4555 = vld [vmem:[#allocation6 + $0x714] sm:$0xf]
    %v4556 = vld [vmem:[#allocation6 + $0x718] sm:$0xf]
    %v4557 = vld [vmem:[#allocation6 + $0x71c] sm:$0xf]
    %v4558 = vld [vmem:[#allocation6 + $0x720] sm:$0xf]
    %v4559 = vld [vmem:[#allocation6 + $0x724] sm:$0xf]
    %v4560 = vld [vmem:[#allocation6 + $0x728] sm:$0xf]
    %v4561 = vld [vmem:[#allocation6 + $0x72c] sm:$0xf]
    %v4562 = vld [vmem:[#allocation6 + $0x730] sm:$0xf]
    %v4563 = vld [vmem:[#allocation6 + $0x734] sm:$0xf]
    %v4564 = vld [vmem:[#allocation6 + $0x738] sm:$0xf]
    %v4565 = vld [vmem:[#allocation6 + $0x73c] sm:$0xf]
    %v4566 = vld [vmem:[#allocation6 + $0x740] sm:$0xf]
    %v4567 = vld [vmem:[#allocation6 + $0x744] sm:$0xf]
    %v4568 = vld [vmem:[#allocation6 + $0x748] sm:$0xf]
    %v4569 = vld [vmem:[#allocation6 + $0x74c] sm:$0xf]
    %v4570 = vld [vmem:[#allocation6 + $0x750] sm:$0xf]
    %v4571 = vld [vmem:[#allocation6 + $0x754] sm:$0xf]
    %v4572 = vld [vmem:[#allocation6 + $0x758] sm:$0xf]
    %v4573 = vld [vmem:[#allocation6 + $0x75c] sm:$0xf]
    %v4574 = vld [vmem:[#allocation6 + $0x760] sm:$0xf]
    %v4575 = vld [vmem:[#allocation6 + $0x764] sm:$0xf]
    %v4576 = vld [vmem:[#allocation6 + $0x768] sm:$0xf]
    %v4577 = vld [vmem:[#allocation6 + $0x76c] sm:$0xf]
    %v4578 = vld [vmem:[#allocation6 + $0x770] sm:$0xf]
    %v4579 = vld [vmem:[#allocation6 + $0x774] sm:$0xf]
    %v4580 = vld [vmem:[#allocation6 + $0x778] sm:$0xf]
    %v4581 = vld [vmem:[#allocation6 + $0x77c] sm:$0xf]
    %v4582 = vld [vmem:[#allocation6 + $0x780] sm:$0xf]
    %v4583 = vld [vmem:[#allocation6 + $0x784] sm:$0xf]
    %v4584 = vld [vmem:[#allocation6 + $0x788] sm:$0xf]
    %v4585 = vld [vmem:[#allocation6 + $0x78c] sm:$0xf]
    %v4586 = vld [vmem:[#allocation6 + $0x790] sm:$0xf]
    %v4587 = vld [vmem:[#allocation6 + $0x794] sm:$0xf]
    %v4588 = vld [vmem:[#allocation6 + $0x798] sm:$0xf]
    %v4589 = vld [vmem:[#allocation6 + $0x79c] sm:$0xf]
    %v4590 = vld [vmem:[#allocation6 + $0x7a0] sm:$0xf]
    %v4591 = vld [vmem:[#allocation6 + $0x7a4] sm:$0xf]
    %v4592 = vld [vmem:[#allocation6 + $0x7a8] sm:$0xf]
    %v4593 = vld [vmem:[#allocation6 + $0x7ac] sm:$0xf]
    %v4594 = vld [vmem:[#allocation6 + $0x7b0] sm:$0xf]
    %v4595 = vld [vmem:[#allocation6 + $0x7b4] sm:$0xf]
    %v4596 = vld [vmem:[#allocation6 + $0x7b8] sm:$0xf]
    %v4597 = vld [vmem:[#allocation6 + $0x7bc] sm:$0xf]
    %v4598 = vld [vmem:[#allocation6 + $0x7c0] sm:$0xf]
    %v4599 = vld [vmem:[#allocation6 + $0x7c4] sm:$0xf]
    %v4600 = vld [vmem:[#allocation6 + $0x7c8] sm:$0xf]
    %v4601 = vld [vmem:[#allocation6 + $0x7cc] sm:$0xf]
    %v4602 = vld [vmem:[#allocation6 + $0x7d0] sm:$0xf]
    %v4603 = vld [vmem:[#allocation6 + $0x7d4] sm:$0xf]
    %v4604 = vld [vmem:[#allocation6 + $0x7d8] sm:$0xf]
    %v4605 = vld [vmem:[#allocation6 + $0x7dc] sm:$0xf]
    %v4606 = vld [vmem:[#allocation6 + $0x7e0] sm:$0xf]
    %v4607 = vld [vmem:[#allocation6 + $0x7e4] sm:$0xf]
    %v4608 = vld [vmem:[#allocation6 + $0x7e8] sm:$0xf]
    %v4609 = vld [vmem:[#allocation6 + $0x7ec] sm:$0xf]
    %v4610 = vld [vmem:[#allocation6 + $0x7f0] sm:$0xf]
    %v4611 = vld [vmem:[#allocation6 + $0x7f4] sm:$0xf]
    %v4612 = vld [vmem:[#allocation6 + $0x7f8] sm:$0xf]
    %v4613 = vld [vmem:[#allocation6 + $0x7fc] sm:$0xf]
    %v4614 = vld [vmem:[#allocation7] sm:$0x1]
    %v4616 = vlaneseq
    %v4617 = vshrl.u32 %v4616, 7
    %v4618 = vsub.s32 0, %v4617
    %v4619 = vrot.slane %v4614, %v4618
    %v5133 = vunpack.c.l.b16 %v4102
    %v5134 = vunpack.c.l.b16 %v4103
    %v5135 = vunpack.c.l.b16 %v4104
    %v5136 = vunpack.c.l.b16 %v4105
    %v5137 = vunpack.c.l.b16 %v4106
    %v5138 = vunpack.c.l.b16 %v4107
    %v5139 = vunpack.c.l.b16 %v4108
    %v5140 = vunpack.c.l.b16 %v4109
    %v5141 = vunpack.c.l.b16 %v4110
    %v5142 = vunpack.c.l.b16 %v4111
    %v5143 = vunpack.c.l.b16 %v4112
    %v5144 = vunpack.c.l.b16 %v4113
    %v5145 = vunpack.c.l.b16 %v4114
    %v5146 = vunpack.c.l.b16 %v4115
    %v5147 = vunpack.c.l.b16 %v4116
    %v5148 = vunpack.c.l.b16 %v4117
    %v5149 = vunpack.c.l.b16 %v4118
    %v5150 = vunpack.c.l.b16 %v4119
    %v5151 = vunpack.c.l.b16 %v4120
    %v5152 = vunpack.c.l.b16 %v4121
    %v5153 = vunpack.c.l.b16 %v4122
    %v5154 = vunpack.c.l.b16 %v4123
    %v5155 = vunpack.c.l.b16 %v4124
    %v5156 = vunpack.c.l.b16 %v4125
    %v5157 = vunpack.c.l.b16 %v4126
    %v5158 = vunpack.c.l.b16 %v4127
    %v5159 = vunpack.c.l.b16 %v4128
    %v5160 = vunpack.c.l.b16 %v4129
    %v5161 = vunpack.c.l.b16 %v4130
    %v5162 = vunpack.c.l.b16 %v4131
    %v5163 = vunpack.c.l.b16 %v4132
    %v5164 = vunpack.c.l.b16 %v4133
    %v5165 = vunpack.c.l.b16 %v4134
    %v5166 = vunpack.c.l.b16 %v4135
    %v5167 = vunpack.c.l.b16 %v4136
    %v5168 = vunpack.c.l.b16 %v4137
    %v5169 = vunpack.c.l.b16 %v4138
    %v5170 = vunpack.c.l.b16 %v4139
    %v5171 = vunpack.c.l.b16 %v4140
    %v5172 = vunpack.c.l.b16 %v4141
    %v5173 = vunpack.c.l.b16 %v4142
    %v5174 = vunpack.c.l.b16 %v4143
    %v5175 = vunpack.c.l.b16 %v4144
    %v5176 = vunpack.c.l.b16 %v4145
    %v5177 = vunpack.c.l.b16 %v4146
    %v5178 = vunpack.c.l.b16 %v4147
    %v5179 = vunpack.c.l.b16 %v4148
    %v5180 = vunpack.c.l.b16 %v4149
    %v5181 = vunpack.c.l.b16 %v4150
    %v5182 = vunpack.c.l.b16 %v4151
    %v5183 = vunpack.c.l.b16 %v4152
    %v5184 = vunpack.c.l.b16 %v4153
    %v5185 = vunpack.c.l.b16 %v4154
    %v5186 = vunpack.c.l.b16 %v4155
    %v5187 = vunpack.c.l.b16 %v4156
    %v5188 = vunpack.c.l.b16 %v4157
    %v5189 = vunpack.c.l.b16 %v4158
    %v5190 = vunpack.c.l.b16 %v4159
    %v5191 = vunpack.c.l.b16 %v4160
    %v5192 = vunpack.c.l.b16 %v4161
    %v5193 = vunpack.c.l.b16 %v4162
    %v5194 = vunpack.c.l.b16 %v4163
    %v5195 = vunpack.c.l.b16 %v4164
    %v5196 = vunpack.c.l.b16 %v4165
    %v5197 = vunpack.c.l.b16 %v4166
    %v5198 = vunpack.c.l.b16 %v4167
    %v5199 = vunpack.c.l.b16 %v4168
    %v5200 = vunpack.c.l.b16 %v4169
    %v5201 = vunpack.c.l.b16 %v4170
    %v5202 = vunpack.c.l.b16 %v4171
    %v5203 = vunpack.c.l.b16 %v4172
    %v5204 = vunpack.c.l.b16 %v4173
    %v5205 = vunpack.c.l.b16 %v4174
    %v5206 = vunpack.c.l.b16 %v4175
    %v5207 = vunpack.c.l.b16 %v4176
    %v5208 = vunpack.c.l.b16 %v4177
    %v5209 = vunpack.c.l.b16 %v4178
    %v5210 = vunpack.c.l.b16 %v4179
    %v5211 = vunpack.c.l.b16 %v4180
    %v5212 = vunpack.c.l.b16 %v4181
    %v5213 = vunpack.c.l.b16 %v4182
    %v5214 = vunpack.c.l.b16 %v4183
    %v5215 = vunpack.c.l.b16 %v4184
    %v5216 = vunpack.c.l.b16 %v4185
    %v5217 = vunpack.c.l.b16 %v4186
    %v5218 = vunpack.c.l.b16 %v4187
    %v5219 = vunpack.c.l.b16 %v4188
    %v5220 = vunpack.c.l.b16 %v4189
    %v5221 = vunpack.c.l.b16 %v4190
    %v5222 = vunpack.c.l.b16 %v4191
    %v5223 = vunpack.c.l.b16 %v4192
    %v5224 = vunpack.c.l.b16 %v4193
    %v5225 = vunpack.c.l.b16 %v4194
    %v5226 = vunpack.c.l.b16 %v4195
    %v5227 = vunpack.c.l.b16 %v4196
    %v5228 = vunpack.c.l.b16 %v4197
    %v5229 = vunpack.c.l.b16 %v4198
    %v5230 = vunpack.c.l.b16 %v4199
    %v5231 = vunpack.c.l.b16 %v4200
    %v5232 = vunpack.c.l.b16 %v4201
    %v5233 = vunpack.c.l.b16 %v4202
    %v5234 = vunpack.c.l.b16 %v4203
    %v5235 = vunpack.c.l.b16 %v4204
    %v5236 = vunpack.c.l.b16 %v4205
    %v5237 = vunpack.c.l.b16 %v4206
    %v5238 = vunpack.c.l.b16 %v4207
    %v5239 = vunpack.c.l.b16 %v4208
    %v5240 = vunpack.c.l.b16 %v4209
    %v5241 = vunpack.c.l.b16 %v4210
    %v5242 = vunpack.c.l.b16 %v4211
    %v5243 = vunpack.c.l.b16 %v4212
    %v5244 = vunpack.c.l.b16 %v4213
    %v5245 = vunpack.c.l.b16 %v4214
    %v5246 = vunpack.c.l.b16 %v4215
    %v5247 = vunpack.c.l.b16 %v4216
    %v5248 = vunpack.c.l.b16 %v4217
    %v5249 = vunpack.c.l.b16 %v4218
    %v5250 = vunpack.c.l.b16 %v4219
    %v5251 = vunpack.c.l.b16 %v4220
    %v5252 = vunpack.c.l.b16 %v4221
    %v5253 = vunpack.c.l.b16 %v4222
    %v5254 = vunpack.c.l.b16 %v4223
    %v5255 = vunpack.c.l.b16 %v4224
    %v5256 = vunpack.c.l.b16 %v4225
    %v5257 = vunpack.c.l.b16 %v4226
    %v5258 = vunpack.c.l.b16 %v4227
    %v5259 = vunpack.c.l.b16 %v4228
    %v5260 = vunpack.c.l.b16 %v4229
    %v5261 = vunpack.c.l.b16 %v4230
    %v5262 = vunpack.c.l.b16 %v4231
    %v5263 = vunpack.c.l.b16 %v4232
    %v5264 = vunpack.c.l.b16 %v4233
    %v5265 = vunpack.c.l.b16 %v4234
    %v5266 = vunpack.c.l.b16 %v4235
    %v5267 = vunpack.c.l.b16 %v4236
    %v5268 = vunpack.c.l.b16 %v4237
    %v5269 = vunpack.c.l.b16 %v4238
    %v5270 = vunpack.c.l.b16 %v4239
    %v5271 = vunpack.c.l.b16 %v4240
    %v5272 = vunpack.c.l.b16 %v4241
    %v5273 = vunpack.c.l.b16 %v4242
    %v5274 = vunpack.c.l.b16 %v4243
    %v5275 = vunpack.c.l.b16 %v4244
    %v5276 = vunpack.c.l.b16 %v4245
    %v5277 = vunpack.c.l.b16 %v4246
    %v5278 = vunpack.c.l.b16 %v4247
    %v5279 = vunpack.c.l.b16 %v4248
    %v5280 = vunpack.c.l.b16 %v4249
    %v5281 = vunpack.c.l.b16 %v4250
    %v5282 = vunpack.c.l.b16 %v4251
    %v5283 = vunpack.c.l.b16 %v4252
    %v5284 = vunpack.c.l.b16 %v4253
    %v5285 = vunpack.c.l.b16 %v4254
    %v5286 = vunpack.c.l.b16 %v4255
    %v5287 = vunpack.c.l.b16 %v4256
    %v5288 = vunpack.c.l.b16 %v4257
    %v5289 = vunpack.c.l.b16 %v4258
    %v5290 = vunpack.c.l.b16 %v4259
    %v5291 = vunpack.c.l.b16 %v4260
    %v5292 = vunpack.c.l.b16 %v4261
    %v5293 = vunpack.c.l.b16 %v4262
    %v5294 = vunpack.c.l.b16 %v4263
    %v5295 = vunpack.c.l.b16 %v4264
    %v5296 = vunpack.c.l.b16 %v4265
    %v5297 = vunpack.c.l.b16 %v4266
    %v5298 = vunpack.c.l.b16 %v4267
    %v5299 = vunpack.c.l.b16 %v4268
    %v5300 = vunpack.c.l.b16 %v4269
    %v5301 = vunpack.c.l.b16 %v4270
    %v5302 = vunpack.c.l.b16 %v4271
    %v5303 = vunpack.c.l.b16 %v4272
    %v5304 = vunpack.c.l.b16 %v4273
    %v5305 = vunpack.c.l.b16 %v4274
    %v5306 = vunpack.c.l.b16 %v4275
    %v5307 = vunpack.c.l.b16 %v4276
    %v5308 = vunpack.c.l.b16 %v4277
    %v5309 = vunpack.c.l.b16 %v4278
    %v5310 = vunpack.c.l.b16 %v4279
    %v5311 = vunpack.c.l.b16 %v4280
    %v5312 = vunpack.c.l.b16 %v4281
    %v5313 = vunpack.c.l.b16 %v4282
    %v5314 = vunpack.c.l.b16 %v4283
    %v5315 = vunpack.c.l.b16 %v4284
    %v5316 = vunpack.c.l.b16 %v4285
    %v5317 = vunpack.c.l.b16 %v4286
    %v5318 = vunpack.c.l.b16 %v4287
    %v5319 = vunpack.c.l.b16 %v4288
    %v5320 = vunpack.c.l.b16 %v4289
    %v5321 = vunpack.c.l.b16 %v4290
    %v5322 = vunpack.c.l.b16 %v4291
    %v5323 = vunpack.c.l.b16 %v4292
    %v5324 = vunpack.c.l.b16 %v4293
    %v5325 = vunpack.c.l.b16 %v4294
    %v5326 = vunpack.c.l.b16 %v4295
    %v5327 = vunpack.c.l.b16 %v4296
    %v5328 = vunpack.c.l.b16 %v4297
    %v5329 = vunpack.c.l.b16 %v4298
    %v5330 = vunpack.c.l.b16 %v4299
    %v5331 = vunpack.c.l.b16 %v4300
    %v5332 = vunpack.c.l.b16 %v4301
    %v5333 = vunpack.c.l.b16 %v4302
    %v5334 = vunpack.c.l.b16 %v4303
    %v5335 = vunpack.c.l.b16 %v4304
    %v5336 = vunpack.c.l.b16 %v4305
    %v5337 = vunpack.c.l.b16 %v4306
    %v5338 = vunpack.c.l.b16 %v4307
    %v5339 = vunpack.c.l.b16 %v4308
    %v5340 = vunpack.c.l.b16 %v4309
    %v5341 = vunpack.c.l.b16 %v4310
    %v5342 = vunpack.c.l.b16 %v4311
    %v5343 = vunpack.c.l.b16 %v4312
    %v5344 = vunpack.c.l.b16 %v4313
    %v5345 = vunpack.c.l.b16 %v4314
    %v5346 = vunpack.c.l.b16 %v4315
    %v5347 = vunpack.c.l.b16 %v4316
    %v5348 = vunpack.c.l.b16 %v4317
    %v5349 = vunpack.c.l.b16 %v4318
    %v5350 = vunpack.c.l.b16 %v4319
    %v5351 = vunpack.c.l.b16 %v4320
    %v5352 = vunpack.c.l.b16 %v4321
    %v5353 = vunpack.c.l.b16 %v4322
    %v5354 = vunpack.c.l.b16 %v4323
    %v5355 = vunpack.c.l.b16 %v4324
    %v5356 = vunpack.c.l.b16 %v4325
    %v5357 = vunpack.c.l.b16 %v4326
    %v5358 = vunpack.c.l.b16 %v4327
    %v5359 = vunpack.c.l.b16 %v4328
    %v5360 = vunpack.c.l.b16 %v4329
    %v5361 = vunpack.c.l.b16 %v4330
    %v5362 = vunpack.c.l.b16 %v4331
    %v5363 = vunpack.c.l.b16 %v4332
    %v5364 = vunpack.c.l.b16 %v4333
    %v5365 = vunpack.c.l.b16 %v4334
    %v5366 = vunpack.c.l.b16 %v4335
    %v5367 = vunpack.c.l.b16 %v4336
    %v5368 = vunpack.c.l.b16 %v4337
    %v5369 = vunpack.c.l.b16 %v4338
    %v5370 = vunpack.c.l.b16 %v4339
    %v5371 = vunpack.c.l.b16 %v4340
    %v5372 = vunpack.c.l.b16 %v4341
    %v5373 = vunpack.c.l.b16 %v4342
    %v5374 = vunpack.c.l.b16 %v4343
    %v5375 = vunpack.c.l.b16 %v4344
    %v5376 = vunpack.c.l.b16 %v4345
    %v5377 = vunpack.c.l.b16 %v4346
    %v5378 = vunpack.c.l.b16 %v4347
    %v5379 = vunpack.c.l.b16 %v4348
    %v5380 = vunpack.c.l.b16 %v4349
    %v5381 = vunpack.c.l.b16 %v4350
    %v5382 = vunpack.c.l.b16 %v4351
    %v5383 = vunpack.c.l.b16 %v4352
    %v5384 = vunpack.c.l.b16 %v4353
    %v5385 = vunpack.c.l.b16 %v4354
    %v5386 = vunpack.c.l.b16 %v4355
    %v5387 = vunpack.c.l.b16 %v4356
    %v5388 = vunpack.c.l.b16 %v4357
    %v5389 = vunpack.c.l.b16 %v4358
    %v5390 = vunpack.c.l.b16 %v4359
    %v5391 = vunpack.c.l.b16 %v4360
    %v5392 = vunpack.c.l.b16 %v4361
    %v5393 = vunpack.c.l.b16 %v4362
    %v5394 = vunpack.c.l.b16 %v4363
    %v5395 = vunpack.c.l.b16 %v4364
    %v5396 = vunpack.c.l.b16 %v4365
    %v5397 = vunpack.c.l.b16 %v4366
    %v5398 = vunpack.c.l.b16 %v4367
    %v5399 = vunpack.c.l.b16 %v4368
    %v5400 = vunpack.c.l.b16 %v4369
    %v5401 = vunpack.c.l.b16 %v4370
    %v5402 = vunpack.c.l.b16 %v4371
    %v5403 = vunpack.c.l.b16 %v4372
    %v5404 = vunpack.c.l.b16 %v4373
    %v5405 = vunpack.c.l.b16 %v4374
    %v5406 = vunpack.c.l.b16 %v4375
    %v5407 = vunpack.c.l.b16 %v4376
    %v5408 = vunpack.c.l.b16 %v4377
    %v5409 = vunpack.c.l.b16 %v4378
    %v5410 = vunpack.c.l.b16 %v4379
    %v5411 = vunpack.c.l.b16 %v4380
    %v5412 = vunpack.c.l.b16 %v4381
    %v5413 = vunpack.c.l.b16 %v4382
    %v5414 = vunpack.c.l.b16 %v4383
    %v5415 = vunpack.c.l.b16 %v4384
    %v5416 = vunpack.c.l.b16 %v4385
    %v5417 = vunpack.c.l.b16 %v4386
    %v5418 = vunpack.c.l.b16 %v4387
    %v5419 = vunpack.c.l.b16 %v4388
    %v5420 = vunpack.c.l.b16 %v4389
    %v5421 = vunpack.c.l.b16 %v4390
    %v5422 = vunpack.c.l.b16 %v4391
    %v5423 = vunpack.c.l.b16 %v4392
    %v5424 = vunpack.c.l.b16 %v4393
    %v5425 = vunpack.c.l.b16 %v4394
    %v5426 = vunpack.c.l.b16 %v4395
    %v5427 = vunpack.c.l.b16 %v4396
    %v5428 = vunpack.c.l.b16 %v4397
    %v5429 = vunpack.c.l.b16 %v4398
    %v5430 = vunpack.c.l.b16 %v4399
    %v5431 = vunpack.c.l.b16 %v4400
    %v5432 = vunpack.c.l.b16 %v4401
    %v5433 = vunpack.c.l.b16 %v4402
    %v5434 = vunpack.c.l.b16 %v4403
    %v5435 = vunpack.c.l.b16 %v4404
    %v5436 = vunpack.c.l.b16 %v4405
    %v5437 = vunpack.c.l.b16 %v4406
    %v5438 = vunpack.c.l.b16 %v4407
    %v5439 = vunpack.c.l.b16 %v4408
    %v5440 = vunpack.c.l.b16 %v4409
    %v5441 = vunpack.c.l.b16 %v4410
    %v5442 = vunpack.c.l.b16 %v4411
    %v5443 = vunpack.c.l.b16 %v4412
    %v5444 = vunpack.c.l.b16 %v4413
    %v5445 = vunpack.c.l.b16 %v4414
    %v5446 = vunpack.c.l.b16 %v4415
    %v5447 = vunpack.c.l.b16 %v4416
    %v5448 = vunpack.c.l.b16 %v4417
    %v5449 = vunpack.c.l.b16 %v4418
    %v5450 = vunpack.c.l.b16 %v4419
    %v5451 = vunpack.c.l.b16 %v4420
    %v5452 = vunpack.c.l.b16 %v4421
    %v5453 = vunpack.c.l.b16 %v4422
    %v5454 = vunpack.c.l.b16 %v4423
    %v5455 = vunpack.c.l.b16 %v4424
    %v5456 = vunpack.c.l.b16 %v4425
    %v5457 = vunpack.c.l.b16 %v4426
    %v5458 = vunpack.c.l.b16 %v4427
    %v5459 = vunpack.c.l.b16 %v4428
    %v5460 = vunpack.c.l.b16 %v4429
    %v5461 = vunpack.c.l.b16 %v4430
    %v5462 = vunpack.c.l.b16 %v4431
    %v5463 = vunpack.c.l.b16 %v4432
    %v5464 = vunpack.c.l.b16 %v4433
    %v5465 = vunpack.c.l.b16 %v4434
    %v5466 = vunpack.c.l.b16 %v4435
    %v5467 = vunpack.c.l.b16 %v4436
    %v5468 = vunpack.c.l.b16 %v4437
    %v5469 = vunpack.c.l.b16 %v4438
    %v5470 = vunpack.c.l.b16 %v4439
    %v5471 = vunpack.c.l.b16 %v4440
    %v5472 = vunpack.c.l.b16 %v4441
    %v5473 = vunpack.c.l.b16 %v4442
    %v5474 = vunpack.c.l.b16 %v4443
    %v5475 = vunpack.c.l.b16 %v4444
    %v5476 = vunpack.c.l.b16 %v4445
    %v5477 = vunpack.c.l.b16 %v4446
    %v5478 = vunpack.c.l.b16 %v4447
    %v5479 = vunpack.c.l.b16 %v4448
    %v5480 = vunpack.c.l.b16 %v4449
    %v5481 = vunpack.c.l.b16 %v4450
    %v5482 = vunpack.c.l.b16 %v4451
    %v5483 = vunpack.c.l.b16 %v4452
    %v5484 = vunpack.c.l.b16 %v4453
    %v5485 = vunpack.c.l.b16 %v4454
    %v5486 = vunpack.c.l.b16 %v4455
    %v5487 = vunpack.c.l.b16 %v4456
    %v5488 = vunpack.c.l.b16 %v4457
    %v5489 = vunpack.c.l.b16 %v4458
    %v5490 = vunpack.c.l.b16 %v4459
    %v5491 = vunpack.c.l.b16 %v4460
    %v5492 = vunpack.c.l.b16 %v4461
    %v5493 = vunpack.c.l.b16 %v4462
    %v5494 = vunpack.c.l.b16 %v4463
    %v5495 = vunpack.c.l.b16 %v4464
    %v5496 = vunpack.c.l.b16 %v4465
    %v5497 = vunpack.c.l.b16 %v4466
    %v5498 = vunpack.c.l.b16 %v4467
    %v5499 = vunpack.c.l.b16 %v4468
    %v5500 = vunpack.c.l.b16 %v4469
    %v5501 = vunpack.c.l.b16 %v4470
    %v5502 = vunpack.c.l.b16 %v4471
    %v5503 = vunpack.c.l.b16 %v4472
    %v5504 = vunpack.c.l.b16 %v4473
    %v5505 = vunpack.c.l.b16 %v4474
    %v5506 = vunpack.c.l.b16 %v4475
    %v5507 = vunpack.c.l.b16 %v4476
    %v5508 = vunpack.c.l.b16 %v4477
    %v5509 = vunpack.c.l.b16 %v4478
    %v5510 = vunpack.c.l.b16 %v4479
    %v5511 = vunpack.c.l.b16 %v4480
    %v5512 = vunpack.c.l.b16 %v4481
    %v5513 = vunpack.c.l.b16 %v4482
    %v5514 = vunpack.c.l.b16 %v4483
    %v5515 = vunpack.c.l.b16 %v4484
    %v5516 = vunpack.c.l.b16 %v4485
    %v5517 = vunpack.c.l.b16 %v4486
    %v5518 = vunpack.c.l.b16 %v4487
    %v5519 = vunpack.c.l.b16 %v4488
    %v5520 = vunpack.c.l.b16 %v4489
    %v5521 = vunpack.c.l.b16 %v4490
    %v5522 = vunpack.c.l.b16 %v4491
    %v5523 = vunpack.c.l.b16 %v4492
    %v5524 = vunpack.c.l.b16 %v4493
    %v5525 = vunpack.c.l.b16 %v4494
    %v5526 = vunpack.c.l.b16 %v4495
    %v5527 = vunpack.c.l.b16 %v4496
    %v5528 = vunpack.c.l.b16 %v4497
    %v5529 = vunpack.c.l.b16 %v4498
    %v5530 = vunpack.c.l.b16 %v4499
    %v5531 = vunpack.c.l.b16 %v4500
    %v5532 = vunpack.c.l.b16 %v4501
    %v5533 = vunpack.c.l.b16 %v4502
    %v5534 = vunpack.c.l.b16 %v4503
    %v5535 = vunpack.c.l.b16 %v4504
    %v5536 = vunpack.c.l.b16 %v4505
    %v5537 = vunpack.c.l.b16 %v4506
    %v5538 = vunpack.c.l.b16 %v4507
    %v5539 = vunpack.c.l.b16 %v4508
    %v5540 = vunpack.c.l.b16 %v4509
    %v5541 = vunpack.c.l.b16 %v4510
    %v5542 = vunpack.c.l.b16 %v4511
    %v5543 = vunpack.c.l.b16 %v4512
    %v5544 = vunpack.c.l.b16 %v4513
    %v5545 = vunpack.c.l.b16 %v4514
    %v5546 = vunpack.c.l.b16 %v4515
    %v5547 = vunpack.c.l.b16 %v4516
    %v5548 = vunpack.c.l.b16 %v4517
    %v5549 = vunpack.c.l.b16 %v4518
    %v5550 = vunpack.c.l.b16 %v4519
    %v5551 = vunpack.c.l.b16 %v4520
    %v5552 = vunpack.c.l.b16 %v4521
    %v5553 = vunpack.c.l.b16 %v4522
    %v5554 = vunpack.c.l.b16 %v4523
    %v5555 = vunpack.c.l.b16 %v4524
    %v5556 = vunpack.c.l.b16 %v4525
    %v5557 = vunpack.c.l.b16 %v4526
    %v5558 = vunpack.c.l.b16 %v4527
    %v5559 = vunpack.c.l.b16 %v4528
    %v5560 = vunpack.c.l.b16 %v4529
    %v5561 = vunpack.c.l.b16 %v4530
    %v5562 = vunpack.c.l.b16 %v4531
    %v5563 = vunpack.c.l.b16 %v4532
    %v5564 = vunpack.c.l.b16 %v4533
    %v5565 = vunpack.c.l.b16 %v4534
    %v5566 = vunpack.c.l.b16 %v4535
    %v5567 = vunpack.c.l.b16 %v4536
    %v5568 = vunpack.c.l.b16 %v4537
    %v5569 = vunpack.c.l.b16 %v4538
    %v5570 = vunpack.c.l.b16 %v4539
    %v5571 = vunpack.c.l.b16 %v4540
    %v5572 = vunpack.c.l.b16 %v4541
    %v5573 = vunpack.c.l.b16 %v4542
    %v5574 = vunpack.c.l.b16 %v4543
    %v5575 = vunpack.c.l.b16 %v4544
    %v5576 = vunpack.c.l.b16 %v4545
    %v5577 = vunpack.c.l.b16 %v4546
    %v5578 = vunpack.c.l.b16 %v4547
    %v5579 = vunpack.c.l.b16 %v4548
    %v5580 = vunpack.c.l.b16 %v4549
    %v5581 = vunpack.c.l.b16 %v4550
    %v5582 = vunpack.c.l.b16 %v4551
    %v5583 = vunpack.c.l.b16 %v4552
    %v5584 = vunpack.c.l.b16 %v4553
    %v5585 = vunpack.c.l.b16 %v4554
    %v5586 = vunpack.c.l.b16 %v4555
    %v5587 = vunpack.c.l.b16 %v4556
    %v5588 = vunpack.c.l.b16 %v4557
    %v5589 = vunpack.c.l.b16 %v4558
    %v5590 = vunpack.c.l.b16 %v4559
    %v5591 = vunpack.c.l.b16 %v4560
    %v5592 = vunpack.c.l.b16 %v4561
    %v5593 = vunpack.c.l.b16 %v4562
    %v5594 = vunpack.c.l.b16 %v4563
    %v5595 = vunpack.c.l.b16 %v4564
    %v5596 = vunpack.c.l.b16 %v4565
    %v5597 = vunpack.c.l.b16 %v4566
    %v5598 = vunpack.c.l.b16 %v4567
    %v5599 = vunpack.c.l.b16 %v4568
    %v5600 = vunpack.c.l.b16 %v4569
    %v5601 = vunpack.c.l.b16 %v4570
    %v5602 = vunpack.c.l.b16 %v4571
    %v5603 = vunpack.c.l.b16 %v4572
    %v5604 = vunpack.c.l.b16 %v4573
    %v5605 = vunpack.c.l.b16 %v4574
    %v5606 = vunpack.c.l.b16 %v4575
    %v5607 = vunpack.c.l.b16 %v4576
    %v5608 = vunpack.c.l.b16 %v4577
    %v5609 = vunpack.c.l.b16 %v4578
    %v5610 = vunpack.c.l.b16 %v4579
    %v5611 = vunpack.c.l.b16 %v4580
    %v5612 = vunpack.c.l.b16 %v4581
    %v5613 = vunpack.c.l.b16 %v4582
    %v5614 = vunpack.c.l.b16 %v4583
    %v5615 = vunpack.c.l.b16 %v4584
    %v5616 = vunpack.c.l.b16 %v4585
    %v5617 = vunpack.c.l.b16 %v4586
    %v5618 = vunpack.c.l.b16 %v4587
    %v5619 = vunpack.c.l.b16 %v4588
    %v5620 = vunpack.c.l.b16 %v4589
    %v5621 = vunpack.c.l.b16 %v4590
    %v5622 = vunpack.c.l.b16 %v4591
    %v5623 = vunpack.c.l.b16 %v4592
    %v5624 = vunpack.c.l.b16 %v4593
    %v5625 = vunpack.c.l.b16 %v4594
    %v5626 = vunpack.c.l.b16 %v4595
    %v5627 = vunpack.c.l.b16 %v4596
    %v5628 = vunpack.c.l.b16 %v4597
    %v5629 = vunpack.c.l.b16 %v4598
    %v5630 = vunpack.c.l.b16 %v4599
    %v5631 = vunpack.c.l.b16 %v4600
    %v5632 = vunpack.c.l.b16 %v4601
    %v5633 = vunpack.c.l.b16 %v4602
    %v5634 = vunpack.c.l.b16 %v4603
    %v5635 = vunpack.c.l.b16 %v4604
    %v5636 = vunpack.c.l.b16 %v4605
    %v5637 = vunpack.c.l.b16 %v4606
    %v5638 = vunpack.c.l.b16 %v4607
    %v5639 = vunpack.c.l.b16 %v4608
    %v5640 = vunpack.c.l.b16 %v4609
    %v5641 = vunpack.c.l.b16 %v4610
    %v5642 = vunpack.c.l.b16 %v4611
    %v5643 = vunpack.c.l.b16 %v4612
    %v5644 = vunpack.c.l.b16 %v4613
    %v5645 = vpack.c.b16 %v5134, %v5133
    %v5646 = vpack.c.b16 %v5136, %v5135
    %v5647 = vpack.c.b16 %v5138, %v5137
    %v5648 = vpack.c.b16 %v5140, %v5139
    %v5649 = vpack.c.b16 %v5142, %v5141
    %v5650 = vpack.c.b16 %v5144, %v5143
    %v5651 = vpack.c.b16 %v5146, %v5145
    %v5652 = vpack.c.b16 %v5148, %v5147
    %v5653 = vpack.c.b16 %v5150, %v5149
    %v5654 = vpack.c.b16 %v5152, %v5151
    %v5655 = vpack.c.b16 %v5154, %v5153
    %v5656 = vpack.c.b16 %v5156, %v5155
    %v5657 = vpack.c.b16 %v5158, %v5157
    %v5658 = vpack.c.b16 %v5160, %v5159
    %v5659 = vpack.c.b16 %v5162, %v5161
    %v5660 = vpack.c.b16 %v5164, %v5163
    %v5661 = vpack.c.b16 %v5166, %v5165
    %v5662 = vpack.c.b16 %v5168, %v5167
    %v5663 = vpack.c.b16 %v5170, %v5169
    %v5664 = vpack.c.b16 %v5172, %v5171
    %v5665 = vpack.c.b16 %v5174, %v5173
    %v5666 = vpack.c.b16 %v5176, %v5175
    %v5667 = vpack.c.b16 %v5178, %v5177
    %v5668 = vpack.c.b16 %v5180, %v5179
    %v5669 = vpack.c.b16 %v5182, %v5181
    %v5670 = vpack.c.b16 %v5184, %v5183
    %v5671 = vpack.c.b16 %v5186, %v5185
    %v5672 = vpack.c.b16 %v5188, %v5187
    %v5673 = vpack.c.b16 %v5190, %v5189
    %v5674 = vpack.c.b16 %v5192, %v5191
    %v5675 = vpack.c.b16 %v5194, %v5193
    %v5676 = vpack.c.b16 %v5196, %v5195
    %v5677 = vpack.c.b16 %v5198, %v5197
    %v5678 = vpack.c.b16 %v5200, %v5199
    %v5679 = vpack.c.b16 %v5202, %v5201
    %v5680 = vpack.c.b16 %v5204, %v5203
    %v5681 = vpack.c.b16 %v5206, %v5205
    %v5682 = vpack.c.b16 %v5208, %v5207
    %v5683 = vpack.c.b16 %v5210, %v5209
    %v5684 = vpack.c.b16 %v5212, %v5211
    %v5685 = vpack.c.b16 %v5214, %v5213
    %v5686 = vpack.c.b16 %v5216, %v5215
    %v5687 = vpack.c.b16 %v5218, %v5217
    %v5688 = vpack.c.b16 %v5220, %v5219
    %v5689 = vpack.c.b16 %v5222, %v5221
    %v5690 = vpack.c.b16 %v5224, %v5223
    %v5691 = vpack.c.b16 %v5226, %v5225
    %v5692 = vpack.c.b16 %v5228, %v5227
    %v5693 = vpack.c.b16 %v5230, %v5229
    %v5694 = vpack.c.b16 %v5232, %v5231
    %v5695 = vpack.c.b16 %v5234, %v5233
    %v5696 = vpack.c.b16 %v5236, %v5235
    %v5697 = vpack.c.b16 %v5238, %v5237
    %v5698 = vpack.c.b16 %v5240, %v5239
    %v5699 = vpack.c.b16 %v5242, %v5241
    %v5700 = vpack.c.b16 %v5244, %v5243
    %v5701 = vpack.c.b16 %v5246, %v5245
    %v5702 = vpack.c.b16 %v5248, %v5247
    %v5703 = vpack.c.b16 %v5250, %v5249
    %v5704 = vpack.c.b16 %v5252, %v5251
    %v5705 = vpack.c.b16 %v5254, %v5253
    %v5706 = vpack.c.b16 %v5256, %v5255
    %v5707 = vpack.c.b16 %v5258, %v5257
    %v5708 = vpack.c.b16 %v5260, %v5259
    %v5709 = vpack.c.b16 %v5262, %v5261
    %v5710 = vpack.c.b16 %v5264, %v5263
    %v5711 = vpack.c.b16 %v5266, %v5265
    %v5712 = vpack.c.b16 %v5268, %v5267
    %v5713 = vpack.c.b16 %v5270, %v5269
    %v5714 = vpack.c.b16 %v5272, %v5271
    %v5715 = vpack.c.b16 %v5274, %v5273
    %v5716 = vpack.c.b16 %v5276, %v5275
    %v5717 = vpack.c.b16 %v5278, %v5277
    %v5718 = vpack.c.b16 %v5280, %v5279
    %v5719 = vpack.c.b16 %v5282, %v5281
    %v5720 = vpack.c.b16 %v5284, %v5283
    %v5721 = vpack.c.b16 %v5286, %v5285
    %v5722 = vpack.c.b16 %v5288, %v5287
    %v5723 = vpack.c.b16 %v5290, %v5289
    %v5724 = vpack.c.b16 %v5292, %v5291
    %v5725 = vpack.c.b16 %v5294, %v5293
    %v5726 = vpack.c.b16 %v5296, %v5295
    %v5727 = vpack.c.b16 %v5298, %v5297
    %v5728 = vpack.c.b16 %v5300, %v5299
    %v5729 = vpack.c.b16 %v5302, %v5301
    %v5730 = vpack.c.b16 %v5304, %v5303
    %v5731 = vpack.c.b16 %v5306, %v5305
    %v5732 = vpack.c.b16 %v5308, %v5307
    %v5733 = vpack.c.b16 %v5310, %v5309
    %v5734 = vpack.c.b16 %v5312, %v5311
    %v5735 = vpack.c.b16 %v5314, %v5313
    %v5736 = vpack.c.b16 %v5316, %v5315
    %v5737 = vpack.c.b16 %v5318, %v5317
    %v5738 = vpack.c.b16 %v5320, %v5319
    %v5739 = vpack.c.b16 %v5322, %v5321
    %v5740 = vpack.c.b16 %v5324, %v5323
    %v5741 = vpack.c.b16 %v5326, %v5325
    %v5742 = vpack.c.b16 %v5328, %v5327
    %v5743 = vpack.c.b16 %v5330, %v5329
    %v5744 = vpack.c.b16 %v5332, %v5331
    %v5745 = vpack.c.b16 %v5334, %v5333
    %v5746 = vpack.c.b16 %v5336, %v5335
    %v5747 = vpack.c.b16 %v5338, %v5337
    %v5748 = vpack.c.b16 %v5340, %v5339
    %v5749 = vpack.c.b16 %v5342, %v5341
    %v5750 = vpack.c.b16 %v5344, %v5343
    %v5751 = vpack.c.b16 %v5346, %v5345
    %v5752 = vpack.c.b16 %v5348, %v5347
    %v5753 = vpack.c.b16 %v5350, %v5349
    %v5754 = vpack.c.b16 %v5352, %v5351
    %v5755 = vpack.c.b16 %v5354, %v5353
    %v5756 = vpack.c.b16 %v5356, %v5355
    %v5757 = vpack.c.b16 %v5358, %v5357
    %v5758 = vpack.c.b16 %v5360, %v5359
    %v5759 = vpack.c.b16 %v5362, %v5361
    %v5760 = vpack.c.b16 %v5364, %v5363
    %v5761 = vpack.c.b16 %v5366, %v5365
    %v5762 = vpack.c.b16 %v5368, %v5367
    %v5763 = vpack.c.b16 %v5370, %v5369
    %v5764 = vpack.c.b16 %v5372, %v5371
    %v5765 = vpack.c.b16 %v5374, %v5373
    %v5766 = vpack.c.b16 %v5376, %v5375
    %v5767 = vpack.c.b16 %v5378, %v5377
    %v5768 = vpack.c.b16 %v5380, %v5379
    %v5769 = vpack.c.b16 %v5382, %v5381
    %v5770 = vpack.c.b16 %v5384, %v5383
    %v5771 = vpack.c.b16 %v5386, %v5385
    %v5772 = vpack.c.b16 %v5388, %v5387
    %v5773 = vpack.c.b16 %v5390, %v5389
    %v5774 = vpack.c.b16 %v5392, %v5391
    %v5775 = vpack.c.b16 %v5394, %v5393
    %v5776 = vpack.c.b16 %v5396, %v5395
    %v5777 = vpack.c.b16 %v5398, %v5397
    %v5778 = vpack.c.b16 %v5400, %v5399
    %v5779 = vpack.c.b16 %v5402, %v5401
    %v5780 = vpack.c.b16 %v5404, %v5403
    %v5781 = vpack.c.b16 %v5406, %v5405
    %v5782 = vpack.c.b16 %v5408, %v5407
    %v5783 = vpack.c.b16 %v5410, %v5409
    %v5784 = vpack.c.b16 %v5412, %v5411
    %v5785 = vpack.c.b16 %v5414, %v5413
    %v5786 = vpack.c.b16 %v5416, %v5415
    %v5787 = vpack.c.b16 %v5418, %v5417
    %v5788 = vpack.c.b16 %v5420, %v5419
    %v5789 = vpack.c.b16 %v5422, %v5421
    %v5790 = vpack.c.b16 %v5424, %v5423
    %v5791 = vpack.c.b16 %v5426, %v5425
    %v5792 = vpack.c.b16 %v5428, %v5427
    %v5793 = vpack.c.b16 %v5430, %v5429
    %v5794 = vpack.c.b16 %v5432, %v5431
    %v5795 = vpack.c.b16 %v5434, %v5433
    %v5796 = vpack.c.b16 %v5436, %v5435
    %v5797 = vpack.c.b16 %v5438, %v5437
    %v5798 = vpack.c.b16 %v5440, %v5439
    %v5799 = vpack.c.b16 %v5442, %v5441
    %v5800 = vpack.c.b16 %v5444, %v5443
    %v5801 = vpack.c.b16 %v5446, %v5445
    %v5802 = vpack.c.b16 %v5448, %v5447
    %v5803 = vpack.c.b16 %v5450, %v5449
    %v5804 = vpack.c.b16 %v5452, %v5451
    %v5805 = vpack.c.b16 %v5454, %v5453
    %v5806 = vpack.c.b16 %v5456, %v5455
    %v5807 = vpack.c.b16 %v5458, %v5457
    %v5808 = vpack.c.b16 %v5460, %v5459
    %v5809 = vpack.c.b16 %v5462, %v5461
    %v5810 = vpack.c.b16 %v5464, %v5463
    %v5811 = vpack.c.b16 %v5466, %v5465
    %v5812 = vpack.c.b16 %v5468, %v5467
    %v5813 = vpack.c.b16 %v5470, %v5469
    %v5814 = vpack.c.b16 %v5472, %v5471
    %v5815 = vpack.c.b16 %v5474, %v5473
    %v5816 = vpack.c.b16 %v5476, %v5475
    %v5817 = vpack.c.b16 %v5478, %v5477
    %v5818 = vpack.c.b16 %v5480, %v5479
    %v5819 = vpack.c.b16 %v5482, %v5481
    %v5820 = vpack.c.b16 %v5484, %v5483
    %v5821 = vpack.c.b16 %v5486, %v5485
    %v5822 = vpack.c.b16 %v5488, %v5487
    %v5823 = vpack.c.b16 %v5490, %v5489
    %v5824 = vpack.c.b16 %v5492, %v5491
    %v5825 = vpack.c.b16 %v5494, %v5493
    %v5826 = vpack.c.b16 %v5496, %v5495
    %v5827 = vpack.c.b16 %v5498, %v5497
    %v5828 = vpack.c.b16 %v5500, %v5499
    %v5829 = vpack.c.b16 %v5502, %v5501
    %v5830 = vpack.c.b16 %v5504, %v5503
    %v5831 = vpack.c.b16 %v5506, %v5505
    %v5832 = vpack.c.b16 %v5508, %v5507
    %v5833 = vpack.c.b16 %v5510, %v5509
    %v5834 = vpack.c.b16 %v5512, %v5511
    %v5835 = vpack.c.b16 %v5514, %v5513
    %v5836 = vpack.c.b16 %v5516, %v5515
    %v5837 = vpack.c.b16 %v5518, %v5517
    %v5838 = vpack.c.b16 %v5520, %v5519
    %v5839 = vpack.c.b16 %v5522, %v5521
    %v5840 = vpack.c.b16 %v5524, %v5523
    %v5841 = vpack.c.b16 %v5526, %v5525
    %v5842 = vpack.c.b16 %v5528, %v5527
    %v5843 = vpack.c.b16 %v5530, %v5529
    %v5844 = vpack.c.b16 %v5532, %v5531
    %v5845 = vpack.c.b16 %v5534, %v5533
    %v5846 = vpack.c.b16 %v5536, %v5535
    %v5847 = vpack.c.b16 %v5538, %v5537
    %v5848 = vpack.c.b16 %v5540, %v5539
    %v5849 = vpack.c.b16 %v5542, %v5541
    %v5850 = vpack.c.b16 %v5544, %v5543
    %v5851 = vpack.c.b16 %v5546, %v5545
    %v5852 = vpack.c.b16 %v5548, %v5547
    %v5853 = vpack.c.b16 %v5550, %v5549
    %v5854 = vpack.c.b16 %v5552, %v5551
    %v5855 = vpack.c.b16 %v5554, %v5553
    %v5856 = vpack.c.b16 %v5556, %v5555
    %v5857 = vpack.c.b16 %v5558, %v5557
    %v5858 = vpack.c.b16 %v5560, %v5559
    %v5859 = vpack.c.b16 %v5562, %v5561
    %v5860 = vpack.c.b16 %v5564, %v5563
    %v5861 = vpack.c.b16 %v5566, %v5565
    %v5862 = vpack.c.b16 %v5568, %v5567
    %v5863 = vpack.c.b16 %v5570, %v5569
    %v5864 = vpack.c.b16 %v5572, %v5571
    %v5865 = vpack.c.b16 %v5574, %v5573
    %v5866 = vpack.c.b16 %v5576, %v5575
    %v5867 = vpack.c.b16 %v5578, %v5577
    %v5868 = vpack.c.b16 %v5580, %v5579
    %v5869 = vpack.c.b16 %v5582, %v5581
    %v5870 = vpack.c.b16 %v5584, %v5583
    %v5871 = vpack.c.b16 %v5586, %v5585
    %v5872 = vpack.c.b16 %v5588, %v5587
    %v5873 = vpack.c.b16 %v5590, %v5589
    %v5874 = vpack.c.b16 %v5592, %v5591
    %v5875 = vpack.c.b16 %v5594, %v5593
    %v5876 = vpack.c.b16 %v5596, %v5595
    %v5877 = vpack.c.b16 %v5598, %v5597
    %v5878 = vpack.c.b16 %v5600, %v5599
    %v5879 = vpack.c.b16 %v5602, %v5601
    %v5880 = vpack.c.b16 %v5604, %v5603
    %v5881 = vpack.c.b16 %v5606, %v5605
    %v5882 = vpack.c.b16 %v5608, %v5607
    %v5883 = vpack.c.b16 %v5610, %v5609
    %v5884 = vpack.c.b16 %v5612, %v5611
    %v5885 = vpack.c.b16 %v5614, %v5613
    %v5886 = vpack.c.b16 %v5616, %v5615
    %v5887 = vpack.c.b16 %v5618, %v5617
    %v5888 = vpack.c.b16 %v5620, %v5619
    %v5889 = vpack.c.b16 %v5622, %v5621
    %v5890 = vpack.c.b16 %v5624, %v5623
    %v5891 = vpack.c.b16 %v5626, %v5625
    %v5892 = vpack.c.b16 %v5628, %v5627
    %v5893 = vpack.c.b16 %v5630, %v5629
    %v5894 = vpack.c.b16 %v5632, %v5631
    %v5895 = vpack.c.b16 %v5634, %v5633
    %v5896 = vpack.c.b16 %v5636, %v5635
    %v5897 = vpack.c.b16 %v5638, %v5637
    %v5898 = vpack.c.b16 %v5640, %v5639
    %v5899 = vpack.c.b16 %v5642, %v5641
    %v5900 = vpack.c.b16 %v5644, %v5643
    %6157 = vmatprep.subr.bf16.mxu0 0
    %6158 = vmatpush1.bf16.msra.mxu0 %v5645
    %6159 = vmatprep.subr.bf16.mxu0 0
    %6160 = vmatpush1.bf16.msra.mxu0 %v5646
    %6161 = vmatprep.subr.bf16.mxu0 0
    %6162 = vmatpush1.bf16.msra.mxu0 %v5647
    %6163 = vmatprep.subr.bf16.mxu0 0
    %6164 = vmatpush1.bf16.msra.mxu0 %v5648
    %6165 = vmatprep.subr.bf16.mxu0 0
    %6166 = vmatpush1.bf16.msra.mxu0 %v5649
    %6167 = vmatprep.subr.bf16.mxu0 0
    %6168 = vmatpush1.bf16.msra.mxu0 %v5650
    %6169 = vmatprep.subr.bf16.mxu0 0
    %6170 = vmatpush1.bf16.msra.mxu0 %v5651
    %6171 = vmatprep.subr.bf16.mxu0 0
    %6172 = vmatpush1.bf16.msra.mxu0 %v5652
    %6173 = vmatprep.subr.bf16.mxu0 0
    %6174 = vmatpush1.bf16.msra.mxu0 %v5653
    %6175 = vmatprep.subr.bf16.mxu0 0
    %6176 = vmatpush1.bf16.msra.mxu0 %v5654
    %6177 = vmatprep.subr.bf16.mxu0 0
    %6178 = vmatpush1.bf16.msra.mxu0 %v5655
    %6179 = vmatprep.subr.bf16.mxu0 0
    %6180 = vmatpush1.bf16.msra.mxu0 %v5656
    %6181 = vmatprep.subr.bf16.mxu0 0
    %6182 = vmatpush1.bf16.msra.mxu0 %v5657
    %6183 = vmatprep.subr.bf16.mxu0 0
    %6184 = vmatpush1.bf16.msra.mxu0 %v5658
    %6185 = vmatprep.subr.bf16.mxu0 0
    %6186 = vmatpush1.bf16.msra.mxu0 %v5659
    %6187 = vmatprep.subr.bf16.mxu0 0
    %6188 = vmatpush1.bf16.msra.mxu0 %v5660
    %6189 = vmatprep.mubr.bf16.mxu0 %v4071
    %6190 = vmatmul.mubr.bf16.gmra.mrb[0].mxu0 %v4070
    %v6191 = vpop.f32.mrb[0].mxu0
    %v6192 = vadd.f32 %v4619, %v6191
    %v6193 = vpop.f32.mrb[0].mxu0
    %v6194 = vpop.f32.mrb[0].mxu0
    %v6195 = vadd.f32 %v4619, %v6194
    %v6196 = vpop.f32.mrb[0].mxu0
    %6197 = vdwg.mxu0
    %6198 = vmatprep.subr.bf16.mxu0 0
    %6199 = vmatpush1.bf16.msra.mxu0 %v5661
    %6200 = vmatprep.subr.bf16.mxu0 0
    %6201 = vmatpush1.bf16.msra.mxu0 %v5662
    %6202 = vmatprep.subr.bf16.mxu0 0
    %6203 = vmatpush1.bf16.msra.mxu0 %v5663
    %6204 = vmatprep.subr.bf16.mxu0 0
    %6205 = vmatpush1.bf16.msra.mxu0 %v5664
    %6206 = vmatprep.subr.bf16.mxu0 0
    %6207 = vmatpush1.bf16.msra.mxu0 %v5665
    %6208 = vmatprep.subr.bf16.mxu0 0
    %6209 = vmatpush1.bf16.msra.mxu0 %v5666
    %6210 = vmatprep.subr.bf16.mxu0 0
    %6211 = vmatpush1.bf16.msra.mxu0 %v5667
    %6212 = vmatprep.subr.bf16.mxu0 0
    %6213 = vmatpush1.bf16.msra.mxu0 %v5668
    %6214 = vmatprep.subr.bf16.mxu0 0
    %6215 = vmatpush1.bf16.msra.mxu0 %v5669
    %6216 = vmatprep.subr.bf16.mxu0 0
    %6217 = vmatpush1.bf16.msra.mxu0 %v5670
    %6218 = vmatprep.subr.bf16.mxu0 0
    %6219 = vmatpush1.bf16.msra.mxu0 %v5671
    %6220 = vmatprep.subr.bf16.mxu0 0
    %6221 = vmatpush1.bf16.msra.mxu0 %v5672
    %6222 = vmatprep.subr.bf16.mxu0 0
    %6223 = vmatpush1.bf16.msra.mxu0 %v5673
    %6224 = vmatprep.subr.bf16.mxu0 0
    %6225 = vmatpush1.bf16.msra.mxu0 %v5674
    %6226 = vmatprep.subr.bf16.mxu0 0
    %6227 = vmatpush1.bf16.msra.mxu0 %v5675
    %6228 = vmatprep.subr.bf16.mxu0 0
    %6229 = vmatpush1.bf16.msra.mxu0 %v5676
    %6230 = vmatprep.mubr.bf16.mxu0 %v4073
    %6231 = vmatmul.mubr.bf16.gmra.mrb[0].mxu0 %v4072
    %v6232 = vpop.f32.mrb[0].mxu0
    %v6233 = vadd.f32 %v6192, %v6232
    %v6234 = vpop.f32.mrb[0].mxu0
    %v6235 = vpop.f32.mrb[0].mxu0
    %v6236 = vadd.f32 %v6195, %v6235
    %v6237 = vpop.f32.mrb[0].mxu0
    %6238 = vdwg.mxu0
    %6239 = vmatprep.subr.bf16.mxu0 0
    %6240 = vmatpush1.bf16.msra.mxu0 %v5677
    %6241 = vmatprep.subr.bf16.mxu0 0
    %6242 = vmatpush1.bf16.msra.mxu0 %v5678
    %6243 = vmatprep.subr.bf16.mxu0 0
    %6244 = vmatpush1.bf16.msra.mxu0 %v5679
    %6245 = vmatprep.subr.bf16.mxu0 0
    %6246 = vmatpush1.bf16.msra.mxu0 %v5680
    %6247 = vmatprep.subr.bf16.mxu0 0
    %6248 = vmatpush1.bf16.msra.mxu0 %v5681
    %6249 = vmatprep.subr.bf16.mxu0 0
    %6250 = vmatpush1.bf16.msra.mxu0 %v5682
    %6251 = vmatprep.subr.bf16.mxu0 0
    %6252 = vmatpush1.bf16.msra.mxu0 %v5683
    %6253 = vmatprep.subr.bf16.mxu0 0
    %6254 = vmatpush1.bf16.msra.mxu0 %v5684
    %6255 = vmatprep.subr.bf16.mxu0 0
    %6256 = vmatpush1.bf16.msra.mxu0 %v5685
    %6257 = vmatprep.subr.bf16.mxu0 0
    %6258 = vmatpush1.bf16.msra.mxu0 %v5686
    %6259 = vmatprep.subr.bf16.mxu0 0
    %6260 = vmatpush1.bf16.msra.mxu0 %v5687
    %6261 = vmatprep.subr.bf16.mxu0 0
    %6262 = vmatpush1.bf16.msra.mxu0 %v5688
    %6263 = vmatprep.subr.bf16.mxu0 0
    %6264 = vmatpush1.bf16.msra.mxu0 %v5689
    %6265 = vmatprep.subr.bf16.mxu0 0
    %6266 = vmatpush1.bf16.msra.mxu0 %v5690
    %6267 = vmatprep.subr.bf16.mxu0 0
    %6268 = vmatpush1.bf16.msra.mxu0 %v5691
    %6269 = vmatprep.subr.bf16.mxu0 0
    %6270 = vmatpush1.bf16.msra.mxu0 %v5692
    %6271 = vmatprep.mubr.bf16.mxu0 %v4075
    %6272 = vmatmul.mubr.bf16.gmra.mrb[0].mxu0 %v4074
    %v6273 = vpop.f32.mrb[0].mxu0
    %v6274 = vadd.f32 %v6233, %v6273
    %v6275 = vpop.f32.mrb[0].mxu0
    %v6276 = vpop.f32.mrb[0].mxu0
    %v6277 = vadd.f32 %v6236, %v6276
    %v6278 = vpop.f32.mrb[0].mxu0
    %6279 = vdwg.mxu0
    %6280 = vmatprep.subr.bf16.mxu0 0
    %6281 = vmatpush1.bf16.msra.mxu0 %v5693
    %6282 = vmatprep.subr.bf16.mxu0 0
    %6283 = vmatpush1.bf16.msra.mxu0 %v5694
    %6284 = vmatprep.subr.bf16.mxu0 0
    %6285 = vmatpush1.bf16.msra.mxu0 %v5695
    %6286 = vmatprep.subr.bf16.mxu0 0
    %6287 = vmatpush1.bf16.msra.mxu0 %v5696
    %6288 = vmatprep.subr.bf16.mxu0 0
    %6289 = vmatpush1.bf16.msra.mxu0 %v5697
    %6290 = vmatprep.subr.bf16.mxu0 0
    %6291 = vmatpush1.bf16.msra.mxu0 %v5698
    %6292 = vmatprep.subr.bf16.mxu0 0
    %6293 = vmatpush1.bf16.msra.mxu0 %v5699
    %6294 = vmatprep.subr.bf16.mxu0 0
    %6295 = vmatpush1.bf16.msra.mxu0 %v5700
    %6296 = vmatprep.subr.bf16.mxu0 0
    %6297 = vmatpush1.bf16.msra.mxu0 %v5701
    %6298 = vmatprep.subr.bf16.mxu0 0
    %6299 = vmatpush1.bf16.msra.mxu0 %v5702
    %6300 = vmatprep.subr.bf16.mxu0 0
    %6301 = vmatpush1.bf16.msra.mxu0 %v5703
    %6302 = vmatprep.subr.bf16.mxu0 0
    %6303 = vmatpush1.bf16.msra.mxu0 %v5704
    %6304 = vmatprep.subr.bf16.mxu0 0
    %6305 = vmatpush1.bf16.msra.mxu0 %v5705
    %6306 = vmatprep.subr.bf16.mxu0 0
    %6307 = vmatpush1.bf16.msra.mxu0 %v5706
    %6308 = vmatprep.subr.bf16.mxu0 0
    %6309 = vmatpush1.bf16.msra.mxu0 %v5707
    %6310 = vmatprep.subr.bf16.mxu0 0
    %6311 = vmatpush1.bf16.msra.mxu0 %v5708
    %6312 = vmatprep.mubr.bf16.mxu0 %v4077
    %6313 = vmatmul.mubr.bf16.gmra.mrb[0].mxu0 %v4076
    %v6314 = vpop.f32.mrb[0].mxu0
    %v6315 = vadd.f32 %v6274, %v6314
    %v6316 = vpop.f32.mrb[0].mxu0
    %v6317 = vpop.f32.mrb[0].mxu0
    %v6318 = vadd.f32 %v6277, %v6317
    %v6319 = vpop.f32.mrb[0].mxu0
    %6320 = vdwg.mxu0
    %6321 = vmatprep.subr.bf16.mxu0 0
    %6322 = vmatpush1.bf16.msra.mxu0 %v5709
    %6323 = vmatprep.subr.bf16.mxu0 0
    %6324 = vmatpush1.bf16.msra.mxu0 %v5710
    %6325 = vmatprep.subr.bf16.mxu0 0
    %6326 = vmatpush1.bf16.msra.mxu0 %v5711
    %6327 = vmatprep.subr.bf16.mxu0 0
    %6328 = vmatpush1.bf16.msra.mxu0 %v5712
    %6329 = vmatprep.subr.bf16.mxu0 0
    %6330 = vmatpush1.bf16.msra.mxu0 %v5713
    %6331 = vmatprep.subr.bf16.mxu0 0
    %6332 = vmatpush1.bf16.msra.mxu0 %v5714
    %6333 = vmatprep.subr.bf16.mxu0 0
    %6334 = vmatpush1.bf16.msra.mxu0 %v5715
    %6335 = vmatprep.subr.bf16.mxu0 0
    %6336 = vmatpush1.bf16.msra.mxu0 %v5716
    %6337 = vmatprep.subr.bf16.mxu0 0
    %6338 = vmatpush1.bf16.msra.mxu0 %v5717
    %6339 = vmatprep.subr.bf16.mxu0 0
    %6340 = vmatpush1.bf16.msra.mxu0 %v5718
    %6341 = vmatprep.subr.bf16.mxu0 0
    %6342 = vmatpush1.bf16.msra.mxu0 %v5719
    %6343 = vmatprep.subr.bf16.mxu0 0
    %6344 = vmatpush1.bf16.msra.mxu0 %v5720
    %6345 = vmatprep.subr.bf16.mxu0 0
    %6346 = vmatpush1.bf16.msra.mxu0 %v5721
    %6347 = vmatprep.subr.bf16.mxu0 0
    %6348 = vmatpush1.bf16.msra.mxu0 %v5722
    %6349 = vmatprep.subr.bf16.mxu0 0
    %6350 = vmatpush1.bf16.msra.mxu0 %v5723
    %6351 = vmatprep.subr.bf16.mxu0 0
    %6352 = vmatpush1.bf16.msra.mxu0 %v5724
    %6353 = vmatprep.mubr.bf16.mxu0 %v4079
    %6354 = vmatmul.mubr.bf16.gmra.mrb[0].mxu0 %v4078
    %v6355 = vpop.f32.mrb[0].mxu0
    %v6356 = vadd.f32 %v6315, %v6355
    %v6357 = vpop.f32.mrb[0].mxu0
    %v6358 = vpop.f32.mrb[0].mxu0
    %v6359 = vadd.f32 %v6318, %v6358
    %v6360 = vpop.f32.mrb[0].mxu0
    %6361 = vdwg.mxu0
    %6362 = vmatprep.subr.bf16.mxu0 0
    %6363 = vmatpush1.bf16.msra.mxu0 %v5725
    %6364 = vmatprep.subr.bf16.mxu0 0
    %6365 = vmatpush1.bf16.msra.mxu0 %v5726
    %6366 = vmatprep.subr.bf16.mxu0 0
    %6367 = vmatpush1.bf16.msra.mxu0 %v5727
    %6368 = vmatprep.subr.bf16.mxu0 0
    %6369 = vmatpush1.bf16.msra.mxu0 %v5728
    %6370 = vmatprep.subr.bf16.mxu0 0
    %6371 = vmatpush1.bf16.msra.mxu0 %v5729
    %6372 = vmatprep.subr.bf16.mxu0 0
    %6373 = vmatpush1.bf16.msra.mxu0 %v5730
    %6374 = vmatprep.subr.bf16.mxu0 0
    %6375 = vmatpush1.bf16.msra.mxu0 %v5731
    %6376 = vmatprep.subr.bf16.mxu0 0
    %6377 = vmatpush1.bf16.msra.mxu0 %v5732
    %6378 = vmatprep.subr.bf16.mxu0 0
    %6379 = vmatpush1.bf16.msra.mxu0 %v5733
    %6380 = vmatprep.subr.bf16.mxu0 0
    %6381 = vmatpush1.bf16.msra.mxu0 %v5734
    %6382 = vmatprep.subr.bf16.mxu0 0
    %6383 = vmatpush1.bf16.msra.mxu0 %v5735
    %6384 = vmatprep.subr.bf16.mxu0 0
    %6385 = vmatpush1.bf16.msra.mxu0 %v5736
    %6386 = vmatprep.subr.bf16.mxu0 0
    %6387 = vmatpush1.bf16.msra.mxu0 %v5737
    %6388 = vmatprep.subr.bf16.mxu0 0
    %6389 = vmatpush1.bf16.msra.mxu0 %v5738
    %6390 = vmatprep.subr.bf16.mxu0 0
    %6391 = vmatpush1.bf16.msra.mxu0 %v5739
    %6392 = vmatprep.subr.bf16.mxu0 0
    %6393 = vmatpush1.bf16.msra.mxu0 %v5740
    %6394 = vmatprep.mubr.bf16.mxu0 %v4081
    %6395 = vmatmul.mubr.bf16.gmra.mrb[0].mxu0 %v4080
    %v6396 = vpop.f32.mrb[0].mxu0
    %v6397 = vadd.f32 %v6356, %v6396
    %v6398 = vpop.f32.mrb[0].mxu0
    %v6399 = vpop.f32.mrb[0].mxu0
    %v6400 = vadd.f32 %v6359, %v6399
    %v6401 = vpop.f32.mrb[0].mxu0
    %6402 = vdwg.mxu0
    %6403 = vmatprep.subr.bf16.mxu0 0
    %6404 = vmatpush1.bf16.msra.mxu0 %v5741
    %6405 = vmatprep.subr.bf16.mxu0 0
    %6406 = vmatpush1.bf16.msra.mxu0 %v5742
    %6407 = vmatprep.subr.bf16.mxu0 0
    %6408 = vmatpush1.bf16.msra.mxu0 %v5743
    %6409 = vmatprep.subr.bf16.mxu0 0
    %6410 = vmatpush1.bf16.msra.mxu0 %v5744
    %6411 = vmatprep.subr.bf16.mxu0 0
    %6412 = vmatpush1.bf16.msra.mxu0 %v5745
    %6413 = vmatprep.subr.bf16.mxu0 0
    %6414 = vmatpush1.bf16.msra.mxu0 %v5746
    %6415 = vmatprep.subr.bf16.mxu0 0
    %6416 = vmatpush1.bf16.msra.mxu0 %v5747
    %6417 = vmatprep.subr.bf16.mxu0 0
    %6418 = vmatpush1.bf16.msra.mxu0 %v5748
    %6419 = vmatprep.subr.bf16.mxu0 0
    %6420 = vmatpush1.bf16.msra.mxu0 %v5749
    %6421 = vmatprep.subr.bf16.mxu0 0
    %6422 = vmatpush1.bf16.msra.mxu0 %v5750
    %6423 = vmatprep.subr.bf16.mxu0 0
    %6424 = vmatpush1.bf16.msra.mxu0 %v5751
    %6425 = vmatprep.subr.bf16.mxu0 0
    %6426 = vmatpush1.bf16.msra.mxu0 %v5752
    %6427 = vmatprep.subr.bf16.mxu0 0
    %6428 = vmatpush1.bf16.msra.mxu0 %v5753
    %6429 = vmatprep.subr.bf16.mxu0 0
    %6430 = vmatpush1.bf16.msra.mxu0 %v5754
    %6431 = vmatprep.subr.bf16.mxu0 0
    %6432 = vmatpush1.bf16.msra.mxu0 %v5755
    %6433 = vmatprep.subr.bf16.mxu0 0
    %6434 = vmatpush1.bf16.msra.mxu0 %v5756
    %6435 = vmatprep.mubr.bf16.mxu0 %v4083
    %6436 = vmatmul.mubr.bf16.gmra.mrb[0].mxu0 %v4082
    %v6437 = vpop.f32.mrb[0].mxu0
    %v6438 = vadd.f32 %v6397, %v6437
    %v6439 = vpop.f32.mrb[0].mxu0
    %v6440 = vpop.f32.mrb[0].mxu0
    %v6441 = vadd.f32 %v6400, %v6440
    %v6442 = vpop.f32.mrb[0].mxu0
    %6443 = vdwg.mxu0
    %6444 = vmatprep.subr.bf16.mxu0 0
    %6445 = vmatpush1.bf16.msra.mxu0 %v5757
    %6446 = vmatprep.subr.bf16.mxu0 0
    %6447 = vmatpush1.bf16.msra.mxu0 %v5758
    %6448 = vmatprep.subr.bf16.mxu0 0
    %6449 = vmatpush1.bf16.msra.mxu0 %v5759
    %6450 = vmatprep.subr.bf16.mxu0 0
    %6451 = vmatpush1.bf16.msra.mxu0 %v5760
    %6452 = vmatprep.subr.bf16.mxu0 0
    %6453 = vmatpush1.bf16.msra.mxu0 %v5761
    %6454 = vmatprep.subr.bf16.mxu0 0
    %6455 = vmatpush1.bf16.msra.mxu0 %v5762
    %6456 = vmatprep.subr.bf16.mxu0 0
    %6457 = vmatpush1.bf16.msra.mxu0 %v5763
    %6458 = vmatprep.subr.bf16.mxu0 0
    %6459 = vmatpush1.bf16.msra.mxu0 %v5764
    %6460 = vmatprep.subr.bf16.mxu0 0
    %6461 = vmatpush1.bf16.msra.mxu0 %v5765
    %6462 = vmatprep.subr.bf16.mxu0 0
    %6463 = vmatpush1.bf16.msra.mxu0 %v5766
    %6464 = vmatprep.subr.bf16.mxu0 0
    %6465 = vmatpush1.bf16.msra.mxu0 %v5767
    %6466 = vmatprep.subr.bf16.mxu0 0
    %6467 = vmatpush1.bf16.msra.mxu0 %v5768
    %6468 = vmatprep.subr.bf16.mxu0 0
    %6469 = vmatpush1.bf16.msra.mxu0 %v5769
    %6470 = vmatprep.subr.bf16.mxu0 0
    %6471 = vmatpush1.bf16.msra.mxu0 %v5770
    %6472 = vmatprep.subr.bf16.mxu0 0
    %6473 = vmatpush1.bf16.msra.mxu0 %v5771
    %6474 = vmatprep.subr.bf16.mxu0 0
    %6475 = vmatpush1.bf16.msra.mxu0 %v5772
    %6476 = vmatprep.mubr.bf16.mxu0 %v4085
    %6477 = vmatmul.mubr.bf16.gmra.mrb[0].mxu0 %v4084
    %v6478 = vpop.f32.mrb[0].mxu0
    %v6479 = vadd.f32 %v6438, %v6478
    %v6480 = vpop.f32.mrb[0].mxu0
    %v6481 = vpop.f32.mrb[0].mxu0
    %v6482 = vadd.f32 %v6441, %v6481
    %v6483 = vpop.f32.mrb[0].mxu0
    %6484 = vdwg.mxu0
    %6485 = vmatprep.subr.bf16.mxu0 0
    %6486 = vmatpush1.bf16.msra.mxu0 %v5773
    %6487 = vmatprep.subr.bf16.mxu0 0
    %6488 = vmatpush1.bf16.msra.mxu0 %v5774
    %6489 = vmatprep.subr.bf16.mxu0 0
    %6490 = vmatpush1.bf16.msra.mxu0 %v5775
    %6491 = vmatprep.subr.bf16.mxu0 0
    %6492 = vmatpush1.bf16.msra.mxu0 %v5776
    %6493 = vmatprep.subr.bf16.mxu0 0
    %6494 = vmatpush1.bf16.msra.mxu0 %v5777
    %6495 = vmatprep.subr.bf16.mxu0 0
    %6496 = vmatpush1.bf16.msra.mxu0 %v5778
    %6497 = vmatprep.subr.bf16.mxu0 0
    %6498 = vmatpush1.bf16.msra.mxu0 %v5779
    %6499 = vmatprep.subr.bf16.mxu0 0
    %6500 = vmatpush1.bf16.msra.mxu0 %v5780
    %6501 = vmatprep.subr.bf16.mxu0 0
    %6502 = vmatpush1.bf16.msra.mxu0 %v5781
    %6503 = vmatprep.subr.bf16.mxu0 0
    %6504 = vmatpush1.bf16.msra.mxu0 %v5782
    %6505 = vmatprep.subr.bf16.mxu0 0
    %6506 = vmatpush1.bf16.msra.mxu0 %v5783
    %6507 = vmatprep.subr.bf16.mxu0 0
    %6508 = vmatpush1.bf16.msra.mxu0 %v5784
    %6509 = vmatprep.subr.bf16.mxu0 0
    %6510 = vmatpush1.bf16.msra.mxu0 %v5785
    %6511 = vmatprep.subr.bf16.mxu0 0
    %6512 = vmatpush1.bf16.msra.mxu0 %v5786
    %6513 = vmatprep.subr.bf16.mxu0 0
    %6514 = vmatpush1.bf16.msra.mxu0 %v5787
    %6515 = vmatprep.subr.bf16.mxu0 0
    %6516 = vmatpush1.bf16.msra.mxu0 %v5788
    %6517 = vmatprep.mubr.bf16.mxu0 %v4087
    %6518 = vmatmul.mubr.bf16.gmra.mrb[0].mxu0 %v4086
    %v6519 = vpop.f32.mrb[0].mxu0
    %v6520 = vadd.f32 %v6479, %v6519
    %v6521 = vpop.f32.mrb[0].mxu0
    %v6522 = vpop.f32.mrb[0].mxu0
    %v6523 = vadd.f32 %v6482, %v6522
    %v6524 = vpop.f32.mrb[0].mxu0
    %6525 = vdwg.mxu0
    %6526 = vmatprep.subr.bf16.mxu0 0
    %6527 = vmatpush1.bf16.msra.mxu0 %v5789
    %6528 = vmatprep.subr.bf16.mxu0 0
    %6529 = vmatpush1.bf16.msra.mxu0 %v5790
    %6530 = vmatprep.subr.bf16.mxu0 0
    %6531 = vmatpush1.bf16.msra.mxu0 %v5791
    %6532 = vmatprep.subr.bf16.mxu0 0
    %6533 = vmatpush1.bf16.msra.mxu0 %v5792
    %6534 = vmatprep.subr.bf16.mxu0 0
    %6535 = vmatpush1.bf16.msra.mxu0 %v5793
    %6536 = vmatprep.subr.bf16.mxu0 0
    %6537 = vmatpush1.bf16.msra.mxu0 %v5794
    %6538 = vmatprep.subr.bf16.mxu0 0
    %6539 = vmatpush1.bf16.msra.mxu0 %v5795
    %6540 = vmatprep.subr.bf16.mxu0 0
    %6541 = vmatpush1.bf16.msra.mxu0 %v5796
    %6542 = vmatprep.subr.bf16.mxu0 0
    %6543 = vmatpush1.bf16.msra.mxu0 %v5797
    %6544 = vmatprep.subr.bf16.mxu0 0
    %6545 = vmatpush1.bf16.msra.mxu0 %v5798
    %6546 = vmatprep.subr.bf16.mxu0 0
    %6547 = vmatpush1.bf16.msra.mxu0 %v5799
    %6548 = vmatprep.subr.bf16.mxu0 0
    %6549 = vmatpush1.bf16.msra.mxu0 %v5800
    %6550 = vmatprep.subr.bf16.mxu0 0
    %6551 = vmatpush1.bf16.msra.mxu0 %v5801
    %6552 = vmatprep.subr.bf16.mxu0 0
    %6553 = vmatpush1.bf16.msra.mxu0 %v5802
    %6554 = vmatprep.subr.bf16.mxu0 0
    %6555 = vmatpush1.bf16.msra.mxu0 %v5803
    %6556 = vmatprep.subr.bf16.mxu0 0
    %6557 = vmatpush1.bf16.msra.mxu0 %v5804
    %6558 = vmatprep.mubr.bf16.mxu0 %v4089
    %6559 = vmatmul.mubr.bf16.gmra.mrb[0].mxu0 %v4088
    %v6560 = vpop.f32.mrb[0].mxu0
    %v6561 = vadd.f32 %v6520, %v6560
    %v6562 = vpop.f32.mrb[0].mxu0
    %v6563 = vpop.f32.mrb[0].mxu0
    %v6564 = vadd.f32 %v6523, %v6563
    %v6565 = vpop.f32.mrb[0].mxu0
    %6566 = vdwg.mxu0
    %6567 = vmatprep.subr.bf16.mxu0 0
    %6568 = vmatpush1.bf16.msra.mxu0 %v5805
    %6569 = vmatprep.subr.bf16.mxu0 0
    %6570 = vmatpush1.bf16.msra.mxu0 %v5806
    %6571 = vmatprep.subr.bf16.mxu0 0
    %6572 = vmatpush1.bf16.msra.mxu0 %v5807
    %6573 = vmatprep.subr.bf16.mxu0 0
    %6574 = vmatpush1.bf16.msra.mxu0 %v5808
    %6575 = vmatprep.subr.bf16.mxu0 0
    %6576 = vmatpush1.bf16.msra.mxu0 %v5809
    %6577 = vmatprep.subr.bf16.mxu0 0
    %6578 = vmatpush1.bf16.msra.mxu0 %v5810
    %6579 = vmatprep.subr.bf16.mxu0 0
    %6580 = vmatpush1.bf16.msra.mxu0 %v5811
    %6581 = vmatprep.subr.bf16.mxu0 0
    %6582 = vmatpush1.bf16.msra.mxu0 %v5812
    %6583 = vmatprep.subr.bf16.mxu0 0
    %6584 = vmatpush1.bf16.msra.mxu0 %v5813
    %6585 = vmatprep.subr.bf16.mxu0 0
    %6586 = vmatpush1.bf16.msra.mxu0 %v5814
    %6587 = vmatprep.subr.bf16.mxu0 0
    %6588 = vmatpush1.bf16.msra.mxu0 %v5815
    %6589 = vmatprep.subr.bf16.mxu0 0
    %6590 = vmatpush1.bf16.msra.mxu0 %v5816
    %6591 = vmatprep.subr.bf16.mxu0 0
    %6592 = vmatpush1.bf16.msra.mxu0 %v5817
    %6593 = vmatprep.subr.bf16.mxu0 0
    %6594 = vmatpush1.bf16.msra.mxu0 %v5818
    %6595 = vmatprep.subr.bf16.mxu0 0
    %6596 = vmatpush1.bf16.msra.mxu0 %v5819
    %6597 = vmatprep.subr.bf16.mxu0 0
    %6598 = vmatpush1.bf16.msra.mxu0 %v5820
    %6599 = vmatprep.mubr.bf16.mxu0 %v4091
    %6600 = vmatmul.mubr.bf16.gmra.mrb[0].mxu0 %v4090
    %v6601 = vpop.f32.mrb[0].mxu0
    %v6602 = vadd.f32 %v6561, %v6601
    %v6603 = vpop.f32.mrb[0].mxu0
    %v6604 = vpop.f32.mrb[0].mxu0
    %v6605 = vadd.f32 %v6564, %v6604
    %v6606 = vpop.f32.mrb[0].mxu0
    %6607 = vdwg.mxu0
    %6608 = vmatprep.subr.bf16.mxu0 0
    %6609 = vmatpush1.bf16.msra.mxu0 %v5821
    %6610 = vmatprep.subr.bf16.mxu0 0
    %6611 = vmatpush1.bf16.msra.mxu0 %v5822
    %6612 = vmatprep.subr.bf16.mxu0 0
    %6613 = vmatpush1.bf16.msra.mxu0 %v5823
    %6614 = vmatprep.subr.bf16.mxu0 0
    %6615 = vmatpush1.bf16.msra.mxu0 %v5824
    %6616 = vmatprep.subr.bf16.mxu0 0
    %6617 = vmatpush1.bf16.msra.mxu0 %v5825
    %6618 = vmatprep.subr.bf16.mxu0 0
    %6619 = vmatpush1.bf16.msra.mxu0 %v5826
    %6620 = vmatprep.subr.bf16.mxu0 0
    %6621 = vmatpush1.bf16.msra.mxu0 %v5827
    %6622 = vmatprep.subr.bf16.mxu0 0
    %6623 = vmatpush1.bf16.msra.mxu0 %v5828
    %6624 = vmatprep.subr.bf16.mxu0 0
    %6625 = vmatpush1.bf16.msra.mxu0 %v5829
    %6626 = vmatprep.subr.bf16.mxu0 0
    %6627 = vmatpush1.bf16.msra.mxu0 %v5830
    %6628 = vmatprep.subr.bf16.mxu0 0
    %6629 = vmatpush1.bf16.msra.mxu0 %v5831
    %6630 = vmatprep.subr.bf16.mxu0 0
    %6631 = vmatpush1.bf16.msra.mxu0 %v5832
    %6632 = vmatprep.subr.bf16.mxu0 0
    %6633 = vmatpush1.bf16.msra.mxu0 %v5833
    %6634 = vmatprep.subr.bf16.mxu0 0
    %6635 = vmatpush1.bf16.msra.mxu0 %v5834
    %6636 = vmatprep.subr.bf16.mxu0 0
    %6637 = vmatpush1.bf16.msra.mxu0 %v5835
    %6638 = vmatprep.subr.bf16.mxu0 0
    %6639 = vmatpush1.bf16.msra.mxu0 %v5836
    %6640 = vmatprep.mubr.bf16.mxu0 %v4093
    %6641 = vmatmul.mubr.bf16.gmra.mrb[0].mxu0 %v4092
    %v6642 = vpop.f32.mrb[0].mxu0
    %v6643 = vadd.f32 %v6602, %v6642
    %v6644 = vpop.f32.mrb[0].mxu0
    %v6645 = vpop.f32.mrb[0].mxu0
    %v6646 = vadd.f32 %v6605, %v6645
    %v6647 = vpop.f32.mrb[0].mxu0
    %6648 = vdwg.mxu0
    %6649 = vmatprep.subr.bf16.mxu0 0
    %6650 = vmatpush1.bf16.msra.mxu0 %v5837
    %6651 = vmatprep.subr.bf16.mxu0 0
    %6652 = vmatpush1.bf16.msra.mxu0 %v5838
    %6653 = vmatprep.subr.bf16.mxu0 0
    %6654 = vmatpush1.bf16.msra.mxu0 %v5839
    %6655 = vmatprep.subr.bf16.mxu0 0
    %6656 = vmatpush1.bf16.msra.mxu0 %v5840
    %6657 = vmatprep.subr.bf16.mxu0 0
    %6658 = vmatpush1.bf16.msra.mxu0 %v5841
    %6659 = vmatprep.subr.bf16.mxu0 0
    %6660 = vmatpush1.bf16.msra.mxu0 %v5842
    %6661 = vmatprep.subr.bf16.mxu0 0
    %6662 = vmatpush1.bf16.msra.mxu0 %v5843
    %6663 = vmatprep.subr.bf16.mxu0 0
    %6664 = vmatpush1.bf16.msra.mxu0 %v5844
    %6665 = vmatprep.subr.bf16.mxu0 0
    %6666 = vmatpush1.bf16.msra.mxu0 %v5845
    %6667 = vmatprep.subr.bf16.mxu0 0
    %6668 = vmatpush1.bf16.msra.mxu0 %v5846
    %6669 = vmatprep.subr.bf16.mxu0 0
    %6670 = vmatpush1.bf16.msra.mxu0 %v5847
    %6671 = vmatprep.subr.bf16.mxu0 0
    %6672 = vmatpush1.bf16.msra.mxu0 %v5848
    %6673 = vmatprep.subr.bf16.mxu0 0
    %6674 = vmatpush1.bf16.msra.mxu0 %v5849
    %6675 = vmatprep.subr.bf16.mxu0 0
    %6676 = vmatpush1.bf16.msra.mxu0 %v5850
    %6677 = vmatprep.subr.bf16.mxu0 0
    %6678 = vmatpush1.bf16.msra.mxu0 %v5851
    %6679 = vmatprep.subr.bf16.mxu0 0
    %6680 = vmatpush1.bf16.msra.mxu0 %v5852
    %6681 = vmatprep.mubr.bf16.mxu0 %v4095
    %6682 = vmatmul.mubr.bf16.gmra.mrb[0].mxu0 %v4094
    %v6683 = vpop.f32.mrb[0].mxu0
    %v6684 = vadd.f32 %v6643, %v6683
    %v6685 = vpop.f32.mrb[0].mxu0
    %v6686 = vpop.f32.mrb[0].mxu0
    %v6687 = vadd.f32 %v6646, %v6686
    %v6688 = vpop.f32.mrb[0].mxu0
    %6689 = vdwg.mxu0
    %6690 = vmatprep.subr.bf16.mxu0 0
    %6691 = vmatpush1.bf16.msra.mxu0 %v5853
    %6692 = vmatprep.subr.bf16.mxu0 0
    %6693 = vmatpush1.bf16.msra.mxu0 %v5854
    %6694 = vmatprep.subr.bf16.mxu0 0
    %6695 = vmatpush1.bf16.msra.mxu0 %v5855
    %6696 = vmatprep.subr.bf16.mxu0 0
    %6697 = vmatpush1.bf16.msra.mxu0 %v5856
    %6698 = vmatprep.subr.bf16.mxu0 0
    %6699 = vmatpush1.bf16.msra.mxu0 %v5857
    %6700 = vmatprep.subr.bf16.mxu0 0
    %6701 = vmatpush1.bf16.msra.mxu0 %v5858
    %6702 = vmatprep.subr.bf16.mxu0 0
    %6703 = vmatpush1.bf16.msra.mxu0 %v5859
    %6704 = vmatprep.subr.bf16.mxu0 0
    %6705 = vmatpush1.bf16.msra.mxu0 %v5860
    %6706 = vmatprep.subr.bf16.mxu0 0
    %6707 = vmatpush1.bf16.msra.mxu0 %v5861
    %6708 = vmatprep.subr.bf16.mxu0 0
    %6709 = vmatpush1.bf16.msra.mxu0 %v5862
    %6710 = vmatprep.subr.bf16.mxu0 0
    %6711 = vmatpush1.bf16.msra.mxu0 %v5863
    %6712 = vmatprep.subr.bf16.mxu0 0
    %6713 = vmatpush1.bf16.msra.mxu0 %v5864
    %6714 = vmatprep.subr.bf16.mxu0 0
    %6715 = vmatpush1.bf16.msra.mxu0 %v5865
    %6716 = vmatprep.subr.bf16.mxu0 0
    %6717 = vmatpush1.bf16.msra.mxu0 %v5866
    %6718 = vmatprep.subr.bf16.mxu0 0
    %6719 = vmatpush1.bf16.msra.mxu0 %v5867
    %6720 = vmatprep.subr.bf16.mxu0 0
    %6721 = vmatpush1.bf16.msra.mxu0 %v5868
    %6722 = vmatprep.mubr.bf16.mxu0 %v4097
    %6723 = vmatmul.mubr.bf16.gmra.mrb[0].mxu0 %v4096
    %v6724 = vpop.f32.mrb[0].mxu0
    %v6725 = vadd.f32 %v6684, %v6724
    %v6726 = vpop.f32.mrb[0].mxu0
    %v6727 = vpop.f32.mrb[0].mxu0
    %v6728 = vadd.f32 %v6687, %v6727
    %v6729 = vpop.f32.mrb[0].mxu0
    %6730 = vdwg.mxu0
    %6731 = vmatprep.subr.bf16.mxu0 0
    %6732 = vmatpush1.bf16.msra.mxu0 %v5869
    %6733 = vmatprep.subr.bf16.mxu0 0
    %6734 = vmatpush1.bf16.msra.mxu0 %v5870
    %6735 = vmatprep.subr.bf16.mxu0 0
    %6736 = vmatpush1.bf16.msra.mxu0 %v5871
    %6737 = vmatprep.subr.bf16.mxu0 0
    %6738 = vmatpush1.bf16.msra.mxu0 %v5872
    %6739 = vmatprep.subr.bf16.mxu0 0
    %6740 = vmatpush1.bf16.msra.mxu0 %v5873
    %6741 = vmatprep.subr.bf16.mxu0 0
    %6742 = vmatpush1.bf16.msra.mxu0 %v5874
    %6743 = vmatprep.subr.bf16.mxu0 0
    %6744 = vmatpush1.bf16.msra.mxu0 %v5875
    %6745 = vmatprep.subr.bf16.mxu0 0
    %6746 = vmatpush1.bf16.msra.mxu0 %v5876
    %6747 = vmatprep.subr.bf16.mxu0 0
    %6748 = vmatpush1.bf16.msra.mxu0 %v5877
    %6749 = vmatprep.subr.bf16.mxu0 0
    %6750 = vmatpush1.bf16.msra.mxu0 %v5878
    %6751 = vmatprep.subr.bf16.mxu0 0
    %6752 = vmatpush1.bf16.msra.mxu0 %v5879
    %6753 = vmatprep.subr.bf16.mxu0 0
    %6754 = vmatpush1.bf16.msra.mxu0 %v5880
    %6755 = vmatprep.subr.bf16.mxu0 0
    %6756 = vmatpush1.bf16.msra.mxu0 %v5881
    %6757 = vmatprep.subr.bf16.mxu0 0
    %6758 = vmatpush1.bf16.msra.mxu0 %v5882
    %6759 = vmatprep.subr.bf16.mxu0 0
    %6760 = vmatpush1.bf16.msra.mxu0 %v5883
    %6761 = vmatprep.subr.bf16.mxu0 0
    %6762 = vmatpush1.bf16.msra.mxu0 %v5884
    %6763 = vmatprep.mubr.bf16.mxu0 %v4099
    %6764 = vmatmul.mubr.bf16.gmra.mrb[0].mxu0 %v4098
    %v6765 = vpop.f32.mrb[0].mxu0
    %v6766 = vadd.f32 %v6725, %v6765
    %v6767 = vpop.f32.mrb[0].mxu0
    %v6768 = vpop.f32.mrb[0].mxu0
    %v6769 = vadd.f32 %v6728, %v6768
    %v6770 = vpop.f32.mrb[0].mxu0
    %6771 = vdwg.mxu0
    %6772 = vmatprep.subr.bf16.mxu0 0
    %6773 = vmatpush1.bf16.msra.mxu0 %v5885
    %6774 = vmatprep.subr.bf16.mxu0 0
    %6775 = vmatpush1.bf16.msra.mxu0 %v5886
    %6776 = vmatprep.subr.bf16.mxu0 0
    %6777 = vmatpush1.bf16.msra.mxu0 %v5887
    %6778 = vmatprep.subr.bf16.mxu0 0
    %6779 = vmatpush1.bf16.msra.mxu0 %v5888
    %6780 = vmatprep.subr.bf16.mxu0 0
    %6781 = vmatpush1.bf16.msra.mxu0 %v5889
    %6782 = vmatprep.subr.bf16.mxu0 0
    %6783 = vmatpush1.bf16.msra.mxu0 %v5890
    %6784 = vmatprep.subr.bf16.mxu0 0
    %6785 = vmatpush1.bf16.msra.mxu0 %v5891
    %6786 = vmatprep.subr.bf16.mxu0 0
    %6787 = vmatpush1.bf16.msra.mxu0 %v5892
    %6788 = vmatprep.subr.bf16.mxu0 0
    %6789 = vmatpush1.bf16.msra.mxu0 %v5893
    %6790 = vmatprep.subr.bf16.mxu0 0
    %6791 = vmatpush1.bf16.msra.mxu0 %v5894
    %6792 = vmatprep.subr.bf16.mxu0 0
    %6793 = vmatpush1.bf16.msra.mxu0 %v5895
    %6794 = vmatprep.subr.bf16.mxu0 0
    %6795 = vmatpush1.bf16.msra.mxu0 %v5896
    %6796 = vmatprep.subr.bf16.mxu0 0
    %6797 = vmatpush1.bf16.msra.mxu0 %v5897
    %6798 = vmatprep.subr.bf16.mxu0 0
    %6799 = vmatpush1.bf16.msra.mxu0 %v5898
    %6800 = vmatprep.subr.bf16.mxu0 0
    %6801 = vmatpush1.bf16.msra.mxu0 %v5899
    %6802 = vmatprep.subr.bf16.mxu0 0
    %6803 = vmatpush1.bf16.msra.mxu0 %v5900
    %6804 = vmatprep.mubr.bf16.mxu0 %v4101
    %6805 = vmatmul.mubr.bf16.gmra.mrb[0].mxu0 %v4100
    %v6806 = vpop.f32.mrb[0].mxu0
    %v6807 = vadd.f32 %v6766, %v6806
    %v6808 = vpop.f32.mrb[0].mxu0
    %v6809 = vpop.f32.mrb[0].mxu0
    %v6810 = vadd.f32 %v6769, %v6809
    %v6811 = vpop.f32.mrb[0].mxu0
    %6812 = vdwg.mxu0
    %v6813 = vmax.f32 %v6807, 0.0
    %v6814 = vmax.f32 %v6810, 0.0
    %v6815 = vpack.c.bf16 %v6814, %v6813
    %v6817 = vunpack.c.l.b16 %v6815
    %v6818 = vunpack.c.h.b16 %v6815
    %v6819 = vpack.c.b16 %v6817, %v6817
    %v6820 = vpack.c.b16 %v6818, %v6818
    %6823 = vst [vmem:[%s5] sm:$0xf] %v6819
    %6824 = vst [vmem:[%s5 + $0x4] sm:$0xf] %v6820
    // Predicated region
    $region38: #{tfcncap_lstm_forward.2} parent=1 // pred_check
      _
    $region39: #{tfcncap_lstm_forward.2} parent=1 // pred_check_branch
      %6826 = sbr.rel (0) target = $region41
    $region40: #{tfcncap_lstm_forward.2} parent=1 // pred_region
      _
    $region41: #{tfcncap_lstm_forward.2} parent=1 // pred_fallthru
      _
    // Predicated region
    $region42: #{tfcncap_lstm_forward.2} parent=1 // pred_check
      _
    $region43: #{tfcncap_lstm_forward.2} parent=1 // pred_check_branch
      %6828 = sbr.rel (0) target = $region45
    $region44: #{tfcncap_lstm_forward.2} parent=1 // pred_region
      _
    $region45: #{tfcncap_lstm_forward.2} parent=1 // pred_fallthru
      _
    %6829 = vsyncpa [#allocation3], 1
    %6830 = vsyncpa [#allocation5], 1
    %6831 = vsyncpa [#allocation8], 1

</llo_original>
